<compile_context>
chip_gen: v6e
topology: v6e:2x2x1
jax: 0.10.0
libtpu: 0.0.40
codegen_flags: <defaults>
</compile_context>

<pallas_src>
import jax
import jax.numpy as jnp
from jax import lax
from jax.experimental import pallas as pl
from jax.experimental.pallas import tpu as pltpu

# ----------------------- model hyper-parameters (opts) -----------------------
NT = 20                    # len(nonterminals)  (one-hot node feature width)
EMB = 32                   # opts.embedding_dim
SORTK = 12                 # opts.sortk
N_PER = 16                 # nodes per synthetic AST graph (>= SORTK)
N_LC = 10                  # local-context graphs per example (fixed by module)
BATCH = 2

G_PER_EX = 1 + N_LC                       # goal + 10 local-context graphs
G_TOT = BATCH * G_PER_EX                  # 22 graphs per forward
ROWS = G_TOT * N_PER                      # 352 node rows
CONCAT_D = 3 * EMB + 1                    # width of cat([x1,x2,x3,x4]) = 97
CPAD = 128                                # lane-dense padded concat width
KEY_LANE = CONCAT_D - 1                   # sort-key column (conv4 output) = 96
POOL_L = (SORTK - 2) // 2 + 1             # MaxPool1d(2,2) output length = 6
CONV6_L = POOL_L - 5 + 1                  # Conv1d(k=5,s=1) output length = 2
DENSE_DIM = CONV6_L * EMB                 # per-graph embedding size = 64
CLS_IN = G_PER_EX * DENSE_DIM             # classifier_1 input size = 704
GK = G_TOT * SORTK                        # 264 sorted-node rows
GP = G_TOT * POOL_L                       # 132 pooled rows
GL2 = G_TOT * CONV6_L                     # 44 conv6 output rows
EX_ROWS = G_PER_EX * CONV6_L              # 22 conv6 rows per example


# ------------------------------ the fused kernel ------------------------------
def _gast_fused_kernel(x_ref, abd_ref,
                       w1_ref, b1_ref, w2_ref, b2_ref, w3_ref, b3_ref,
                       w4_ref, b4_ref,
                       gcol_ref, grow_ref, gq_ref, kq_ref,
                       w5_ref, b5_ref, esel_ref, osel_ref, ssel_ref,
                       w6_ref, b6_ref, wc1_ref, bc1_ref, wc2_ref, bc2_ref,
                       o_ref):
    f32, bf16 = jnp.float32, jnp.bfloat16

    def mdot(a, b):
        # bf16 operands (MXU native on v6e/v7x), f32 accumulation.
        return jnp.dot(a.astype(bf16), b.astype(bf16), preferred_element_type=f32)

    # ---- 4 GCN layers:  x_l = tanh(A_bd @ (x_{l-1} @ W_l) + b_l) -------------
    # A_bd is the constant block-diagonal normalized adjacency for all 22 graphs,
    # so each layer is exactly two well-shaped MXU matmuls.
    a_bd = abd_ref[...]                                        # [352,352] bf16

    def gcn(h, w_ref, b_ref):
        hw = mdot(h, w_ref[...])                               # [352, 32]
        return jnp.tanh(mdot(a_bd, hw) + b_ref[...])

    x0 = x_ref[...]                                            # [352, NT]
    x1 = gcn(x0, w1_ref, b1_ref)
    x2 = gcn(x1, w2_ref, b2_ref)
    x3 = gcn(x2, w3_ref, b3_ref)
    x4 = gcn(x3, w4_ref, b4_ref)     # col 0 = real conv4 (+bias), cols 1..31 == 0
    xc = jnp.concatenate([x1, x2, x3, x4], axis=-1)            # [352, 128] f32

    # ---- global_sort_pool: top-SORTK nodes per graph by conv4 channel --------
    # Rank each node inside its graph by (key descending, node index ascending);
    # the gather is a single 0/1 selection matmul.  Keys are taken through bf16
    # once so the lane- and sublane-oriented copies compare bit-identically.
    # TODO(synk): tie order / bf16-rounded keys may differ from PyG's sort on
    # exactly-tied f32 keys (tanh saturation); deterministic either way.
    xcb = xc.astype(bf16)
    key_col = xcb[:, KEY_LANE:KEY_LANE + 1].astype(f32)        # [352, 1]
    e_key = (lax.broadcasted_iota(jnp.int32, (1, CPAD), 1) == KEY_LANE).astype(bf16)
    key_row = lax.dot_general(e_key, xcb, (((1,), (1,)), ((), ())),
                              preferred_element_type=f32)      # [1, 352] same values
    ii = lax.broadcasted_iota(jnp.int32, (ROWS, ROWS), 0)      # counted node c2
    jj = lax.broadcasted_iota(jnp.int32, (ROWS, ROWS), 1)      # ranked node c
    same_g = gcol_ref[...] == grow_ref[...]                    # [352, 352]
    ahead = (key_col > key_row) | ((key_col == key_row) & (ii < jj))
    cnt = jnp.where(same_g & ahead, 1.0, 0.0)
    rank = jnp.sum(cnt, axis=0, keepdims=True)                 # [1, 352]
    keep = (gq_ref[...] == grow_ref[...]) & (kq_ref[...] == rank)
    p_sel = jnp.where(keep, 1.0, 0.0)                          # [264, 352] 0/1
    sp = mdot(p_sel, xc)                                       # [264, 128]

    # ---- conv5 -> relu -> MaxPool1d(2,2) -> conv6 -> relu --------------------
    y5 = jnp.maximum(mdot(sp, w5_ref[...]) + b5_ref[...], 0.0)          # [264,16]
    pooled = jnp.maximum(mdot(esel_ref[...], y5),
                         mdot(osel_ref[...], y5))                       # [132,16]
    cols = jnp.concatenate([mdot(ssel_ref[u], pooled) for u in range(5)],
                           axis=-1)                                     # [44, 80]
    y6 = jnp.maximum(mdot(cols, w6_ref[...]) + b6_ref[...], 0.0)        # [44, 32]

    # ---- per-example flatten (classifier_1 weight rows pre-permuted) ---------
    # emb[b, l*32 + o] = y6[b*22 + l, o];  torch's (graph, chan, t) flatten order
    # is folded into Wc1's row permutation on the host.
    pieces = [jnp.concatenate([y6[l:l + 1, :], y6[EX_ROWS + l:EX_ROWS + l + 1, :]],
                              axis=0) for l in range(EX_ROWS)]
    emb = jnp.concatenate(pieces, axis=-1)                              # [2, 704]

    # ---- classifier_1 -> relu -> (dropout = identity) -> classifier_2 --------
    h = jnp.maximum(mdot(emb, wc1_ref[...]) + bc1_ref[...], 0.0)        # [2, 32]
    o_ref[...] = mdot(h, wc2_ref[...]) + bc2_ref[...]                   # [2, 128]


# ------------------------------ kernel wrapper --------------------------------
def fused_forward(kp, c, x_nodes):
    """One pallas_call for the whole forward. Returns padded logits [2, 128]."""
    def spec(a):
        shp = a.shape
        return pl.BlockSpec(shp, lambda i, _n=len(shp): (0,) * _n)

    args = [x_nodes, c["a_bd"],
            kp["w1"], kp["b1"], kp["w2"], kp["b2"], kp["w3"], kp["b3"],
            kp["w4"], kp["b4"],
            c["gidx_col"], c["gidx_row"], c["gq_col"], c["kq_col"],
            kp["w5"], kp["b5"], c["esel"], c["osel"], c["ssel"],
            kp["w6"], kp["b6"], kp["wc1"], kp["bc1"], kp["wc2"], kp["bc2"]]

    return pl.pallas_call(
        _gast_fused_kernel,
        out_shape=jax.ShapeDtypeStruct((BATCH, CPAD), jnp.float32),
        grid=(1,),
        in_specs=[spec(a) for a in args],
        out_specs=pl.BlockSpec((BATCH, CPAD), lambda i: (0, 0)),
        compiler_params=pltpu.CompilerParams(dimension_semantics=("arbitrary",)),
    )(*args)


# ------------------------------- JAX glue -------------------------------------
def gast_lc_forward(kp, consts, x_nodes, targets):
    logits = fused_forward(kp, consts, x_nodes)[:, :10]        # lane-dense out, slice
    logp = jax.nn.log_softmax(logits, axis=-1)
    loss = -jnp.mean(jnp.take_along_axis(logp, targets[:, None], axis=1))
    probs = jax.nn.softmax(logits, axis=-1)
    # TODO(synk): get_lc_pred maps probs back to local-context items; use argmax.
    preds = jnp.argmax(probs, axis=-1)
    return preds, targets, loss


# --------------------------- constants & parameters ---------------------------
def chain_norm_adj(n):
    """Symmetrically normalized (A + I) for one n-node chain graph."""
    idx = jnp.arange(n - 1)
    A = jnp.zeros((n, n), jnp.float32)
    A = A.at[idx, idx + 1].set(1.0).at[idx + 1, idx].set(1.0)
    A = A + jnp.eye(n, dtype=jnp.float32)
    dinv = 1.0 / jnp.sqrt(A.sum(axis=1))
    return A * dinv[:, None] * dinv[None, :]


def build_constants():
    """Block-diag adjacency, 0/1 selection matrices and index vectors."""
    a_hat = chain_norm_adj(N_PER)
    a_bd = jnp.kron(jnp.eye(G_TOT, dtype=jnp.float32), a_hat)          # [352,352]

    r = jnp.arange(GP)
    g, j = r // POOL_L, r % POOL_L
    esel = jnp.zeros((GP, GK), jnp.float32).at[r, g * SORTK + 2 * j].set(1.0)
    osel = jnp.zeros((GP, GK), jnp.float32).at[r, g * SORTK + 2 * j + 1].set(1.0)

    r2 = jnp.arange(GL2)
    g2, t2 = r2 // CONV6_L, r2 % CONV6_L
    ssel = jnp.stack([jnp.zeros((GL2, GP), jnp.float32)
                      .at[r2, g2 * POOL_L + t2 + u].set(1.0) for u in range(5)])

    cidx = jnp.arange(ROWS)
    gidx = (cidx // N_PER).astype(jnp.float32)
    rr = jnp.arange(GK)
    return dict(
        a_bd=a_bd.astype(jnp.bfloat16),
        esel=esel.astype(jnp.bfloat16),
        osel=osel.astype(jnp.bfloat16),
        ssel=ssel.astype(jnp.bfloat16),
        gidx_col=gidx[:, None],                                 # [352, 1]
        gidx_row=gidx[None, :],                                 # [1, 352]
        gq_col=(rr // SORTK).astype(jnp.float32)[:, None],      # [264, 1]
        kq_col=(rr % SORTK).astype(jnp.float32)[:, None],       # [264, 1]
    )


def init_torch_params(key):
    """Synthetic parameters in (torch-like) layer layouts."""
    ks = jax.random.split(key, 14)
    E = EMB

    def w(k, shape, scale=0.1):
        return (scale * jax.random.normal(k, shape)).astype(jnp.float32)

    return dict(
        conv1_w=w(ks[0], (NT, E)),   conv1_b=w(ks[1], (E,), 0.01),
        conv2_w=w(ks[2], (E, E)),    conv2_b=jnp.zeros((E,), jnp.float32),
        conv3_w=w(ks[3], (E, E)),    conv3_b=jnp.zeros((E,), jnp.float32),
        conv4_w=w(ks[4], (E, 1)),    conv4_b=w(ks[5], (1,), 0.01),
        conv5_w=w(ks[6], (E // 2, 1, CONCAT_D)), conv5_b=w(ks[7], (E // 2,), 0.01),
        conv6_w=w(ks[8], (E, E // 2, 5)),        conv6_b=w(ks[9], (E,), 0.01),
        cls1_w=w(ks[10], (CLS_IN, E)), cls1_b=w(ks[11], (E,), 0.01),
        cls2_w=w(ks[12], (E, 10)),     cls2_b=w(ks[13], (10,), 0.01),
    )


def prep_params(tp):
    """Repack torch-layout params into the kernel's matmul layouts (host side)."""
    E, bf16 = EMB, jnp.bfloat16
    p = {}
    p["w1"], p["b1"] = tp["conv1_w"].astype(bf16), tp["conv1_b"].reshape(1, E)
    p["w2"], p["b2"] = tp["conv2_w"].astype(bf16), tp["conv2_b"].reshape(1, E)
    p["w3"], p["b3"] = tp["conv3_w"].astype(bf16), tp["conv3_b"].reshape(1, E)
    # conv4 (E -> 1): zero-pad to E output columns so it lands in xc lane 96;
    # bias goes ONLY into column 0 so xc lanes 97..127 stay exactly zero.
    p["w4"] = jnp.zeros((E, E), jnp.float32).at[:, 0].set(tp["conv4_w"][:, 0]).astype(bf16)
    p["b4"] = jnp.zeros((1, E), jnp.float32).at[0, 0].set(tp["conv4_b"][0])
    # conv5 (Conv1d kernel=stride=97) == per-sorted-node linear, zero-pad to 128.
    W5 = tp["conv5_w"]
    p["w5"] = (jnp.zeros((CPAD, E // 2), jnp.float32)
               .at[:CONCAT_D, :].set(W5[:, 0, :].T)).astype(bf16)
    p["b5"] = tp["conv5_b"].reshape(1, E // 2)
    # conv6 in im2col form: row (u, ch) -> col o.
    p["w6"] = tp["conv6_w"].transpose(2, 1, 0).reshape(5 * (E // 2), E).astype(bf16)
    p["b6"] = tp["conv6_b"].reshape(1, E)
    # classifier_1: permute torch's flatten order (graph j, chan o, t) to the
    # kernel's (graph j, t, chan o) row-major layout of the conv6 output block.
    l = jnp.arange(EX_ROWS)
    o = jnp.arange(E)
    torch_idx = ((l[:, None] // CONV6_L) * DENSE_DIM + o[None, :] * CONV6_L
                 + (l[:, None] % CONV6_L)).reshape(-1)
    p["wc1"] = tp["cls1_w"][torch_idx, :].astype(bf16)
    p["bc1"] = tp["cls1_b"].reshape(1, E)
    # classifier_2 zero-padded to 128 output lanes (lane-dense store).
    p["wc2"] = (jnp.zeros((E, CPAD), jnp.float32).at[:, :10].set(tp["cls2_w"])).astype(bf16)
    p["bc2"] = jnp.zeros((1, CPAD), jnp.float32).at[0, :10].set(tp["cls2_b"])
    return p


# ----------------------------------- main --------------------------------------
if __name__ == "__main__":
    root = jax.random.PRNGKey(0)
    k_nodes, k_tgt, k_par = jax.random.split(root, 3)

    # Synthetic "prep_asts" output: one-hot nonterminal features for every node
    # of every graph, ordered (example, [goal, lc0..lc9], node).
    node_ids = jax.random.randint(k_nodes, (BATCH, G_PER_EX, N_PER), 0, NT)
    x_nodes = jax.nn.one_hot(node_ids, NT, dtype=jnp.float32).reshape(-1, NT)
    targets = jax.random.randint(k_tgt, (BATCH,), 0, 10)       # synthetic labels

    kparams = prep_params(init_torch_params(k_par))
    consts = build_constants()

    fwd = jax.jit(gast_lc_forward)
    preds, trues, loss = fwd(kparams, consts, x_nodes, targets)
    jax.block_until_ready((preds, trues, loss))

    assert preds.shape == (BATCH,)
    assert trues.shape == (BATCH,)
    assert loss.shape == ()
    assert bool(jnp.isfinite(loss))
    print("KERNEL_OK")
</pallas_src>

<mosaic_0001>
module attributes {stable_mosaic.version = 11 : i64} {
  func.func @_gast_fused_kernel(%arg0: i32, %arg1: memref<352x20xf32, #tpu.memory_space<vmem>>, %arg2: memref<352x352xbf16, #tpu.memory_space<vmem>>, %arg3: memref<20x32xbf16, #tpu.memory_space<vmem>>, %arg4: memref<1x32xf32, #tpu.memory_space<vmem>>, %arg5: memref<32x32xbf16, #tpu.memory_space<vmem>>, %arg6: memref<1x32xf32, #tpu.memory_space<vmem>>, %arg7: memref<32x32xbf16, #tpu.memory_space<vmem>>, %arg8: memref<1x32xf32, #tpu.memory_space<vmem>>, %arg9: memref<32x32xbf16, #tpu.memory_space<vmem>>, %arg10: memref<1x32xf32, #tpu.memory_space<vmem>>, %arg11: memref<352x1xf32, #tpu.memory_space<vmem>>, %arg12: memref<1x352xf32, #tpu.memory_space<vmem>>, %arg13: memref<264x1xf32, #tpu.memory_space<vmem>>, %arg14: memref<264x1xf32, #tpu.memory_space<vmem>>, %arg15: memref<128x16xbf16, #tpu.memory_space<vmem>>, %arg16: memref<1x16xf32, #tpu.memory_space<vmem>>, %arg17: memref<132x264xbf16, #tpu.memory_space<vmem>>, %arg18: memref<132x264xbf16, #tpu.memory_space<vmem>>, %arg19: memref<5x44x132xbf16, #tpu.memory_space<vmem>>, %arg20: memref<80x32xbf16, #tpu.memory_space<vmem>>, %arg21: memref<1x32xf32, #tpu.memory_space<vmem>>, %arg22: memref<704x32xbf16, #tpu.memory_space<vmem>>, %arg23: memref<1x32xf32, #tpu.memory_space<vmem>>, %arg24: memref<32x128xbf16, #tpu.memory_space<vmem>>, %arg25: memref<1x128xf32, #tpu.memory_space<vmem>>, %arg26: memref<2x128xf32, #tpu.memory_space<vmem>>) attributes {dimension_semantics = [#tpu.dimension_semantics<arbitrary>], iteration_bounds = array<i64: 1>, scalar_prefetch = 0 : i64, scratch_operands = 0 : i64, tpu.core_type = #tpu.core_type<tc>, window_params = [{pipeline_mode = #tpu.pipeline_mode<synchronous>, transform_indices = @transform_0, window_bounds = array<i64: 352, 20>}, {pipeline_mode = #tpu.pipeline_mode<synchronous>, transform_indices = @transform_1, window_bounds = array<i64: 352, 352>}, {pipeline_mode = #tpu.pipeline_mode<synchronous>, transform_indices = @transform_2, window_bounds = array<i64: 20, 32>}, {pipeline_mode = #tpu.pipeline_mode<synchronous>, transform_indices = @transform_3, window_bounds = array<i64: 1, 32>}, {pipeline_mode = #tpu.pipeline_mode<synchronous>, transform_indices = @transform_4, window_bounds = array<i64: 32, 32>}, {pipeline_mode = #tpu.pipeline_mode<synchronous>, transform_indices = @transform_5, window_bounds = array<i64: 1, 32>}, {pipeline_mode = #tpu.pipeline_mode<synchronous>, transform_indices = @transform_6, window_bounds = array<i64: 32, 32>}, {pipeline_mode = #tpu.pipeline_mode<synchronous>, transform_indices = @transform_7, window_bounds = array<i64: 1, 32>}, {pipeline_mode = #tpu.pipeline_mode<synchronous>, transform_indices = @transform_8, window_bounds = array<i64: 32, 32>}, {pipeline_mode = #tpu.pipeline_mode<synchronous>, transform_indices = @transform_9, window_bounds = array<i64: 1, 32>}, {pipeline_mode = #tpu.pipeline_mode<synchronous>, transform_indices = @transform_10, window_bounds = array<i64: 352, 1>}, {pipeline_mode = #tpu.pipeline_mode<synchronous>, transform_indices = @transform_11, window_bounds = array<i64: 1, 352>}, {pipeline_mode = #tpu.pipeline_mode<synchronous>, transform_indices = @transform_12, window_bounds = array<i64: 264, 1>}, {pipeline_mode = #tpu.pipeline_mode<synchronous>, transform_indices = @transform_13, window_bounds = array<i64: 264, 1>}, {pipeline_mode = #tpu.pipeline_mode<synchronous>, transform_indices = @transform_14, window_bounds = array<i64: 128, 16>}, {pipeline_mode = #tpu.pipeline_mode<synchronous>, transform_indices = @transform_15, window_bounds = array<i64: 1, 16>}, {pipeline_mode = #tpu.pipeline_mode<synchronous>, transform_indices = @transform_16, window_bounds = array<i64: 132, 264>}, {pipeline_mode = #tpu.pipeline_mode<synchronous>, transform_indices = @transform_17, window_bounds = array<i64: 132, 264>}, {pipeline_mode = #tpu.pipeline_mode<synchronous>, transform_indices = @transform_18, window_bounds = array<i64: 5, 44, 132>}, {pipeline_mode = #tpu.pipeline_mode<synchronous>, transform_indices = @transform_19, window_bounds = array<i64: 80, 32>}, {pipeline_mode = #tpu.pipeline_mode<synchronous>, transform_indices = @transform_20, window_bounds = array<i64: 1, 32>}, {pipeline_mode = #tpu.pipeline_mode<synchronous>, transform_indices = @transform_21, window_bounds = array<i64: 704, 32>}, {pipeline_mode = #tpu.pipeline_mode<synchronous>, transform_indices = @transform_22, window_bounds = array<i64: 1, 32>}, {pipeline_mode = #tpu.pipeline_mode<synchronous>, transform_indices = @transform_23, window_bounds = array<i64: 32, 128>}, {pipeline_mode = #tpu.pipeline_mode<synchronous>, transform_indices = @transform_24, window_bounds = array<i64: 1, 128>}, {pipeline_mode = #tpu.pipeline_mode<synchronous>, transform_indices = @transform_25, window_bounds = array<i64: 2, 128>}]} {
    %c0 = arith.constant 0 : index
    %c0_0 = arith.constant 0 : index
    %0 = vector.load %arg2[%c0, %c0_0] : memref<352x352xbf16, #tpu.memory_space<vmem>>, vector<352x352xbf16>
    %c0_1 = arith.constant 0 : index
    %c0_2 = arith.constant 0 : index
    %1 = vector.load %arg1[%c0_1, %c0_2] : memref<352x20xf32, #tpu.memory_space<vmem>>, vector<352x20xf32>
    %c0_3 = arith.constant 0 : index
    %c0_4 = arith.constant 0 : index
    %2 = vector.load %arg3[%c0_3, %c0_4] : memref<20x32xbf16, #tpu.memory_space<vmem>>, vector<20x32xbf16>
    %3 = arith.truncf %1 : vector<352x20xf32> to vector<352x20xbf16>
    %cst = arith.constant dense<0.000000e+00> : vector<352x32xf32>
    %4 = tpu.matmul %3, %2, %cst {dimension_numbers = #tpu.dot_dimension_numbers<[1], [0], [0], [1], [0, 0, 1, 1], [], []>} : vector<352x20xbf16>, vector<20x32xbf16>, vector<352x32xf32> -> vector<352x32xf32>
    %5 = arith.truncf %4 : vector<352x32xf32> to vector<352x32xbf16>
    %cst_5 = arith.constant dense<0.000000e+00> : vector<352x32xf32>
    %6 = tpu.matmul %0, %5, %cst_5 {dimension_numbers = #tpu.dot_dimension_numbers<[1], [0], [0], [1], [0, 0, 1, 1], [], []>} : vector<352x352xbf16>, vector<352x32xbf16>, vector<352x32xf32> -> vector<352x32xf32>
    %c0_6 = arith.constant 0 : index
    %c0_7 = arith.constant 0 : index
    %7 = vector.load %arg4[%c0_6, %c0_7] : memref<1x32xf32, #tpu.memory_space<vmem>>, vector<1x32xf32>
    %8 = vector.broadcast %7 : vector<1x32xf32> to vector<352x32xf32>
    %9 = arith.addf %6, %8 : vector<352x32xf32>
    %10 = math.tanh %9 : vector<352x32xf32>
    %c0_8 = arith.constant 0 : index
    %c0_9 = arith.constant 0 : index
    %11 = vector.load %arg5[%c0_8, %c0_9] : memref<32x32xbf16, #tpu.memory_space<vmem>>, vector<32x32xbf16>
    %12 = arith.truncf %10 : vector<352x32xf32> to vector<352x32xbf16>
    %cst_10 = arith.constant dense<0.000000e+00> : vector<352x32xf32>
    %13 = tpu.matmul %12, %11, %cst_10 {dimension_numbers = #tpu.dot_dimension_numbers<[1], [0], [0], [1], [0, 0, 1, 1], [], []>} : vector<352x32xbf16>, vector<32x32xbf16>, vector<352x32xf32> -> vector<352x32xf32>
    %14 = arith.truncf %13 : vector<352x32xf32> to vector<352x32xbf16>
    %cst_11 = arith.constant dense<0.000000e+00> : vector<352x32xf32>
    %15 = tpu.matmul %0, %14, %cst_11 {dimension_numbers = #tpu.dot_dimension_numbers<[1], [0], [0], [1], [0, 0, 1, 1], [], []>} : vector<352x352xbf16>, vector<352x32xbf16>, vector<352x32xf32> -> vector<352x32xf32>
    %c0_12 = arith.constant 0 : index
    %c0_13 = arith.constant 0 : index
    %16 = vector.load %arg6[%c0_12, %c0_13] : memref<1x32xf32, #tpu.memory_space<vmem>>, vector<1x32xf32>
    %17 = vector.broadcast %16 : vector<1x32xf32> to vector<352x32xf32>
    %18 = arith.addf %15, %17 : vector<352x32xf32>
    %19 = math.tanh %18 : vector<352x32xf32>
    %c0_14 = arith.constant 0 : index
    %c0_15 = arith.constant 0 : index
    %20 = vector.load %arg7[%c0_14, %c0_15] : memref<32x32xbf16, #tpu.memory_space<vmem>>, vector<32x32xbf16>
    %21 = arith.truncf %19 : vector<352x32xf32> to vector<352x32xbf16>
    %cst_16 = arith.constant dense<0.000000e+00> : vector<352x32xf32>
    %22 = tpu.matmul %21, %20, %cst_16 {dimension_numbers = #tpu.dot_dimension_numbers<[1], [0], [0], [1], [0, 0, 1, 1], [], []>} : vector<352x32xbf16>, vector<32x32xbf16>, vector<352x32xf32> -> vector<352x32xf32>
    %23 = arith.truncf %22 : vector<352x32xf32> to vector<352x32xbf16>
    %cst_17 = arith.constant dense<0.000000e+00> : vector<352x32xf32>
    %24 = tpu.matmul %0, %23, %cst_17 {dimension_numbers = #tpu.dot_dimension_numbers<[1], [0], [0], [1], [0, 0, 1, 1], [], []>} : vector<352x352xbf16>, vector<352x32xbf16>, vector<352x32xf32> -> vector<352x32xf32>
    %c0_18 = arith.constant 0 : index
    %c0_19 = arith.constant 0 : index
    %25 = vector.load %arg8[%c0_18, %c0_19] : memref<1x32xf32, #tpu.memory_space<vmem>>, vector<1x32xf32>
    %26 = vector.broadcast %25 : vector<1x32xf32> to vector<352x32xf32>
    %27 = arith.addf %24, %26 : vector<352x32xf32>
    %28 = math.tanh %27 : vector<352x32xf32>
    %c0_20 = arith.constant 0 : index
    %c0_21 = arith.constant 0 : index
    %29 = vector.load %arg9[%c0_20, %c0_21] : memref<32x32xbf16, #tpu.memory_space<vmem>>, vector<32x32xbf16>
    %30 = arith.truncf %28 : vector<352x32xf32> to vector<352x32xbf16>
    %cst_22 = arith.constant dense<0.000000e+00> : vector<352x32xf32>
    %31 = tpu.matmul %30, %29, %cst_22 {dimension_numbers = #tpu.dot_dimension_numbers<[1], [0], [0], [1], [0, 0, 1, 1], [], []>} : vector<352x32xbf16>, vector<32x32xbf16>, vector<352x32xf32> -> vector<352x32xf32>
    %32 = arith.truncf %31 : vector<352x32xf32> to vector<352x32xbf16>
    %cst_23 = arith.constant dense<0.000000e+00> : vector<352x32xf32>
    %33 = tpu.matmul %0, %32, %cst_23 {dimension_numbers = #tpu.dot_dimension_numbers<[1], [0], [0], [1], [0, 0, 1, 1], [], []>} : vector<352x352xbf16>, vector<352x32xbf16>, vector<352x32xf32> -> vector<352x32xf32>
    %c0_24 = arith.constant 0 : index
    %c0_25 = arith.constant 0 : index
    %34 = vector.load %arg10[%c0_24, %c0_25] : memref<1x32xf32, #tpu.memory_space<vmem>>, vector<1x32xf32>
    %35 = vector.broadcast %34 : vector<1x32xf32> to vector<352x32xf32>
    %36 = arith.addf %33, %35 : vector<352x32xf32>
    %37 = math.tanh %36 : vector<352x32xf32>
    %38 = tpu.concatenate %10, %19, %28, %37 in 1 : vector<352x32xf32>, vector<352x32xf32>, vector<352x32xf32>, vector<352x32xf32> -> vector<352x128xf32>
    %39 = arith.truncf %38 : vector<352x128xf32> to vector<352x128xbf16>
    %40 = vector.extract_strided_slice %39 {offsets = [0, 96], sizes = [352, 1], strides = [1, 1]} : vector<352x128xbf16> to vector<352x1xbf16>
    %41 = arith.extf %40 : vector<352x1xbf16> to vector<352x1xf32>
    %42 = tpu.iota {dimensions = array<i32: 1>} : vector<1x128xi32>
    %c96_i32 = arith.constant 96 : i32
    %43 = vector.broadcast %c96_i32 : i32 to vector<1x128xi32>
    %44 = arith.cmpi eq, %42, %43 : vector<1x128xi32>
    %45 = arith.extui %44 : vector<1x128xi1> to vector<1x128xi32>
    %46 = arith.sitofp %45 : vector<1x128xi32> to vector<1x128xf32>
    %47 = arith.truncf %46 : vector<1x128xf32> to vector<1x128xbf16>
    %cst_26 = arith.constant dense<0.000000e+00> : vector<1x352xf32>
    %48 = tpu.matmul %47, %39, %cst_26 {dimension_numbers = #tpu.dot_dimension_numbers<[1], [1], [0], [0], [0, 0, 1, 0], [], []>} : vector<1x128xbf16>, vector<352x128xbf16>, vector<1x352xf32> -> vector<1x352xf32>
    %49 = tpu.iota {dimensions = array<i32: 0>} : vector<352x352xi32>
    %50 = tpu.iota {dimensions = array<i32: 1>} : vector<352x352xi32>
    %c0_27 = arith.constant 0 : index
    %c0_28 = arith.constant 0 : index
    %51 = vector.load %arg11[%c0_27, %c0_28] : memref<352x1xf32, #tpu.memory_space<vmem>>, vector<352x1xf32>
    %c0_29 = arith.constant 0 : index
    %c0_30 = arith.constant 0 : index
    %52 = vector.load %arg12[%c0_29, %c0_30] : memref<1x352xf32, #tpu.memory_space<vmem>>, vector<1x352xf32>
    %53 = vector.broadcast %51 : vector<352x1xf32> to vector<352x352xf32>
    %54 = vector.broadcast %52 : vector<1x352xf32> to vector<352x352xf32>
    %55 = arith.cmpf oeq, %53, %54 : vector<352x352xf32>
    %56 = vector.broadcast %41 : vector<352x1xf32> to vector<352x352xf32>
    %57 = vector.broadcast %48 : vector<1x352xf32> to vector<352x352xf32>
    %58 = arith.cmpf ogt, %56, %57 : vector<352x352xf32>
    %59 = vector.broadcast %41 : vector<352x1xf32> to vector<352x352xf32>
    %60 = vector.broadcast %48 : vector<1x352xf32> to vector<352x352xf32>
    %61 = arith.cmpf oeq, %59, %60 : vector<352x352xf32>
    %62 = arith.cmpi slt, %49, %50 : vector<352x352xi32>
    %63 = arith.andi %61, %62 : vector<352x352xi1>
    %64 = arith.ori %58, %63 : vector<352x352xi1>
    %65 = arith.andi %55, %64 : vector<352x352xi1>
    %cst_31 = arith.constant 1.000000e+00 : f32
    %cst_32 = arith.constant 0.000000e+00 : f32
    %66 = vector.broadcast %cst_31 : f32 to vector<352x352xf32>
    %67 = vector.broadcast %cst_32 : f32 to vector<352x352xf32>
    %68 = arith.select %65, %66, %67 : vector<352x352xi1>, vector<352x352xf32>
    %cst_33 = arith.constant dense<0.000000e+00> : vector<352xf32>
    %69 = vector.multi_reduction <add>, %68, %cst_33 [0] : vector<352x352xf32> to vector<352xf32>
    %70 = vector.shape_cast %69 : vector<352xf32> to vector<1x352xf32>
    %c0_34 = arith.constant 0 : index
    %c0_35 = arith.constant 0 : index
    %71 = vector.load %arg13[%c0_34, %c0_35] : memref<264x1xf32, #tpu.memory_space<vmem>>, vector<264x1xf32>
    %c0_36 = arith.constant 0 : index
    %c0_37 = arith.constant 0 : index
    %72 = vector.load %arg12[%c0_36, %c0_37] : memref<1x352xf32, #tpu.memory_space<vmem>>, vector<1x352xf32>
    %73 = vector.broadcast %71 : vector<264x1xf32> to vector<264x352xf32>
    %74 = vector.broadcast %72 : vector<1x352xf32> to vector<264x352xf32>
    %75 = arith.cmpf oeq, %73, %74 : vector<264x352xf32>
    %c0_38 = arith.constant 0 : index
    %c0_39 = arith.constant 0 : index
    %76 = vector.load %arg14[%c0_38, %c0_39] : memref<264x1xf32, #tpu.memory_space<vmem>>, vector<264x1xf32>
    %77 = vector.broadcast %76 : vector<264x1xf32> to vector<264x352xf32>
    %78 = vector.broadcast %70 : vector<1x352xf32> to vector<264x352xf32>
    %79 = arith.cmpf oeq, %77, %78 : vector<264x352xf32>
    %80 = arith.andi %75, %79 : vector<264x352xi1>
    %cst_40 = arith.constant 1.000000e+00 : f32
    %cst_41 = arith.constant 0.000000e+00 : f32
    %81 = vector.broadcast %cst_40 : f32 to vector<264x352xf32>
    %82 = vector.broadcast %cst_41 : f32 to vector<264x352xf32>
    %83 = arith.select %80, %81, %82 : vector<264x352xi1>, vector<264x352xf32>
    %84 = arith.truncf %83 : vector<264x352xf32> to vector<264x352xbf16>
    %85 = arith.truncf %38 : vector<352x128xf32> to vector<352x128xbf16>
    %cst_42 = arith.constant dense<0.000000e+00> : vector<264x128xf32>
    %86 = tpu.matmul %84, %85, %cst_42 {dimension_numbers = #tpu.dot_dimension_numbers<[1], [0], [0], [1], [0, 0, 1, 1], [], []>} : vector<264x352xbf16>, vector<352x128xbf16>, vector<264x128xf32> -> vector<264x128xf32>
    %c0_43 = arith.constant 0 : index
    %c0_44 = arith.constant 0 : index
    %87 = vector.load %arg15[%c0_43, %c0_44] : memref<128x16xbf16, #tpu.memory_space<vmem>>, vector<128x16xbf16>
    %88 = arith.truncf %86 : vector<264x128xf32> to vector<264x128xbf16>
    %cst_45 = arith.constant dense<0.000000e+00> : vector<264x16xf32>
    %89 = tpu.matmul %88, %87, %cst_45 {dimension_numbers = #tpu.dot_dimension_numbers<[1], [0], [0], [1], [0, 0, 1, 1], [], []>} : vector<264x128xbf16>, vector<128x16xbf16>, vector<264x16xf32> -> vector<264x16xf32>
    %c0_46 = arith.constant 0 : index
    %c0_47 = arith.constant 0 : index
    %90 = vector.load %arg16[%c0_46, %c0_47] : memref<1x16xf32, #tpu.memory_space<vmem>>, vector<1x16xf32>
    %91 = vector.broadcast %90 : vector<1x16xf32> to vector<264x16xf32>
    %92 = arith.addf %89, %91 : vector<264x16xf32>
    %cst_48 = arith.constant 0.000000e+00 : f32
    %93 = vector.broadcast %cst_48 : f32 to vector<264x16xf32>
    %94 = arith.maximumf %92, %93 : vector<264x16xf32>
    %c0_49 = arith.constant 0 : index
    %c0_50 = arith.constant 0 : index
    %95 = vector.load %arg17[%c0_49, %c0_50] : memref<132x264xbf16, #tpu.memory_space<vmem>>, vector<132x264xbf16>
    %96 = arith.truncf %94 : vector<264x16xf32> to vector<264x16xbf16>
    %cst_51 = arith.constant dense<0.000000e+00> : vector<132x16xf32>
    %97 = tpu.matmul %95, %96, %cst_51 {dimension_numbers = #tpu.dot_dimension_numbers<[1], [0], [0], [1], [0, 0, 1, 1], [], []>} : vector<132x264xbf16>, vector<264x16xbf16>, vector<132x16xf32> -> vector<132x16xf32>
    %c0_52 = arith.constant 0 : index
    %c0_53 = arith.constant 0 : index
    %98 = vector.load %arg18[%c0_52, %c0_53] : memref<132x264xbf16, #tpu.memory_space<vmem>>, vector<132x264xbf16>
    %99 = arith.truncf %94 : vector<264x16xf32> to vector<264x16xbf16>
    %cst_54 = arith.constant dense<0.000000e+00> : vector<132x16xf32>
    %100 = tpu.matmul %98, %99, %cst_54 {dimension_numbers = #tpu.dot_dimension_numbers<[1], [0], [0], [1], [0, 0, 1, 1], [], []>} : vector<132x264xbf16>, vector<264x16xbf16>, vector<132x16xf32> -> vector<132x16xf32>
    %101 = arith.maximumf %97, %100 : vector<132x16xf32>
    %c0_55 = arith.constant 0 : index
    %c0_56 = arith.constant 0 : index
    %c0_57 = arith.constant 0 : index
    %102 = vector.load %arg19[%c0_55, %c0_56, %c0_57] : memref<5x44x132xbf16, #tpu.memory_space<vmem>>, vector<1x44x132xbf16>
    %103 = vector.shape_cast %102 : vector<1x44x132xbf16> to vector<44x132xbf16>
    %104 = arith.truncf %101 : vector<132x16xf32> to vector<132x16xbf16>
    %cst_58 = arith.constant dense<0.000000e+00> : vector<44x16xf32>
    %105 = tpu.matmul %103, %104, %cst_58 {dimension_numbers = #tpu.dot_dimension_numbers<[1], [0], [0], [1], [0, 0, 1, 1], [], []>} : vector<44x132xbf16>, vector<132x16xbf16>, vector<44x16xf32> -> vector<44x16xf32>
    %c1 = arith.constant 1 : index
    %c0_59 = arith.constant 0 : index
    %c0_60 = arith.constant 0 : index
    %106 = vector.load %arg19[%c1, %c0_59, %c0_60] : memref<5x44x132xbf16, #tpu.memory_space<vmem>>, vector<1x44x132xbf16>
    %107 = vector.shape_cast %106 : vector<1x44x132xbf16> to vector<44x132xbf16>
    %108 = arith.truncf %101 : vector<132x16xf32> to vector<132x16xbf16>
    %cst_61 = arith.constant dense<0.000000e+00> : vector<44x16xf32>
    %109 = tpu.matmul %107, %108, %cst_61 {dimension_numbers = #tpu.dot_dimension_numbers<[1], [0], [0], [1], [0, 0, 1, 1], [], []>} : vector<44x132xbf16>, vector<132x16xbf16>, vector<44x16xf32> -> vector<44x16xf32>
    %c2 = arith.constant 2 : index
    %c0_62 = arith.constant 0 : index
    %c0_63 = arith.constant 0 : index
    %110 = vector.load %arg19[%c2, %c0_62, %c0_63] : memref<5x44x132xbf16, #tpu.memory_space<vmem>>, vector<1x44x132xbf16>
    %111 = vector.shape_cast %110 : vector<1x44x132xbf16> to vector<44x132xbf16>
    %112 = arith.truncf %101 : vector<132x16xf32> to vector<132x16xbf16>
    %cst_64 = arith.constant dense<0.000000e+00> : vector<44x16xf32>
    %113 = tpu.matmul %111, %112, %cst_64 {dimension_numbers = #tpu.dot_dimension_numbers<[1], [0], [0], [1], [0, 0, 1, 1], [], []>} : vector<44x132xbf16>, vector<132x16xbf16>, vector<44x16xf32> -> vector<44x16xf32>
    %c3 = arith.constant 3 : index
    %c0_65 = arith.constant 0 : index
    %c0_66 = arith.constant 0 : index
    %114 = vector.load %arg19[%c3, %c0_65, %c0_66] : memref<5x44x132xbf16, #tpu.memory_space<vmem>>, vector<1x44x132xbf16>
    %115 = vector.shape_cast %114 : vector<1x44x132xbf16> to vector<44x132xbf16>
    %116 = arith.truncf %101 : vector<132x16xf32> to vector<132x16xbf16>
    %cst_67 = arith.constant dense<0.000000e+00> : vector<44x16xf32>
    %117 = tpu.matmul %115, %116, %cst_67 {dimension_numbers = #tpu.dot_dimension_numbers<[1], [0], [0], [1], [0, 0, 1, 1], [], []>} : vector<44x132xbf16>, vector<132x16xbf16>, vector<44x16xf32> -> vector<44x16xf32>
    %c4 = arith.constant 4 : index
    %c0_68 = arith.constant 0 : index
    %c0_69 = arith.constant 0 : index
    %118 = vector.load %arg19[%c4, %c0_68, %c0_69] : memref<5x44x132xbf16, #tpu.memory_space<vmem>>, vector<1x44x132xbf16>
    %119 = vector.shape_cast %118 : vector<1x44x132xbf16> to vector<44x132xbf16>
    %120 = arith.truncf %101 : vector<132x16xf32> to vector<132x16xbf16>
    %cst_70 = arith.constant dense<0.000000e+00> : vector<44x16xf32>
    %121 = tpu.matmul %119, %120, %cst_70 {dimension_numbers = #tpu.dot_dimension_numbers<[1], [0], [0], [1], [0, 0, 1, 1], [], []>} : vector<44x132xbf16>, vector<132x16xbf16>, vector<44x16xf32> -> vector<44x16xf32>
    %122 = tpu.concatenate %105, %109, %113, %117, %121 in 1 : vector<44x16xf32>, vector<44x16xf32>, vector<44x16xf32>, vector<44x16xf32>, vector<44x16xf32> -> vector<44x80xf32>
    %c0_71 = arith.constant 0 : index
    %c0_72 = arith.constant 0 : index
    %123 = vector.load %arg20[%c0_71, %c0_72] : memref<80x32xbf16, #tpu.memory_space<vmem>>, vector<80x32xbf16>
    %124 = arith.truncf %122 : vector<44x80xf32> to vector<44x80xbf16>
    %cst_73 = arith.constant dense<0.000000e+00> : vector<44x32xf32>
    %125 = tpu.matmul %124, %123, %cst_73 {dimension_numbers = #tpu.dot_dimension_numbers<[1], [0], [0], [1], [0, 0, 1, 1], [], []>} : vector<44x80xbf16>, vector<80x32xbf16>, vector<44x32xf32> -> vector<44x32xf32>
    %c0_74 = arith.constant 0 : index
    %c0_75 = arith.constant 0 : index
    %126 = vector.load %arg21[%c0_74, %c0_75] : memref<1x32xf32, #tpu.memory_space<vmem>>, vector<1x32xf32>
    %127 = vector.broadcast %126 : vector<1x32xf32> to vector<44x32xf32>
    %128 = arith.addf %125, %127 : vector<44x32xf32>
    %cst_76 = arith.constant 0.000000e+00 : f32
    %129 = vector.broadcast %cst_76 : f32 to vector<44x32xf32>
    %130 = arith.maximumf %128, %129 : vector<44x32xf32>
    %131 = vector.extract_strided_slice %130 {offsets = [0, 0], sizes = [1, 32], strides = [1, 1]} : vector<44x32xf32> to vector<1x32xf32>
    %132 = vector.extract_strided_slice %130 {offsets = [22, 0], sizes = [1, 32], strides = [1, 1]} : vector<44x32xf32> to vector<1x32xf32>
    %133 = tpu.concatenate %131, %132 in 0 : vector<1x32xf32>, vector<1x32xf32> -> vector<2x32xf32>
    %134 = vector.extract_strided_slice %130 {offsets = [1, 0], sizes = [1, 32], strides = [1, 1]} : vector<44x32xf32> to vector<1x32xf32>
    %135 = vector.extract_strided_slice %130 {offsets = [23, 0], sizes = [1, 32], strides = [1, 1]} : vector<44x32xf32> to vector<1x32xf32>
    %136 = tpu.concatenate %134, %135 in 0 : vector<1x32xf32>, vector<1x32xf32> -> vector<2x32xf32>
    %137 = vector.extract_strided_slice %130 {offsets = [2, 0], sizes = [1, 32], strides = [1, 1]} : vector<44x32xf32> to vector<1x32xf32>
    %138 = vector.extract_strided_slice %130 {offsets = [24, 0], sizes = [1, 32], strides = [1, 1]} : vector<44x32xf32> to vector<1x32xf32>
    %139 = tpu.concatenate %137, %138 in 0 : vector<1x32xf32>, vector<1x32xf32> -> vector<2x32xf32>
    %140 = vector.extract_strided_slice %130 {offsets = [3, 0], sizes = [1, 32], strides = [1, 1]} : vector<44x32xf32> to vector<1x32xf32>
    %141 = vector.extract_strided_slice %130 {offsets = [25, 0], sizes = [1, 32], strides = [1, 1]} : vector<44x32xf32> to vector<1x32xf32>
    %142 = tpu.concatenate %140, %141 in 0 : vector<1x32xf32>, vector<1x32xf32> -> vector<2x32xf32>
    %143 = vector.extract_strided_slice %130 {offsets = [4, 0], sizes = [1, 32], strides = [1, 1]} : vector<44x32xf32> to vector<1x32xf32>
    %144 = vector.extract_strided_slice %130 {offsets = [26, 0], sizes = [1, 32], strides = [1, 1]} : vector<44x32xf32> to vector<1x32xf32>
    %145 = tpu.concatenate %143, %144 in 0 : vector<1x32xf32>, vector<1x32xf32> -> vector<2x32xf32>
    %146 = vector.extract_strided_slice %130 {offsets = [5, 0], sizes = [1, 32], strides = [1, 1]} : vector<44x32xf32> to vector<1x32xf32>
    %147 = vector.extract_strided_slice %130 {offsets = [27, 0], sizes = [1, 32], strides = [1, 1]} : vector<44x32xf32> to vector<1x32xf32>
    %148 = tpu.concatenate %146, %147 in 0 : vector<1x32xf32>, vector<1x32xf32> -> vector<2x32xf32>
    %149 = vector.extract_strided_slice %130 {offsets = [6, 0], sizes = [1, 32], strides = [1, 1]} : vector<44x32xf32> to vector<1x32xf32>
    %150 = vector.extract_strided_slice %130 {offsets = [28, 0], sizes = [1, 32], strides = [1, 1]} : vector<44x32xf32> to vector<1x32xf32>
    %151 = tpu.concatenate %149, %150 in 0 : vector<1x32xf32>, vector<1x32xf32> -> vector<2x32xf32>
    %152 = vector.extract_strided_slice %130 {offsets = [7, 0], sizes = [1, 32], strides = [1, 1]} : vector<44x32xf32> to vector<1x32xf32>
    %153 = vector.extract_strided_slice %130 {offsets = [29, 0], sizes = [1, 32], strides = [1, 1]} : vector<44x32xf32> to vector<1x32xf32>
    %154 = tpu.concatenate %152, %153 in 0 : vector<1x32xf32>, vector<1x32xf32> -> vector<2x32xf32>
    %155 = vector.extract_strided_slice %130 {offsets = [8, 0], sizes = [1, 32], strides = [1, 1]} : vector<44x32xf32> to vector<1x32xf32>
    %156 = vector.extract_strided_slice %130 {offsets = [30, 0], sizes = [1, 32], strides = [1, 1]} : vector<44x32xf32> to vector<1x32xf32>
    %157 = tpu.concatenate %155, %156 in 0 : vector<1x32xf32>, vector<1x32xf32> -> vector<2x32xf32>
    %158 = vector.extract_strided_slice %130 {offsets = [9, 0], sizes = [1, 32], strides = [1, 1]} : vector<44x32xf32> to vector<1x32xf32>
    %159 = vector.extract_strided_slice %130 {offsets = [31, 0], sizes = [1, 32], strides = [1, 1]} : vector<44x32xf32> to vector<1x32xf32>
    %160 = tpu.concatenate %158, %159 in 0 : vector<1x32xf32>, vector<1x32xf32> -> vector<2x32xf32>
    %161 = vector.extract_strided_slice %130 {offsets = [10, 0], sizes = [1, 32], strides = [1, 1]} : vector<44x32xf32> to vector<1x32xf32>
    %162 = vector.extract_strided_slice %130 {offsets = [32, 0], sizes = [1, 32], strides = [1, 1]} : vector<44x32xf32> to vector<1x32xf32>
    %163 = tpu.concatenate %161, %162 in 0 : vector<1x32xf32>, vector<1x32xf32> -> vector<2x32xf32>
    %164 = vector.extract_strided_slice %130 {offsets = [11, 0], sizes = [1, 32], strides = [1, 1]} : vector<44x32xf32> to vector<1x32xf32>
    %165 = vector.extract_strided_slice %130 {offsets = [33, 0], sizes = [1, 32], strides = [1, 1]} : vector<44x32xf32> to vector<1x32xf32>
    %166 = tpu.concatenate %164, %165 in 0 : vector<1x32xf32>, vector<1x32xf32> -> vector<2x32xf32>
    %167 = vector.extract_strided_slice %130 {offsets = [12, 0], sizes = [1, 32], strides = [1, 1]} : vector<44x32xf32> to vector<1x32xf32>
    %168 = vector.extract_strided_slice %130 {offsets = [34, 0], sizes = [1, 32], strides = [1, 1]} : vector<44x32xf32> to vector<1x32xf32>
    %169 = tpu.concatenate %167, %168 in 0 : vector<1x32xf32>, vector<1x32xf32> -> vector<2x32xf32>
    %170 = vector.extract_strided_slice %130 {offsets = [13, 0], sizes = [1, 32], strides = [1, 1]} : vector<44x32xf32> to vector<1x32xf32>
    %171 = vector.extract_strided_slice %130 {offsets = [35, 0], sizes = [1, 32], strides = [1, 1]} : vector<44x32xf32> to vector<1x32xf32>
    %172 = tpu.concatenate %170, %171 in 0 : vector<1x32xf32>, vector<1x32xf32> -> vector<2x32xf32>
    %173 = vector.extract_strided_slice %130 {offsets = [14, 0], sizes = [1, 32], strides = [1, 1]} : vector<44x32xf32> to vector<1x32xf32>
    %174 = vector.extract_strided_slice %130 {offsets = [36, 0], sizes = [1, 32], strides = [1, 1]} : vector<44x32xf32> to vector<1x32xf32>
    %175 = tpu.concatenate %173, %174 in 0 : vector<1x32xf32>, vector<1x32xf32> -> vector<2x32xf32>
    %176 = vector.extract_strided_slice %130 {offsets = [15, 0], sizes = [1, 32], strides = [1, 1]} : vector<44x32xf32> to vector<1x32xf32>
    %177 = vector.extract_strided_slice %130 {offsets = [37, 0], sizes = [1, 32], strides = [1, 1]} : vector<44x32xf32> to vector<1x32xf32>
    %178 = tpu.concatenate %176, %177 in 0 : vector<1x32xf32>, vector<1x32xf32> -> vector<2x32xf32>
    %179 = vector.extract_strided_slice %130 {offsets = [16, 0], sizes = [1, 32], strides = [1, 1]} : vector<44x32xf32> to vector<1x32xf32>
    %180 = vector.extract_strided_slice %130 {offsets = [38, 0], sizes = [1, 32], strides = [1, 1]} : vector<44x32xf32> to vector<1x32xf32>
    %181 = tpu.concatenate %179, %180 in 0 : vector<1x32xf32>, vector<1x32xf32> -> vector<2x32xf32>
    %182 = vector.extract_strided_slice %130 {offsets = [17, 0], sizes = [1, 32], strides = [1, 1]} : vector<44x32xf32> to vector<1x32xf32>
    %183 = vector.extract_strided_slice %130 {offsets = [39, 0], sizes = [1, 32], strides = [1, 1]} : vector<44x32xf32> to vector<1x32xf32>
    %184 = tpu.concatenate %182, %183 in 0 : vector<1x32xf32>, vector<1x32xf32> -> vector<2x32xf32>
    %185 = vector.extract_strided_slice %130 {offsets = [18, 0], sizes = [1, 32], strides = [1, 1]} : vector<44x32xf32> to vector<1x32xf32>
    %186 = vector.extract_strided_slice %130 {offsets = [40, 0], sizes = [1, 32], strides = [1, 1]} : vector<44x32xf32> to vector<1x32xf32>
    %187 = tpu.concatenate %185, %186 in 0 : vector<1x32xf32>, vector<1x32xf32> -> vector<2x32xf32>
    %188 = vector.extract_strided_slice %130 {offsets = [19, 0], sizes = [1, 32], strides = [1, 1]} : vector<44x32xf32> to vector<1x32xf32>
    %189 = vector.extract_strided_slice %130 {offsets = [41, 0], sizes = [1, 32], strides = [1, 1]} : vector<44x32xf32> to vector<1x32xf32>
    %190 = tpu.concatenate %188, %189 in 0 : vector<1x32xf32>, vector<1x32xf32> -> vector<2x32xf32>
    %191 = vector.extract_strided_slice %130 {offsets = [20, 0], sizes = [1, 32], strides = [1, 1]} : vector<44x32xf32> to vector<1x32xf32>
    %192 = vector.extract_strided_slice %130 {offsets = [42, 0], sizes = [1, 32], strides = [1, 1]} : vector<44x32xf32> to vector<1x32xf32>
    %193 = tpu.concatenate %191, %192 in 0 : vector<1x32xf32>, vector<1x32xf32> -> vector<2x32xf32>
    %194 = vector.extract_strided_slice %130 {offsets = [21, 0], sizes = [1, 32], strides = [1, 1]} : vector<44x32xf32> to vector<1x32xf32>
    %195 = vector.extract_strided_slice %130 {offsets = [43, 0], sizes = [1, 32], strides = [1, 1]} : vector<44x32xf32> to vector<1x32xf32>
    %196 = tpu.concatenate %194, %195 in 0 : vector<1x32xf32>, vector<1x32xf32> -> vector<2x32xf32>
    %197 = tpu.concatenate %133, %136, %139, %142, %145, %148, %151, %154, %157, %160, %163, %166, %169, %172, %175, %178 in 1 : vector<2x32xf32>, vector<2x32xf32>, vector<2x32xf32>, vector<2x32xf32>, vector<2x32xf32>, vector<2x32xf32>, vector<2x32xf32>, vector<2x32xf32>, vector<2x32xf32>, vector<2x32xf32>, vector<2x32xf32>, vector<2x32xf32>, vector<2x32xf32>, vector<2x32xf32>, vector<2x32xf32>, vector<2x32xf32> -> vector<2x512xf32>
    %198 = tpu.concatenate %181, %184, %187, %190, %193, %196 in 1 : vector<2x32xf32>, vector<2x32xf32>, vector<2x32xf32>, vector<2x32xf32>, vector<2x32xf32>, vector<2x32xf32> -> vector<2x192xf32>
    %199 = tpu.concatenate %197, %198 in 1 : vector<2x512xf32>, vector<2x192xf32> -> vector<2x704xf32>
    %c0_77 = arith.constant 0 : index
    %c0_78 = arith.constant 0 : index
    %200 = vector.load %arg22[%c0_77, %c0_78] : memref<704x32xbf16, #tpu.memory_space<vmem>>, vector<704x32xbf16>
    %201 = arith.truncf %199 : vector<2x704xf32> to vector<2x704xbf16>
    %cst_79 = arith.constant dense<0.000000e+00> : vector<2x32xf32>
    %202 = tpu.matmul %201, %200, %cst_79 {dimension_numbers = #tpu.dot_dimension_numbers<[1], [0], [0], [1], [0, 0, 1, 1], [], []>} : vector<2x704xbf16>, vector<704x32xbf16>, vector<2x32xf32> -> vector<2x32xf32>
    %c0_80 = arith.constant 0 : index
    %c0_81 = arith.constant 0 : index
    %203 = vector.load %arg23[%c0_80, %c0_81] : memref<1x32xf32, #tpu.memory_space<vmem>>, vector<1x32xf32>
    %204 = vector.broadcast %203 : vector<1x32xf32> to vector<2x32xf32>
    %205 = arith.addf %202, %204 : vector<2x32xf32>
    %cst_82 = arith.constant 0.000000e+00 : f32
    %206 = vector.broadcast %cst_82 : f32 to vector<2x32xf32>
    %207 = arith.maximumf %205, %206 : vector<2x32xf32>
    %c0_83 = arith.constant 0 : index
    %c0_84 = arith.constant 0 : index
    %208 = vector.load %arg24[%c0_83, %c0_84] : memref<32x128xbf16, #tpu.memory_space<vmem>>, vector<32x128xbf16>
    %209 = arith.truncf %207 : vector<2x32xf32> to vector<2x32xbf16>
    %cst_85 = arith.constant dense<0.000000e+00> : vector<2x128xf32>
    %210 = tpu.matmul %209, %208, %cst_85 {dimension_numbers = #tpu.dot_dimension_numbers<[1], [0], [0], [1], [0, 0, 1, 1], [], []>} : vector<2x32xbf16>, vector<32x128xbf16>, vector<2x128xf32> -> vector<2x128xf32>
    %c0_86 = arith.constant 0 : index
    %c0_87 = arith.constant 0 : index
    %211 = vector.load %arg25[%c0_86, %c0_87] : memref<1x128xf32, #tpu.memory_space<vmem>>, vector<1x128xf32>
    %212 = vector.broadcast %211 : vector<1x128xf32> to vector<2x128xf32>
    %213 = arith.addf %210, %212 : vector<2x128xf32>
    %c0_88 = arith.constant 0 : index
    %c0_89 = arith.constant 0 : index
    %214 = vector.load %arg26[%c0_88, %c0_89] : memref<2x128xf32, #tpu.memory_space<vmem>>, vector<2x128xf32>
    tpu.vector_store %arg26[%c0_88, %c0_89], %213 {strides = array<i32>} : memref<2x128xf32, #tpu.memory_space<vmem>>, vector<2x128xf32>,
    return
  }
  func.func @transform_0(%arg0: i32) -> (i32, i32) {
    %c0_i32 = arith.constant 0 : i32
    %c0_i32_0 = arith.constant 0 : i32
    %c0_i32_1 = arith.constant 0 : i32
    return %c0_i32, %c0_i32_0 : i32, i32
  }
  func.func @transform_1(%arg0: i32) -> (i32, i32) {
    %c0_i32 = arith.constant 0 : i32
    %c0_i32_0 = arith.constant 0 : i32
    %c0_i32_1 = arith.constant 0 : i32
    return %c0_i32, %c0_i32_0 : i32, i32
  }
  func.func @transform_2(%arg0: i32) -> (i32, i32) {
    %c0_i32 = arith.constant 0 : i32
    %c0_i32_0 = arith.constant 0 : i32
    %c0_i32_1 = arith.constant 0 : i32
    return %c0_i32, %c0_i32_0 : i32, i32
  }
  func.func @transform_3(%arg0: i32) -> (i32, i32) {
    %c0_i32 = arith.constant 0 : i32
    %c0_i32_0 = arith.constant 0 : i32
    %c0_i32_1 = arith.constant 0 : i32
    return %c0_i32, %c0_i32_0 : i32, i32
  }
  func.func @transform_4(%arg0: i32) -> (i32, i32) {
    %c0_i32 = arith.constant 0 : i32
    %c0_i32_0 = arith.constant 0 : i32
    %c0_i32_1 = arith.constant 0 : i32
    return %c0_i32, %c0_i32_0 : i32, i32
  }
  func.func @transform_5(%arg0: i32) -> (i32, i32) {
    %c0_i32 = arith.constant 0 : i32
    %c0_i32_0 = arith.constant 0 : i32
    %c0_i32_1 = arith.constant 0 : i32
    return %c0_i32, %c0_i32_0 : i32, i32
  }
  func.func @transform_6(%arg0: i32) -> (i32, i32) {
    %c0_i32 = arith.constant 0 : i32
    %c0_i32_0 = arith.constant 0 : i32
    %c0_i32_1 = arith.constant 0 : i32
    return %c0_i32, %c0_i32_0 : i32, i32
  }
  func.func @transform_7(%arg0: i32) -> (i32, i32) {
    %c0_i32 = arith.constant 0 : i32
    %c0_i32_0 = arith.constant 0 : i32
    %c0_i32_1 = arith.constant 0 : i32
    return %c0_i32, %c0_i32_0 : i32, i32
  }
  func.func @transform_8(%arg0: i32) -> (i32, i32) {
    %c0_i32 = arith.constant 0 : i32
    %c0_i32_0 = arith.constant 0 : i32
    %c0_i32_1 = arith.constant 0 : i32
    return %c0_i32, %c0_i32_0 : i32, i32
  }
  func.func @transform_9(%arg0: i32) -> (i32, i32) {
    %c0_i32 = arith.constant 0 : i32
    %c0_i32_0 = arith.constant 0 : i32
    %c0_i32_1 = arith.constant 0 : i32
    return %c0_i32, %c0_i32_0 : i32, i32
  }
  func.func @transform_10(%arg0: i32) -> (i32, i32) {
    %c0_i32 = arith.constant 0 : i32
    %c0_i32_0 = arith.constant 0 : i32
    %c0_i32_1 = arith.constant 0 : i32
    return %c0_i32, %c0_i32_0 : i32, i32
  }
  func.func @transform_11(%arg0: i32) -> (i32, i32) {
    %c0_i32 = arith.constant 0 : i32
    %c0_i32_0 = arith.constant 0 : i32
    %c0_i32_1 = arith.constant 0 : i32
    return %c0_i32, %c0_i32_0 : i32, i32
  }
  func.func @transform_12(%arg0: i32) -> (i32, i32) {
    %c0_i32 = arith.constant 0 : i32
    %c0_i32_0 = arith.constant 0 : i32
    %c0_i32_1 = arith.constant 0 : i32
    return %c0_i32, %c0_i32_0 : i32, i32
  }
  func.func @transform_13(%arg0: i32) -> (i32, i32) {
    %c0_i32 = arith.constant 0 : i32
    %c0_i32_0 = arith.constant 0 : i32
    %c0_i32_1 = arith.constant 0 : i32
    return %c0_i32, %c0_i32_0 : i32, i32
  }
  func.func @transform_14(%arg0: i32) -> (i32, i32) {
    %c0_i32 = arith.constant 0 : i32
    %c0_i32_0 = arith.constant 0 : i32
    %c0_i32_1 = arith.constant 0 : i32
    return %c0_i32, %c0_i32_0 : i32, i32
  }
  func.func @transform_15(%arg0: i32) -> (i32, i32) {
    %c0_i32 = arith.constant 0 : i32
    %c0_i32_0 = arith.constant 0 : i32
    %c0_i32_1 = arith.constant 0 : i32
    return %c0_i32, %c0_i32_0 : i32, i32
  }
  func.func @transform_16(%arg0: i32) -> (i32, i32) {
    %c0_i32 = arith.constant 0 : i32
    %c0_i32_0 = arith.constant 0 : i32
    %c0_i32_1 = arith.constant 0 : i32
    return %c0_i32, %c0_i32_0 : i32, i32
  }
  func.func @transform_17(%arg0: i32) -> (i32, i32) {
    %c0_i32 = arith.constant 0 : i32
    %c0_i32_0 = arith.constant 0 : i32
    %c0_i32_1 = arith.constant 0 : i32
    return %c0_i32, %c0_i32_0 : i32, i32
  }
  func.func @transform_18(%arg0: i32) -> (i32, i32, i32) {
    %c0_i32 = arith.constant 0 : i32
    %c0_i32_0 = arith.constant 0 : i32
    %c0_i32_1 = arith.constant 0 : i32
    %c0_i32_2 = arith.constant 0 : i32
    return %c0_i32, %c0_i32_0, %c0_i32_1 : i32, i32, i32
  }
  func.func @transform_19(%arg0: i32) -> (i32, i32) {
    %c0_i32 = arith.constant 0 : i32
    %c0_i32_0 = arith.constant 0 : i32
    %c0_i32_1 = arith.constant 0 : i32
    return %c0_i32, %c0_i32_0 : i32, i32
  }
  func.func @transform_20(%arg0: i32) -> (i32, i32) {
    %c0_i32 = arith.constant 0 : i32
    %c0_i32_0 = arith.constant 0 : i32
    %c0_i32_1 = arith.constant 0 : i32
    return %c0_i32, %c0_i32_0 : i32, i32
  }
  func.func @transform_21(%arg0: i32) -> (i32, i32) {
    %c0_i32 = arith.constant 0 : i32
    %c0_i32_0 = arith.constant 0 : i32
    %c0_i32_1 = arith.constant 0 : i32
    return %c0_i32, %c0_i32_0 : i32, i32
  }
  func.func @transform_22(%arg0: i32) -> (i32, i32) {
    %c0_i32 = arith.constant 0 : i32
    %c0_i32_0 = arith.constant 0 : i32
    %c0_i32_1 = arith.constant 0 : i32
    return %c0_i32, %c0_i32_0 : i32, i32
  }
  func.func @transform_23(%arg0: i32) -> (i32, i32) {
    %c0_i32 = arith.constant 0 : i32
    %c0_i32_0 = arith.constant 0 : i32
    %c0_i32_1 = arith.constant 0 : i32
    return %c0_i32, %c0_i32_0 : i32, i32
  }
  func.func @transform_24(%arg0: i32) -> (i32, i32) {
    %c0_i32 = arith.constant 0 : i32
    %c0_i32_0 = arith.constant 0 : i32
    %c0_i32_1 = arith.constant 0 : i32
    return %c0_i32, %c0_i32_0 : i32, i32
  }
  func.func @transform_25(%arg0: i32) -> (i32, i32) {
    %c0_i32 = arith.constant 0 : i32
    %c0_i32_0 = arith.constant 0 : i32
    %c0_i32_1 = arith.constant 0 : i32
    return %c0_i32, %c0_i32_0 : i32, i32
  }
}

</mosaic_0001>

<llo_original>
// kernel: gast_lc_forward.1
$region0: #{gast_lc_forward.1}
  #allocation0 [shape = 'u32[]', space=smem, size = 0x4, offset = 0x4, fixed_abs, tag = 'smem constant byte address 0x4 - core index']
  #allocation1 [shape = 'u32[144,128]{1,0:T(1,128)}', space=vmem, size = 0x12000, scoped, tag = 'internal scratch']
  %s0 = inlined_call_operand.vmem [shape: f32[352,20], index: 0, kind: input, shape index: {}]
  %s1 = inlined_call_operand.vmem [shape: bf16[352,352], index: 1, kind: input, shape index: {}]
  %s2 = inlined_call_operand.vmem [shape: bf16[20,32], index: 2, kind: input, shape index: {}]
  %s3 = inlined_call_operand.vmem [shape: f32[1,32], index: 3, kind: input, shape index: {}]
  %s4 = inlined_call_operand.vmem [shape: bf16[32,32], index: 4, kind: input, shape index: {}]
  %s5 = inlined_call_operand.vmem [shape: f32[1,32], index: 5, kind: input, shape index: {}]
  %s6 = inlined_call_operand.vmem [shape: bf16[32,32], index: 6, kind: input, shape index: {}]
  %s7 = inlined_call_operand.vmem [shape: f32[1,32], index: 7, kind: input, shape index: {}]
  %s8 = inlined_call_operand.vmem [shape: bf16[32,32], index: 8, kind: input, shape index: {}]
  %s9 = inlined_call_operand.vmem [shape: f32[1,32], index: 9, kind: input, shape index: {}]
  %s10 = inlined_call_operand.vmem [shape: f32[352,1], index: 10, kind: input, shape index: {}]
  %s11 = inlined_call_operand.vmem [shape: f32[1,352], index: 11, kind: input, shape index: {}]
  %s12 = inlined_call_operand.vmem [shape: f32[264,1], index: 12, kind: input, shape index: {}]
  %s13 = inlined_call_operand.vmem [shape: f32[264,1], index: 13, kind: input, shape index: {}]
  %s14 = inlined_call_operand.vmem [shape: bf16[128,16], index: 14, kind: input, shape index: {}]
  %s15 = inlined_call_operand.vmem [shape: f32[1,16], index: 15, kind: input, shape index: {}]
  %s16 = inlined_call_operand.vmem [shape: bf16[132,264], index: 16, kind: input, shape index: {}]
  %s17 = inlined_call_operand.vmem [shape: bf16[132,264], index: 17, kind: input, shape index: {}]
  %s18 = inlined_call_operand.vmem [shape: bf16[5,44,132], index: 18, kind: input, shape index: {}]
  %s19 = inlined_call_operand.vmem [shape: bf16[80,32], index: 19, kind: input, shape index: {}]
  %s20 = inlined_call_operand.vmem [shape: f32[1,32], index: 20, kind: input, shape index: {}]
  %s21 = inlined_call_operand.vmem [shape: bf16[704,32], index: 21, kind: input, shape index: {}]
  %s22 = inlined_call_operand.vmem [shape: f32[1,32], index: 22, kind: input, shape index: {}]
  %s23 = inlined_call_operand.vmem [shape: bf16[32,128], index: 23, kind: input, shape index: {}]
  %s24 = inlined_call_operand.vmem [shape: f32[1,128], index: 24, kind: input, shape index: {}]
  %s25 = inlined_call_operand.vmem [shape: f32[2,128], index: 25, kind: output, shape index: {}]
  %s26 = sld [smem:[#allocation0]]
  $region110: #{gast_lc_forward.1} parent=0
    _
  %s28 = ssub.s32 1, %s26
  %s29 = scalar_select 0, %s28, %s26
  // Predicated region
  $region2: #{gast_lc_forward.1} parent=0 // pred_check
    _
  $region3: #{gast_lc_forward.1} parent=0 // pred_check_branch
    %31 = sbr.rel (0) target = $region5
  $region4: #{gast_lc_forward.1} parent=0 // pred_region
    _
  $region5: #{gast_lc_forward.1} parent=0 // pred_fallthru
    _
  // Predicated region
  $region6: #{gast_lc_forward.1} parent=0 // pred_check
    _
  $region7: #{gast_lc_forward.1} parent=0 // pred_check_branch
    %33 = sbr.rel (0) target = $region9
  $region8: #{gast_lc_forward.1} parent=0 // pred_region
    _
  $region9: #{gast_lc_forward.1} parent=0 // pred_fallthru
    _
  // Predicated region
  $region10: #{gast_lc_forward.1} parent=0 // pred_check
    _
  $region11: #{gast_lc_forward.1} parent=0 // pred_check_branch
    %35 = sbr.rel (0) target = $region13
  $region12: #{gast_lc_forward.1} parent=0 // pred_region
    _
  $region13: #{gast_lc_forward.1} parent=0 // pred_fallthru
    _
  // Predicated region
  $region14: #{gast_lc_forward.1} parent=0 // pred_check
    _
  $region15: #{gast_lc_forward.1} parent=0 // pred_check_branch
    %37 = sbr.rel (0) target = $region17
  $region16: #{gast_lc_forward.1} parent=0 // pred_region
    _
  $region17: #{gast_lc_forward.1} parent=0 // pred_fallthru
    _
  // Predicated region
  $region18: #{gast_lc_forward.1} parent=0 // pred_check
    _
  $region19: #{gast_lc_forward.1} parent=0 // pred_check_branch
    %39 = sbr.rel (0) target = $region21
  $region20: #{gast_lc_forward.1} parent=0 // pred_region
    _
  $region21: #{gast_lc_forward.1} parent=0 // pred_fallthru
    _
  // Predicated region
  $region22: #{gast_lc_forward.1} parent=0 // pred_check
    _
  $region23: #{gast_lc_forward.1} parent=0 // pred_check_branch
    %41 = sbr.rel (0) target = $region25
  $region24: #{gast_lc_forward.1} parent=0 // pred_region
    _
  $region25: #{gast_lc_forward.1} parent=0 // pred_fallthru
    _
  // Predicated region
  $region26: #{gast_lc_forward.1} parent=0 // pred_check
    _
  $region27: #{gast_lc_forward.1} parent=0 // pred_check_branch
    %43 = sbr.rel (0) target = $region29
  $region28: #{gast_lc_forward.1} parent=0 // pred_region
    _
  $region29: #{gast_lc_forward.1} parent=0 // pred_fallthru
    _
  // Predicated region
  $region30: #{gast_lc_forward.1} parent=0 // pred_check
    _
  $region31: #{gast_lc_forward.1} parent=0 // pred_check_branch
    %45 = sbr.rel (0) target = $region33
  $region32: #{gast_lc_forward.1} parent=0 // pred_region
    _
  $region33: #{gast_lc_forward.1} parent=0 // pred_fallthru
    _
  // Predicated region
  $region34: #{gast_lc_forward.1} parent=0 // pred_check
    _
  $region35: #{gast_lc_forward.1} parent=0 // pred_check_branch
    %47 = sbr.rel (0) target = $region37
  $region36: #{gast_lc_forward.1} parent=0 // pred_region
    _
  $region37: #{gast_lc_forward.1} parent=0 // pred_fallthru
    _
  // Predicated region
  $region38: #{gast_lc_forward.1} parent=0 // pred_check
    _
  $region39: #{gast_lc_forward.1} parent=0 // pred_check_branch
    %49 = sbr.rel (0) target = $region41
  $region40: #{gast_lc_forward.1} parent=0 // pred_region
    _
  $region41: #{gast_lc_forward.1} parent=0 // pred_fallthru
    _
  // Predicated region
  $region42: #{gast_lc_forward.1} parent=0 // pred_check
    _
  $region43: #{gast_lc_forward.1} parent=0 // pred_check_branch
    %51 = sbr.rel (0) target = $region45
  $region44: #{gast_lc_forward.1} parent=0 // pred_region
    _
  $region45: #{gast_lc_forward.1} parent=0 // pred_fallthru
    _
  // Predicated region
  $region46: #{gast_lc_forward.1} parent=0 // pred_check
    _
  $region47: #{gast_lc_forward.1} parent=0 // pred_check_branch
    %53 = sbr.rel (0) target = $region49
  $region48: #{gast_lc_forward.1} parent=0 // pred_region
    _
  $region49: #{gast_lc_forward.1} parent=0 // pred_fallthru
    _
  // Predicated region
  $region50: #{gast_lc_forward.1} parent=0 // pred_check
    _
  $region51: #{gast_lc_forward.1} parent=0 // pred_check_branch
    %55 = sbr.rel (0) target = $region53
  $region52: #{gast_lc_forward.1} parent=0 // pred_region
    _
  $region53: #{gast_lc_forward.1} parent=0 // pred_fallthru
    _
  // Predicated region
  $region54: #{gast_lc_forward.1} parent=0 // pred_check
    _
  $region55: #{gast_lc_forward.1} parent=0 // pred_check_branch
    %57 = sbr.rel (0) target = $region57
  $region56: #{gast_lc_forward.1} parent=0 // pred_region
    _
  $region57: #{gast_lc_forward.1} parent=0 // pred_fallthru
    _
  // Predicated region
  $region58: #{gast_lc_forward.1} parent=0 // pred_check
    _
  $region59: #{gast_lc_forward.1} parent=0 // pred_check_branch
    %59 = sbr.rel (0) target = $region61
  $region60: #{gast_lc_forward.1} parent=0 // pred_region
    _
  $region61: #{gast_lc_forward.1} parent=0 // pred_fallthru
    _
  // Predicated region
  $region62: #{gast_lc_forward.1} parent=0 // pred_check
    _
  $region63: #{gast_lc_forward.1} parent=0 // pred_check_branch
    %61 = sbr.rel (0) target = $region65
  $region64: #{gast_lc_forward.1} parent=0 // pred_region
    _
  $region65: #{gast_lc_forward.1} parent=0 // pred_fallthru
    _
  // Predicated region
  $region66: #{gast_lc_forward.1} parent=0 // pred_check
    _
  $region67: #{gast_lc_forward.1} parent=0 // pred_check_branch
    %63 = sbr.rel (0) target = $region69
  $region68: #{gast_lc_forward.1} parent=0 // pred_region
    _
  $region69: #{gast_lc_forward.1} parent=0 // pred_fallthru
    _
  // Predicated region
  $region70: #{gast_lc_forward.1} parent=0 // pred_check
    _
  $region71: #{gast_lc_forward.1} parent=0 // pred_check_branch
    %65 = sbr.rel (0) target = $region73
  $region72: #{gast_lc_forward.1} parent=0 // pred_region
    _
  $region73: #{gast_lc_forward.1} parent=0 // pred_fallthru
    _
  // Predicated region
  $region74: #{gast_lc_forward.1} parent=0 // pred_check
    _
  $region75: #{gast_lc_forward.1} parent=0 // pred_check_branch
    %67 = sbr.rel (0) target = $region77
  $region76: #{gast_lc_forward.1} parent=0 // pred_region
    _
  $region77: #{gast_lc_forward.1} parent=0 // pred_fallthru
    _
  // Predicated region
  $region78: #{gast_lc_forward.1} parent=0 // pred_check
    _
  $region79: #{gast_lc_forward.1} parent=0 // pred_check_branch
    %69 = sbr.rel (0) target = $region81
  $region80: #{gast_lc_forward.1} parent=0 // pred_region
    _
  $region81: #{gast_lc_forward.1} parent=0 // pred_fallthru
    _
  // Predicated region
  $region82: #{gast_lc_forward.1} parent=0 // pred_check
    _
  $region83: #{gast_lc_forward.1} parent=0 // pred_check_branch
    %71 = sbr.rel (0) target = $region85
  $region84: #{gast_lc_forward.1} parent=0 // pred_region
    _
  $region85: #{gast_lc_forward.1} parent=0 // pred_fallthru
    _
  // Predicated region
  $region86: #{gast_lc_forward.1} parent=0 // pred_check
    _
  $region87: #{gast_lc_forward.1} parent=0 // pred_check_branch
    %73 = sbr.rel (0) target = $region89
  $region88: #{gast_lc_forward.1} parent=0 // pred_region
    _
  $region89: #{gast_lc_forward.1} parent=0 // pred_fallthru
    _
  // Predicated region
  $region90: #{gast_lc_forward.1} parent=0 // pred_check
    _
  $region91: #{gast_lc_forward.1} parent=0 // pred_check_branch
    %75 = sbr.rel (0) target = $region93
  $region92: #{gast_lc_forward.1} parent=0 // pred_region
    _
  $region93: #{gast_lc_forward.1} parent=0 // pred_fallthru
    _
  // Predicated region
  $region94: #{gast_lc_forward.1} parent=0 // pred_check
    _
  $region95: #{gast_lc_forward.1} parent=0 // pred_check_branch
    %77 = sbr.rel (0) target = $region97
  $region96: #{gast_lc_forward.1} parent=0 // pred_region
    _
  $region97: #{gast_lc_forward.1} parent=0 // pred_fallthru
    _
  // Predicated region
  $region98: #{gast_lc_forward.1} parent=0 // pred_check
    _
  $region99: #{gast_lc_forward.1} parent=0 // pred_check_branch
    %79 = sbr.rel (0) target = $region101
  $region100: #{gast_lc_forward.1} parent=0 // pred_region
    _
  $region101: #{gast_lc_forward.1} parent=0 // pred_fallthru
    _
  %v81 = vld [vmem:[%s1] sm:$0xff]
  %v82 = vld [vmem:[%s1 + $0x8] sm:$0xf]
  %v83 = vld [vmem:[%s1 + $0xc] sm:$0xff]
  %v84 = vld [vmem:[%s1 + $0x14] sm:$0xf]
  %v85 = vld [vmem:[%s1 + $0x18] sm:$0xff]
  %v86 = vld [vmem:[%s1 + $0x20] sm:$0xf]
  %v87 = vld [vmem:[%s1 + $0x24] sm:$0xff]
  %v88 = vld [vmem:[%s1 + $0x2c] sm:$0xf]
  %v89 = vld [vmem:[%s1 + $0x30] sm:$0xff]
  %v90 = vld [vmem:[%s1 + $0x38] sm:$0xf]
  %v91 = vld [vmem:[%s1 + $0x3c] sm:$0xff]
  %v92 = vld [vmem:[%s1 + $0x44] sm:$0xf]
  %v93 = vld [vmem:[%s1 + $0x48] sm:$0xff]
  %v94 = vld [vmem:[%s1 + $0x50] sm:$0xf]
  %v95 = vld [vmem:[%s1 + $0x54] sm:$0xff]
  %v96 = vld [vmem:[%s1 + $0x5c] sm:$0xf]
  %v97 = vld [vmem:[%s1 + $0x60] sm:$0xff]
  %v98 = vld [vmem:[%s1 + $0x68] sm:$0xf]
  %v99 = vld [vmem:[%s1 + $0x6c] sm:$0xff]
  %v100 = vld [vmem:[%s1 + $0x74] sm:$0xf]
  %v101 = vld [vmem:[%s1 + $0x78] sm:$0xff]
  %v102 = vld [vmem:[%s1 + $0x80] sm:$0xf]
  %v103 = vld [vmem:[%s1 + $0x84] sm:$0xff]
  %v104 = vld [vmem:[%s1 + $0x8c] sm:$0xf]
  %v105 = vld [vmem:[%s1 + $0x90] sm:$0xff]
  %v106 = vld [vmem:[%s1 + $0x98] sm:$0xf]
  %v107 = vld [vmem:[%s1 + $0x9c] sm:$0xff]
  %v108 = vld [vmem:[%s1 + $0xa4] sm:$0xf]
  %v109 = vld [vmem:[%s1 + $0xa8] sm:$0xff]
  %v110 = vld [vmem:[%s1 + $0xb0] sm:$0xf]
  %v111 = vld [vmem:[%s1 + $0xb4] sm:$0xff]
  %v112 = vld [vmem:[%s1 + $0xbc] sm:$0xf]
  %v113 = vld [vmem:[%s1 + $0xc0] sm:$0xff]
  %v114 = vld [vmem:[%s1 + $0xc8] sm:$0xf]
  %v115 = vld [vmem:[%s1 + $0xcc] sm:$0xff]
  %v116 = vld [vmem:[%s1 + $0xd4] sm:$0xf]
  %v117 = vld [vmem:[%s1 + $0xd8] sm:$0xff]
  %v118 = vld [vmem:[%s1 + $0xe0] sm:$0xf]
  %v119 = vld [vmem:[%s1 + $0xe4] sm:$0xff]
  %v120 = vld [vmem:[%s1 + $0xec] sm:$0xf]
  %v121 = vld [vmem:[%s1 + $0xf0] sm:$0xff]
  %v122 = vld [vmem:[%s1 + $0xf8] sm:$0xf]
  %v123 = vld [vmem:[%s1 + $0xfc] sm:$0xff]
  %v124 = vld [vmem:[%s1 + $0x104] sm:$0xf]
  %v125 = vld [vmem:[%s1 + $0x108] sm:$0xff]
  %v126 = vld [vmem:[%s1 + $0x110] sm:$0xf]
  %v127 = vld [vmem:[%s1 + $0x114] sm:$0xff]
  %v128 = vld [vmem:[%s1 + $0x11c] sm:$0xf]
  %v129 = vld [vmem:[%s1 + $0x120] sm:$0xff]
  %v130 = vld [vmem:[%s1 + $0x128] sm:$0xf]
  %v131 = vld [vmem:[%s1 + $0x12c] sm:$0xff]
  %v132 = vld [vmem:[%s1 + $0x134] sm:$0xf]
  %v133 = vld [vmem:[%s1 + $0x138] sm:$0xff]
  %v134 = vld [vmem:[%s1 + $0x140] sm:$0xf]
  %v135 = vld [vmem:[%s1 + $0x144] sm:$0xff]
  %v136 = vld [vmem:[%s1 + $0x14c] sm:$0xf]
  %v137 = vld [vmem:[%s1 + $0x150] sm:$0xff]
  %v138 = vld [vmem:[%s1 + $0x158] sm:$0xf]
  %v139 = vld [vmem:[%s1 + $0x15c] sm:$0xff]
  %v140 = vld [vmem:[%s1 + $0x164] sm:$0xf]
  %v141 = vld [vmem:[%s1 + $0x168] sm:$0xff]
  %v142 = vld [vmem:[%s1 + $0x170] sm:$0xf]
  %v143 = vld [vmem:[%s1 + $0x174] sm:$0xff]
  %v144 = vld [vmem:[%s1 + $0x17c] sm:$0xf]
  %v145 = vld [vmem:[%s1 + $0x180] sm:$0xff]
  %v146 = vld [vmem:[%s1 + $0x188] sm:$0xf]
  %v147 = vld [vmem:[%s1 + $0x18c] sm:$0xff]
  %v148 = vld [vmem:[%s1 + $0x194] sm:$0xf]
  %v149 = vld [vmem:[%s1 + $0x198] sm:$0xff]
  %v150 = vld [vmem:[%s1 + $0x1a0] sm:$0xf]
  %v151 = vld [vmem:[%s1 + $0x1a4] sm:$0xff]
  %v152 = vld [vmem:[%s1 + $0x1ac] sm:$0xf]
  %v153 = vld [vmem:[%s1 + $0x1b0] sm:$0xff]
  %v154 = vld [vmem:[%s1 + $0x1b8] sm:$0xf]
  %v155 = vld [vmem:[%s1 + $0x1bc] sm:$0xff]
  %v156 = vld [vmem:[%s1 + $0x1c4] sm:$0xf]
  %v157 = vld [vmem:[%s1 + $0x1c8] sm:$0xff]
  %v158 = vld [vmem:[%s1 + $0x1d0] sm:$0xf]
  %v159 = vld [vmem:[%s1 + $0x1d4] sm:$0xff]
  %v160 = vld [vmem:[%s1 + $0x1dc] sm:$0xf]
  %v161 = vld [vmem:[%s1 + $0x1e0] sm:$0xff]
  %v162 = vld [vmem:[%s1 + $0x1e8] sm:$0xf]
  %v163 = vld [vmem:[%s1 + $0x1ec] sm:$0xff]
  %v164 = vld [vmem:[%s1 + $0x1f4] sm:$0xf]
  %v165 = vld [vmem:[%s1 + $0x1f8] sm:$0xff]
  %v166 = vld [vmem:[%s1 + $0x200] sm:$0xf]
  %v167 = vld [vmem:[%s1 + $0x204] sm:$0xff]
  %v168 = vld [vmem:[%s1 + $0x20c] sm:$0xf]
  %v169 = vld [vmem:[%s0] sm:$0xff]
  %v170 = vld [vmem:[%s0 + $0x8] sm:$0xff]
  %v171 = vld [vmem:[%s0 + $0x10] sm:$0xff]
  %v172 = vld [vmem:[%s0 + $0x18] sm:$0xff]
  %v173 = vld [vmem:[%s0 + $0x20] sm:$0xff]
  %v174 = vld [vmem:[%s0 + $0x28] sm:$0xff]
  %v175 = vld [vmem:[%s0 + $0x30] sm:$0xff]
  %v176 = vld [vmem:[%s0 + $0x38] sm:$0xff]
  %v177 = vld [vmem:[%s0 + $0x40] sm:$0xff]
  %v178 = vld [vmem:[%s0 + $0x48] sm:$0xff]
  %v179 = vld [vmem:[%s0 + $0x50] sm:$0xff]
  %v180 = vld [vmem:[%s0 + $0x58] sm:$0xff]
  %v181 = vld [vmem:[%s0 + $0x60] sm:$0xff]
  %v182 = vld [vmem:[%s0 + $0x68] sm:$0xff]
  %v183 = vld [vmem:[%s0 + $0x70] sm:$0xff]
  %v184 = vld [vmem:[%s0 + $0x78] sm:$0xff]
  %v185 = vld [vmem:[%s0 + $0x80] sm:$0xff]
  %v186 = vld [vmem:[%s0 + $0x88] sm:$0xff]
  %v187 = vld [vmem:[%s0 + $0x90] sm:$0xff]
  %v188 = vld [vmem:[%s0 + $0x98] sm:$0xff]
  %v189 = vld [vmem:[%s0 + $0xa0] sm:$0xff]
  %v190 = vld [vmem:[%s0 + $0xa8] sm:$0xff]
  %v191 = vld [vmem:[%s0 + $0xb0] sm:$0xff]
  %v192 = vld [vmem:[%s0 + $0xb8] sm:$0xff]
  %v193 = vld [vmem:[%s0 + $0xc0] sm:$0xff]
  %v194 = vld [vmem:[%s0 + $0xc8] sm:$0xff]
  %v195 = vld [vmem:[%s0 + $0xd0] sm:$0xff]
  %v196 = vld [vmem:[%s0 + $0xd8] sm:$0xff]
  %v197 = vld [vmem:[%s0 + $0xe0] sm:$0xff]
  %v198 = vld [vmem:[%s0 + $0xe8] sm:$0xff]
  %v199 = vld [vmem:[%s0 + $0xf0] sm:$0xff]
  %v200 = vld [vmem:[%s0 + $0xf8] sm:$0xff]
  %v201 = vld [vmem:[%s0 + $0x100] sm:$0xff]
  %v202 = vld [vmem:[%s0 + $0x108] sm:$0xff]
  %v203 = vld [vmem:[%s0 + $0x110] sm:$0xff]
  %v204 = vld [vmem:[%s0 + $0x118] sm:$0xff]
  %v205 = vld [vmem:[%s0 + $0x120] sm:$0xff]
  %v206 = vld [vmem:[%s0 + $0x128] sm:$0xff]
  %v207 = vld [vmem:[%s0 + $0x130] sm:$0xff]
  %v208 = vld [vmem:[%s0 + $0x138] sm:$0xff]
  %v209 = vld [vmem:[%s0 + $0x140] sm:$0xff]
  %v210 = vld [vmem:[%s0 + $0x148] sm:$0xff]
  %v211 = vld [vmem:[%s0 + $0x150] sm:$0xff]
  %v212 = vld [vmem:[%s0 + $0x158] sm:$0xff]
  %v213 = vld [vmem:[%s2] sm:$0xf]
  %v214 = vld [vmem:[%s2 + $0x4] sm:$0xf]
  %v215 = vld [vmem:[%s2 + $0x8] sm:$0x3]
  %v216 = vpack.c.bf16 %v170, %v169
  %v217 = vpack.c.bf16 %v172, %v171
  %v218 = vpack.c.bf16 %v174, %v173
  %v219 = vpack.c.bf16 %v176, %v175
  %v220 = vpack.c.bf16 %v178, %v177
  %v221 = vpack.c.bf16 %v180, %v179
  %v222 = vpack.c.bf16 %v182, %v181
  %v223 = vpack.c.bf16 %v184, %v183
  %v224 = vpack.c.bf16 %v186, %v185
  %v225 = vpack.c.bf16 %v188, %v187
  %v226 = vpack.c.bf16 %v190, %v189
  %v227 = vpack.c.bf16 %v192, %v191
  %v228 = vpack.c.bf16 %v194, %v193
  %v229 = vpack.c.bf16 %v196, %v195
  %v230 = vpack.c.bf16 %v198, %v197
  %v231 = vpack.c.bf16 %v200, %v199
  %v232 = vpack.c.bf16 %v202, %v201
  %v233 = vpack.c.bf16 %v204, %v203
  %v234 = vpack.c.bf16 %v206, %v205
  %v235 = vpack.c.bf16 %v208, %v207
  %v236 = vpack.c.bf16 %v210, %v209
  %v237 = vpack.c.bf16 %v212, %v211
  %v241 = vunpack.c.l.b16 %v213
  %v242 = vunpack.c.l.b16 %v214
  %v243 = vunpack.c.l.b16 %v215
  %v244 = vpack.c.b16 %v242, %v241
  %v245 = vpack.c.b16 %v243, %v243
  %vm247 = vcmask 162816
  %v249 = vsel %vm247, %v216, 0
  %v252 = vsel %vm247, %v217, 0
  %v255 = vsel %vm247, %v218, 0
  %v258 = vsel %vm247, %v219, 0
  %v261 = vsel %vm247, %v220, 0
  %v264 = vsel %vm247, %v221, 0
  %v267 = vsel %vm247, %v222, 0
  %v270 = vsel %vm247, %v223, 0
  %v273 = vsel %vm247, %v224, 0
  %v276 = vsel %vm247, %v225, 0
  %v279 = vsel %vm247, %v226, 0
  %v282 = vsel %vm247, %v227, 0
  %v285 = vsel %vm247, %v228, 0
  %v288 = vsel %vm247, %v229, 0
  %v291 = vsel %vm247, %v230, 0
  %v294 = vsel %vm247, %v231, 0
  %v297 = vsel %vm247, %v232, 0
  %v300 = vsel %vm247, %v233, 0
  %v303 = vsel %vm247, %v234, 0
  %v306 = vsel %vm247, %v235, 0
  %v309 = vsel %vm247, %v236, 0
  %v312 = vsel %vm247, %v237, 0
  %vm314 = vcmask 1041408
  %v316 = vsel %vm314, %v245, 0
  %318 = vmatprep.subr.bf16.mxu0 0
  %319 = vmatpush1.bf16.msra.mxu0 0
  %320 = vmatprep.subr.bf16.mxu0 0
  %321 = vmatpush1.bf16.msra.mxu0 0
  %322 = vmatprep.subr.bf16.mxu0 0
  %323 = vmatpush1.bf16.msra.mxu0 0
  %324 = vmatprep.subr.bf16.mxu0 0
  %325 = vmatpush1.bf16.msra.mxu0 0
  %326 = vmatprep.subr.bf16.mxu0 0
  %327 = vmatpush1.bf16.msra.mxu0 0
  %328 = vmatprep.subr.bf16.mxu0 0
  %329 = vmatpush1.bf16.msra.mxu0 0
  %330 = vmatprep.subr.bf16.mxu0 0
  %331 = vmatpush1.bf16.msra.mxu0 %v316
  %332 = vmatprep.subr.bf16.mxu0 0
  %333 = vmatpush1.bf16.msra.mxu0 %v244
  %334 = vmatprep.subr.bf16.mxu0 0
  %335 = vmatpush2.bf16.msra.mxu0 0
  %336 = vmatprep.subr.bf16.mxu0 0
  %337 = vmatpush2.bf16.msra.mxu0 0
  %338 = vmatprep.subr.bf16.mxu0 0
  %339 = vmatpush2.bf16.msra.mxu0 0
  %340 = vmatprep.subr.bf16.mxu0 0
  %341 = vmatpush2.bf16.msra.mxu0 0
  %342 = vmatprep.subr.bf16.mxu0 0
  %343 = vmatpush2.bf16.msra.mxu0 0
  %344 = vmatprep.subr.bf16.mxu0 0
  %345 = vmatpush2.bf16.msra.mxu0 0
  %346 = vmatprep.subr.bf16.mxu0 0
  %347 = vmatpush2.bf16.msra.mxu0 0
  %348 = vmatprep.subr.bf16.mxu0 0
  %349 = vmatpush2.bf16.msra.mxu0 0
  %350 = vmatprep.mubr.bf16.mxu0 0
  %351 = vmatmul.mubr.bf16.gmra.mxu0 %v249
  %v352 = vpop.f32.mrf.mxu0
  %v353 = vadd.f32 0.0, %v352
  %v354 = vpop.f32.mrf.mxu0
  %v355 = vpop.f32.mrf.mxu0
  %v356 = vadd.f32 0.0, %v355
  %v357 = vpop.f32.mrf.mxu0
  %358 = vmatprep.mubr.bf16.mxu0 0
  %359 = vmatmul.mubr.bf16.gmra.mxu0 %v252
  %v360 = vpop.f32.mrf.mxu0
  %v361 = vadd.f32 0.0, %v360
  %v362 = vpop.f32.mrf.mxu0
  %v363 = vpop.f32.mrf.mxu0
  %v364 = vadd.f32 0.0, %v363
  %v365 = vpop.f32.mrf.mxu0
  %366 = vmatprep.mubr.bf16.mxu0 0
  %367 = vmatmul.mubr.bf16.gmra.mxu0 %v255
  %v368 = vpop.f32.mrf.mxu0
  %v369 = vadd.f32 0.0, %v368
  %v370 = vpop.f32.mrf.mxu0
  %v371 = vpop.f32.mrf.mxu0
  %v372 = vadd.f32 0.0, %v371
  %v373 = vpop.f32.mrf.mxu0
  %374 = vmatprep.mubr.bf16.mxu0 0
  %375 = vmatmul.mubr.bf16.gmra.mxu0 %v258
  %v376 = vpop.f32.mrf.mxu0
  %v377 = vadd.f32 0.0, %v376
  %v378 = vpop.f32.mrf.mxu0
  %v379 = vpop.f32.mrf.mxu0
  %v380 = vadd.f32 0.0, %v379
  %v381 = vpop.f32.mrf.mxu0
  %382 = vmatprep.mubr.bf16.mxu0 0
  %383 = vmatmul.mubr.bf16.gmra.mxu0 %v261
  %v384 = vpop.f32.mrf.mxu0
  %v385 = vadd.f32 0.0, %v384
  %v386 = vpop.f32.mrf.mxu0
  %v387 = vpop.f32.mrf.mxu0
  %v388 = vadd.f32 0.0, %v387
  %v389 = vpop.f32.mrf.mxu0
  %390 = vmatprep.mubr.bf16.mxu0 0
  %391 = vmatmul.mubr.bf16.gmra.mxu0 %v264
  %v392 = vpop.f32.mrf.mxu0
  %v393 = vadd.f32 0.0, %v392
  %v394 = vpop.f32.mrf.mxu0
  %v395 = vpop.f32.mrf.mxu0
  %v396 = vadd.f32 0.0, %v395
  %v397 = vpop.f32.mrf.mxu0
  %398 = vmatprep.mubr.bf16.mxu0 0
  %399 = vmatmul.mubr.bf16.gmra.mxu0 %v267
  %v400 = vpop.f32.mrf.mxu0
  %v401 = vadd.f32 0.0, %v400
  %v402 = vpop.f32.mrf.mxu0
  %v403 = vpop.f32.mrf.mxu0
  %v404 = vadd.f32 0.0, %v403
  %v405 = vpop.f32.mrf.mxu0
  %406 = vmatprep.mubr.bf16.mxu0 0
  %407 = vmatmul.mubr.bf16.gmra.mxu0 %v270
  %v408 = vpop.f32.mrf.mxu0
  %v409 = vadd.f32 0.0, %v408
  %v410 = vpop.f32.mrf.mxu0
  %v411 = vpop.f32.mrf.mxu0
  %v412 = vadd.f32 0.0, %v411
  %v413 = vpop.f32.mrf.mxu0
  %414 = vmatprep.mubr.bf16.mxu0 0
  %415 = vmatmul.mubr.bf16.gmra.mxu0 %v273
  %v416 = vpop.f32.mrf.mxu0
  %v417 = vadd.f32 0.0, %v416
  %v418 = vpop.f32.mrf.mxu0
  %v419 = vpop.f32.mrf.mxu0
  %v420 = vadd.f32 0.0, %v419
  %v421 = vpop.f32.mrf.mxu0
  %422 = vmatprep.mubr.bf16.mxu0 0
  %423 = vmatmul.mubr.bf16.gmra.mxu0 %v276
  %v424 = vpop.f32.mrf.mxu0
  %v425 = vadd.f32 0.0, %v424
  %v426 = vpop.f32.mrf.mxu0
  %v427 = vpop.f32.mrf.mxu0
  %v428 = vadd.f32 0.0, %v427
  %v429 = vpop.f32.mrf.mxu0
  %430 = vmatprep.mubr.bf16.mxu0 0
  %431 = vmatmul.mubr.bf16.gmra.mxu0 %v279
  %v432 = vpop.f32.mrf.mxu0
  %v433 = vadd.f32 0.0, %v432
  %v434 = vpop.f32.mrf.mxu0
  %v435 = vpop.f32.mrf.mxu0
  %v436 = vadd.f32 0.0, %v435
  %v437 = vpop.f32.mrf.mxu0
  %438 = vmatprep.mubr.bf16.mxu0 0
  %439 = vmatmul.mubr.bf16.gmra.mxu0 %v282
  %v440 = vpop.f32.mrf.mxu0
  %v441 = vadd.f32 0.0, %v440
  %v442 = vpop.f32.mrf.mxu0
  %v443 = vpop.f32.mrf.mxu0
  %v444 = vadd.f32 0.0, %v443
  %v445 = vpop.f32.mrf.mxu0
  %446 = vmatprep.mubr.bf16.mxu0 0
  %447 = vmatmul.mubr.bf16.gmra.mxu0 %v285
  %v448 = vpop.f32.mrf.mxu0
  %v449 = vadd.f32 0.0, %v448
  %v450 = vpop.f32.mrf.mxu0
  %v451 = vpop.f32.mrf.mxu0
  %v452 = vadd.f32 0.0, %v451
  %v453 = vpop.f32.mrf.mxu0
  %454 = vmatprep.mubr.bf16.mxu0 0
  %455 = vmatmul.mubr.bf16.gmra.mxu0 %v288
  %v456 = vpop.f32.mrf.mxu0
  %v457 = vadd.f32 0.0, %v456
  %v458 = vpop.f32.mrf.mxu0
  %v459 = vpop.f32.mrf.mxu0
  %v460 = vadd.f32 0.0, %v459
  %v461 = vpop.f32.mrf.mxu0
  %462 = vmatprep.mubr.bf16.mxu0 0
  %463 = vmatmul.mubr.bf16.gmra.mxu0 %v291
  %v464 = vpop.f32.mrf.mxu0
  %v465 = vadd.f32 0.0, %v464
  %v466 = vpop.f32.mrf.mxu0
  %v467 = vpop.f32.mrf.mxu0
  %v468 = vadd.f32 0.0, %v467
  %v469 = vpop.f32.mrf.mxu0
  %470 = vmatprep.mubr.bf16.mxu0 0
  %471 = vmatmul.mubr.bf16.gmra.mxu0 %v294
  %v472 = vpop.f32.mrf.mxu0
  %v473 = vadd.f32 0.0, %v472
  %v474 = vpop.f32.mrf.mxu0
  %v475 = vpop.f32.mrf.mxu0
  %v476 = vadd.f32 0.0, %v475
  %v477 = vpop.f32.mrf.mxu0
  %478 = vmatprep.mubr.bf16.mxu0 0
  %479 = vmatmul.mubr.bf16.gmra.mxu0 %v297
  %v480 = vpop.f32.mrf.mxu0
  %v481 = vadd.f32 0.0, %v480
  %v482 = vpop.f32.mrf.mxu0
  %v483 = vpop.f32.mrf.mxu0
  %v484 = vadd.f32 0.0, %v483
  %v485 = vpop.f32.mrf.mxu0
  %486 = vmatprep.mubr.bf16.mxu0 0
  %487 = vmatmul.mubr.bf16.gmra.mxu0 %v300
  %v488 = vpop.f32.mrf.mxu0
  %v489 = vadd.f32 0.0, %v488
  %v490 = vpop.f32.mrf.mxu0
  %v491 = vpop.f32.mrf.mxu0
  %v492 = vadd.f32 0.0, %v491
  %v493 = vpop.f32.mrf.mxu0
  %494 = vmatprep.mubr.bf16.mxu0 0
  %495 = vmatmul.mubr.bf16.gmra.mxu0 %v303
  %v496 = vpop.f32.mrf.mxu0
  %v497 = vadd.f32 0.0, %v496
  %v498 = vpop.f32.mrf.mxu0
  %v499 = vpop.f32.mrf.mxu0
  %v500 = vadd.f32 0.0, %v499
  %v501 = vpop.f32.mrf.mxu0
  %502 = vmatprep.mubr.bf16.mxu0 0
  %503 = vmatmul.mubr.bf16.gmra.mxu0 %v306
  %v504 = vpop.f32.mrf.mxu0
  %v505 = vadd.f32 0.0, %v504
  %v506 = vpop.f32.mrf.mxu0
  %v507 = vpop.f32.mrf.mxu0
  %v508 = vadd.f32 0.0, %v507
  %v509 = vpop.f32.mrf.mxu0
  %510 = vmatprep.mubr.bf16.mxu0 0
  %511 = vmatmul.mubr.bf16.gmra.mxu0 %v309
  %v512 = vpop.f32.mrf.mxu0
  %v513 = vadd.f32 0.0, %v512
  %v514 = vpop.f32.mrf.mxu0
  %v515 = vpop.f32.mrf.mxu0
  %v516 = vadd.f32 0.0, %v515
  %v517 = vpop.f32.mrf.mxu0
  %518 = vmatprep.mubr.bf16.mxu0 0
  %519 = vmatmul.mubr.bf16.gmra.mxu0 %v312
  %v520 = vpop.f32.mrf.mxu0
  %v521 = vadd.f32 0.0, %v520
  %v522 = vpop.f32.mrf.mxu0
  %v523 = vpop.f32.mrf.mxu0
  %v524 = vadd.f32 0.0, %v523
  %v525 = vpop.f32.mrf.mxu0
  %526 = vdwg.mxu0
  %v527 = vpack.c.bf16 %v356, %v353
  %v528 = vpack.c.bf16 %v364, %v361
  %v529 = vpack.c.bf16 %v372, %v369
  %v530 = vpack.c.bf16 %v380, %v377
  %v531 = vpack.c.bf16 %v388, %v385
  %v532 = vpack.c.bf16 %v396, %v393
  %v533 = vpack.c.bf16 %v404, %v401
  %v534 = vpack.c.bf16 %v412, %v409
  %v535 = vpack.c.bf16 %v420, %v417
  %v536 = vpack.c.bf16 %v428, %v425
  %v537 = vpack.c.bf16 %v436, %v433
  %v538 = vpack.c.bf16 %v444, %v441
  %v539 = vpack.c.bf16 %v452, %v449
  %v540 = vpack.c.bf16 %v460, %v457
  %v541 = vpack.c.bf16 %v468, %v465
  %v542 = vpack.c.bf16 %v476, %v473
  %v543 = vpack.c.bf16 %v484, %v481
  %v544 = vpack.c.bf16 %v492, %v489
  %v545 = vpack.c.bf16 %v500, %v497
  %v546 = vpack.c.bf16 %v508, %v505
  %v547 = vpack.c.bf16 %v516, %v513
  %v548 = vpack.c.bf16 %v524, %v521
  %v549 = vld [vmem:[%s3] sm:$0x1]
  %v551 = vlaneseq
  %v552 = vshrl.u32 %v551, 7
  %v553 = vsub.s32 0, %v552
  %v554 = vrot.slane %v549, %v553
  %v644 = vunpack.c.l.b16 %v81
  %v645 = vunpack.c.h.b16 %v81
  %v646 = vunpack.c.l.b16 %v82
  %v647 = vunpack.c.l.b16 %v83
  %v648 = vunpack.c.h.b16 %v83
  %v649 = vunpack.c.l.b16 %v84
  %v650 = vunpack.c.l.b16 %v85
  %v651 = vunpack.c.h.b16 %v85
  %v652 = vunpack.c.l.b16 %v86
  %v653 = vunpack.c.l.b16 %v87
  %v654 = vunpack.c.h.b16 %v87
  %v655 = vunpack.c.l.b16 %v88
  %v656 = vunpack.c.l.b16 %v89
  %v657 = vunpack.c.h.b16 %v89
  %v658 = vunpack.c.l.b16 %v90
  %v659 = vunpack.c.l.b16 %v91
  %v660 = vunpack.c.h.b16 %v91
  %v661 = vunpack.c.l.b16 %v92
  %v662 = vunpack.c.l.b16 %v93
  %v663 = vunpack.c.h.b16 %v93
  %v664 = vunpack.c.l.b16 %v94
  %v665 = vunpack.c.l.b16 %v95
  %v666 = vunpack.c.h.b16 %v95
  %v667 = vunpack.c.l.b16 %v96
  %v668 = vunpack.c.l.b16 %v97
  %v669 = vunpack.c.h.b16 %v97
  %v670 = vunpack.c.l.b16 %v98
  %v671 = vunpack.c.l.b16 %v99
  %v672 = vunpack.c.h.b16 %v99
  %v673 = vunpack.c.l.b16 %v100
  %v674 = vunpack.c.l.b16 %v101
  %v675 = vunpack.c.h.b16 %v101
  %v676 = vunpack.c.l.b16 %v102
  %v677 = vunpack.c.l.b16 %v103
  %v678 = vunpack.c.h.b16 %v103
  %v679 = vunpack.c.l.b16 %v104
  %v680 = vunpack.c.l.b16 %v105
  %v681 = vunpack.c.h.b16 %v105
  %v682 = vunpack.c.l.b16 %v106
  %v683 = vunpack.c.l.b16 %v107
  %v684 = vunpack.c.h.b16 %v107
  %v685 = vunpack.c.l.b16 %v108
  %v686 = vunpack.c.l.b16 %v109
  %v687 = vunpack.c.h.b16 %v109
  %v688 = vunpack.c.l.b16 %v110
  %v689 = vunpack.c.l.b16 %v111
  %v690 = vunpack.c.h.b16 %v111
  %v691 = vunpack.c.l.b16 %v112
  %v692 = vunpack.c.l.b16 %v113
  %v693 = vunpack.c.h.b16 %v113
  %v694 = vunpack.c.l.b16 %v114
  %v695 = vunpack.c.l.b16 %v115
  %v696 = vunpack.c.h.b16 %v115
  %v697 = vunpack.c.l.b16 %v116
  %v698 = vunpack.c.l.b16 %v117
  %v699 = vunpack.c.h.b16 %v117
  %v700 = vunpack.c.l.b16 %v118
  %v701 = vunpack.c.l.b16 %v119
  %v702 = vunpack.c.h.b16 %v119
  %v703 = vunpack.c.l.b16 %v120
  %v704 = vunpack.c.l.b16 %v121
  %v705 = vunpack.c.h.b16 %v121
  %v706 = vunpack.c.l.b16 %v122
  %v707 = vunpack.c.l.b16 %v123
  %v708 = vunpack.c.h.b16 %v123
  %v709 = vunpack.c.l.b16 %v124
  %v710 = vunpack.c.l.b16 %v125
  %v711 = vunpack.c.h.b16 %v125
  %v712 = vunpack.c.l.b16 %v126
  %v713 = vunpack.c.l.b16 %v127
  %v714 = vunpack.c.h.b16 %v127
  %v715 = vunpack.c.l.b16 %v128
  %v716 = vunpack.c.l.b16 %v129
  %v717 = vunpack.c.h.b16 %v129
  %v718 = vunpack.c.l.b16 %v130
  %v719 = vunpack.c.l.b16 %v131
  %v720 = vunpack.c.h.b16 %v131
  %v721 = vunpack.c.l.b16 %v132
  %v722 = vunpack.c.l.b16 %v133
  %v723 = vunpack.c.h.b16 %v133
  %v724 = vunpack.c.l.b16 %v134
  %v725 = vunpack.c.l.b16 %v135
  %v726 = vunpack.c.h.b16 %v135
  %v727 = vunpack.c.l.b16 %v136
  %v728 = vunpack.c.l.b16 %v137
  %v729 = vunpack.c.h.b16 %v137
  %v730 = vunpack.c.l.b16 %v138
  %v731 = vunpack.c.l.b16 %v139
  %v732 = vunpack.c.h.b16 %v139
  %v733 = vunpack.c.l.b16 %v140
  %v734 = vunpack.c.l.b16 %v141
  %v735 = vunpack.c.h.b16 %v141
  %v736 = vunpack.c.l.b16 %v142
  %v737 = vunpack.c.l.b16 %v143
  %v738 = vunpack.c.h.b16 %v143
  %v739 = vunpack.c.l.b16 %v144
  %v740 = vunpack.c.l.b16 %v145
  %v741 = vunpack.c.h.b16 %v145
  %v742 = vunpack.c.l.b16 %v146
  %v743 = vunpack.c.l.b16 %v147
  %v744 = vunpack.c.h.b16 %v147
  %v745 = vunpack.c.l.b16 %v148
  %v746 = vunpack.c.l.b16 %v149
  %v747 = vunpack.c.h.b16 %v149
  %v748 = vunpack.c.l.b16 %v150
  %v749 = vunpack.c.l.b16 %v151
  %v750 = vunpack.c.h.b16 %v151
  %v751 = vunpack.c.l.b16 %v152
  %v752 = vunpack.c.l.b16 %v153
  %v753 = vunpack.c.h.b16 %v153
  %v754 = vunpack.c.l.b16 %v154
  %v755 = vunpack.c.l.b16 %v155
  %v756 = vunpack.c.h.b16 %v155
  %v757 = vunpack.c.l.b16 %v156
  %v758 = vunpack.c.l.b16 %v157
  %v759 = vunpack.c.h.b16 %v157
  %v760 = vunpack.c.l.b16 %v158
  %v761 = vunpack.c.l.b16 %v159
  %v762 = vunpack.c.h.b16 %v159
  %v763 = vunpack.c.l.b16 %v160
  %v764 = vunpack.c.l.b16 %v161
  %v765 = vunpack.c.h.b16 %v161
  %v766 = vunpack.c.l.b16 %v162
  %v767 = vunpack.c.l.b16 %v163
  %v768 = vunpack.c.h.b16 %v163
  %v769 = vunpack.c.l.b16 %v164
  %v770 = vunpack.c.l.b16 %v165
  %v771 = vunpack.c.h.b16 %v165
  %v772 = vunpack.c.l.b16 %v166
  %v773 = vunpack.c.l.b16 %v167
  %v774 = vunpack.c.h.b16 %v167
  %v775 = vunpack.c.l.b16 %v168
  %v776 = vpack.c.b16 %v647, %v644
  %v777 = vpack.c.b16 %v648, %v645
  %v778 = vpack.c.b16 %v649, %v646
  %v779 = vpack.c.b16 %v653, %v650
  %v780 = vpack.c.b16 %v654, %v651
  %v781 = vpack.c.b16 %v655, %v652
  %v782 = vpack.c.b16 %v659, %v656
  %v783 = vpack.c.b16 %v660, %v657
  %v784 = vpack.c.b16 %v661, %v658
  %v785 = vpack.c.b16 %v665, %v662
  %v786 = vpack.c.b16 %v666, %v663
  %v787 = vpack.c.b16 %v667, %v664
  %v788 = vpack.c.b16 %v671, %v668
  %v789 = vpack.c.b16 %v672, %v669
  %v790 = vpack.c.b16 %v673, %v670
  %v791 = vpack.c.b16 %v677, %v674
  %v792 = vpack.c.b16 %v678, %v675
  %v793 = vpack.c.b16 %v679, %v676
  %v794 = vpack.c.b16 %v683, %v680
  %v795 = vpack.c.b16 %v684, %v681
  %v796 = vpack.c.b16 %v685, %v682
  %v797 = vpack.c.b16 %v689, %v686
  %v798 = vpack.c.b16 %v690, %v687
  %v799 = vpack.c.b16 %v691, %v688
  %v800 = vpack.c.b16 %v695, %v692
  %v801 = vpack.c.b16 %v696, %v693
  %v802 = vpack.c.b16 %v697, %v694
  %v803 = vpack.c.b16 %v701, %v698
  %v804 = vpack.c.b16 %v702, %v699
  %v805 = vpack.c.b16 %v703, %v700
  %v806 = vpack.c.b16 %v707, %v704
  %v807 = vpack.c.b16 %v708, %v705
  %v808 = vpack.c.b16 %v709, %v706
  %v809 = vpack.c.b16 %v713, %v710
  %v810 = vpack.c.b16 %v714, %v711
  %v811 = vpack.c.b16 %v715, %v712
  %v812 = vpack.c.b16 %v719, %v716
  %v813 = vpack.c.b16 %v720, %v717
  %v814 = vpack.c.b16 %v721, %v718
  %v815 = vpack.c.b16 %v725, %v722
  %v816 = vpack.c.b16 %v726, %v723
  %v817 = vpack.c.b16 %v727, %v724
  %v818 = vpack.c.b16 %v731, %v728
  %v819 = vpack.c.b16 %v732, %v729
  %v820 = vpack.c.b16 %v733, %v730
  %v821 = vpack.c.b16 %v737, %v734
  %v822 = vpack.c.b16 %v738, %v735
  %v823 = vpack.c.b16 %v739, %v736
  %v824 = vpack.c.b16 %v743, %v740
  %v825 = vpack.c.b16 %v744, %v741
  %v826 = vpack.c.b16 %v745, %v742
  %v827 = vpack.c.b16 %v749, %v746
  %v828 = vpack.c.b16 %v750, %v747
  %v829 = vpack.c.b16 %v751, %v748
  %v830 = vpack.c.b16 %v755, %v752
  %v831 = vpack.c.b16 %v756, %v753
  %v832 = vpack.c.b16 %v757, %v754
  %v833 = vpack.c.b16 %v761, %v758
  %v834 = vpack.c.b16 %v762, %v759
  %v835 = vpack.c.b16 %v763, %v760
  %v836 = vpack.c.b16 %v767, %v764
  %v837 = vpack.c.b16 %v768, %v765
  %v838 = vpack.c.b16 %v769, %v766
  %v839 = vpack.c.b16 %v773, %v770
  %v840 = vpack.c.b16 %v774, %v771
  %v841 = vpack.c.b16 %v775, %v772
  %vm886 = vcmask 785408
  %v888 = vsel %vm886, %v778, 0
  %v891 = vsel %vm886, %v781, 0
  %v894 = vsel %vm886, %v784, 0
  %v897 = vsel %vm886, %v787, 0
  %v900 = vsel %vm886, %v790, 0
  %v903 = vsel %vm886, %v793, 0
  %v906 = vsel %vm886, %v796, 0
  %v909 = vsel %vm886, %v799, 0
  %v912 = vsel %vm886, %v802, 0
  %v915 = vsel %vm886, %v805, 0
  %v918 = vsel %vm886, %v808, 0
  %v921 = vsel %vm886, %v811, 0
  %v924 = vsel %vm886, %v814, 0
  %v927 = vsel %vm886, %v817, 0
  %v930 = vsel %vm886, %v820, 0
  %v933 = vsel %vm886, %v823, 0
  %v936 = vsel %vm886, %v826, 0
  %v939 = vsel %vm886, %v829, 0
  %v942 = vsel %vm886, %v832, 0
  %v945 = vsel %vm886, %v835, 0
  %v948 = vsel %vm886, %v838, 0
  %v951 = vsel %vm886, %v841, 0
  %953 = vmatprep.subr.bf16.mxu0 0
  %954 = vmatpush1.bf16.msra.mxu0 %v534
  %955 = vmatprep.subr.bf16.mxu0 0
  %956 = vmatpush1.bf16.msra.mxu0 %v533
  %957 = vmatprep.subr.bf16.mxu0 0
  %958 = vmatpush1.bf16.msra.mxu0 %v532
  %959 = vmatprep.subr.bf16.mxu0 0
  %960 = vmatpush1.bf16.msra.mxu0 %v531
  %961 = vmatprep.subr.bf16.mxu0 0
  %962 = vmatpush1.bf16.msra.mxu0 %v530
  %963 = vmatprep.subr.bf16.mxu0 0
  %964 = vmatpush1.bf16.msra.mxu0 %v529
  %965 = vmatprep.subr.bf16.mxu0 0
  %966 = vmatpush1.bf16.msra.mxu0 %v528
  %967 = vmatprep.subr.bf16.mxu0 0
  %968 = vmatpush1.bf16.msra.mxu0 %v527
  %969 = vmatprep.subr.bf16.mxu0 0
  %970 = vmatpush2.bf16.msra.mxu0 %v542
  %971 = vmatprep.subr.bf16.mxu0 0
  %972 = vmatpush2.bf16.msra.mxu0 %v541
  %973 = vmatprep.subr.bf16.mxu0 0
  %974 = vmatpush2.bf16.msra.mxu0 %v540
  %975 = vmatprep.subr.bf16.mxu0 0
  %976 = vmatpush2.bf16.msra.mxu0 %v539
  %977 = vmatprep.subr.bf16.mxu0 0
  %978 = vmatpush2.bf16.msra.mxu0 %v538
  %979 = vmatprep.subr.bf16.mxu0 0
  %980 = vmatpush2.bf16.msra.mxu0 %v537
  %981 = vmatprep.subr.bf16.mxu0 0
  %982 = vmatpush2.bf16.msra.mxu0 %v536
  %983 = vmatprep.subr.bf16.mxu0 0
  %984 = vmatpush2.bf16.msra.mxu0 %v535
  %985 = vmatprep.mubr.bf16.mxu0 %v777
  %986 = vmatmul.mubr.bf16.gmra.mxu0 %v776
  %v987 = vpop.f32.mrf.mxu0
  %v988 = vadd.f32 %v554, %v987
  %v989 = vpop.f32.mrf.mxu0
  %v990 = vpop.f32.mrf.mxu0
  %v991 = vadd.f32 %v554, %v990
  %v992 = vpop.f32.mrf.mxu0
  %993 = vmatprep.mubr.bf16.mxu0 %v780
  %994 = vmatmul.mubr.bf16.gmra.mxu0 %v779
  %v995 = vpop.f32.mrf.mxu0
  %v996 = vadd.f32 %v554, %v995
  %v997 = vpop.f32.mrf.mxu0
  %v998 = vpop.f32.mrf.mxu0
  %v999 = vadd.f32 %v554, %v998
  %v1000 = vpop.f32.mrf.mxu0
  %1001 = vmatprep.mubr.bf16.mxu0 %v783
  %1002 = vmatmul.mubr.bf16.gmra.mxu0 %v782
  %v1003 = vpop.f32.mrf.mxu0
  %v1004 = vadd.f32 %v554, %v1003
  %v1005 = vpop.f32.mrf.mxu0
  %v1006 = vpop.f32.mrf.mxu0
  %v1007 = vadd.f32 %v554, %v1006
  %v1008 = vpop.f32.mrf.mxu0
  %1009 = vmatprep.mubr.bf16.mxu0 %v786
  %1010 = vmatmul.mubr.bf16.gmra.mxu0 %v785
  %v1011 = vpop.f32.mrf.mxu0
  %v1012 = vadd.f32 %v554, %v1011
  %v1013 = vpop.f32.mrf.mxu0
  %v1014 = vpop.f32.mrf.mxu0
  %v1015 = vadd.f32 %v554, %v1014
  %v1016 = vpop.f32.mrf.mxu0
  %1017 = vmatprep.mubr.bf16.mxu0 %v789
  %1018 = vmatmul.mubr.bf16.gmra.mxu0 %v788
  %v1019 = vpop.f32.mrf.mxu0
  %v1020 = vadd.f32 %v554, %v1019
  %v1021 = vpop.f32.mrf.mxu0
  %v1022 = vpop.f32.mrf.mxu0
  %v1023 = vadd.f32 %v554, %v1022
  %v1024 = vpop.f32.mrf.mxu0
  %1025 = vmatprep.mubr.bf16.mxu0 %v792
  %1026 = vmatmul.mubr.bf16.gmra.mxu0 %v791
  %v1027 = vpop.f32.mrf.mxu0
  %v1028 = vadd.f32 %v554, %v1027
  %v1029 = vpop.f32.mrf.mxu0
  %v1030 = vpop.f32.mrf.mxu0
  %v1031 = vadd.f32 %v554, %v1030
  %v1032 = vpop.f32.mrf.mxu0
  %1033 = vmatprep.mubr.bf16.mxu0 %v795
  %1034 = vmatmul.mubr.bf16.gmra.mxu0 %v794
  %v1035 = vpop.f32.mrf.mxu0
  %v1036 = vadd.f32 %v554, %v1035
  %v1037 = vpop.f32.mrf.mxu0
  %v1038 = vpop.f32.mrf.mxu0
  %v1039 = vadd.f32 %v554, %v1038
  %v1040 = vpop.f32.mrf.mxu0
  %1041 = vmatprep.mubr.bf16.mxu0 %v798
  %1042 = vmatmul.mubr.bf16.gmra.mxu0 %v797
  %v1043 = vpop.f32.mrf.mxu0
  %v1044 = vadd.f32 %v554, %v1043
  %v1045 = vpop.f32.mrf.mxu0
  %v1046 = vpop.f32.mrf.mxu0
  %v1047 = vadd.f32 %v554, %v1046
  %v1048 = vpop.f32.mrf.mxu0
  %1049 = vmatprep.mubr.bf16.mxu0 %v801
  %1050 = vmatmul.mubr.bf16.gmra.mxu0 %v800
  %v1051 = vpop.f32.mrf.mxu0
  %v1052 = vadd.f32 %v554, %v1051
  %v1053 = vpop.f32.mrf.mxu0
  %v1054 = vpop.f32.mrf.mxu0
  %v1055 = vadd.f32 %v554, %v1054
  %v1056 = vpop.f32.mrf.mxu0
  %1057 = vmatprep.mubr.bf16.mxu0 %v804
  %1058 = vmatmul.mubr.bf16.gmra.mxu0 %v803
  %v1059 = vpop.f32.mrf.mxu0
  %v1060 = vadd.f32 %v554, %v1059
  %v1061 = vpop.f32.mrf.mxu0
  %v1062 = vpop.f32.mrf.mxu0
  %v1063 = vadd.f32 %v554, %v1062
  %v1064 = vpop.f32.mrf.mxu0
  %1065 = vmatprep.mubr.bf16.mxu0 %v807
  %1066 = vmatmul.mubr.bf16.gmra.mxu0 %v806
  %v1067 = vpop.f32.mrf.mxu0
  %v1068 = vadd.f32 %v554, %v1067
  %v1069 = vpop.f32.mrf.mxu0
  %v1070 = vpop.f32.mrf.mxu0
  %v1071 = vadd.f32 %v554, %v1070
  %v1072 = vpop.f32.mrf.mxu0
  %1073 = vmatprep.mubr.bf16.mxu0 %v810
  %1074 = vmatmul.mubr.bf16.gmra.mxu0 %v809
  %v1075 = vpop.f32.mrf.mxu0
  %v1076 = vadd.f32 %v554, %v1075
  %v1077 = vpop.f32.mrf.mxu0
  %v1078 = vpop.f32.mrf.mxu0
  %v1079 = vadd.f32 %v554, %v1078
  %v1080 = vpop.f32.mrf.mxu0
  %1081 = vmatprep.mubr.bf16.mxu0 %v813
  %1082 = vmatmul.mubr.bf16.gmra.mxu0 %v812
  %v1083 = vpop.f32.mrf.mxu0
  %v1084 = vadd.f32 %v554, %v1083
  %v1085 = vpop.f32.mrf.mxu0
  %v1086 = vpop.f32.mrf.mxu0
  %v1087 = vadd.f32 %v554, %v1086
  %v1088 = vpop.f32.mrf.mxu0
  %1089 = vmatprep.mubr.bf16.mxu0 %v816
  %1090 = vmatmul.mubr.bf16.gmra.mxu0 %v815
  %v1091 = vpop.f32.mrf.mxu0
  %v1092 = vadd.f32 %v554, %v1091
  %v1093 = vpop.f32.mrf.mxu0
  %v1094 = vpop.f32.mrf.mxu0
  %v1095 = vadd.f32 %v554, %v1094
  %v1096 = vpop.f32.mrf.mxu0
  %1097 = vmatprep.mubr.bf16.mxu0 %v819
  %1098 = vmatmul.mubr.bf16.gmra.mxu0 %v818
  %v1099 = vpop.f32.mrf.mxu0
  %v1100 = vadd.f32 %v554, %v1099
  %v1101 = vpop.f32.mrf.mxu0
  %v1102 = vpop.f32.mrf.mxu0
  %v1103 = vadd.f32 %v554, %v1102
  %v1104 = vpop.f32.mrf.mxu0
  %1105 = vmatprep.mubr.bf16.mxu0 %v822
  %1106 = vmatmul.mubr.bf16.gmra.mxu0 %v821
  %v1107 = vpop.f32.mrf.mxu0
  %v1108 = vadd.f32 %v554, %v1107
  %v1109 = vpop.f32.mrf.mxu0
  %v1110 = vpop.f32.mrf.mxu0
  %v1111 = vadd.f32 %v554, %v1110
  %v1112 = vpop.f32.mrf.mxu0
  %1113 = vmatprep.mubr.bf16.mxu0 %v825
  %1114 = vmatmul.mubr.bf16.gmra.mxu0 %v824
  %v1115 = vpop.f32.mrf.mxu0
  %v1116 = vadd.f32 %v554, %v1115
  %v1117 = vpop.f32.mrf.mxu0
  %v1118 = vpop.f32.mrf.mxu0
  %v1119 = vadd.f32 %v554, %v1118
  %v1120 = vpop.f32.mrf.mxu0
  %1121 = vmatprep.mubr.bf16.mxu0 %v828
  %1122 = vmatmul.mubr.bf16.gmra.mxu0 %v827
  %v1123 = vpop.f32.mrf.mxu0
  %v1124 = vadd.f32 %v554, %v1123
  %v1125 = vpop.f32.mrf.mxu0
  %v1126 = vpop.f32.mrf.mxu0
  %v1127 = vadd.f32 %v554, %v1126
  %v1128 = vpop.f32.mrf.mxu0
  %1129 = vmatprep.mubr.bf16.mxu0 %v831
  %1130 = vmatmul.mubr.bf16.gmra.mxu0 %v830
  %v1131 = vpop.f32.mrf.mxu0
  %v1132 = vadd.f32 %v554, %v1131
  %v1133 = vpop.f32.mrf.mxu0
  %v1134 = vpop.f32.mrf.mxu0
  %v1135 = vadd.f32 %v554, %v1134
  %v1136 = vpop.f32.mrf.mxu0
  %1137 = vmatprep.mubr.bf16.mxu0 %v834
  %1138 = vmatmul.mubr.bf16.gmra.mxu0 %v833
  %v1139 = vpop.f32.mrf.mxu0
  %v1140 = vadd.f32 %v554, %v1139
  %v1141 = vpop.f32.mrf.mxu0
  %v1142 = vpop.f32.mrf.mxu0
  %v1143 = vadd.f32 %v554, %v1142
  %v1144 = vpop.f32.mrf.mxu0
  %1145 = vmatprep.mubr.bf16.mxu0 %v837
  %1146 = vmatmul.mubr.bf16.gmra.mxu0 %v836
  %v1147 = vpop.f32.mrf.mxu0
  %v1148 = vadd.f32 %v554, %v1147
  %v1149 = vpop.f32.mrf.mxu0
  %v1150 = vpop.f32.mrf.mxu0
  %v1151 = vadd.f32 %v554, %v1150
  %v1152 = vpop.f32.mrf.mxu0
  %1153 = vmatprep.mubr.bf16.mxu0 %v840
  %1154 = vmatmul.mubr.bf16.gmra.mxu0 %v839
  %v1155 = vpop.f32.mrf.mxu0
  %v1156 = vadd.f32 %v554, %v1155
  %v1157 = vpop.f32.mrf.mxu0
  %v1158 = vpop.f32.mrf.mxu0
  %v1159 = vadd.f32 %v554, %v1158
  %v1160 = vpop.f32.mrf.mxu0
  %1161 = vdwg.mxu0
  %1162 = vmatprep.subr.bf16.mxu0 0
  %1163 = vmatpush1.bf16.msra.mxu0 0
  %1164 = vmatprep.subr.bf16.mxu0 0
  %1165 = vmatpush1.bf16.msra.mxu0 0
  %1166 = vmatprep.subr.bf16.mxu0 0
  %1167 = vmatpush1.bf16.msra.mxu0 %v548
  %1168 = vmatprep.subr.bf16.mxu0 0
  %1169 = vmatpush1.bf16.msra.mxu0 %v547
  %1170 = vmatprep.subr.bf16.mxu0 0
  %1171 = vmatpush1.bf16.msra.mxu0 %v546
  %1172 = vmatprep.subr.bf16.mxu0 0
  %1173 = vmatpush1.bf16.msra.mxu0 %v545
  %1174 = vmatprep.subr.bf16.mxu0 0
  %1175 = vmatpush1.bf16.msra.mxu0 %v544
  %1176 = vmatprep.subr.bf16.mxu0 0
  %1177 = vmatpush1.bf16.msra.mxu0 %v543
  %1178 = vmatprep.subr.bf16.mxu0 0
  %1179 = vmatpush2.bf16.msra.mxu0 0
  %1180 = vmatprep.subr.bf16.mxu0 0
  %1181 = vmatpush2.bf16.msra.mxu0 0
  %1182 = vmatprep.subr.bf16.mxu0 0
  %1183 = vmatpush2.bf16.msra.mxu0 0
  %1184 = vmatprep.subr.bf16.mxu0 0
  %1185 = vmatpush2.bf16.msra.mxu0 0
  %1186 = vmatprep.subr.bf16.mxu0 0
  %1187 = vmatpush2.bf16.msra.mxu0 0
  %1188 = vmatprep.subr.bf16.mxu0 0
  %1189 = vmatpush2.bf16.msra.mxu0 0
  %1190 = vmatprep.subr.bf16.mxu0 0
  %1191 = vmatpush2.bf16.msra.mxu0 0
  %1192 = vmatprep.subr.bf16.mxu0 0
  %1193 = vmatpush2.bf16.msra.mxu0 0
  %1194 = vmatprep.mubr.bf16.mxu0 0
  %1195 = vmatmul.mubr.bf16.gmra.mxu0 %v888
  %v1196 = vpop.f32.mrf.mxu0
  %v1197 = vadd.f32 %v988, %v1196
  %v1198 = vpop.f32.mrf.mxu0
  %v1199 = vpop.f32.mrf.mxu0
  %v1200 = vadd.f32 %v991, %v1199
  %v1201 = vpop.f32.mrf.mxu0
  %1202 = vmatprep.mubr.bf16.mxu0 0
  %1203 = vmatmul.mubr.bf16.gmra.mxu0 %v891
  %v1204 = vpop.f32.mrf.mxu0
  %v1205 = vadd.f32 %v996, %v1204
  %v1206 = vpop.f32.mrf.mxu0
  %v1207 = vpop.f32.mrf.mxu0
  %v1208 = vadd.f32 %v999, %v1207
  %v1209 = vpop.f32.mrf.mxu0
  %1210 = vmatprep.mubr.bf16.mxu0 0
  %1211 = vmatmul.mubr.bf16.gmra.mxu0 %v894
  %v1212 = vpop.f32.mrf.mxu0
  %v1213 = vadd.f32 %v1004, %v1212
  %v1214 = vpop.f32.mrf.mxu0
  %v1215 = vpop.f32.mrf.mxu0
  %v1216 = vadd.f32 %v1007, %v1215
  %v1217 = vpop.f32.mrf.mxu0
  %1218 = vmatprep.mubr.bf16.mxu0 0
  %1219 = vmatmul.mubr.bf16.gmra.mxu0 %v897
  %v1220 = vpop.f32.mrf.mxu0
  %v1221 = vadd.f32 %v1012, %v1220
  %v1222 = vpop.f32.mrf.mxu0
  %v1223 = vpop.f32.mrf.mxu0
  %v1224 = vadd.f32 %v1015, %v1223
  %v1225 = vpop.f32.mrf.mxu0
  %1226 = vmatprep.mubr.bf16.mxu0 0
  %1227 = vmatmul.mubr.bf16.gmra.mxu0 %v900
  %v1228 = vpop.f32.mrf.mxu0
  %v1229 = vadd.f32 %v1020, %v1228
  %v1230 = vpop.f32.mrf.mxu0
  %v1231 = vpop.f32.mrf.mxu0
  %v1232 = vadd.f32 %v1023, %v1231
  %v1233 = vpop.f32.mrf.mxu0
  %1234 = vmatprep.mubr.bf16.mxu0 0
  %1235 = vmatmul.mubr.bf16.gmra.mxu0 %v903
  %v1236 = vpop.f32.mrf.mxu0
  %v1237 = vadd.f32 %v1028, %v1236
  %v1238 = vpop.f32.mrf.mxu0
  %v1239 = vpop.f32.mrf.mxu0
  %v1240 = vadd.f32 %v1031, %v1239
  %v1241 = vpop.f32.mrf.mxu0
  %1242 = vmatprep.mubr.bf16.mxu0 0
  %1243 = vmatmul.mubr.bf16.gmra.mxu0 %v906
  %v1244 = vpop.f32.mrf.mxu0
  %v1245 = vadd.f32 %v1036, %v1244
  %v1246 = vpop.f32.mrf.mxu0
  %v1247 = vpop.f32.mrf.mxu0
  %v1248 = vadd.f32 %v1039, %v1247
  %v1249 = vpop.f32.mrf.mxu0
  %1250 = vmatprep.mubr.bf16.mxu0 0
  %1251 = vmatmul.mubr.bf16.gmra.mxu0 %v909
  %v1252 = vpop.f32.mrf.mxu0
  %v1253 = vadd.f32 %v1044, %v1252
  %v1254 = vpop.f32.mrf.mxu0
  %v1255 = vpop.f32.mrf.mxu0
  %v1256 = vadd.f32 %v1047, %v1255
  %v1257 = vpop.f32.mrf.mxu0
  %1258 = vmatprep.mubr.bf16.mxu0 0
  %1259 = vmatmul.mubr.bf16.gmra.mxu0 %v912
  %v1260 = vpop.f32.mrf.mxu0
  %v1261 = vadd.f32 %v1052, %v1260
  %v1262 = vpop.f32.mrf.mxu0
  %v1263 = vpop.f32.mrf.mxu0
  %v1264 = vadd.f32 %v1055, %v1263
  %v1265 = vpop.f32.mrf.mxu0
  %1266 = vmatprep.mubr.bf16.mxu0 0
  %1267 = vmatmul.mubr.bf16.gmra.mxu0 %v915
  %v1268 = vpop.f32.mrf.mxu0
  %v1269 = vadd.f32 %v1060, %v1268
  %v1270 = vpop.f32.mrf.mxu0
  %v1271 = vpop.f32.mrf.mxu0
  %v1272 = vadd.f32 %v1063, %v1271
  %v1273 = vpop.f32.mrf.mxu0
  %1274 = vmatprep.mubr.bf16.mxu0 0
  %1275 = vmatmul.mubr.bf16.gmra.mxu0 %v918
  %v1276 = vpop.f32.mrf.mxu0
  %v1277 = vadd.f32 %v1068, %v1276
  %v1278 = vpop.f32.mrf.mxu0
  %v1279 = vpop.f32.mrf.mxu0
  %v1280 = vadd.f32 %v1071, %v1279
  %v1281 = vpop.f32.mrf.mxu0
  %1282 = vmatprep.mubr.bf16.mxu0 0
  %1283 = vmatmul.mubr.bf16.gmra.mxu0 %v921
  %v1284 = vpop.f32.mrf.mxu0
  %v1285 = vadd.f32 %v1076, %v1284
  %v1286 = vpop.f32.mrf.mxu0
  %v1287 = vpop.f32.mrf.mxu0
  %v1288 = vadd.f32 %v1079, %v1287
  %v1289 = vpop.f32.mrf.mxu0
  %1290 = vmatprep.mubr.bf16.mxu0 0
  %1291 = vmatmul.mubr.bf16.gmra.mxu0 %v924
  %v1292 = vpop.f32.mrf.mxu0
  %v1293 = vadd.f32 %v1084, %v1292
  %v1294 = vpop.f32.mrf.mxu0
  %v1295 = vpop.f32.mrf.mxu0
  %v1296 = vadd.f32 %v1087, %v1295
  %v1297 = vpop.f32.mrf.mxu0
  %1298 = vmatprep.mubr.bf16.mxu0 0
  %1299 = vmatmul.mubr.bf16.gmra.mxu0 %v927
  %v1300 = vpop.f32.mrf.mxu0
  %v1301 = vadd.f32 %v1092, %v1300
  %v1302 = vpop.f32.mrf.mxu0
  %v1303 = vpop.f32.mrf.mxu0
  %v1304 = vadd.f32 %v1095, %v1303
  %v1305 = vpop.f32.mrf.mxu0
  %1306 = vmatprep.mubr.bf16.mxu0 0
  %1307 = vmatmul.mubr.bf16.gmra.mxu0 %v930
  %v1308 = vpop.f32.mrf.mxu0
  %v1309 = vadd.f32 %v1100, %v1308
  %v1310 = vpop.f32.mrf.mxu0
  %v1311 = vpop.f32.mrf.mxu0
  %v1312 = vadd.f32 %v1103, %v1311
  %v1313 = vpop.f32.mrf.mxu0
  %1314 = vmatprep.mubr.bf16.mxu0 0
  %1315 = vmatmul.mubr.bf16.gmra.mxu0 %v933
  %v1316 = vpop.f32.mrf.mxu0
  %v1317 = vadd.f32 %v1108, %v1316
  %v1318 = vpop.f32.mrf.mxu0
  %v1319 = vpop.f32.mrf.mxu0
  %v1320 = vadd.f32 %v1111, %v1319
  %v1321 = vpop.f32.mrf.mxu0
  %1322 = vmatprep.mubr.bf16.mxu0 0
  %1323 = vmatmul.mubr.bf16.gmra.mxu0 %v936
  %v1324 = vpop.f32.mrf.mxu0
  %v1325 = vadd.f32 %v1116, %v1324
  %v1326 = vpop.f32.mrf.mxu0
  %v1327 = vpop.f32.mrf.mxu0
  %v1328 = vadd.f32 %v1119, %v1327
  %v1329 = vpop.f32.mrf.mxu0
  %1330 = vmatprep.mubr.bf16.mxu0 0
  %1331 = vmatmul.mubr.bf16.gmra.mxu0 %v939
  %v1332 = vpop.f32.mrf.mxu0
  %v1333 = vadd.f32 %v1124, %v1332
  %v1334 = vpop.f32.mrf.mxu0
  %v1335 = vpop.f32.mrf.mxu0
  %v1336 = vadd.f32 %v1127, %v1335
  %v1337 = vpop.f32.mrf.mxu0
  %1338 = vmatprep.mubr.bf16.mxu0 0
  %1339 = vmatmul.mubr.bf16.gmra.mxu0 %v942
  %v1340 = vpop.f32.mrf.mxu0
  %v1341 = vadd.f32 %v1132, %v1340
  %v1342 = vpop.f32.mrf.mxu0
  %v1343 = vpop.f32.mrf.mxu0
  %v1344 = vadd.f32 %v1135, %v1343
  %v1345 = vpop.f32.mrf.mxu0
  %1346 = vmatprep.mubr.bf16.mxu0 0
  %1347 = vmatmul.mubr.bf16.gmra.mxu0 %v945
  %v1348 = vpop.f32.mrf.mxu0
  %v1349 = vadd.f32 %v1140, %v1348
  %v1350 = vpop.f32.mrf.mxu0
  %v1351 = vpop.f32.mrf.mxu0
  %v1352 = vadd.f32 %v1143, %v1351
  %v1353 = vpop.f32.mrf.mxu0
  %1354 = vmatprep.mubr.bf16.mxu0 0
  %1355 = vmatmul.mubr.bf16.gmra.mxu0 %v948
  %v1356 = vpop.f32.mrf.mxu0
  %v1357 = vadd.f32 %v1148, %v1356
  %v1358 = vpop.f32.mrf.mxu0
  %v1359 = vpop.f32.mrf.mxu0
  %v1360 = vadd.f32 %v1151, %v1359
  %v1361 = vpop.f32.mrf.mxu0
  %1362 = vmatprep.mubr.bf16.mxu0 0
  %1363 = vmatmul.mubr.bf16.gmra.mxu0 %v951
  %v1364 = vpop.f32.mrf.mxu0
  %v1365 = vadd.f32 %v1156, %v1364
  %v1366 = vpop.f32.mrf.mxu0
  %v1367 = vpop.f32.mrf.mxu0
  %v1368 = vadd.f32 %v1159, %v1367
  %v1369 = vpop.f32.mrf.mxu0
  %1370 = vdwg.mxu0
  %v1371 = vtanh.pop %v1197
  %v1372 = vtanh.pop %v1200
  %v1373 = vtanh.pop %v1205
  %v1374 = vtanh.pop %v1208
  %v1375 = vtanh.pop %v1213
  %v1376 = vtanh.pop %v1216
  %v1377 = vtanh.pop %v1221
  %v1378 = vtanh.pop %v1224
  %v1379 = vtanh.pop %v1229
  %v1380 = vtanh.pop %v1232
  %v1381 = vtanh.pop %v1237
  %v1382 = vtanh.pop %v1240
  %v1383 = vtanh.pop %v1245
  %v1384 = vtanh.pop %v1248
  %v1385 = vtanh.pop %v1253
  %v1386 = vtanh.pop %v1256
  %v1387 = vtanh.pop %v1261
  %v1388 = vtanh.pop %v1264
  %v1389 = vtanh.pop %v1269
  %v1390 = vtanh.pop %v1272
  %v1391 = vtanh.pop %v1277
  %v1392 = vtanh.pop %v1280
  %v1393 = vtanh.pop %v1285
  %v1394 = vtanh.pop %v1288
  %v1395 = vtanh.pop %v1293
  %v1396 = vtanh.pop %v1296
  %v1397 = vtanh.pop %v1301
  %v1398 = vtanh.pop %v1304
  %v1399 = vtanh.pop %v1309
  %v1400 = vtanh.pop %v1312
  %v1401 = vtanh.pop %v1317
  %v1402 = vtanh.pop %v1320
  %v1403 = vtanh.pop %v1325
  %v1404 = vtanh.pop %v1328
  %v1405 = vtanh.pop %v1333
  %v1406 = vtanh.pop %v1336
  %v1407 = vtanh.pop %v1341
  %v1408 = vtanh.pop %v1344
  %v1409 = vtanh.pop %v1349
  %v1410 = vtanh.pop %v1352
  %v1411 = vtanh.pop %v1357
  %v1412 = vtanh.pop %v1360
  %v1413 = vtanh.pop %v1365
  %v1414 = vtanh.pop %v1368
  %v1415 = vld [vmem:[%s4] sm:$0xf]
  %v1416 = vld [vmem:[%s4 + $0x4] sm:$0xf]
  %v1417 = vld [vmem:[%s4 + $0x8] sm:$0xf]
  %v1418 = vld [vmem:[%s4 + $0xc] sm:$0xf]
  %v1419 = vpack.c.bf16 %v1372, %v1371
  %v1420 = vpack.c.bf16 %v1374, %v1373
  %v1421 = vpack.c.bf16 %v1376, %v1375
  %v1422 = vpack.c.bf16 %v1378, %v1377
  %v1423 = vpack.c.bf16 %v1380, %v1379
  %v1424 = vpack.c.bf16 %v1382, %v1381
  %v1425 = vpack.c.bf16 %v1384, %v1383
  %v1426 = vpack.c.bf16 %v1386, %v1385
  %v1427 = vpack.c.bf16 %v1388, %v1387
  %v1428 = vpack.c.bf16 %v1390, %v1389
  %v1429 = vpack.c.bf16 %v1392, %v1391
  %v1430 = vpack.c.bf16 %v1394, %v1393
  %v1431 = vpack.c.bf16 %v1396, %v1395
  %v1432 = vpack.c.bf16 %v1398, %v1397
  %v1433 = vpack.c.bf16 %v1400, %v1399
  %v1434 = vpack.c.bf16 %v1402, %v1401
  %v1435 = vpack.c.bf16 %v1404, %v1403
  %v1436 = vpack.c.bf16 %v1406, %v1405
  %v1437 = vpack.c.bf16 %v1408, %v1407
  %v1438 = vpack.c.bf16 %v1410, %v1409
  %v1439 = vpack.c.bf16 %v1412, %v1411
  %v1440 = vpack.c.bf16 %v1414, %v1413
  %v1445 = vunpack.c.l.b16 %v1415
  %v1446 = vunpack.c.l.b16 %v1416
  %v1447 = vunpack.c.l.b16 %v1417
  %v1448 = vunpack.c.l.b16 %v1418
  %v1449 = vpack.c.b16 %v1446, %v1445
  %v1450 = vpack.c.b16 %v1448, %v1447
  %vm1453 = vcmask 261120
  %v1455 = vsel %vm1453, %v1419, 0
  %v1458 = vsel %vm1453, %v1420, 0
  %v1461 = vsel %vm1453, %v1421, 0
  %v1464 = vsel %vm1453, %v1422, 0
  %v1467 = vsel %vm1453, %v1423, 0
  %v1470 = vsel %vm1453, %v1424, 0
  %v1473 = vsel %vm1453, %v1425, 0
  %v1476 = vsel %vm1453, %v1426, 0
  %v1479 = vsel %vm1453, %v1427, 0
  %v1482 = vsel %vm1453, %v1428, 0
  %v1485 = vsel %vm1453, %v1429, 0
  %v1488 = vsel %vm1453, %v1430, 0
  %v1491 = vsel %vm1453, %v1431, 0
  %v1494 = vsel %vm1453, %v1432, 0
  %v1497 = vsel %vm1453, %v1433, 0
  %v1500 = vsel %vm1453, %v1434, 0
  %v1503 = vsel %vm1453, %v1435, 0
  %v1506 = vsel %vm1453, %v1436, 0
  %v1509 = vsel %vm1453, %v1437, 0
  %v1512 = vsel %vm1453, %v1438, 0
  %v1515 = vsel %vm1453, %v1439, 0
  %v1518 = vsel %vm1453, %v1440, 0
  %1520 = vmatprep.subr.bf16.mxu0 0
  %1521 = vmatpush1.bf16.msra.mxu0 0
  %1522 = vmatprep.subr.bf16.mxu0 0
  %1523 = vmatpush1.bf16.msra.mxu0 0
  %1524 = vmatprep.subr.bf16.mxu0 0
  %1525 = vmatpush1.bf16.msra.mxu0 0
  %1526 = vmatprep.subr.bf16.mxu0 0
  %1527 = vmatpush1.bf16.msra.mxu0 0
  %1528 = vmatprep.subr.bf16.mxu0 0
  %1529 = vmatpush1.bf16.msra.mxu0 0
  %1530 = vmatprep.subr.bf16.mxu0 0
  %1531 = vmatpush1.bf16.msra.mxu0 0
  %1532 = vmatprep.subr.bf16.mxu0 0
  %1533 = vmatpush1.bf16.msra.mxu0 %v1450
  %1534 = vmatprep.subr.bf16.mxu0 0
  %1535 = vmatpush1.bf16.msra.mxu0 %v1449
  %1536 = vmatprep.subr.bf16.mxu0 0
  %1537 = vmatpush2.bf16.msra.mxu0 0
  %1538 = vmatprep.subr.bf16.mxu0 0
  %1539 = vmatpush2.bf16.msra.mxu0 0
  %1540 = vmatprep.subr.bf16.mxu0 0
  %1541 = vmatpush2.bf16.msra.mxu0 0
  %1542 = vmatprep.subr.bf16.mxu0 0
  %1543 = vmatpush2.bf16.msra.mxu0 0
  %1544 = vmatprep.subr.bf16.mxu0 0
  %1545 = vmatpush2.bf16.msra.mxu0 0
  %1546 = vmatprep.subr.bf16.mxu0 0
  %1547 = vmatpush2.bf16.msra.mxu0 0
  %1548 = vmatprep.subr.bf16.mxu0 0
  %1549 = vmatpush2.bf16.msra.mxu0 0
  %1550 = vmatprep.subr.bf16.mxu0 0
  %1551 = vmatpush2.bf16.msra.mxu0 0
  %1552 = vmatprep.mubr.bf16.mxu0 0
  %1553 = vmatmul.mubr.bf16.gmra.mxu0 %v1455
  %v1554 = vpop.f32.mrf.mxu0
  %v1555 = vadd.f32 0.0, %v1554
  %v1556 = vpop.f32.mrf.mxu0
  %v1557 = vpop.f32.mrf.mxu0
  %v1558 = vadd.f32 0.0, %v1557
  %v1559 = vpop.f32.mrf.mxu0
  %1560 = vmatprep.mubr.bf16.mxu0 0
  %1561 = vmatmul.mubr.bf16.gmra.mxu0 %v1458
  %v1562 = vpop.f32.mrf.mxu0
  %v1563 = vadd.f32 0.0, %v1562
  %v1564 = vpop.f32.mrf.mxu0
  %v1565 = vpop.f32.mrf.mxu0
  %v1566 = vadd.f32 0.0, %v1565
  %v1567 = vpop.f32.mrf.mxu0
  %1568 = vmatprep.mubr.bf16.mxu0 0
  %1569 = vmatmul.mubr.bf16.gmra.mxu0 %v1461
  %v1570 = vpop.f32.mrf.mxu0
  %v1571 = vadd.f32 0.0, %v1570
  %v1572 = vpop.f32.mrf.mxu0
  %v1573 = vpop.f32.mrf.mxu0
  %v1574 = vadd.f32 0.0, %v1573
  %v1575 = vpop.f32.mrf.mxu0
  %1576 = vmatprep.mubr.bf16.mxu0 0
  %1577 = vmatmul.mubr.bf16.gmra.mxu0 %v1464
  %v1578 = vpop.f32.mrf.mxu0
  %v1579 = vadd.f32 0.0, %v1578
  %v1580 = vpop.f32.mrf.mxu0
  %v1581 = vpop.f32.mrf.mxu0
  %v1582 = vadd.f32 0.0, %v1581
  %v1583 = vpop.f32.mrf.mxu0
  %1584 = vmatprep.mubr.bf16.mxu0 0
  %1585 = vmatmul.mubr.bf16.gmra.mxu0 %v1467
  %v1586 = vpop.f32.mrf.mxu0
  %v1587 = vadd.f32 0.0, %v1586
  %v1588 = vpop.f32.mrf.mxu0
  %v1589 = vpop.f32.mrf.mxu0
  %v1590 = vadd.f32 0.0, %v1589
  %v1591 = vpop.f32.mrf.mxu0
  %1592 = vmatprep.mubr.bf16.mxu0 0
  %1593 = vmatmul.mubr.bf16.gmra.mxu0 %v1470
  %v1594 = vpop.f32.mrf.mxu0
  %v1595 = vadd.f32 0.0, %v1594
  %v1596 = vpop.f32.mrf.mxu0
  %v1597 = vpop.f32.mrf.mxu0
  %v1598 = vadd.f32 0.0, %v1597
  %v1599 = vpop.f32.mrf.mxu0
  %1600 = vmatprep.mubr.bf16.mxu0 0
  %1601 = vmatmul.mubr.bf16.gmra.mxu0 %v1473
  %v1602 = vpop.f32.mrf.mxu0
  %v1603 = vadd.f32 0.0, %v1602
  %v1604 = vpop.f32.mrf.mxu0
  %v1605 = vpop.f32.mrf.mxu0
  %v1606 = vadd.f32 0.0, %v1605
  %v1607 = vpop.f32.mrf.mxu0
  %1608 = vmatprep.mubr.bf16.mxu0 0
  %1609 = vmatmul.mubr.bf16.gmra.mxu0 %v1476
  %v1610 = vpop.f32.mrf.mxu0
  %v1611 = vadd.f32 0.0, %v1610
  %v1612 = vpop.f32.mrf.mxu0
  %v1613 = vpop.f32.mrf.mxu0
  %v1614 = vadd.f32 0.0, %v1613
  %v1615 = vpop.f32.mrf.mxu0
  %1616 = vmatprep.mubr.bf16.mxu0 0
  %1617 = vmatmul.mubr.bf16.gmra.mxu0 %v1479
  %v1618 = vpop.f32.mrf.mxu0
  %v1619 = vadd.f32 0.0, %v1618
  %v1620 = vpop.f32.mrf.mxu0
  %v1621 = vpop.f32.mrf.mxu0
  %v1622 = vadd.f32 0.0, %v1621
  %v1623 = vpop.f32.mrf.mxu0
  %1624 = vmatprep.mubr.bf16.mxu0 0
  %1625 = vmatmul.mubr.bf16.gmra.mxu0 %v1482
  %v1626 = vpop.f32.mrf.mxu0
  %v1627 = vadd.f32 0.0, %v1626
  %v1628 = vpop.f32.mrf.mxu0
  %v1629 = vpop.f32.mrf.mxu0
  %v1630 = vadd.f32 0.0, %v1629
  %v1631 = vpop.f32.mrf.mxu0
  %1632 = vmatprep.mubr.bf16.mxu0 0
  %1633 = vmatmul.mubr.bf16.gmra.mxu0 %v1485
  %v1634 = vpop.f32.mrf.mxu0
  %v1635 = vadd.f32 0.0, %v1634
  %v1636 = vpop.f32.mrf.mxu0
  %v1637 = vpop.f32.mrf.mxu0
  %v1638 = vadd.f32 0.0, %v1637
  %v1639 = vpop.f32.mrf.mxu0
  %1640 = vmatprep.mubr.bf16.mxu0 0
  %1641 = vmatmul.mubr.bf16.gmra.mxu0 %v1488
  %v1642 = vpop.f32.mrf.mxu0
  %v1643 = vadd.f32 0.0, %v1642
  %v1644 = vpop.f32.mrf.mxu0
  %v1645 = vpop.f32.mrf.mxu0
  %v1646 = vadd.f32 0.0, %v1645
  %v1647 = vpop.f32.mrf.mxu0
  %1648 = vmatprep.mubr.bf16.mxu0 0
  %1649 = vmatmul.mubr.bf16.gmra.mxu0 %v1491
  %v1650 = vpop.f32.mrf.mxu0
  %v1651 = vadd.f32 0.0, %v1650
  %v1652 = vpop.f32.mrf.mxu0
  %v1653 = vpop.f32.mrf.mxu0
  %v1654 = vadd.f32 0.0, %v1653
  %v1655 = vpop.f32.mrf.mxu0
  %1656 = vmatprep.mubr.bf16.mxu0 0
  %1657 = vmatmul.mubr.bf16.gmra.mxu0 %v1494
  %v1658 = vpop.f32.mrf.mxu0
  %v1659 = vadd.f32 0.0, %v1658
  %v1660 = vpop.f32.mrf.mxu0
  %v1661 = vpop.f32.mrf.mxu0
  %v1662 = vadd.f32 0.0, %v1661
  %v1663 = vpop.f32.mrf.mxu0
  %1664 = vmatprep.mubr.bf16.mxu0 0
  %1665 = vmatmul.mubr.bf16.gmra.mxu0 %v1497
  %v1666 = vpop.f32.mrf.mxu0
  %v1667 = vadd.f32 0.0, %v1666
  %v1668 = vpop.f32.mrf.mxu0
  %v1669 = vpop.f32.mrf.mxu0
  %v1670 = vadd.f32 0.0, %v1669
  %v1671 = vpop.f32.mrf.mxu0
  %1672 = vmatprep.mubr.bf16.mxu0 0
  %1673 = vmatmul.mubr.bf16.gmra.mxu0 %v1500
  %v1674 = vpop.f32.mrf.mxu0
  %v1675 = vadd.f32 0.0, %v1674
  %v1676 = vpop.f32.mrf.mxu0
  %v1677 = vpop.f32.mrf.mxu0
  %v1678 = vadd.f32 0.0, %v1677
  %v1679 = vpop.f32.mrf.mxu0
  %1680 = vmatprep.mubr.bf16.mxu0 0
  %1681 = vmatmul.mubr.bf16.gmra.mxu0 %v1503
  %v1682 = vpop.f32.mrf.mxu0
  %v1683 = vadd.f32 0.0, %v1682
  %v1684 = vpop.f32.mrf.mxu0
  %v1685 = vpop.f32.mrf.mxu0
  %v1686 = vadd.f32 0.0, %v1685
  %v1687 = vpop.f32.mrf.mxu0
  %1688 = vmatprep.mubr.bf16.mxu0 0
  %1689 = vmatmul.mubr.bf16.gmra.mxu0 %v1506
  %v1690 = vpop.f32.mrf.mxu0
  %v1691 = vadd.f32 0.0, %v1690
  %v1692 = vpop.f32.mrf.mxu0
  %v1693 = vpop.f32.mrf.mxu0
  %v1694 = vadd.f32 0.0, %v1693
  %v1695 = vpop.f32.mrf.mxu0
  %1696 = vmatprep.mubr.bf16.mxu0 0
  %1697 = vmatmul.mubr.bf16.gmra.mxu0 %v1509
  %v1698 = vpop.f32.mrf.mxu0
  %v1699 = vadd.f32 0.0, %v1698
  %v1700 = vpop.f32.mrf.mxu0
  %v1701 = vpop.f32.mrf.mxu0
  %v1702 = vadd.f32 0.0, %v1701
  %v1703 = vpop.f32.mrf.mxu0
  %1704 = vmatprep.mubr.bf16.mxu0 0
  %1705 = vmatmul.mubr.bf16.gmra.mxu0 %v1512
  %v1706 = vpop.f32.mrf.mxu0
  %v1707 = vadd.f32 0.0, %v1706
  %v1708 = vpop.f32.mrf.mxu0
  %v1709 = vpop.f32.mrf.mxu0
  %v1710 = vadd.f32 0.0, %v1709
  %v1711 = vpop.f32.mrf.mxu0
  %1712 = vmatprep.mubr.bf16.mxu0 0
  %1713 = vmatmul.mubr.bf16.gmra.mxu0 %v1515
  %v1714 = vpop.f32.mrf.mxu0
  %v1715 = vadd.f32 0.0, %v1714
  %v1716 = vpop.f32.mrf.mxu0
  %v1717 = vpop.f32.mrf.mxu0
  %v1718 = vadd.f32 0.0, %v1717
  %v1719 = vpop.f32.mrf.mxu0
  %1720 = vmatprep.mubr.bf16.mxu0 0
  %1721 = vmatmul.mubr.bf16.gmra.mxu0 %v1518
  %v1722 = vpop.f32.mrf.mxu0
  %v1723 = vadd.f32 0.0, %v1722
  %v1724 = vpop.f32.mrf.mxu0
  %v1725 = vpop.f32.mrf.mxu0
  %v1726 = vadd.f32 0.0, %v1725
  %v1727 = vpop.f32.mrf.mxu0
  %1728 = vdwg.mxu0
  %v1729 = vpack.c.bf16 %v1558, %v1555
  %v1730 = vpack.c.bf16 %v1566, %v1563
  %v1731 = vpack.c.bf16 %v1574, %v1571
  %v1732 = vpack.c.bf16 %v1582, %v1579
  %v1733 = vpack.c.bf16 %v1590, %v1587
  %v1734 = vpack.c.bf16 %v1598, %v1595
  %v1735 = vpack.c.bf16 %v1606, %v1603
  %v1736 = vpack.c.bf16 %v1614, %v1611
  %v1737 = vpack.c.bf16 %v1622, %v1619
  %v1738 = vpack.c.bf16 %v1630, %v1627
  %v1739 = vpack.c.bf16 %v1638, %v1635
  %v1740 = vpack.c.bf16 %v1646, %v1643
  %v1741 = vpack.c.bf16 %v1654, %v1651
  %v1742 = vpack.c.bf16 %v1662, %v1659
  %v1743 = vpack.c.bf16 %v1670, %v1667
  %v1744 = vpack.c.bf16 %v1678, %v1675
  %v1745 = vpack.c.bf16 %v1686, %v1683
  %v1746 = vpack.c.bf16 %v1694, %v1691
  %v1747 = vpack.c.bf16 %v1702, %v1699
  %v1748 = vpack.c.bf16 %v1710, %v1707
  %v1749 = vpack.c.bf16 %v1718, %v1715
  %v1750 = vpack.c.bf16 %v1726, %v1723
  %v1751 = vld [vmem:[%s5] sm:$0x1]
  %v1753 = vlaneseq
  %v1754 = vshrl.u32 %v1753, 7
  %v1755 = vsub.s32 0, %v1754
  %v1756 = vrot.slane %v1751, %v1755
  %1758 = vmatprep.subr.bf16.mxu0 0
  %1759 = vmatpush1.bf16.msra.mxu0 %v1736
  %1760 = vmatprep.subr.bf16.mxu0 0
  %1761 = vmatpush1.bf16.msra.mxu0 %v1735
  %1762 = vmatprep.subr.bf16.mxu0 0
  %1763 = vmatpush1.bf16.msra.mxu0 %v1734
  %1764 = vmatprep.subr.bf16.mxu0 0
  %1765 = vmatpush1.bf16.msra.mxu0 %v1733
  %1766 = vmatprep.subr.bf16.mxu0 0
  %1767 = vmatpush1.bf16.msra.mxu0 %v1732
  %1768 = vmatprep.subr.bf16.mxu0 0
  %1769 = vmatpush1.bf16.msra.mxu0 %v1731
  %1770 = vmatprep.subr.bf16.mxu0 0
  %1771 = vmatpush1.bf16.msra.mxu0 %v1730
  %1772 = vmatprep.subr.bf16.mxu0 0
  %1773 = vmatpush1.bf16.msra.mxu0 %v1729
  %1774 = vmatprep.subr.bf16.mxu0 0
  %1775 = vmatpush2.bf16.msra.mxu0 %v1744
  %1776 = vmatprep.subr.bf16.mxu0 0
  %1777 = vmatpush2.bf16.msra.mxu0 %v1743
  %1778 = vmatprep.subr.bf16.mxu0 0
  %1779 = vmatpush2.bf16.msra.mxu0 %v1742
  %1780 = vmatprep.subr.bf16.mxu0 0
  %1781 = vmatpush2.bf16.msra.mxu0 %v1741
  %1782 = vmatprep.subr.bf16.mxu0 0
  %1783 = vmatpush2.bf16.msra.mxu0 %v1740
  %1784 = vmatprep.subr.bf16.mxu0 0
  %1785 = vmatpush2.bf16.msra.mxu0 %v1739
  %1786 = vmatprep.subr.bf16.mxu0 0
  %1787 = vmatpush2.bf16.msra.mxu0 %v1738
  %1788 = vmatprep.subr.bf16.mxu0 0
  %1789 = vmatpush2.bf16.msra.mxu0 %v1737
  %1790 = vmatprep.mubr.bf16.mxu0 %v777
  %1791 = vmatmul.mubr.bf16.gmra.mxu0 %v776
  %v1792 = vpop.f32.mrf.mxu0
  %v1793 = vadd.f32 %v1756, %v1792
  %v1794 = vpop.f32.mrf.mxu0
  %v1795 = vpop.f32.mrf.mxu0
  %v1796 = vadd.f32 %v1756, %v1795
  %v1797 = vpop.f32.mrf.mxu0
  %1798 = vmatprep.mubr.bf16.mxu0 %v780
  %1799 = vmatmul.mubr.bf16.gmra.mxu0 %v779
  %v1800 = vpop.f32.mrf.mxu0
  %v1801 = vadd.f32 %v1756, %v1800
  %v1802 = vpop.f32.mrf.mxu0
  %v1803 = vpop.f32.mrf.mxu0
  %v1804 = vadd.f32 %v1756, %v1803
  %v1805 = vpop.f32.mrf.mxu0
  %1806 = vmatprep.mubr.bf16.mxu0 %v783
  %1807 = vmatmul.mubr.bf16.gmra.mxu0 %v782
  %v1808 = vpop.f32.mrf.mxu0
  %v1809 = vadd.f32 %v1756, %v1808
  %v1810 = vpop.f32.mrf.mxu0
  %v1811 = vpop.f32.mrf.mxu0
  %v1812 = vadd.f32 %v1756, %v1811
  %v1813 = vpop.f32.mrf.mxu0
  %1814 = vmatprep.mubr.bf16.mxu0 %v786
  %1815 = vmatmul.mubr.bf16.gmra.mxu0 %v785
  %v1816 = vpop.f32.mrf.mxu0
  %v1817 = vadd.f32 %v1756, %v1816
  %v1818 = vpop.f32.mrf.mxu0
  %v1819 = vpop.f32.mrf.mxu0
  %v1820 = vadd.f32 %v1756, %v1819
  %v1821 = vpop.f32.mrf.mxu0
  %1822 = vmatprep.mubr.bf16.mxu0 %v789
  %1823 = vmatmul.mubr.bf16.gmra.mxu0 %v788
  %v1824 = vpop.f32.mrf.mxu0
  %v1825 = vadd.f32 %v1756, %v1824
  %v1826 = vpop.f32.mrf.mxu0
  %v1827 = vpop.f32.mrf.mxu0
  %v1828 = vadd.f32 %v1756, %v1827
  %v1829 = vpop.f32.mrf.mxu0
  %1830 = vmatprep.mubr.bf16.mxu0 %v792
  %1831 = vmatmul.mubr.bf16.gmra.mxu0 %v791
  %v1832 = vpop.f32.mrf.mxu0
  %v1833 = vadd.f32 %v1756, %v1832
  %v1834 = vpop.f32.mrf.mxu0
  %v1835 = vpop.f32.mrf.mxu0
  %v1836 = vadd.f32 %v1756, %v1835
  %v1837 = vpop.f32.mrf.mxu0
  %1838 = vmatprep.mubr.bf16.mxu0 %v795
  %1839 = vmatmul.mubr.bf16.gmra.mxu0 %v794
  %v1840 = vpop.f32.mrf.mxu0
  %v1841 = vadd.f32 %v1756, %v1840
  %v1842 = vpop.f32.mrf.mxu0
  %v1843 = vpop.f32.mrf.mxu0
  %v1844 = vadd.f32 %v1756, %v1843
  %v1845 = vpop.f32.mrf.mxu0
  %1846 = vmatprep.mubr.bf16.mxu0 %v798
  %1847 = vmatmul.mubr.bf16.gmra.mxu0 %v797
  %v1848 = vpop.f32.mrf.mxu0
  %v1849 = vadd.f32 %v1756, %v1848
  %v1850 = vpop.f32.mrf.mxu0
  %v1851 = vpop.f32.mrf.mxu0
  %v1852 = vadd.f32 %v1756, %v1851
  %v1853 = vpop.f32.mrf.mxu0
  %1854 = vmatprep.mubr.bf16.mxu0 %v801
  %1855 = vmatmul.mubr.bf16.gmra.mxu0 %v800
  %v1856 = vpop.f32.mrf.mxu0
  %v1857 = vadd.f32 %v1756, %v1856
  %v1858 = vpop.f32.mrf.mxu0
  %v1859 = vpop.f32.mrf.mxu0
  %v1860 = vadd.f32 %v1756, %v1859
  %v1861 = vpop.f32.mrf.mxu0
  %1862 = vmatprep.mubr.bf16.mxu0 %v804
  %1863 = vmatmul.mubr.bf16.gmra.mxu0 %v803
  %v1864 = vpop.f32.mrf.mxu0
  %v1865 = vadd.f32 %v1756, %v1864
  %v1866 = vpop.f32.mrf.mxu0
  %v1867 = vpop.f32.mrf.mxu0
  %v1868 = vadd.f32 %v1756, %v1867
  %v1869 = vpop.f32.mrf.mxu0
  %1870 = vmatprep.mubr.bf16.mxu0 %v807
  %1871 = vmatmul.mubr.bf16.gmra.mxu0 %v806
  %v1872 = vpop.f32.mrf.mxu0
  %v1873 = vadd.f32 %v1756, %v1872
  %v1874 = vpop.f32.mrf.mxu0
  %v1875 = vpop.f32.mrf.mxu0
  %v1876 = vadd.f32 %v1756, %v1875
  %v1877 = vpop.f32.mrf.mxu0
  %1878 = vmatprep.mubr.bf16.mxu0 %v810
  %1879 = vmatmul.mubr.bf16.gmra.mxu0 %v809
  %v1880 = vpop.f32.mrf.mxu0
  %v1881 = vadd.f32 %v1756, %v1880
  %v1882 = vpop.f32.mrf.mxu0
  %v1883 = vpop.f32.mrf.mxu0
  %v1884 = vadd.f32 %v1756, %v1883
  %v1885 = vpop.f32.mrf.mxu0
  %1886 = vmatprep.mubr.bf16.mxu0 %v813
  %1887 = vmatmul.mubr.bf16.gmra.mxu0 %v812
  %v1888 = vpop.f32.mrf.mxu0
  %v1889 = vadd.f32 %v1756, %v1888
  %v1890 = vpop.f32.mrf.mxu0
  %v1891 = vpop.f32.mrf.mxu0
  %v1892 = vadd.f32 %v1756, %v1891
  %v1893 = vpop.f32.mrf.mxu0
  %1894 = vmatprep.mubr.bf16.mxu0 %v816
  %1895 = vmatmul.mubr.bf16.gmra.mxu0 %v815
  %v1896 = vpop.f32.mrf.mxu0
  %v1897 = vadd.f32 %v1756, %v1896
  %v1898 = vpop.f32.mrf.mxu0
  %v1899 = vpop.f32.mrf.mxu0
  %v1900 = vadd.f32 %v1756, %v1899
  %v1901 = vpop.f32.mrf.mxu0
  %1902 = vmatprep.mubr.bf16.mxu0 %v819
  %1903 = vmatmul.mubr.bf16.gmra.mxu0 %v818
  %v1904 = vpop.f32.mrf.mxu0
  %v1905 = vadd.f32 %v1756, %v1904
  %v1906 = vpop.f32.mrf.mxu0
  %v1907 = vpop.f32.mrf.mxu0
  %v1908 = vadd.f32 %v1756, %v1907
  %v1909 = vpop.f32.mrf.mxu0
  %1910 = vmatprep.mubr.bf16.mxu0 %v822
  %1911 = vmatmul.mubr.bf16.gmra.mxu0 %v821
  %v1912 = vpop.f32.mrf.mxu0
  %v1913 = vadd.f32 %v1756, %v1912
  %v1914 = vpop.f32.mrf.mxu0
  %v1915 = vpop.f32.mrf.mxu0
  %v1916 = vadd.f32 %v1756, %v1915
  %v1917 = vpop.f32.mrf.mxu0
  %1918 = vmatprep.mubr.bf16.mxu0 %v825
  %1919 = vmatmul.mubr.bf16.gmra.mxu0 %v824
  %v1920 = vpop.f32.mrf.mxu0
  %v1921 = vadd.f32 %v1756, %v1920
  %v1922 = vpop.f32.mrf.mxu0
  %v1923 = vpop.f32.mrf.mxu0
  %v1924 = vadd.f32 %v1756, %v1923
  %v1925 = vpop.f32.mrf.mxu0
  %1926 = vmatprep.mubr.bf16.mxu0 %v828
  %1927 = vmatmul.mubr.bf16.gmra.mxu0 %v827
  %v1928 = vpop.f32.mrf.mxu0
  %v1929 = vadd.f32 %v1756, %v1928
  %v1930 = vpop.f32.mrf.mxu0
  %v1931 = vpop.f32.mrf.mxu0
  %v1932 = vadd.f32 %v1756, %v1931
  %v1933 = vpop.f32.mrf.mxu0
  %1934 = vmatprep.mubr.bf16.mxu0 %v831
  %1935 = vmatmul.mubr.bf16.gmra.mxu0 %v830
  %v1936 = vpop.f32.mrf.mxu0
  %v1937 = vadd.f32 %v1756, %v1936
  %v1938 = vpop.f32.mrf.mxu0
  %v1939 = vpop.f32.mrf.mxu0
  %v1940 = vadd.f32 %v1756, %v1939
  %v1941 = vpop.f32.mrf.mxu0
  %1942 = vmatprep.mubr.bf16.mxu0 %v834
  %1943 = vmatmul.mubr.bf16.gmra.mxu0 %v833
  %v1944 = vpop.f32.mrf.mxu0
  %v1945 = vadd.f32 %v1756, %v1944
  %v1946 = vpop.f32.mrf.mxu0
  %v1947 = vpop.f32.mrf.mxu0
  %v1948 = vadd.f32 %v1756, %v1947
  %v1949 = vpop.f32.mrf.mxu0
  %1950 = vmatprep.mubr.bf16.mxu0 %v837
  %1951 = vmatmul.mubr.bf16.gmra.mxu0 %v836
  %v1952 = vpop.f32.mrf.mxu0
  %v1953 = vadd.f32 %v1756, %v1952
  %v1954 = vpop.f32.mrf.mxu0
  %v1955 = vpop.f32.mrf.mxu0
  %v1956 = vadd.f32 %v1756, %v1955
  %v1957 = vpop.f32.mrf.mxu0
  %1958 = vmatprep.mubr.bf16.mxu0 %v840
  %1959 = vmatmul.mubr.bf16.gmra.mxu0 %v839
  %v1960 = vpop.f32.mrf.mxu0
  %v1961 = vadd.f32 %v1756, %v1960
  %v1962 = vpop.f32.mrf.mxu0
  %v1963 = vpop.f32.mrf.mxu0
  %v1964 = vadd.f32 %v1756, %v1963
  %v1965 = vpop.f32.mrf.mxu0
  %1966 = vdwg.mxu0
  %1967 = vmatprep.subr.bf16.mxu0 0
  %1968 = vmatpush1.bf16.msra.mxu0 0
  %1969 = vmatprep.subr.bf16.mxu0 0
  %1970 = vmatpush1.bf16.msra.mxu0 0
  %1971 = vmatprep.subr.bf16.mxu0 0
  %1972 = vmatpush1.bf16.msra.mxu0 %v1750
  %1973 = vmatprep.subr.bf16.mxu0 0
  %1974 = vmatpush1.bf16.msra.mxu0 %v1749
  %1975 = vmatprep.subr.bf16.mxu0 0
  %1976 = vmatpush1.bf16.msra.mxu0 %v1748
  %1977 = vmatprep.subr.bf16.mxu0 0
  %1978 = vmatpush1.bf16.msra.mxu0 %v1747
  %1979 = vmatprep.subr.bf16.mxu0 0
  %1980 = vmatpush1.bf16.msra.mxu0 %v1746
  %1981 = vmatprep.subr.bf16.mxu0 0
  %1982 = vmatpush1.bf16.msra.mxu0 %v1745
  %1983 = vmatprep.subr.bf16.mxu0 0
  %1984 = vmatpush2.bf16.msra.mxu0 0
  %1985 = vmatprep.subr.bf16.mxu0 0
  %1986 = vmatpush2.bf16.msra.mxu0 0
  %1987 = vmatprep.subr.bf16.mxu0 0
  %1988 = vmatpush2.bf16.msra.mxu0 0
  %1989 = vmatprep.subr.bf16.mxu0 0
  %1990 = vmatpush2.bf16.msra.mxu0 0
  %1991 = vmatprep.subr.bf16.mxu0 0
  %1992 = vmatpush2.bf16.msra.mxu0 0
  %1993 = vmatprep.subr.bf16.mxu0 0
  %1994 = vmatpush2.bf16.msra.mxu0 0
  %1995 = vmatprep.subr.bf16.mxu0 0
  %1996 = vmatpush2.bf16.msra.mxu0 0
  %1997 = vmatprep.subr.bf16.mxu0 0
  %1998 = vmatpush2.bf16.msra.mxu0 0
  %1999 = vmatprep.mubr.bf16.mxu0 0
  %2000 = vmatmul.mubr.bf16.gmra.mxu0 %v888
  %v2001 = vpop.f32.mrf.mxu0
  %v2002 = vadd.f32 %v1793, %v2001
  %v2003 = vpop.f32.mrf.mxu0
  %v2004 = vpop.f32.mrf.mxu0
  %v2005 = vadd.f32 %v1796, %v2004
  %v2006 = vpop.f32.mrf.mxu0
  %2007 = vmatprep.mubr.bf16.mxu0 0
  %2008 = vmatmul.mubr.bf16.gmra.mxu0 %v891
  %v2009 = vpop.f32.mrf.mxu0
  %v2010 = vadd.f32 %v1801, %v2009
  %v2011 = vpop.f32.mrf.mxu0
  %v2012 = vpop.f32.mrf.mxu0
  %v2013 = vadd.f32 %v1804, %v2012
  %v2014 = vpop.f32.mrf.mxu0
  %2015 = vmatprep.mubr.bf16.mxu0 0
  %2016 = vmatmul.mubr.bf16.gmra.mxu0 %v894
  %v2017 = vpop.f32.mrf.mxu0
  %v2018 = vadd.f32 %v1809, %v2017
  %v2019 = vpop.f32.mrf.mxu0
  %v2020 = vpop.f32.mrf.mxu0
  %v2021 = vadd.f32 %v1812, %v2020
  %v2022 = vpop.f32.mrf.mxu0
  %2023 = vmatprep.mubr.bf16.mxu0 0
  %2024 = vmatmul.mubr.bf16.gmra.mxu0 %v897
  %v2025 = vpop.f32.mrf.mxu0
  %v2026 = vadd.f32 %v1817, %v2025
  %v2027 = vpop.f32.mrf.mxu0
  %v2028 = vpop.f32.mrf.mxu0
  %v2029 = vadd.f32 %v1820, %v2028
  %v2030 = vpop.f32.mrf.mxu0
  %2031 = vmatprep.mubr.bf16.mxu0 0
  %2032 = vmatmul.mubr.bf16.gmra.mxu0 %v900
  %v2033 = vpop.f32.mrf.mxu0
  %v2034 = vadd.f32 %v1825, %v2033
  %v2035 = vpop.f32.mrf.mxu0
  %v2036 = vpop.f32.mrf.mxu0
  %v2037 = vadd.f32 %v1828, %v2036
  %v2038 = vpop.f32.mrf.mxu0
  %2039 = vmatprep.mubr.bf16.mxu0 0
  %2040 = vmatmul.mubr.bf16.gmra.mxu0 %v903
  %v2041 = vpop.f32.mrf.mxu0
  %v2042 = vadd.f32 %v1833, %v2041
  %v2043 = vpop.f32.mrf.mxu0
  %v2044 = vpop.f32.mrf.mxu0
  %v2045 = vadd.f32 %v1836, %v2044
  %v2046 = vpop.f32.mrf.mxu0
  %2047 = vmatprep.mubr.bf16.mxu0 0
  %2048 = vmatmul.mubr.bf16.gmra.mxu0 %v906
  %v2049 = vpop.f32.mrf.mxu0
  %v2050 = vadd.f32 %v1841, %v2049
  %v2051 = vpop.f32.mrf.mxu0
  %v2052 = vpop.f32.mrf.mxu0
  %v2053 = vadd.f32 %v1844, %v2052
  %v2054 = vpop.f32.mrf.mxu0
  %2055 = vmatprep.mubr.bf16.mxu0 0
  %2056 = vmatmul.mubr.bf16.gmra.mxu0 %v909
  %v2057 = vpop.f32.mrf.mxu0
  %v2058 = vadd.f32 %v1849, %v2057
  %v2059 = vpop.f32.mrf.mxu0
  %v2060 = vpop.f32.mrf.mxu0
  %v2061 = vadd.f32 %v1852, %v2060
  %v2062 = vpop.f32.mrf.mxu0
  %2063 = vmatprep.mubr.bf16.mxu0 0
  %2064 = vmatmul.mubr.bf16.gmra.mxu0 %v912
  %v2065 = vpop.f32.mrf.mxu0
  %v2066 = vadd.f32 %v1857, %v2065
  %v2067 = vpop.f32.mrf.mxu0
  %v2068 = vpop.f32.mrf.mxu0
  %v2069 = vadd.f32 %v1860, %v2068
  %v2070 = vpop.f32.mrf.mxu0
  %2071 = vmatprep.mubr.bf16.mxu0 0
  %2072 = vmatmul.mubr.bf16.gmra.mxu0 %v915
  %v2073 = vpop.f32.mrf.mxu0
  %v2074 = vadd.f32 %v1865, %v2073
  %v2075 = vpop.f32.mrf.mxu0
  %v2076 = vpop.f32.mrf.mxu0
  %v2077 = vadd.f32 %v1868, %v2076
  %v2078 = vpop.f32.mrf.mxu0
  %2079 = vmatprep.mubr.bf16.mxu0 0
  %2080 = vmatmul.mubr.bf16.gmra.mxu0 %v918
  %v2081 = vpop.f32.mrf.mxu0
  %v2082 = vadd.f32 %v1873, %v2081
  %v2083 = vpop.f32.mrf.mxu0
  %v2084 = vpop.f32.mrf.mxu0
  %v2085 = vadd.f32 %v1876, %v2084
  %v2086 = vpop.f32.mrf.mxu0
  %2087 = vmatprep.mubr.bf16.mxu0 0
  %2088 = vmatmul.mubr.bf16.gmra.mxu0 %v921
  %v2089 = vpop.f32.mrf.mxu0
  %v2090 = vadd.f32 %v1881, %v2089
  %v2091 = vpop.f32.mrf.mxu0
  %v2092 = vpop.f32.mrf.mxu0
  %v2093 = vadd.f32 %v1884, %v2092
  %v2094 = vpop.f32.mrf.mxu0
  %2095 = vmatprep.mubr.bf16.mxu0 0
  %2096 = vmatmul.mubr.bf16.gmra.mxu0 %v924
  %v2097 = vpop.f32.mrf.mxu0
  %v2098 = vadd.f32 %v1889, %v2097
  %v2099 = vpop.f32.mrf.mxu0
  %v2100 = vpop.f32.mrf.mxu0
  %v2101 = vadd.f32 %v1892, %v2100
  %v2102 = vpop.f32.mrf.mxu0
  %2103 = vmatprep.mubr.bf16.mxu0 0
  %2104 = vmatmul.mubr.bf16.gmra.mxu0 %v927
  %v2105 = vpop.f32.mrf.mxu0
  %v2106 = vadd.f32 %v1897, %v2105
  %v2107 = vpop.f32.mrf.mxu0
  %v2108 = vpop.f32.mrf.mxu0
  %v2109 = vadd.f32 %v1900, %v2108
  %v2110 = vpop.f32.mrf.mxu0
  %2111 = vmatprep.mubr.bf16.mxu0 0
  %2112 = vmatmul.mubr.bf16.gmra.mxu0 %v930
  %v2113 = vpop.f32.mrf.mxu0
  %v2114 = vadd.f32 %v1905, %v2113
  %v2115 = vpop.f32.mrf.mxu0
  %v2116 = vpop.f32.mrf.mxu0
  %v2117 = vadd.f32 %v1908, %v2116
  %v2118 = vpop.f32.mrf.mxu0
  %2119 = vmatprep.mubr.bf16.mxu0 0
  %2120 = vmatmul.mubr.bf16.gmra.mxu0 %v933
  %v2121 = vpop.f32.mrf.mxu0
  %v2122 = vadd.f32 %v1913, %v2121
  %v2123 = vpop.f32.mrf.mxu0
  %v2124 = vpop.f32.mrf.mxu0
  %v2125 = vadd.f32 %v1916, %v2124
  %v2126 = vpop.f32.mrf.mxu0
  %2127 = vmatprep.mubr.bf16.mxu0 0
  %2128 = vmatmul.mubr.bf16.gmra.mxu0 %v936
  %v2129 = vpop.f32.mrf.mxu0
  %v2130 = vadd.f32 %v1921, %v2129
  %v2131 = vpop.f32.mrf.mxu0
  %v2132 = vpop.f32.mrf.mxu0
  %v2133 = vadd.f32 %v1924, %v2132
  %v2134 = vpop.f32.mrf.mxu0
  %2135 = vmatprep.mubr.bf16.mxu0 0
  %2136 = vmatmul.mubr.bf16.gmra.mxu0 %v939
  %v2137 = vpop.f32.mrf.mxu0
  %v2138 = vadd.f32 %v1929, %v2137
  %v2139 = vpop.f32.mrf.mxu0
  %v2140 = vpop.f32.mrf.mxu0
  %v2141 = vadd.f32 %v1932, %v2140
  %v2142 = vpop.f32.mrf.mxu0
  %2143 = vmatprep.mubr.bf16.mxu0 0
  %2144 = vmatmul.mubr.bf16.gmra.mxu0 %v942
  %v2145 = vpop.f32.mrf.mxu0
  %v2146 = vadd.f32 %v1937, %v2145
  %v2147 = vpop.f32.mrf.mxu0
  %v2148 = vpop.f32.mrf.mxu0
  %v2149 = vadd.f32 %v1940, %v2148
  %v2150 = vpop.f32.mrf.mxu0
  %2151 = vmatprep.mubr.bf16.mxu0 0
  %2152 = vmatmul.mubr.bf16.gmra.mxu0 %v945
  %v2153 = vpop.f32.mrf.mxu0
  %v2154 = vadd.f32 %v1945, %v2153
  %v2155 = vpop.f32.mrf.mxu0
  %v2156 = vpop.f32.mrf.mxu0
  %v2157 = vadd.f32 %v1948, %v2156
  %v2158 = vpop.f32.mrf.mxu0
  %2159 = vmatprep.mubr.bf16.mxu0 0
  %2160 = vmatmul.mubr.bf16.gmra.mxu0 %v948
  %v2161 = vpop.f32.mrf.mxu0
  %v2162 = vadd.f32 %v1953, %v2161
  %v2163 = vpop.f32.mrf.mxu0
  %v2164 = vpop.f32.mrf.mxu0
  %v2165 = vadd.f32 %v1956, %v2164
  %v2166 = vpop.f32.mrf.mxu0
  %2167 = vmatprep.mubr.bf16.mxu0 0
  %2168 = vmatmul.mubr.bf16.gmra.mxu0 %v951
  %v2169 = vpop.f32.mrf.mxu0
  %v2170 = vadd.f32 %v1961, %v2169
  %v2171 = vpop.f32.mrf.mxu0
  %v2172 = vpop.f32.mrf.mxu0
  %v2173 = vadd.f32 %v1964, %v2172
  %v2174 = vpop.f32.mrf.mxu0
  %2175 = vdwg.mxu0
  %v2176 = vtanh.pop %v2002
  %v2177 = vtanh.pop %v2005
  %v2178 = vtanh.pop %v2010
  %v2179 = vtanh.pop %v2013
  %v2180 = vtanh.pop %v2018
  %v2181 = vtanh.pop %v2021
  %v2182 = vtanh.pop %v2026
  %v2183 = vtanh.pop %v2029
  %v2184 = vtanh.pop %v2034
  %v2185 = vtanh.pop %v2037
  %v2186 = vtanh.pop %v2042
  %v2187 = vtanh.pop %v2045
  %v2188 = vtanh.pop %v2050
  %v2189 = vtanh.pop %v2053
  %v2190 = vtanh.pop %v2058
  %v2191 = vtanh.pop %v2061
  %v2192 = vtanh.pop %v2066
  %v2193 = vtanh.pop %v2069
  %v2194 = vtanh.pop %v2074
  %v2195 = vtanh.pop %v2077
  %v2196 = vtanh.pop %v2082
  %v2197 = vtanh.pop %v2085
  %v2198 = vtanh.pop %v2090
  %v2199 = vtanh.pop %v2093
  %v2200 = vtanh.pop %v2098
  %v2201 = vtanh.pop %v2101
  %v2202 = vtanh.pop %v2106
  %v2203 = vtanh.pop %v2109
  %v2204 = vtanh.pop %v2114
  %v2205 = vtanh.pop %v2117
  %v2206 = vtanh.pop %v2122
  %v2207 = vtanh.pop %v2125
  %v2208 = vtanh.pop %v2130
  %v2209 = vtanh.pop %v2133
  %v2210 = vtanh.pop %v2138
  %v2211 = vtanh.pop %v2141
  %v2212 = vtanh.pop %v2146
  %v2213 = vtanh.pop %v2149
  %v2214 = vtanh.pop %v2154
  %v2215 = vtanh.pop %v2157
  %v2216 = vtanh.pop %v2162
  %v2217 = vtanh.pop %v2165
  %v2218 = vtanh.pop %v2170
  %v2219 = vtanh.pop %v2173
  %v2220 = vld [vmem:[%s6] sm:$0xf]
  %v2221 = vld [vmem:[%s6 + $0x4] sm:$0xf]
  %v2222 = vld [vmem:[%s6 + $0x8] sm:$0xf]
  %v2223 = vld [vmem:[%s6 + $0xc] sm:$0xf]
  %v2224 = vpack.c.bf16 %v2177, %v2176
  %v2225 = vpack.c.bf16 %v2179, %v2178
  %v2226 = vpack.c.bf16 %v2181, %v2180
  %v2227 = vpack.c.bf16 %v2183, %v2182
  %v2228 = vpack.c.bf16 %v2185, %v2184
  %v2229 = vpack.c.bf16 %v2187, %v2186
  %v2230 = vpack.c.bf16 %v2189, %v2188
  %v2231 = vpack.c.bf16 %v2191, %v2190
  %v2232 = vpack.c.bf16 %v2193, %v2192
  %v2233 = vpack.c.bf16 %v2195, %v2194
  %v2234 = vpack.c.bf16 %v2197, %v2196
  %v2235 = vpack.c.bf16 %v2199, %v2198
  %v2236 = vpack.c.bf16 %v2201, %v2200
  %v2237 = vpack.c.bf16 %v2203, %v2202
  %v2238 = vpack.c.bf16 %v2205, %v2204
  %v2239 = vpack.c.bf16 %v2207, %v2206
  %v2240 = vpack.c.bf16 %v2209, %v2208
  %v2241 = vpack.c.bf16 %v2211, %v2210
  %v2242 = vpack.c.bf16 %v2213, %v2212
  %v2243 = vpack.c.bf16 %v2215, %v2214
  %v2244 = vpack.c.bf16 %v2217, %v2216
  %v2245 = vpack.c.bf16 %v2219, %v2218
  %v2250 = vunpack.c.l.b16 %v2220
  %v2251 = vunpack.c.l.b16 %v2221
  %v2252 = vunpack.c.l.b16 %v2222
  %v2253 = vunpack.c.l.b16 %v2223
  %v2254 = vpack.c.b16 %v2251, %v2250
  %v2255 = vpack.c.b16 %v2253, %v2252
  %v2259 = vsel %vm1453, %v2224, 0
  %v2262 = vsel %vm1453, %v2225, 0
  %v2265 = vsel %vm1453, %v2226, 0
  %v2268 = vsel %vm1453, %v2227, 0
  %v2271 = vsel %vm1453, %v2228, 0
  %v2274 = vsel %vm1453, %v2229, 0
  %v2277 = vsel %vm1453, %v2230, 0
  %v2280 = vsel %vm1453, %v2231, 0
  %v2283 = vsel %vm1453, %v2232, 0
  %v2286 = vsel %vm1453, %v2233, 0
  %v2289 = vsel %vm1453, %v2234, 0
  %v2292 = vsel %vm1453, %v2235, 0
  %v2295 = vsel %vm1453, %v2236, 0
  %v2298 = vsel %vm1453, %v2237, 0
  %v2301 = vsel %vm1453, %v2238, 0
  %v2304 = vsel %vm1453, %v2239, 0
  %v2307 = vsel %vm1453, %v2240, 0
  %v2310 = vsel %vm1453, %v2241, 0
  %v2313 = vsel %vm1453, %v2242, 0
  %v2316 = vsel %vm1453, %v2243, 0
  %v2319 = vsel %vm1453, %v2244, 0
  %v2322 = vsel %vm1453, %v2245, 0
  %2324 = vmatprep.subr.bf16.mxu0 0
  %2325 = vmatpush1.bf16.msra.mxu0 0
  %2326 = vmatprep.subr.bf16.mxu0 0
  %2327 = vmatpush1.bf16.msra.mxu0 0
  %2328 = vmatprep.subr.bf16.mxu0 0
  %2329 = vmatpush1.bf16.msra.mxu0 0
  %2330 = vmatprep.subr.bf16.mxu0 0
  %2331 = vmatpush1.bf16.msra.mxu0 0
  %2332 = vmatprep.subr.bf16.mxu0 0
  %2333 = vmatpush1.bf16.msra.mxu0 0
  %2334 = vmatprep.subr.bf16.mxu0 0
  %2335 = vmatpush1.bf16.msra.mxu0 0
  %2336 = vmatprep.subr.bf16.mxu0 0
  %2337 = vmatpush1.bf16.msra.mxu0 %v2255
  %2338 = vmatprep.subr.bf16.mxu0 0
  %2339 = vmatpush1.bf16.msra.mxu0 %v2254
  %2340 = vmatprep.subr.bf16.mxu0 0
  %2341 = vmatpush2.bf16.msra.mxu0 0
  %2342 = vmatprep.subr.bf16.mxu0 0
  %2343 = vmatpush2.bf16.msra.mxu0 0
  %2344 = vmatprep.subr.bf16.mxu0 0
  %2345 = vmatpush2.bf16.msra.mxu0 0
  %2346 = vmatprep.subr.bf16.mxu0 0
  %2347 = vmatpush2.bf16.msra.mxu0 0
  %2348 = vmatprep.subr.bf16.mxu0 0
  %2349 = vmatpush2.bf16.msra.mxu0 0
  %2350 = vmatprep.subr.bf16.mxu0 0
  %2351 = vmatpush2.bf16.msra.mxu0 0
  %2352 = vmatprep.subr.bf16.mxu0 0
  %2353 = vmatpush2.bf16.msra.mxu0 0
  %2354 = vmatprep.subr.bf16.mxu0 0
  %2355 = vmatpush2.bf16.msra.mxu0 0
  %2356 = vmatprep.mubr.bf16.mxu0 0
  %2357 = vmatmul.mubr.bf16.gmra.mxu0 %v2259
  %v2358 = vpop.f32.mrf.mxu0
  %v2359 = vadd.f32 0.0, %v2358
  %v2360 = vpop.f32.mrf.mxu0
  %v2361 = vpop.f32.mrf.mxu0
  %v2362 = vadd.f32 0.0, %v2361
  %v2363 = vpop.f32.mrf.mxu0
  %2364 = vmatprep.mubr.bf16.mxu0 0
  %2365 = vmatmul.mubr.bf16.gmra.mxu0 %v2262
  %v2366 = vpop.f32.mrf.mxu0
  %v2367 = vadd.f32 0.0, %v2366
  %v2368 = vpop.f32.mrf.mxu0
  %v2369 = vpop.f32.mrf.mxu0
  %v2370 = vadd.f32 0.0, %v2369
  %v2371 = vpop.f32.mrf.mxu0
  %2372 = vmatprep.mubr.bf16.mxu0 0
  %2373 = vmatmul.mubr.bf16.gmra.mxu0 %v2265
  %v2374 = vpop.f32.mrf.mxu0
  %v2375 = vadd.f32 0.0, %v2374
  %v2376 = vpop.f32.mrf.mxu0
  %v2377 = vpop.f32.mrf.mxu0
  %v2378 = vadd.f32 0.0, %v2377
  %v2379 = vpop.f32.mrf.mxu0
  %2380 = vmatprep.mubr.bf16.mxu0 0
  %2381 = vmatmul.mubr.bf16.gmra.mxu0 %v2268
  %v2382 = vpop.f32.mrf.mxu0
  %v2383 = vadd.f32 0.0, %v2382
  %v2384 = vpop.f32.mrf.mxu0
  %v2385 = vpop.f32.mrf.mxu0
  %v2386 = vadd.f32 0.0, %v2385
  %v2387 = vpop.f32.mrf.mxu0
  %2388 = vmatprep.mubr.bf16.mxu0 0
  %2389 = vmatmul.mubr.bf16.gmra.mxu0 %v2271
  %v2390 = vpop.f32.mrf.mxu0
  %v2391 = vadd.f32 0.0, %v2390
  %v2392 = vpop.f32.mrf.mxu0
  %v2393 = vpop.f32.mrf.mxu0
  %v2394 = vadd.f32 0.0, %v2393
  %v2395 = vpop.f32.mrf.mxu0
  %2396 = vmatprep.mubr.bf16.mxu0 0
  %2397 = vmatmul.mubr.bf16.gmra.mxu0 %v2274
  %v2398 = vpop.f32.mrf.mxu0
  %v2399 = vadd.f32 0.0, %v2398
  %v2400 = vpop.f32.mrf.mxu0
  %v2401 = vpop.f32.mrf.mxu0
  %v2402 = vadd.f32 0.0, %v2401
  %v2403 = vpop.f32.mrf.mxu0
  %2404 = vmatprep.mubr.bf16.mxu0 0
  %2405 = vmatmul.mubr.bf16.gmra.mxu0 %v2277
  %v2406 = vpop.f32.mrf.mxu0
  %v2407 = vadd.f32 0.0, %v2406
  %v2408 = vpop.f32.mrf.mxu0
  %v2409 = vpop.f32.mrf.mxu0
  %v2410 = vadd.f32 0.0, %v2409
  %v2411 = vpop.f32.mrf.mxu0
  %2412 = vmatprep.mubr.bf16.mxu0 0
  %2413 = vmatmul.mubr.bf16.gmra.mxu0 %v2280
  %v2414 = vpop.f32.mrf.mxu0
  %v2415 = vadd.f32 0.0, %v2414
  %v2416 = vpop.f32.mrf.mxu0
  %v2417 = vpop.f32.mrf.mxu0
  %v2418 = vadd.f32 0.0, %v2417
  %v2419 = vpop.f32.mrf.mxu0
  %2420 = vmatprep.mubr.bf16.mxu0 0
  %2421 = vmatmul.mubr.bf16.gmra.mxu0 %v2283
  %v2422 = vpop.f32.mrf.mxu0
  %v2423 = vadd.f32 0.0, %v2422
  %v2424 = vpop.f32.mrf.mxu0
  %v2425 = vpop.f32.mrf.mxu0
  %v2426 = vadd.f32 0.0, %v2425
  %v2427 = vpop.f32.mrf.mxu0
  %2428 = vmatprep.mubr.bf16.mxu0 0
  %2429 = vmatmul.mubr.bf16.gmra.mxu0 %v2286
  %v2430 = vpop.f32.mrf.mxu0
  %v2431 = vadd.f32 0.0, %v2430
  %v2432 = vpop.f32.mrf.mxu0
  %v2433 = vpop.f32.mrf.mxu0
  %v2434 = vadd.f32 0.0, %v2433
  %v2435 = vpop.f32.mrf.mxu0
  %2436 = vmatprep.mubr.bf16.mxu0 0
  %2437 = vmatmul.mubr.bf16.gmra.mxu0 %v2289
  %v2438 = vpop.f32.mrf.mxu0
  %v2439 = vadd.f32 0.0, %v2438
  %v2440 = vpop.f32.mrf.mxu0
  %v2441 = vpop.f32.mrf.mxu0
  %v2442 = vadd.f32 0.0, %v2441
  %v2443 = vpop.f32.mrf.mxu0
  %2444 = vmatprep.mubr.bf16.mxu0 0
  %2445 = vmatmul.mubr.bf16.gmra.mxu0 %v2292
  %v2446 = vpop.f32.mrf.mxu0
  %v2447 = vadd.f32 0.0, %v2446
  %v2448 = vpop.f32.mrf.mxu0
  %v2449 = vpop.f32.mrf.mxu0
  %v2450 = vadd.f32 0.0, %v2449
  %v2451 = vpop.f32.mrf.mxu0
  %2452 = vmatprep.mubr.bf16.mxu0 0
  %2453 = vmatmul.mubr.bf16.gmra.mxu0 %v2295
  %v2454 = vpop.f32.mrf.mxu0
  %v2455 = vadd.f32 0.0, %v2454
  %v2456 = vpop.f32.mrf.mxu0
  %v2457 = vpop.f32.mrf.mxu0
  %v2458 = vadd.f32 0.0, %v2457
  %v2459 = vpop.f32.mrf.mxu0
  %2460 = vmatprep.mubr.bf16.mxu0 0
  %2461 = vmatmul.mubr.bf16.gmra.mxu0 %v2298
  %v2462 = vpop.f32.mrf.mxu0
  %v2463 = vadd.f32 0.0, %v2462
  %v2464 = vpop.f32.mrf.mxu0
  %v2465 = vpop.f32.mrf.mxu0
  %v2466 = vadd.f32 0.0, %v2465
  %v2467 = vpop.f32.mrf.mxu0
  %2468 = vmatprep.mubr.bf16.mxu0 0
  %2469 = vmatmul.mubr.bf16.gmra.mxu0 %v2301
  %v2470 = vpop.f32.mrf.mxu0
  %v2471 = vadd.f32 0.0, %v2470
  %v2472 = vpop.f32.mrf.mxu0
  %v2473 = vpop.f32.mrf.mxu0
  %v2474 = vadd.f32 0.0, %v2473
  %v2475 = vpop.f32.mrf.mxu0
  %2476 = vmatprep.mubr.bf16.mxu0 0
  %2477 = vmatmul.mubr.bf16.gmra.mxu0 %v2304
  %v2478 = vpop.f32.mrf.mxu0
  %v2479 = vadd.f32 0.0, %v2478
  %v2480 = vpop.f32.mrf.mxu0
  %v2481 = vpop.f32.mrf.mxu0
  %v2482 = vadd.f32 0.0, %v2481
  %v2483 = vpop.f32.mrf.mxu0
  %2484 = vmatprep.mubr.bf16.mxu0 0
  %2485 = vmatmul.mubr.bf16.gmra.mxu0 %v2307
  %v2486 = vpop.f32.mrf.mxu0
  %v2487 = vadd.f32 0.0, %v2486
  %v2488 = vpop.f32.mrf.mxu0
  %v2489 = vpop.f32.mrf.mxu0
  %v2490 = vadd.f32 0.0, %v2489
  %v2491 = vpop.f32.mrf.mxu0
  %2492 = vmatprep.mubr.bf16.mxu0 0
  %2493 = vmatmul.mubr.bf16.gmra.mxu0 %v2310
  %v2494 = vpop.f32.mrf.mxu0
  %v2495 = vadd.f32 0.0, %v2494
  %v2496 = vpop.f32.mrf.mxu0
  %v2497 = vpop.f32.mrf.mxu0
  %v2498 = vadd.f32 0.0, %v2497
  %v2499 = vpop.f32.mrf.mxu0
  %2500 = vmatprep.mubr.bf16.mxu0 0
  %2501 = vmatmul.mubr.bf16.gmra.mxu0 %v2313
  %v2502 = vpop.f32.mrf.mxu0
  %v2503 = vadd.f32 0.0, %v2502
  %v2504 = vpop.f32.mrf.mxu0
  %v2505 = vpop.f32.mrf.mxu0
  %v2506 = vadd.f32 0.0, %v2505
  %v2507 = vpop.f32.mrf.mxu0
  %2508 = vmatprep.mubr.bf16.mxu0 0
  %2509 = vmatmul.mubr.bf16.gmra.mxu0 %v2316
  %v2510 = vpop.f32.mrf.mxu0
  %v2511 = vadd.f32 0.0, %v2510
  %v2512 = vpop.f32.mrf.mxu0
  %v2513 = vpop.f32.mrf.mxu0
  %v2514 = vadd.f32 0.0, %v2513
  %v2515 = vpop.f32.mrf.mxu0
  %2516 = vmatprep.mubr.bf16.mxu0 0
  %2517 = vmatmul.mubr.bf16.gmra.mxu0 %v2319
  %v2518 = vpop.f32.mrf.mxu0
  %v2519 = vadd.f32 0.0, %v2518
  %v2520 = vpop.f32.mrf.mxu0
  %v2521 = vpop.f32.mrf.mxu0
  %v2522 = vadd.f32 0.0, %v2521
  %v2523 = vpop.f32.mrf.mxu0
  %2524 = vmatprep.mubr.bf16.mxu0 0
  %2525 = vmatmul.mubr.bf16.gmra.mxu0 %v2322
  %v2526 = vpop.f32.mrf.mxu0
  %v2527 = vadd.f32 0.0, %v2526
  %v2528 = vpop.f32.mrf.mxu0
  %v2529 = vpop.f32.mrf.mxu0
  %v2530 = vadd.f32 0.0, %v2529
  %v2531 = vpop.f32.mrf.mxu0
  %2532 = vdwg.mxu0
  %v2533 = vpack.c.bf16 %v2362, %v2359
  %v2534 = vpack.c.bf16 %v2370, %v2367
  %v2535 = vpack.c.bf16 %v2378, %v2375
  %v2536 = vpack.c.bf16 %v2386, %v2383
  %v2537 = vpack.c.bf16 %v2394, %v2391
  %v2538 = vpack.c.bf16 %v2402, %v2399
  %v2539 = vpack.c.bf16 %v2410, %v2407
  %v2540 = vpack.c.bf16 %v2418, %v2415
  %v2541 = vpack.c.bf16 %v2426, %v2423
  %v2542 = vpack.c.bf16 %v2434, %v2431
  %v2543 = vpack.c.bf16 %v2442, %v2439
  %v2544 = vpack.c.bf16 %v2450, %v2447
  %v2545 = vpack.c.bf16 %v2458, %v2455
  %v2546 = vpack.c.bf16 %v2466, %v2463
  %v2547 = vpack.c.bf16 %v2474, %v2471
  %v2548 = vpack.c.bf16 %v2482, %v2479
  %v2549 = vpack.c.bf16 %v2490, %v2487
  %v2550 = vpack.c.bf16 %v2498, %v2495
  %v2551 = vpack.c.bf16 %v2506, %v2503
  %v2552 = vpack.c.bf16 %v2514, %v2511
  %v2553 = vpack.c.bf16 %v2522, %v2519
  %v2554 = vpack.c.bf16 %v2530, %v2527
  %v2555 = vld [vmem:[%s7] sm:$0x1]
  %v2557 = vlaneseq
  %v2558 = vshrl.u32 %v2557, 7
  %v2559 = vsub.s32 0, %v2558
  %v2560 = vrot.slane %v2555, %v2559
  %2562 = vmatprep.subr.bf16.mxu0 0
  %2563 = vmatpush1.bf16.msra.mxu0 %v2540
  %2564 = vmatprep.subr.bf16.mxu0 0
  %2565 = vmatpush1.bf16.msra.mxu0 %v2539
  %2566 = vmatprep.subr.bf16.mxu0 0
  %2567 = vmatpush1.bf16.msra.mxu0 %v2538
  %2568 = vmatprep.subr.bf16.mxu0 0
  %2569 = vmatpush1.bf16.msra.mxu0 %v2537
  %2570 = vmatprep.subr.bf16.mxu0 0
  %2571 = vmatpush1.bf16.msra.mxu0 %v2536
  %2572 = vmatprep.subr.bf16.mxu0 0
  %2573 = vmatpush1.bf16.msra.mxu0 %v2535
  %2574 = vmatprep.subr.bf16.mxu0 0
  %2575 = vmatpush1.bf16.msra.mxu0 %v2534
  %2576 = vmatprep.subr.bf16.mxu0 0
  %2577 = vmatpush1.bf16.msra.mxu0 %v2533
  %2578 = vmatprep.subr.bf16.mxu0 0
  %2579 = vmatpush2.bf16.msra.mxu0 %v2548
  %2580 = vmatprep.subr.bf16.mxu0 0
  %2581 = vmatpush2.bf16.msra.mxu0 %v2547
  %2582 = vmatprep.subr.bf16.mxu0 0
  %2583 = vmatpush2.bf16.msra.mxu0 %v2546
  %2584 = vmatprep.subr.bf16.mxu0 0
  %2585 = vmatpush2.bf16.msra.mxu0 %v2545
  %2586 = vmatprep.subr.bf16.mxu0 0
  %2587 = vmatpush2.bf16.msra.mxu0 %v2544
  %2588 = vmatprep.subr.bf16.mxu0 0
  %2589 = vmatpush2.bf16.msra.mxu0 %v2543
  %2590 = vmatprep.subr.bf16.mxu0 0
  %2591 = vmatpush2.bf16.msra.mxu0 %v2542
  %2592 = vmatprep.subr.bf16.mxu0 0
  %2593 = vmatpush2.bf16.msra.mxu0 %v2541
  %2594 = vmatprep.mubr.bf16.mxu0 %v777
  %2595 = vmatmul.mubr.bf16.gmra.mxu0 %v776
  %v2596 = vpop.f32.mrf.mxu0
  %v2597 = vadd.f32 %v2560, %v2596
  %v2598 = vpop.f32.mrf.mxu0
  %v2599 = vpop.f32.mrf.mxu0
  %v2600 = vadd.f32 %v2560, %v2599
  %v2601 = vpop.f32.mrf.mxu0
  %2602 = vmatprep.mubr.bf16.mxu0 %v780
  %2603 = vmatmul.mubr.bf16.gmra.mxu0 %v779
  %v2604 = vpop.f32.mrf.mxu0
  %v2605 = vadd.f32 %v2560, %v2604
  %v2606 = vpop.f32.mrf.mxu0
  %v2607 = vpop.f32.mrf.mxu0
  %v2608 = vadd.f32 %v2560, %v2607
  %v2609 = vpop.f32.mrf.mxu0
  %2610 = vmatprep.mubr.bf16.mxu0 %v783
  %2611 = vmatmul.mubr.bf16.gmra.mxu0 %v782
  %v2612 = vpop.f32.mrf.mxu0
  %v2613 = vadd.f32 %v2560, %v2612
  %v2614 = vpop.f32.mrf.mxu0
  %v2615 = vpop.f32.mrf.mxu0
  %v2616 = vadd.f32 %v2560, %v2615
  %v2617 = vpop.f32.mrf.mxu0
  %2618 = vmatprep.mubr.bf16.mxu0 %v786
  %2619 = vmatmul.mubr.bf16.gmra.mxu0 %v785
  %v2620 = vpop.f32.mrf.mxu0
  %v2621 = vadd.f32 %v2560, %v2620
  %v2622 = vpop.f32.mrf.mxu0
  %v2623 = vpop.f32.mrf.mxu0
  %v2624 = vadd.f32 %v2560, %v2623
  %v2625 = vpop.f32.mrf.mxu0
  %2626 = vmatprep.mubr.bf16.mxu0 %v789
  %2627 = vmatmul.mubr.bf16.gmra.mxu0 %v788
  %v2628 = vpop.f32.mrf.mxu0
  %v2629 = vadd.f32 %v2560, %v2628
  %v2630 = vpop.f32.mrf.mxu0
  %v2631 = vpop.f32.mrf.mxu0
  %v2632 = vadd.f32 %v2560, %v2631
  %v2633 = vpop.f32.mrf.mxu0
  %2634 = vmatprep.mubr.bf16.mxu0 %v792
  %2635 = vmatmul.mubr.bf16.gmra.mxu0 %v791
  %v2636 = vpop.f32.mrf.mxu0
  %v2637 = vadd.f32 %v2560, %v2636
  %v2638 = vpop.f32.mrf.mxu0
  %v2639 = vpop.f32.mrf.mxu0
  %v2640 = vadd.f32 %v2560, %v2639
  %v2641 = vpop.f32.mrf.mxu0
  %2642 = vmatprep.mubr.bf16.mxu0 %v795
  %2643 = vmatmul.mubr.bf16.gmra.mxu0 %v794
  %v2644 = vpop.f32.mrf.mxu0
  %v2645 = vadd.f32 %v2560, %v2644
  %v2646 = vpop.f32.mrf.mxu0
  %v2647 = vpop.f32.mrf.mxu0
  %v2648 = vadd.f32 %v2560, %v2647
  %v2649 = vpop.f32.mrf.mxu0
  %2650 = vmatprep.mubr.bf16.mxu0 %v798
  %2651 = vmatmul.mubr.bf16.gmra.mxu0 %v797
  %v2652 = vpop.f32.mrf.mxu0
  %v2653 = vadd.f32 %v2560, %v2652
  %v2654 = vpop.f32.mrf.mxu0
  %v2655 = vpop.f32.mrf.mxu0
  %v2656 = vadd.f32 %v2560, %v2655
  %v2657 = vpop.f32.mrf.mxu0
  %2658 = vmatprep.mubr.bf16.mxu0 %v801
  %2659 = vmatmul.mubr.bf16.gmra.mxu0 %v800
  %v2660 = vpop.f32.mrf.mxu0
  %v2661 = vadd.f32 %v2560, %v2660
  %v2662 = vpop.f32.mrf.mxu0
  %v2663 = vpop.f32.mrf.mxu0
  %v2664 = vadd.f32 %v2560, %v2663
  %v2665 = vpop.f32.mrf.mxu0
  %2666 = vmatprep.mubr.bf16.mxu0 %v804
  %2667 = vmatmul.mubr.bf16.gmra.mxu0 %v803
  %v2668 = vpop.f32.mrf.mxu0
  %v2669 = vadd.f32 %v2560, %v2668
  %v2670 = vpop.f32.mrf.mxu0
  %v2671 = vpop.f32.mrf.mxu0
  %v2672 = vadd.f32 %v2560, %v2671
  %v2673 = vpop.f32.mrf.mxu0
  %2674 = vmatprep.mubr.bf16.mxu0 %v807
  %2675 = vmatmul.mubr.bf16.gmra.mxu0 %v806
  %v2676 = vpop.f32.mrf.mxu0
  %v2677 = vadd.f32 %v2560, %v2676
  %v2678 = vpop.f32.mrf.mxu0
  %v2679 = vpop.f32.mrf.mxu0
  %v2680 = vadd.f32 %v2560, %v2679
  %v2681 = vpop.f32.mrf.mxu0
  %2682 = vmatprep.mubr.bf16.mxu0 %v810
  %2683 = vmatmul.mubr.bf16.gmra.mxu0 %v809
  %v2684 = vpop.f32.mrf.mxu0
  %v2685 = vadd.f32 %v2560, %v2684
  %v2686 = vpop.f32.mrf.mxu0
  %v2687 = vpop.f32.mrf.mxu0
  %v2688 = vadd.f32 %v2560, %v2687
  %v2689 = vpop.f32.mrf.mxu0
  %2690 = vmatprep.mubr.bf16.mxu0 %v813
  %2691 = vmatmul.mubr.bf16.gmra.mxu0 %v812
  %v2692 = vpop.f32.mrf.mxu0
  %v2693 = vadd.f32 %v2560, %v2692
  %v2694 = vpop.f32.mrf.mxu0
  %v2695 = vpop.f32.mrf.mxu0
  %v2696 = vadd.f32 %v2560, %v2695
  %v2697 = vpop.f32.mrf.mxu0
  %2698 = vmatprep.mubr.bf16.mxu0 %v816
  %2699 = vmatmul.mubr.bf16.gmra.mxu0 %v815
  %v2700 = vpop.f32.mrf.mxu0
  %v2701 = vadd.f32 %v2560, %v2700
  %v2702 = vpop.f32.mrf.mxu0
  %v2703 = vpop.f32.mrf.mxu0
  %v2704 = vadd.f32 %v2560, %v2703
  %v2705 = vpop.f32.mrf.mxu0
  %2706 = vmatprep.mubr.bf16.mxu0 %v819
  %2707 = vmatmul.mubr.bf16.gmra.mxu0 %v818
  %v2708 = vpop.f32.mrf.mxu0
  %v2709 = vadd.f32 %v2560, %v2708
  %v2710 = vpop.f32.mrf.mxu0
  %v2711 = vpop.f32.mrf.mxu0
  %v2712 = vadd.f32 %v2560, %v2711
  %v2713 = vpop.f32.mrf.mxu0
  %2714 = vmatprep.mubr.bf16.mxu0 %v822
  %2715 = vmatmul.mubr.bf16.gmra.mxu0 %v821
  %v2716 = vpop.f32.mrf.mxu0
  %v2717 = vadd.f32 %v2560, %v2716
  %v2718 = vpop.f32.mrf.mxu0
  %v2719 = vpop.f32.mrf.mxu0
  %v2720 = vadd.f32 %v2560, %v2719
  %v2721 = vpop.f32.mrf.mxu0
  %2722 = vmatprep.mubr.bf16.mxu0 %v825
  %2723 = vmatmul.mubr.bf16.gmra.mxu0 %v824
  %v2724 = vpop.f32.mrf.mxu0
  %v2725 = vadd.f32 %v2560, %v2724
  %v2726 = vpop.f32.mrf.mxu0
  %v2727 = vpop.f32.mrf.mxu0
  %v2728 = vadd.f32 %v2560, %v2727
  %v2729 = vpop.f32.mrf.mxu0
  %2730 = vmatprep.mubr.bf16.mxu0 %v828
  %2731 = vmatmul.mubr.bf16.gmra.mxu0 %v827
  %v2732 = vpop.f32.mrf.mxu0
  %v2733 = vadd.f32 %v2560, %v2732
  %v2734 = vpop.f32.mrf.mxu0
  %v2735 = vpop.f32.mrf.mxu0
  %v2736 = vadd.f32 %v2560, %v2735
  %v2737 = vpop.f32.mrf.mxu0
  %2738 = vmatprep.mubr.bf16.mxu0 %v831
  %2739 = vmatmul.mubr.bf16.gmra.mxu0 %v830
  %v2740 = vpop.f32.mrf.mxu0
  %v2741 = vadd.f32 %v2560, %v2740
  %v2742 = vpop.f32.mrf.mxu0
  %v2743 = vpop.f32.mrf.mxu0
  %v2744 = vadd.f32 %v2560, %v2743
  %v2745 = vpop.f32.mrf.mxu0
  %2746 = vmatprep.mubr.bf16.mxu0 %v834
  %2747 = vmatmul.mubr.bf16.gmra.mxu0 %v833
  %v2748 = vpop.f32.mrf.mxu0
  %v2749 = vadd.f32 %v2560, %v2748
  %v2750 = vpop.f32.mrf.mxu0
  %v2751 = vpop.f32.mrf.mxu0
  %v2752 = vadd.f32 %v2560, %v2751
  %v2753 = vpop.f32.mrf.mxu0
  %2754 = vmatprep.mubr.bf16.mxu0 %v837
  %2755 = vmatmul.mubr.bf16.gmra.mxu0 %v836
  %v2756 = vpop.f32.mrf.mxu0
  %v2757 = vadd.f32 %v2560, %v2756
  %v2758 = vpop.f32.mrf.mxu0
  %v2759 = vpop.f32.mrf.mxu0
  %v2760 = vadd.f32 %v2560, %v2759
  %v2761 = vpop.f32.mrf.mxu0
  %2762 = vmatprep.mubr.bf16.mxu0 %v840
  %2763 = vmatmul.mubr.bf16.gmra.mxu0 %v839
  %v2764 = vpop.f32.mrf.mxu0
  %v2765 = vadd.f32 %v2560, %v2764
  %v2766 = vpop.f32.mrf.mxu0
  %v2767 = vpop.f32.mrf.mxu0
  %v2768 = vadd.f32 %v2560, %v2767
  %v2769 = vpop.f32.mrf.mxu0
  %2770 = vdwg.mxu0
  %2771 = vmatprep.subr.bf16.mxu0 0
  %2772 = vmatpush1.bf16.msra.mxu0 0
  %2773 = vmatprep.subr.bf16.mxu0 0
  %2774 = vmatpush1.bf16.msra.mxu0 0
  %2775 = vmatprep.subr.bf16.mxu0 0
  %2776 = vmatpush1.bf16.msra.mxu0 %v2554
  %2777 = vmatprep.subr.bf16.mxu0 0
  %2778 = vmatpush1.bf16.msra.mxu0 %v2553
  %2779 = vmatprep.subr.bf16.mxu0 0
  %2780 = vmatpush1.bf16.msra.mxu0 %v2552
  %2781 = vmatprep.subr.bf16.mxu0 0
  %2782 = vmatpush1.bf16.msra.mxu0 %v2551
  %2783 = vmatprep.subr.bf16.mxu0 0
  %2784 = vmatpush1.bf16.msra.mxu0 %v2550
  %2785 = vmatprep.subr.bf16.mxu0 0
  %2786 = vmatpush1.bf16.msra.mxu0 %v2549
  %2787 = vmatprep.subr.bf16.mxu0 0
  %2788 = vmatpush2.bf16.msra.mxu0 0
  %2789 = vmatprep.subr.bf16.mxu0 0
  %2790 = vmatpush2.bf16.msra.mxu0 0
  %2791 = vmatprep.subr.bf16.mxu0 0
  %2792 = vmatpush2.bf16.msra.mxu0 0
  %2793 = vmatprep.subr.bf16.mxu0 0
  %2794 = vmatpush2.bf16.msra.mxu0 0
  %2795 = vmatprep.subr.bf16.mxu0 0
  %2796 = vmatpush2.bf16.msra.mxu0 0
  %2797 = vmatprep.subr.bf16.mxu0 0
  %2798 = vmatpush2.bf16.msra.mxu0 0
  %2799 = vmatprep.subr.bf16.mxu0 0
  %2800 = vmatpush2.bf16.msra.mxu0 0
  %2801 = vmatprep.subr.bf16.mxu0 0
  %2802 = vmatpush2.bf16.msra.mxu0 0
  %2803 = vmatprep.mubr.bf16.mxu0 0
  %2804 = vmatmul.mubr.bf16.gmra.mxu0 %v888
  %v2805 = vpop.f32.mrf.mxu0
  %v2806 = vadd.f32 %v2597, %v2805
  %v2807 = vpop.f32.mrf.mxu0
  %v2808 = vpop.f32.mrf.mxu0
  %v2809 = vadd.f32 %v2600, %v2808
  %v2810 = vpop.f32.mrf.mxu0
  %2811 = vmatprep.mubr.bf16.mxu0 0
  %2812 = vmatmul.mubr.bf16.gmra.mxu0 %v891
  %v2813 = vpop.f32.mrf.mxu0
  %v2814 = vadd.f32 %v2605, %v2813
  %v2815 = vpop.f32.mrf.mxu0
  %v2816 = vpop.f32.mrf.mxu0
  %v2817 = vadd.f32 %v2608, %v2816
  %v2818 = vpop.f32.mrf.mxu0
  %2819 = vmatprep.mubr.bf16.mxu0 0
  %2820 = vmatmul.mubr.bf16.gmra.mxu0 %v894
  %v2821 = vpop.f32.mrf.mxu0
  %v2822 = vadd.f32 %v2613, %v2821
  %v2823 = vpop.f32.mrf.mxu0
  %v2824 = vpop.f32.mrf.mxu0
  %v2825 = vadd.f32 %v2616, %v2824
  %v2826 = vpop.f32.mrf.mxu0
  %2827 = vmatprep.mubr.bf16.mxu0 0
  %2828 = vmatmul.mubr.bf16.gmra.mxu0 %v897
  %v2829 = vpop.f32.mrf.mxu0
  %v2830 = vadd.f32 %v2621, %v2829
  %v2831 = vpop.f32.mrf.mxu0
  %v2832 = vpop.f32.mrf.mxu0
  %v2833 = vadd.f32 %v2624, %v2832
  %v2834 = vpop.f32.mrf.mxu0
  %2835 = vmatprep.mubr.bf16.mxu0 0
  %2836 = vmatmul.mubr.bf16.gmra.mxu0 %v900
  %v2837 = vpop.f32.mrf.mxu0
  %v2838 = vadd.f32 %v2629, %v2837
  %v2839 = vpop.f32.mrf.mxu0
  %v2840 = vpop.f32.mrf.mxu0
  %v2841 = vadd.f32 %v2632, %v2840
  %v2842 = vpop.f32.mrf.mxu0
  %2843 = vmatprep.mubr.bf16.mxu0 0
  %2844 = vmatmul.mubr.bf16.gmra.mxu0 %v903
  %v2845 = vpop.f32.mrf.mxu0
  %v2846 = vadd.f32 %v2637, %v2845
  %v2847 = vpop.f32.mrf.mxu0
  %v2848 = vpop.f32.mrf.mxu0
  %v2849 = vadd.f32 %v2640, %v2848
  %v2850 = vpop.f32.mrf.mxu0
  %2851 = vmatprep.mubr.bf16.mxu0 0
  %2852 = vmatmul.mubr.bf16.gmra.mxu0 %v906
  %v2853 = vpop.f32.mrf.mxu0
  %v2854 = vadd.f32 %v2645, %v2853
  %v2855 = vpop.f32.mrf.mxu0
  %v2856 = vpop.f32.mrf.mxu0
  %v2857 = vadd.f32 %v2648, %v2856
  %v2858 = vpop.f32.mrf.mxu0
  %2859 = vmatprep.mubr.bf16.mxu0 0
  %2860 = vmatmul.mubr.bf16.gmra.mxu0 %v909
  %v2861 = vpop.f32.mrf.mxu0
  %v2862 = vadd.f32 %v2653, %v2861
  %v2863 = vpop.f32.mrf.mxu0
  %v2864 = vpop.f32.mrf.mxu0
  %v2865 = vadd.f32 %v2656, %v2864
  %v2866 = vpop.f32.mrf.mxu0
  %2867 = vmatprep.mubr.bf16.mxu0 0
  %2868 = vmatmul.mubr.bf16.gmra.mxu0 %v912
  %v2869 = vpop.f32.mrf.mxu0
  %v2870 = vadd.f32 %v2661, %v2869
  %v2871 = vpop.f32.mrf.mxu0
  %v2872 = vpop.f32.mrf.mxu0
  %v2873 = vadd.f32 %v2664, %v2872
  %v2874 = vpop.f32.mrf.mxu0
  %2875 = vmatprep.mubr.bf16.mxu0 0
  %2876 = vmatmul.mubr.bf16.gmra.mxu0 %v915
  %v2877 = vpop.f32.mrf.mxu0
  %v2878 = vadd.f32 %v2669, %v2877
  %v2879 = vpop.f32.mrf.mxu0
  %v2880 = vpop.f32.mrf.mxu0
  %v2881 = vadd.f32 %v2672, %v2880
  %v2882 = vpop.f32.mrf.mxu0
  %2883 = vmatprep.mubr.bf16.mxu0 0
  %2884 = vmatmul.mubr.bf16.gmra.mxu0 %v918
  %v2885 = vpop.f32.mrf.mxu0
  %v2886 = vadd.f32 %v2677, %v2885
  %v2887 = vpop.f32.mrf.mxu0
  %v2888 = vpop.f32.mrf.mxu0
  %v2889 = vadd.f32 %v2680, %v2888
  %v2890 = vpop.f32.mrf.mxu0
  %2891 = vmatprep.mubr.bf16.mxu0 0
  %2892 = vmatmul.mubr.bf16.gmra.mxu0 %v921
  %v2893 = vpop.f32.mrf.mxu0
  %v2894 = vadd.f32 %v2685, %v2893
  %v2895 = vpop.f32.mrf.mxu0
  %v2896 = vpop.f32.mrf.mxu0
  %v2897 = vadd.f32 %v2688, %v2896
  %v2898 = vpop.f32.mrf.mxu0
  %2899 = vmatprep.mubr.bf16.mxu0 0
  %2900 = vmatmul.mubr.bf16.gmra.mxu0 %v924
  %v2901 = vpop.f32.mrf.mxu0
  %v2902 = vadd.f32 %v2693, %v2901
  %v2903 = vpop.f32.mrf.mxu0
  %v2904 = vpop.f32.mrf.mxu0
  %v2905 = vadd.f32 %v2696, %v2904
  %v2906 = vpop.f32.mrf.mxu0
  %2907 = vmatprep.mubr.bf16.mxu0 0
  %2908 = vmatmul.mubr.bf16.gmra.mxu0 %v927
  %v2909 = vpop.f32.mrf.mxu0
  %v2910 = vadd.f32 %v2701, %v2909
  %v2911 = vpop.f32.mrf.mxu0
  %v2912 = vpop.f32.mrf.mxu0
  %v2913 = vadd.f32 %v2704, %v2912
  %v2914 = vpop.f32.mrf.mxu0
  %2915 = vmatprep.mubr.bf16.mxu0 0
  %2916 = vmatmul.mubr.bf16.gmra.mxu0 %v930
  %v2917 = vpop.f32.mrf.mxu0
  %v2918 = vadd.f32 %v2709, %v2917
  %v2919 = vpop.f32.mrf.mxu0
  %v2920 = vpop.f32.mrf.mxu0
  %v2921 = vadd.f32 %v2712, %v2920
  %v2922 = vpop.f32.mrf.mxu0
  %2923 = vmatprep.mubr.bf16.mxu0 0
  %2924 = vmatmul.mubr.bf16.gmra.mxu0 %v933
  %v2925 = vpop.f32.mrf.mxu0
  %v2926 = vadd.f32 %v2717, %v2925
  %v2927 = vpop.f32.mrf.mxu0
  %v2928 = vpop.f32.mrf.mxu0
  %v2929 = vadd.f32 %v2720, %v2928
  %v2930 = vpop.f32.mrf.mxu0
  %2931 = vmatprep.mubr.bf16.mxu0 0
  %2932 = vmatmul.mubr.bf16.gmra.mxu0 %v936
  %v2933 = vpop.f32.mrf.mxu0
  %v2934 = vadd.f32 %v2725, %v2933
  %v2935 = vpop.f32.mrf.mxu0
  %v2936 = vpop.f32.mrf.mxu0
  %v2937 = vadd.f32 %v2728, %v2936
  %v2938 = vpop.f32.mrf.mxu0
  %2939 = vmatprep.mubr.bf16.mxu0 0
  %2940 = vmatmul.mubr.bf16.gmra.mxu0 %v939
  %v2941 = vpop.f32.mrf.mxu0
  %v2942 = vadd.f32 %v2733, %v2941
  %v2943 = vpop.f32.mrf.mxu0
  %v2944 = vpop.f32.mrf.mxu0
  %v2945 = vadd.f32 %v2736, %v2944
  %v2946 = vpop.f32.mrf.mxu0
  %2947 = vmatprep.mubr.bf16.mxu0 0
  %2948 = vmatmul.mubr.bf16.gmra.mxu0 %v942
  %v2949 = vpop.f32.mrf.mxu0
  %v2950 = vadd.f32 %v2741, %v2949
  %v2951 = vpop.f32.mrf.mxu0
  %v2952 = vpop.f32.mrf.mxu0
  %v2953 = vadd.f32 %v2744, %v2952
  %v2954 = vpop.f32.mrf.mxu0
  %2955 = vmatprep.mubr.bf16.mxu0 0
  %2956 = vmatmul.mubr.bf16.gmra.mxu0 %v945
  %v2957 = vpop.f32.mrf.mxu0
  %v2958 = vadd.f32 %v2749, %v2957
  %v2959 = vpop.f32.mrf.mxu0
  %v2960 = vpop.f32.mrf.mxu0
  %v2961 = vadd.f32 %v2752, %v2960
  %v2962 = vpop.f32.mrf.mxu0
  %2963 = vmatprep.mubr.bf16.mxu0 0
  %2964 = vmatmul.mubr.bf16.gmra.mxu0 %v948
  %v2965 = vpop.f32.mrf.mxu0
  %v2966 = vadd.f32 %v2757, %v2965
  %v2967 = vpop.f32.mrf.mxu0
  %v2968 = vpop.f32.mrf.mxu0
  %v2969 = vadd.f32 %v2760, %v2968
  %v2970 = vpop.f32.mrf.mxu0
  %2971 = vmatprep.mubr.bf16.mxu0 0
  %2972 = vmatmul.mubr.bf16.gmra.mxu0 %v951
  %v2973 = vpop.f32.mrf.mxu0
  %v2974 = vadd.f32 %v2765, %v2973
  %v2975 = vpop.f32.mrf.mxu0
  %v2976 = vpop.f32.mrf.mxu0
  %v2977 = vadd.f32 %v2768, %v2976
  %v2978 = vpop.f32.mrf.mxu0
  %2979 = vdwg.mxu0
  %v2980 = vtanh.pop %v2806
  %v2981 = vtanh.pop %v2809
  %v2982 = vtanh.pop %v2814
  %v2983 = vtanh.pop %v2817
  %v2984 = vtanh.pop %v2822
  %v2985 = vtanh.pop %v2825
  %v2986 = vtanh.pop %v2830
  %v2987 = vtanh.pop %v2833
  %v2988 = vtanh.pop %v2838
  %v2989 = vtanh.pop %v2841
  %v2990 = vtanh.pop %v2846
  %v2991 = vtanh.pop %v2849
  %v2992 = vtanh.pop %v2854
  %v2993 = vtanh.pop %v2857
  %v2994 = vtanh.pop %v2862
  %v2995 = vtanh.pop %v2865
  %v2996 = vtanh.pop %v2870
  %v2997 = vtanh.pop %v2873
  %v2998 = vtanh.pop %v2878
  %v2999 = vtanh.pop %v2881
  %v3000 = vtanh.pop %v2886
  %v3001 = vtanh.pop %v2889
  %v3002 = vtanh.pop %v2894
  %v3003 = vtanh.pop %v2897
  %v3004 = vtanh.pop %v2902
  %v3005 = vtanh.pop %v2905
  %v3006 = vtanh.pop %v2910
  %v3007 = vtanh.pop %v2913
  %v3008 = vtanh.pop %v2918
  %v3009 = vtanh.pop %v2921
  %v3010 = vtanh.pop %v2926
  %v3011 = vtanh.pop %v2929
  %v3012 = vtanh.pop %v2934
  %v3013 = vtanh.pop %v2937
  %v3014 = vtanh.pop %v2942
  %v3015 = vtanh.pop %v2945
  %v3016 = vtanh.pop %v2950
  %v3017 = vtanh.pop %v2953
  %v3018 = vtanh.pop %v2958
  %v3019 = vtanh.pop %v2961
  %v3020 = vtanh.pop %v2966
  %v3021 = vtanh.pop %v2969
  %v3022 = vtanh.pop %v2974
  %v3023 = vtanh.pop %v2977
  %v3024 = vld [vmem:[%s8] sm:$0xf]
  %v3025 = vld [vmem:[%s8 + $0x4] sm:$0xf]
  %v3026 = vld [vmem:[%s8 + $0x8] sm:$0xf]
  %v3027 = vld [vmem:[%s8 + $0xc] sm:$0xf]
  %v3028 = vpack.c.bf16 %v2981, %v2980
  %v3029 = vpack.c.bf16 %v2983, %v2982
  %v3030 = vpack.c.bf16 %v2985, %v2984
  %v3031 = vpack.c.bf16 %v2987, %v2986
  %v3032 = vpack.c.bf16 %v2989, %v2988
  %v3033 = vpack.c.bf16 %v2991, %v2990
  %v3034 = vpack.c.bf16 %v2993, %v2992
  %v3035 = vpack.c.bf16 %v2995, %v2994
  %v3036 = vpack.c.bf16 %v2997, %v2996
  %v3037 = vpack.c.bf16 %v2999, %v2998
  %v3038 = vpack.c.bf16 %v3001, %v3000
  %v3039 = vpack.c.bf16 %v3003, %v3002
  %v3040 = vpack.c.bf16 %v3005, %v3004
  %v3041 = vpack.c.bf16 %v3007, %v3006
  %v3042 = vpack.c.bf16 %v3009, %v3008
  %v3043 = vpack.c.bf16 %v3011, %v3010
  %v3044 = vpack.c.bf16 %v3013, %v3012
  %v3045 = vpack.c.bf16 %v3015, %v3014
  %v3046 = vpack.c.bf16 %v3017, %v3016
  %v3047 = vpack.c.bf16 %v3019, %v3018
  %v3048 = vpack.c.bf16 %v3021, %v3020
  %v3049 = vpack.c.bf16 %v3023, %v3022
  %v3054 = vunpack.c.l.b16 %v3024
  %v3055 = vunpack.c.l.b16 %v3025
  %v3056 = vunpack.c.l.b16 %v3026
  %v3057 = vunpack.c.l.b16 %v3027
  %v3058 = vpack.c.b16 %v3055, %v3054
  %v3059 = vpack.c.b16 %v3057, %v3056
  %v3063 = vsel %vm1453, %v3028, 0
  %v3066 = vsel %vm1453, %v3029, 0
  %v3069 = vsel %vm1453, %v3030, 0
  %v3072 = vsel %vm1453, %v3031, 0
  %v3075 = vsel %vm1453, %v3032, 0
  %v3078 = vsel %vm1453, %v3033, 0
  %v3081 = vsel %vm1453, %v3034, 0
  %v3084 = vsel %vm1453, %v3035, 0
  %v3087 = vsel %vm1453, %v3036, 0
  %v3090 = vsel %vm1453, %v3037, 0
  %v3093 = vsel %vm1453, %v3038, 0
  %v3096 = vsel %vm1453, %v3039, 0
  %v3099 = vsel %vm1453, %v3040, 0
  %v3102 = vsel %vm1453, %v3041, 0
  %v3105 = vsel %vm1453, %v3042, 0
  %v3108 = vsel %vm1453, %v3043, 0
  %v3111 = vsel %vm1453, %v3044, 0
  %v3114 = vsel %vm1453, %v3045, 0
  %v3117 = vsel %vm1453, %v3046, 0
  %v3120 = vsel %vm1453, %v3047, 0
  %v3123 = vsel %vm1453, %v3048, 0
  %v3126 = vsel %vm1453, %v3049, 0
  %3128 = vmatprep.subr.bf16.mxu0 0
  %3129 = vmatpush1.bf16.msra.mxu0 0
  %3130 = vmatprep.subr.bf16.mxu0 0
  %3131 = vmatpush1.bf16.msra.mxu0 0
  %3132 = vmatprep.subr.bf16.mxu0 0
  %3133 = vmatpush1.bf16.msra.mxu0 0
  %3134 = vmatprep.subr.bf16.mxu0 0
  %3135 = vmatpush1.bf16.msra.mxu0 0
  %3136 = vmatprep.subr.bf16.mxu0 0
  %3137 = vmatpush1.bf16.msra.mxu0 0
  %3138 = vmatprep.subr.bf16.mxu0 0
  %3139 = vmatpush1.bf16.msra.mxu0 0
  %3140 = vmatprep.subr.bf16.mxu0 0
  %3141 = vmatpush1.bf16.msra.mxu0 %v3059
  %3142 = vmatprep.subr.bf16.mxu0 0
  %3143 = vmatpush1.bf16.msra.mxu0 %v3058
  %3144 = vmatprep.subr.bf16.mxu0 0
  %3145 = vmatpush2.bf16.msra.mxu0 0
  %3146 = vmatprep.subr.bf16.mxu0 0
  %3147 = vmatpush2.bf16.msra.mxu0 0
  %3148 = vmatprep.subr.bf16.mxu0 0
  %3149 = vmatpush2.bf16.msra.mxu0 0
  %3150 = vmatprep.subr.bf16.mxu0 0
  %3151 = vmatpush2.bf16.msra.mxu0 0
  %3152 = vmatprep.subr.bf16.mxu0 0
  %3153 = vmatpush2.bf16.msra.mxu0 0
  %3154 = vmatprep.subr.bf16.mxu0 0
  %3155 = vmatpush2.bf16.msra.mxu0 0
  %3156 = vmatprep.subr.bf16.mxu0 0
  %3157 = vmatpush2.bf16.msra.mxu0 0
  %3158 = vmatprep.subr.bf16.mxu0 0
  %3159 = vmatpush2.bf16.msra.mxu0 0
  %3160 = vmatprep.mubr.bf16.mxu0 0
  %3161 = vmatmul.mubr.bf16.gmra.mxu0 %v3063
  %v3162 = vpop.f32.mrf.mxu0
  %v3163 = vadd.f32 0.0, %v3162
  %v3164 = vpop.f32.mrf.mxu0
  %v3165 = vpop.f32.mrf.mxu0
  %v3166 = vadd.f32 0.0, %v3165
  %v3167 = vpop.f32.mrf.mxu0
  %3168 = vmatprep.mubr.bf16.mxu0 0
  %3169 = vmatmul.mubr.bf16.gmra.mxu0 %v3066
  %v3170 = vpop.f32.mrf.mxu0
  %v3171 = vadd.f32 0.0, %v3170
  %v3172 = vpop.f32.mrf.mxu0
  %v3173 = vpop.f32.mrf.mxu0
  %v3174 = vadd.f32 0.0, %v3173
  %v3175 = vpop.f32.mrf.mxu0
  %3176 = vmatprep.mubr.bf16.mxu0 0
  %3177 = vmatmul.mubr.bf16.gmra.mxu0 %v3069
  %v3178 = vpop.f32.mrf.mxu0
  %v3179 = vadd.f32 0.0, %v3178
  %v3180 = vpop.f32.mrf.mxu0
  %v3181 = vpop.f32.mrf.mxu0
  %v3182 = vadd.f32 0.0, %v3181
  %v3183 = vpop.f32.mrf.mxu0
  %3184 = vmatprep.mubr.bf16.mxu0 0
  %3185 = vmatmul.mubr.bf16.gmra.mxu0 %v3072
  %v3186 = vpop.f32.mrf.mxu0
  %v3187 = vadd.f32 0.0, %v3186
  %v3188 = vpop.f32.mrf.mxu0
  %v3189 = vpop.f32.mrf.mxu0
  %v3190 = vadd.f32 0.0, %v3189
  %v3191 = vpop.f32.mrf.mxu0
  %3192 = vmatprep.mubr.bf16.mxu0 0
  %3193 = vmatmul.mubr.bf16.gmra.mxu0 %v3075
  %v3194 = vpop.f32.mrf.mxu0
  %v3195 = vadd.f32 0.0, %v3194
  %v3196 = vpop.f32.mrf.mxu0
  %v3197 = vpop.f32.mrf.mxu0
  %v3198 = vadd.f32 0.0, %v3197
  %v3199 = vpop.f32.mrf.mxu0
  %3200 = vmatprep.mubr.bf16.mxu0 0
  %3201 = vmatmul.mubr.bf16.gmra.mxu0 %v3078
  %v3202 = vpop.f32.mrf.mxu0
  %v3203 = vadd.f32 0.0, %v3202
  %v3204 = vpop.f32.mrf.mxu0
  %v3205 = vpop.f32.mrf.mxu0
  %v3206 = vadd.f32 0.0, %v3205
  %v3207 = vpop.f32.mrf.mxu0
  %3208 = vmatprep.mubr.bf16.mxu0 0
  %3209 = vmatmul.mubr.bf16.gmra.mxu0 %v3081
  %v3210 = vpop.f32.mrf.mxu0
  %v3211 = vadd.f32 0.0, %v3210
  %v3212 = vpop.f32.mrf.mxu0
  %v3213 = vpop.f32.mrf.mxu0
  %v3214 = vadd.f32 0.0, %v3213
  %v3215 = vpop.f32.mrf.mxu0
  %3216 = vmatprep.mubr.bf16.mxu0 0
  %3217 = vmatmul.mubr.bf16.gmra.mxu0 %v3084
  %v3218 = vpop.f32.mrf.mxu0
  %v3219 = vadd.f32 0.0, %v3218
  %v3220 = vpop.f32.mrf.mxu0
  %v3221 = vpop.f32.mrf.mxu0
  %v3222 = vadd.f32 0.0, %v3221
  %v3223 = vpop.f32.mrf.mxu0
  %3224 = vmatprep.mubr.bf16.mxu0 0
  %3225 = vmatmul.mubr.bf16.gmra.mxu0 %v3087
  %v3226 = vpop.f32.mrf.mxu0
  %v3227 = vadd.f32 0.0, %v3226
  %v3228 = vpop.f32.mrf.mxu0
  %v3229 = vpop.f32.mrf.mxu0
  %v3230 = vadd.f32 0.0, %v3229
  %v3231 = vpop.f32.mrf.mxu0
  %3232 = vmatprep.mubr.bf16.mxu0 0
  %3233 = vmatmul.mubr.bf16.gmra.mxu0 %v3090
  %v3234 = vpop.f32.mrf.mxu0
  %v3235 = vadd.f32 0.0, %v3234
  %v3236 = vpop.f32.mrf.mxu0
  %v3237 = vpop.f32.mrf.mxu0
  %v3238 = vadd.f32 0.0, %v3237
  %v3239 = vpop.f32.mrf.mxu0
  %3240 = vmatprep.mubr.bf16.mxu0 0
  %3241 = vmatmul.mubr.bf16.gmra.mxu0 %v3093
  %v3242 = vpop.f32.mrf.mxu0
  %v3243 = vadd.f32 0.0, %v3242
  %v3244 = vpop.f32.mrf.mxu0
  %v3245 = vpop.f32.mrf.mxu0
  %v3246 = vadd.f32 0.0, %v3245
  %v3247 = vpop.f32.mrf.mxu0
  %3248 = vmatprep.mubr.bf16.mxu0 0
  %3249 = vmatmul.mubr.bf16.gmra.mxu0 %v3096
  %v3250 = vpop.f32.mrf.mxu0
  %v3251 = vadd.f32 0.0, %v3250
  %v3252 = vpop.f32.mrf.mxu0
  %v3253 = vpop.f32.mrf.mxu0
  %v3254 = vadd.f32 0.0, %v3253
  %v3255 = vpop.f32.mrf.mxu0
  %3256 = vmatprep.mubr.bf16.mxu0 0
  %3257 = vmatmul.mubr.bf16.gmra.mxu0 %v3099
  %v3258 = vpop.f32.mrf.mxu0
  %v3259 = vadd.f32 0.0, %v3258
  %v3260 = vpop.f32.mrf.mxu0
  %v3261 = vpop.f32.mrf.mxu0
  %v3262 = vadd.f32 0.0, %v3261
  %v3263 = vpop.f32.mrf.mxu0
  %3264 = vmatprep.mubr.bf16.mxu0 0
  %3265 = vmatmul.mubr.bf16.gmra.mxu0 %v3102
  %v3266 = vpop.f32.mrf.mxu0
  %v3267 = vadd.f32 0.0, %v3266
  %v3268 = vpop.f32.mrf.mxu0
  %v3269 = vpop.f32.mrf.mxu0
  %v3270 = vadd.f32 0.0, %v3269
  %v3271 = vpop.f32.mrf.mxu0
  %3272 = vmatprep.mubr.bf16.mxu0 0
  %3273 = vmatmul.mubr.bf16.gmra.mxu0 %v3105
  %v3274 = vpop.f32.mrf.mxu0
  %v3275 = vadd.f32 0.0, %v3274
  %v3276 = vpop.f32.mrf.mxu0
  %v3277 = vpop.f32.mrf.mxu0
  %v3278 = vadd.f32 0.0, %v3277
  %v3279 = vpop.f32.mrf.mxu0
  %3280 = vmatprep.mubr.bf16.mxu0 0
  %3281 = vmatmul.mubr.bf16.gmra.mxu0 %v3108
  %v3282 = vpop.f32.mrf.mxu0
  %v3283 = vadd.f32 0.0, %v3282
  %v3284 = vpop.f32.mrf.mxu0
  %v3285 = vpop.f32.mrf.mxu0
  %v3286 = vadd.f32 0.0, %v3285
  %v3287 = vpop.f32.mrf.mxu0
  %3288 = vmatprep.mubr.bf16.mxu0 0
  %3289 = vmatmul.mubr.bf16.gmra.mxu0 %v3111
  %v3290 = vpop.f32.mrf.mxu0
  %v3291 = vadd.f32 0.0, %v3290
  %v3292 = vpop.f32.mrf.mxu0
  %v3293 = vpop.f32.mrf.mxu0
  %v3294 = vadd.f32 0.0, %v3293
  %v3295 = vpop.f32.mrf.mxu0
  %3296 = vmatprep.mubr.bf16.mxu0 0
  %3297 = vmatmul.mubr.bf16.gmra.mxu0 %v3114
  %v3298 = vpop.f32.mrf.mxu0
  %v3299 = vadd.f32 0.0, %v3298
  %v3300 = vpop.f32.mrf.mxu0
  %v3301 = vpop.f32.mrf.mxu0
  %v3302 = vadd.f32 0.0, %v3301
  %v3303 = vpop.f32.mrf.mxu0
  %3304 = vmatprep.mubr.bf16.mxu0 0
  %3305 = vmatmul.mubr.bf16.gmra.mxu0 %v3117
  %v3306 = vpop.f32.mrf.mxu0
  %v3307 = vadd.f32 0.0, %v3306
  %v3308 = vpop.f32.mrf.mxu0
  %v3309 = vpop.f32.mrf.mxu0
  %v3310 = vadd.f32 0.0, %v3309
  %v3311 = vpop.f32.mrf.mxu0
  %3312 = vmatprep.mubr.bf16.mxu0 0
  %3313 = vmatmul.mubr.bf16.gmra.mxu0 %v3120
  %v3314 = vpop.f32.mrf.mxu0
  %v3315 = vadd.f32 0.0, %v3314
  %v3316 = vpop.f32.mrf.mxu0
  %v3317 = vpop.f32.mrf.mxu0
  %v3318 = vadd.f32 0.0, %v3317
  %v3319 = vpop.f32.mrf.mxu0
  %3320 = vmatprep.mubr.bf16.mxu0 0
  %3321 = vmatmul.mubr.bf16.gmra.mxu0 %v3123
  %v3322 = vpop.f32.mrf.mxu0
  %v3323 = vadd.f32 0.0, %v3322
  %v3324 = vpop.f32.mrf.mxu0
  %v3325 = vpop.f32.mrf.mxu0
  %v3326 = vadd.f32 0.0, %v3325
  %v3327 = vpop.f32.mrf.mxu0
  %3328 = vmatprep.mubr.bf16.mxu0 0
  %3329 = vmatmul.mubr.bf16.gmra.mxu0 %v3126
  %v3330 = vpop.f32.mrf.mxu0
  %v3331 = vadd.f32 0.0, %v3330
  %v3332 = vpop.f32.mrf.mxu0
  %v3333 = vpop.f32.mrf.mxu0
  %v3334 = vadd.f32 0.0, %v3333
  %v3335 = vpop.f32.mrf.mxu0
  %3336 = vdwg.mxu0
  %v3337 = vpack.c.bf16 %v3166, %v3163
  %v3338 = vpack.c.bf16 %v3174, %v3171
  %v3339 = vpack.c.bf16 %v3182, %v3179
  %v3340 = vpack.c.bf16 %v3190, %v3187
  %v3341 = vpack.c.bf16 %v3198, %v3195
  %v3342 = vpack.c.bf16 %v3206, %v3203
  %v3343 = vpack.c.bf16 %v3214, %v3211
  %v3344 = vpack.c.bf16 %v3222, %v3219
  %v3345 = vpack.c.bf16 %v3230, %v3227
  %v3346 = vpack.c.bf16 %v3238, %v3235
  %v3347 = vpack.c.bf16 %v3246, %v3243
  %v3348 = vpack.c.bf16 %v3254, %v3251
  %v3349 = vpack.c.bf16 %v3262, %v3259
  %v3350 = vpack.c.bf16 %v3270, %v3267
  %v3351 = vpack.c.bf16 %v3278, %v3275
  %v3352 = vpack.c.bf16 %v3286, %v3283
  %v3353 = vpack.c.bf16 %v3294, %v3291
  %v3354 = vpack.c.bf16 %v3302, %v3299
  %v3355 = vpack.c.bf16 %v3310, %v3307
  %v3356 = vpack.c.bf16 %v3318, %v3315
  %v3357 = vpack.c.bf16 %v3326, %v3323
  %v3358 = vpack.c.bf16 %v3334, %v3331
  %v3359 = vld [vmem:[%s9] sm:$0x1]
  %v3361 = vlaneseq
  %v3362 = vshrl.u32 %v3361, 7
  %v3363 = vsub.s32 0, %v3362
  %v3364 = vrot.slane %v3359, %v3363
  %3366 = vmatprep.subr.bf16.mxu0 0
  %3367 = vmatpush1.bf16.msra.mxu0 %v3344
  %3368 = vmatprep.subr.bf16.mxu0 0
  %3369 = vmatpush1.bf16.msra.mxu0 %v3343
  %3370 = vmatprep.subr.bf16.mxu0 0
  %3371 = vmatpush1.bf16.msra.mxu0 %v3342
  %3372 = vmatprep.subr.bf16.mxu0 0
  %3373 = vmatpush1.bf16.msra.mxu0 %v3341
  %3374 = vmatprep.subr.bf16.mxu0 0
  %3375 = vmatpush1.bf16.msra.mxu0 %v3340
  %3376 = vmatprep.subr.bf16.mxu0 0
  %3377 = vmatpush1.bf16.msra.mxu0 %v3339
  %3378 = vmatprep.subr.bf16.mxu0 0
  %3379 = vmatpush1.bf16.msra.mxu0 %v3338
  %3380 = vmatprep.subr.bf16.mxu0 0
  %3381 = vmatpush1.bf16.msra.mxu0 %v3337
  %3382 = vmatprep.subr.bf16.mxu0 0
  %3383 = vmatpush2.bf16.msra.mxu0 %v3352
  %3384 = vmatprep.subr.bf16.mxu0 0
  %3385 = vmatpush2.bf16.msra.mxu0 %v3351
  %3386 = vmatprep.subr.bf16.mxu0 0
  %3387 = vmatpush2.bf16.msra.mxu0 %v3350
  %3388 = vmatprep.subr.bf16.mxu0 0
  %3389 = vmatpush2.bf16.msra.mxu0 %v3349
  %3390 = vmatprep.subr.bf16.mxu0 0
  %3391 = vmatpush2.bf16.msra.mxu0 %v3348
  %3392 = vmatprep.subr.bf16.mxu0 0
  %3393 = vmatpush2.bf16.msra.mxu0 %v3347
  %3394 = vmatprep.subr.bf16.mxu0 0
  %3395 = vmatpush2.bf16.msra.mxu0 %v3346
  %3396 = vmatprep.subr.bf16.mxu0 0
  %3397 = vmatpush2.bf16.msra.mxu0 %v3345
  %3398 = vmatprep.mubr.bf16.mxu0 %v777
  %3399 = vmatmul.mubr.bf16.gmra.mxu0 %v776
  %v3400 = vpop.f32.mrf.mxu0
  %v3401 = vadd.f32 %v3364, %v3400
  %v3402 = vpop.f32.mrf.mxu0
  %v3403 = vpop.f32.mrf.mxu0
  %v3404 = vadd.f32 %v3364, %v3403
  %v3405 = vpop.f32.mrf.mxu0
  %3406 = vmatprep.mubr.bf16.mxu0 %v780
  %3407 = vmatmul.mubr.bf16.gmra.mxu0 %v779
  %v3408 = vpop.f32.mrf.mxu0
  %v3409 = vadd.f32 %v3364, %v3408
  %v3410 = vpop.f32.mrf.mxu0
  %v3411 = vpop.f32.mrf.mxu0
  %v3412 = vadd.f32 %v3364, %v3411
  %v3413 = vpop.f32.mrf.mxu0
  %3414 = vmatprep.mubr.bf16.mxu0 %v783
  %3415 = vmatmul.mubr.bf16.gmra.mxu0 %v782
  %v3416 = vpop.f32.mrf.mxu0
  %v3417 = vadd.f32 %v3364, %v3416
  %v3418 = vpop.f32.mrf.mxu0
  %v3419 = vpop.f32.mrf.mxu0
  %v3420 = vadd.f32 %v3364, %v3419
  %v3421 = vpop.f32.mrf.mxu0
  %3422 = vmatprep.mubr.bf16.mxu0 %v786
  %3423 = vmatmul.mubr.bf16.gmra.mxu0 %v785
  %v3424 = vpop.f32.mrf.mxu0
  %v3425 = vadd.f32 %v3364, %v3424
  %v3426 = vpop.f32.mrf.mxu0
  %v3427 = vpop.f32.mrf.mxu0
  %v3428 = vadd.f32 %v3364, %v3427
  %v3429 = vpop.f32.mrf.mxu0
  %3430 = vmatprep.mubr.bf16.mxu0 %v789
  %3431 = vmatmul.mubr.bf16.gmra.mxu0 %v788
  %v3432 = vpop.f32.mrf.mxu0
  %v3433 = vadd.f32 %v3364, %v3432
  %v3434 = vpop.f32.mrf.mxu0
  %v3435 = vpop.f32.mrf.mxu0
  %v3436 = vadd.f32 %v3364, %v3435
  %v3437 = vpop.f32.mrf.mxu0
  %3438 = vmatprep.mubr.bf16.mxu0 %v792
  %3439 = vmatmul.mubr.bf16.gmra.mxu0 %v791
  %v3440 = vpop.f32.mrf.mxu0
  %v3441 = vadd.f32 %v3364, %v3440
  %v3442 = vpop.f32.mrf.mxu0
  %v3443 = vpop.f32.mrf.mxu0
  %v3444 = vadd.f32 %v3364, %v3443
  %v3445 = vpop.f32.mrf.mxu0
  %3446 = vmatprep.mubr.bf16.mxu0 %v795
  %3447 = vmatmul.mubr.bf16.gmra.mxu0 %v794
  %v3448 = vpop.f32.mrf.mxu0
  %v3449 = vadd.f32 %v3364, %v3448
  %v3450 = vpop.f32.mrf.mxu0
  %v3451 = vpop.f32.mrf.mxu0
  %v3452 = vadd.f32 %v3364, %v3451
  %v3453 = vpop.f32.mrf.mxu0
  %3454 = vmatprep.mubr.bf16.mxu0 %v798
  %3455 = vmatmul.mubr.bf16.gmra.mxu0 %v797
  %v3456 = vpop.f32.mrf.mxu0
  %v3457 = vadd.f32 %v3364, %v3456
  %v3458 = vpop.f32.mrf.mxu0
  %v3459 = vpop.f32.mrf.mxu0
  %v3460 = vadd.f32 %v3364, %v3459
  %v3461 = vpop.f32.mrf.mxu0
  %3462 = vmatprep.mubr.bf16.mxu0 %v801
  %3463 = vmatmul.mubr.bf16.gmra.mxu0 %v800
  %v3464 = vpop.f32.mrf.mxu0
  %v3465 = vadd.f32 %v3364, %v3464
  %v3466 = vpop.f32.mrf.mxu0
  %v3467 = vpop.f32.mrf.mxu0
  %v3468 = vadd.f32 %v3364, %v3467
  %v3469 = vpop.f32.mrf.mxu0
  %3470 = vmatprep.mubr.bf16.mxu0 %v804
  %3471 = vmatmul.mubr.bf16.gmra.mxu0 %v803
  %v3472 = vpop.f32.mrf.mxu0
  %v3473 = vadd.f32 %v3364, %v3472
  %v3474 = vpop.f32.mrf.mxu0
  %v3475 = vpop.f32.mrf.mxu0
  %v3476 = vadd.f32 %v3364, %v3475
  %v3477 = vpop.f32.mrf.mxu0
  %3478 = vmatprep.mubr.bf16.mxu0 %v807
  %3479 = vmatmul.mubr.bf16.gmra.mxu0 %v806
  %v3480 = vpop.f32.mrf.mxu0
  %v3481 = vadd.f32 %v3364, %v3480
  %v3482 = vpop.f32.mrf.mxu0
  %v3483 = vpop.f32.mrf.mxu0
  %v3484 = vadd.f32 %v3364, %v3483
  %v3485 = vpop.f32.mrf.mxu0
  %3486 = vmatprep.mubr.bf16.mxu0 %v810
  %3487 = vmatmul.mubr.bf16.gmra.mxu0 %v809
  %v3488 = vpop.f32.mrf.mxu0
  %v3489 = vadd.f32 %v3364, %v3488
  %v3490 = vpop.f32.mrf.mxu0
  %v3491 = vpop.f32.mrf.mxu0
  %v3492 = vadd.f32 %v3364, %v3491
  %v3493 = vpop.f32.mrf.mxu0
  %3494 = vmatprep.mubr.bf16.mxu0 %v813
  %3495 = vmatmul.mubr.bf16.gmra.mxu0 %v812
  %v3496 = vpop.f32.mrf.mxu0
  %v3497 = vadd.f32 %v3364, %v3496
  %v3498 = vpop.f32.mrf.mxu0
  %v3499 = vpop.f32.mrf.mxu0
  %v3500 = vadd.f32 %v3364, %v3499
  %v3501 = vpop.f32.mrf.mxu0
  %3502 = vmatprep.mubr.bf16.mxu0 %v816
  %3503 = vmatmul.mubr.bf16.gmra.mxu0 %v815
  %v3504 = vpop.f32.mrf.mxu0
  %v3505 = vadd.f32 %v3364, %v3504
  %v3506 = vpop.f32.mrf.mxu0
  %v3507 = vpop.f32.mrf.mxu0
  %v3508 = vadd.f32 %v3364, %v3507
  %v3509 = vpop.f32.mrf.mxu0
  %3510 = vmatprep.mubr.bf16.mxu0 %v819
  %3511 = vmatmul.mubr.bf16.gmra.mxu0 %v818
  %v3512 = vpop.f32.mrf.mxu0
  %v3513 = vadd.f32 %v3364, %v3512
  %v3514 = vpop.f32.mrf.mxu0
  %v3515 = vpop.f32.mrf.mxu0
  %v3516 = vadd.f32 %v3364, %v3515
  %v3517 = vpop.f32.mrf.mxu0
  %3518 = vmatprep.mubr.bf16.mxu0 %v822
  %3519 = vmatmul.mubr.bf16.gmra.mxu0 %v821
  %v3520 = vpop.f32.mrf.mxu0
  %v3521 = vadd.f32 %v3364, %v3520
  %v3522 = vpop.f32.mrf.mxu0
  %v3523 = vpop.f32.mrf.mxu0
  %v3524 = vadd.f32 %v3364, %v3523
  %v3525 = vpop.f32.mrf.mxu0
  %3526 = vmatprep.mubr.bf16.mxu0 %v825
  %3527 = vmatmul.mubr.bf16.gmra.mxu0 %v824
  %v3528 = vpop.f32.mrf.mxu0
  %v3529 = vadd.f32 %v3364, %v3528
  %v3530 = vpop.f32.mrf.mxu0
  %v3531 = vpop.f32.mrf.mxu0
  %v3532 = vadd.f32 %v3364, %v3531
  %v3533 = vpop.f32.mrf.mxu0
  %3534 = vmatprep.mubr.bf16.mxu0 %v828
  %3535 = vmatmul.mubr.bf16.gmra.mxu0 %v827
  %v3536 = vpop.f32.mrf.mxu0
  %v3537 = vadd.f32 %v3364, %v3536
  %v3538 = vpop.f32.mrf.mxu0
  %v3539 = vpop.f32.mrf.mxu0
  %v3540 = vadd.f32 %v3364, %v3539
  %v3541 = vpop.f32.mrf.mxu0
  %3542 = vmatprep.mubr.bf16.mxu0 %v831
  %3543 = vmatmul.mubr.bf16.gmra.mxu0 %v830
  %v3544 = vpop.f32.mrf.mxu0
  %v3545 = vadd.f32 %v3364, %v3544
  %v3546 = vpop.f32.mrf.mxu0
  %v3547 = vpop.f32.mrf.mxu0
  %v3548 = vadd.f32 %v3364, %v3547
  %v3549 = vpop.f32.mrf.mxu0
  %3550 = vmatprep.mubr.bf16.mxu0 %v834
  %3551 = vmatmul.mubr.bf16.gmra.mxu0 %v833
  %v3552 = vpop.f32.mrf.mxu0
  %v3553 = vadd.f32 %v3364, %v3552
  %v3554 = vpop.f32.mrf.mxu0
  %v3555 = vpop.f32.mrf.mxu0
  %v3556 = vadd.f32 %v3364, %v3555
  %v3557 = vpop.f32.mrf.mxu0
  %3558 = vmatprep.mubr.bf16.mxu0 %v837
  %3559 = vmatmul.mubr.bf16.gmra.mxu0 %v836
  %v3560 = vpop.f32.mrf.mxu0
  %v3561 = vadd.f32 %v3364, %v3560
  %v3562 = vpop.f32.mrf.mxu0
  %v3563 = vpop.f32.mrf.mxu0
  %v3564 = vadd.f32 %v3364, %v3563
  %v3565 = vpop.f32.mrf.mxu0
  %3566 = vmatprep.mubr.bf16.mxu0 %v840
  %3567 = vmatmul.mubr.bf16.gmra.mxu0 %v839
  %v3568 = vpop.f32.mrf.mxu0
  %v3569 = vadd.f32 %v3364, %v3568
  %v3570 = vpop.f32.mrf.mxu0
  %v3571 = vpop.f32.mrf.mxu0
  %v3572 = vadd.f32 %v3364, %v3571
  %v3573 = vpop.f32.mrf.mxu0
  %3574 = vdwg.mxu0
  %3575 = vmatprep.subr.bf16.mxu0 0
  %3576 = vmatpush1.bf16.msra.mxu0 0
  %3577 = vmatprep.subr.bf16.mxu0 0
  %3578 = vmatpush1.bf16.msra.mxu0 0
  %3579 = vmatprep.subr.bf16.mxu0 0
  %3580 = vmatpush1.bf16.msra.mxu0 %v3358
  %3581 = vmatprep.subr.bf16.mxu0 0
  %3582 = vmatpush1.bf16.msra.mxu0 %v3357
  %3583 = vmatprep.subr.bf16.mxu0 0
  %3584 = vmatpush1.bf16.msra.mxu0 %v3356
  %3585 = vmatprep.subr.bf16.mxu0 0
  %3586 = vmatpush1.bf16.msra.mxu0 %v3355
  %3587 = vmatprep.subr.bf16.mxu0 0
  %3588 = vmatpush1.bf16.msra.mxu0 %v3354
  %3589 = vmatprep.subr.bf16.mxu0 0
  %3590 = vmatpush1.bf16.msra.mxu0 %v3353
  %3591 = vmatprep.subr.bf16.mxu0 0
  %3592 = vmatpush2.bf16.msra.mxu0 0
  %3593 = vmatprep.subr.bf16.mxu0 0
  %3594 = vmatpush2.bf16.msra.mxu0 0
  %3595 = vmatprep.subr.bf16.mxu0 0
  %3596 = vmatpush2.bf16.msra.mxu0 0
  %3597 = vmatprep.subr.bf16.mxu0 0
  %3598 = vmatpush2.bf16.msra.mxu0 0
  %3599 = vmatprep.subr.bf16.mxu0 0
  %3600 = vmatpush2.bf16.msra.mxu0 0
  %3601 = vmatprep.subr.bf16.mxu0 0
  %3602 = vmatpush2.bf16.msra.mxu0 0
  %3603 = vmatprep.subr.bf16.mxu0 0
  %3604 = vmatpush2.bf16.msra.mxu0 0
  %3605 = vmatprep.subr.bf16.mxu0 0
  %3606 = vmatpush2.bf16.msra.mxu0 0
  %3607 = vmatprep.mubr.bf16.mxu0 0
  %3608 = vmatmul.mubr.bf16.gmra.mxu0 %v888
  %v3609 = vpop.f32.mrf.mxu0
  %v3610 = vadd.f32 %v3401, %v3609
  %v3611 = vpop.f32.mrf.mxu0
  %v3612 = vpop.f32.mrf.mxu0
  %v3613 = vadd.f32 %v3404, %v3612
  %v3614 = vpop.f32.mrf.mxu0
  %3615 = vmatprep.mubr.bf16.mxu0 0
  %3616 = vmatmul.mubr.bf16.gmra.mxu0 %v891
  %v3617 = vpop.f32.mrf.mxu0
  %v3618 = vadd.f32 %v3409, %v3617
  %v3619 = vpop.f32.mrf.mxu0
  %v3620 = vpop.f32.mrf.mxu0
  %v3621 = vadd.f32 %v3412, %v3620
  %v3622 = vpop.f32.mrf.mxu0
  %3623 = vmatprep.mubr.bf16.mxu0 0
  %3624 = vmatmul.mubr.bf16.gmra.mxu0 %v894
  %v3625 = vpop.f32.mrf.mxu0
  %v3626 = vadd.f32 %v3417, %v3625
  %v3627 = vpop.f32.mrf.mxu0
  %v3628 = vpop.f32.mrf.mxu0
  %v3629 = vadd.f32 %v3420, %v3628
  %v3630 = vpop.f32.mrf.mxu0
  %3631 = vmatprep.mubr.bf16.mxu0 0
  %3632 = vmatmul.mubr.bf16.gmra.mxu0 %v897
  %v3633 = vpop.f32.mrf.mxu0
  %v3634 = vadd.f32 %v3425, %v3633
  %v3635 = vpop.f32.mrf.mxu0
  %v3636 = vpop.f32.mrf.mxu0
  %v3637 = vadd.f32 %v3428, %v3636
  %v3638 = vpop.f32.mrf.mxu0
  %3639 = vmatprep.mubr.bf16.mxu0 0
  %3640 = vmatmul.mubr.bf16.gmra.mxu0 %v900
  %v3641 = vpop.f32.mrf.mxu0
  %v3642 = vadd.f32 %v3433, %v3641
  %v3643 = vpop.f32.mrf.mxu0
  %v3644 = vpop.f32.mrf.mxu0
  %v3645 = vadd.f32 %v3436, %v3644
  %v3646 = vpop.f32.mrf.mxu0
  %3647 = vmatprep.mubr.bf16.mxu0 0
  %3648 = vmatmul.mubr.bf16.gmra.mxu0 %v903
  %v3649 = vpop.f32.mrf.mxu0
  %v3650 = vadd.f32 %v3441, %v3649
  %v3651 = vpop.f32.mrf.mxu0
  %v3652 = vpop.f32.mrf.mxu0
  %v3653 = vadd.f32 %v3444, %v3652
  %v3654 = vpop.f32.mrf.mxu0
  %3655 = vmatprep.mubr.bf16.mxu0 0
  %3656 = vmatmul.mubr.bf16.gmra.mxu0 %v906
  %v3657 = vpop.f32.mrf.mxu0
  %v3658 = vadd.f32 %v3449, %v3657
  %v3659 = vpop.f32.mrf.mxu0
  %v3660 = vpop.f32.mrf.mxu0
  %v3661 = vadd.f32 %v3452, %v3660
  %v3662 = vpop.f32.mrf.mxu0
  %3663 = vmatprep.mubr.bf16.mxu0 0
  %3664 = vmatmul.mubr.bf16.gmra.mxu0 %v909
  %v3665 = vpop.f32.mrf.mxu0
  %v3666 = vadd.f32 %v3457, %v3665
  %v3667 = vpop.f32.mrf.mxu0
  %v3668 = vpop.f32.mrf.mxu0
  %v3669 = vadd.f32 %v3460, %v3668
  %v3670 = vpop.f32.mrf.mxu0
  %3671 = vmatprep.mubr.bf16.mxu0 0
  %3672 = vmatmul.mubr.bf16.gmra.mxu0 %v912
  %v3673 = vpop.f32.mrf.mxu0
  %v3674 = vadd.f32 %v3465, %v3673
  %v3675 = vpop.f32.mrf.mxu0
  %v3676 = vpop.f32.mrf.mxu0
  %v3677 = vadd.f32 %v3468, %v3676
  %v3678 = vpop.f32.mrf.mxu0
  %3679 = vmatprep.mubr.bf16.mxu0 0
  %3680 = vmatmul.mubr.bf16.gmra.mxu0 %v915
  %v3681 = vpop.f32.mrf.mxu0
  %v3682 = vadd.f32 %v3473, %v3681
  %v3683 = vpop.f32.mrf.mxu0
  %v3684 = vpop.f32.mrf.mxu0
  %v3685 = vadd.f32 %v3476, %v3684
  %v3686 = vpop.f32.mrf.mxu0
  %3687 = vmatprep.mubr.bf16.mxu0 0
  %3688 = vmatmul.mubr.bf16.gmra.mxu0 %v918
  %v3689 = vpop.f32.mrf.mxu0
  %v3690 = vadd.f32 %v3481, %v3689
  %v3691 = vpop.f32.mrf.mxu0
  %v3692 = vpop.f32.mrf.mxu0
  %v3693 = vadd.f32 %v3484, %v3692
  %v3694 = vpop.f32.mrf.mxu0
  %3695 = vmatprep.mubr.bf16.mxu0 0
  %3696 = vmatmul.mubr.bf16.gmra.mxu0 %v921
  %v3697 = vpop.f32.mrf.mxu0
  %v3698 = vadd.f32 %v3489, %v3697
  %v3699 = vpop.f32.mrf.mxu0
  %v3700 = vpop.f32.mrf.mxu0
  %v3701 = vadd.f32 %v3492, %v3700
  %v3702 = vpop.f32.mrf.mxu0
  %3703 = vmatprep.mubr.bf16.mxu0 0
  %3704 = vmatmul.mubr.bf16.gmra.mxu0 %v924
  %v3705 = vpop.f32.mrf.mxu0
  %v3706 = vadd.f32 %v3497, %v3705
  %v3707 = vpop.f32.mrf.mxu0
  %v3708 = vpop.f32.mrf.mxu0
  %v3709 = vadd.f32 %v3500, %v3708
  %v3710 = vpop.f32.mrf.mxu0
  %3711 = vmatprep.mubr.bf16.mxu0 0
  %3712 = vmatmul.mubr.bf16.gmra.mxu0 %v927
  %v3713 = vpop.f32.mrf.mxu0
  %v3714 = vadd.f32 %v3505, %v3713
  %v3715 = vpop.f32.mrf.mxu0
  %v3716 = vpop.f32.mrf.mxu0
  %v3717 = vadd.f32 %v3508, %v3716
  %v3718 = vpop.f32.mrf.mxu0
  %3719 = vmatprep.mubr.bf16.mxu0 0
  %3720 = vmatmul.mubr.bf16.gmra.mxu0 %v930
  %v3721 = vpop.f32.mrf.mxu0
  %v3722 = vadd.f32 %v3513, %v3721
  %v3723 = vpop.f32.mrf.mxu0
  %v3724 = vpop.f32.mrf.mxu0
  %v3725 = vadd.f32 %v3516, %v3724
  %v3726 = vpop.f32.mrf.mxu0
  %3727 = vmatprep.mubr.bf16.mxu0 0
  %3728 = vmatmul.mubr.bf16.gmra.mxu0 %v933
  %v3729 = vpop.f32.mrf.mxu0
  %v3730 = vadd.f32 %v3521, %v3729
  %v3731 = vpop.f32.mrf.mxu0
  %v3732 = vpop.f32.mrf.mxu0
  %v3733 = vadd.f32 %v3524, %v3732
  %v3734 = vpop.f32.mrf.mxu0
  %3735 = vmatprep.mubr.bf16.mxu0 0
  %3736 = vmatmul.mubr.bf16.gmra.mxu0 %v936
  %v3737 = vpop.f32.mrf.mxu0
  %v3738 = vadd.f32 %v3529, %v3737
  %v3739 = vpop.f32.mrf.mxu0
  %v3740 = vpop.f32.mrf.mxu0
  %v3741 = vadd.f32 %v3532, %v3740
  %v3742 = vpop.f32.mrf.mxu0
  %3743 = vmatprep.mubr.bf16.mxu0 0
  %3744 = vmatmul.mubr.bf16.gmra.mxu0 %v939
  %v3745 = vpop.f32.mrf.mxu0
  %v3746 = vadd.f32 %v3537, %v3745
  %v3747 = vpop.f32.mrf.mxu0
  %v3748 = vpop.f32.mrf.mxu0
  %v3749 = vadd.f32 %v3540, %v3748
  %v3750 = vpop.f32.mrf.mxu0
  %3751 = vmatprep.mubr.bf16.mxu0 0
  %3752 = vmatmul.mubr.bf16.gmra.mxu0 %v942
  %v3753 = vpop.f32.mrf.mxu0
  %v3754 = vadd.f32 %v3545, %v3753
  %v3755 = vpop.f32.mrf.mxu0
  %v3756 = vpop.f32.mrf.mxu0
  %v3757 = vadd.f32 %v3548, %v3756
  %v3758 = vpop.f32.mrf.mxu0
  %3759 = vmatprep.mubr.bf16.mxu0 0
  %3760 = vmatmul.mubr.bf16.gmra.mxu0 %v945
  %v3761 = vpop.f32.mrf.mxu0
  %v3762 = vadd.f32 %v3553, %v3761
  %v3763 = vpop.f32.mrf.mxu0
  %v3764 = vpop.f32.mrf.mxu0
  %v3765 = vadd.f32 %v3556, %v3764
  %v3766 = vpop.f32.mrf.mxu0
  %3767 = vmatprep.mubr.bf16.mxu0 0
  %3768 = vmatmul.mubr.bf16.gmra.mxu0 %v948
  %v3769 = vpop.f32.mrf.mxu0
  %v3770 = vadd.f32 %v3561, %v3769
  %v3771 = vpop.f32.mrf.mxu0
  %v3772 = vpop.f32.mrf.mxu0
  %v3773 = vadd.f32 %v3564, %v3772
  %v3774 = vpop.f32.mrf.mxu0
  %3775 = vmatprep.mubr.bf16.mxu0 0
  %3776 = vmatmul.mubr.bf16.gmra.mxu0 %v951
  %v3777 = vpop.f32.mrf.mxu0
  %v3778 = vadd.f32 %v3569, %v3777
  %v3779 = vpop.f32.mrf.mxu0
  %v3780 = vpop.f32.mrf.mxu0
  %v3781 = vadd.f32 %v3572, %v3780
  %v3782 = vpop.f32.mrf.mxu0
  %3783 = vdwg.mxu0
  %v3784 = vtanh.pop %v3610
  %v3785 = vtanh.pop %v3613
  %v3786 = vtanh.pop %v3618
  %v3787 = vtanh.pop %v3621
  %v3788 = vtanh.pop %v3626
  %v3789 = vtanh.pop %v3629
  %v3790 = vtanh.pop %v3634
  %v3791 = vtanh.pop %v3637
  %v3792 = vtanh.pop %v3642
  %v3793 = vtanh.pop %v3645
  %v3794 = vtanh.pop %v3650
  %v3795 = vtanh.pop %v3653
  %v3796 = vtanh.pop %v3658
  %v3797 = vtanh.pop %v3661
  %v3798 = vtanh.pop %v3666
  %v3799 = vtanh.pop %v3669
  %v3800 = vtanh.pop %v3674
  %v3801 = vtanh.pop %v3677
  %v3802 = vtanh.pop %v3682
  %v3803 = vtanh.pop %v3685
  %v3804 = vtanh.pop %v3690
  %v3805 = vtanh.pop %v3693
  %v3806 = vtanh.pop %v3698
  %v3807 = vtanh.pop %v3701
  %v3808 = vtanh.pop %v3706
  %v3809 = vtanh.pop %v3709
  %v3810 = vtanh.pop %v3714
  %v3811 = vtanh.pop %v3717
  %v3812 = vtanh.pop %v3722
  %v3813 = vtanh.pop %v3725
  %v3814 = vtanh.pop %v3730
  %v3815 = vtanh.pop %v3733
  %v3816 = vtanh.pop %v3738
  %v3817 = vtanh.pop %v3741
  %v3818 = vtanh.pop %v3746
  %v3819 = vtanh.pop %v3749
  %v3820 = vtanh.pop %v3754
  %v3821 = vtanh.pop %v3757
  %v3822 = vtanh.pop %v3762
  %v3823 = vtanh.pop %v3765
  %v3824 = vtanh.pop %v3770
  %v3825 = vtanh.pop %v3773
  %v3826 = vtanh.pop %v3778
  %v3827 = vtanh.pop %v3781
  %3872 = vrot.lane.b32.xlu0 %v2176, 32
  %v3873 = vpop.permute.xlu0 %3872
  %3874 = vrot.lane.b32.xlu0 %v2177, 32
  %v3875 = vpop.permute.xlu0 %3874
  %3876 = vrot.lane.b32.xlu0 %v2178, 32
  %v3877 = vpop.permute.xlu0 %3876
  %3878 = vrot.lane.b32.xlu0 %v2179, 32
  %v3879 = vpop.permute.xlu0 %3878
  %3880 = vrot.lane.b32.xlu0 %v2180, 32
  %v3881 = vpop.permute.xlu0 %3880
  %3882 = vrot.lane.b32.xlu0 %v2181, 32
  %v3883 = vpop.permute.xlu0 %3882
  %3884 = vrot.lane.b32.xlu0 %v2182, 32
  %v3885 = vpop.permute.xlu0 %3884
  %3886 = vrot.lane.b32.xlu0 %v2183, 32
  %v3887 = vpop.permute.xlu0 %3886
  %3888 = vrot.lane.b32.xlu0 %v2184, 32
  %v3889 = vpop.permute.xlu0 %3888
  %3890 = vrot.lane.b32.xlu0 %v2185, 32
  %v3891 = vpop.permute.xlu0 %3890
  %3892 = vrot.lane.b32.xlu0 %v2186, 32
  %v3893 = vpop.permute.xlu0 %3892
  %3894 = vrot.lane.b32.xlu0 %v2187, 32
  %v3895 = vpop.permute.xlu0 %3894
  %3896 = vrot.lane.b32.xlu0 %v2188, 32
  %v3897 = vpop.permute.xlu0 %3896
  %3898 = vrot.lane.b32.xlu0 %v2189, 32
  %v3899 = vpop.permute.xlu0 %3898
  %3900 = vrot.lane.b32.xlu0 %v2190, 32
  %v3901 = vpop.permute.xlu0 %3900
  %3902 = vrot.lane.b32.xlu0 %v2191, 32
  %v3903 = vpop.permute.xlu0 %3902
  %3904 = vrot.lane.b32.xlu0 %v2192, 32
  %v3905 = vpop.permute.xlu0 %3904
  %3906 = vrot.lane.b32.xlu0 %v2193, 32
  %v3907 = vpop.permute.xlu0 %3906
  %3908 = vrot.lane.b32.xlu0 %v2194, 32
  %v3909 = vpop.permute.xlu0 %3908
  %3910 = vrot.lane.b32.xlu0 %v2195, 32
  %v3911 = vpop.permute.xlu0 %3910
  %3912 = vrot.lane.b32.xlu0 %v2196, 32
  %v3913 = vpop.permute.xlu0 %3912
  %3914 = vrot.lane.b32.xlu0 %v2197, 32
  %v3915 = vpop.permute.xlu0 %3914
  %3916 = vrot.lane.b32.xlu0 %v2198, 32
  %v3917 = vpop.permute.xlu0 %3916
  %3918 = vrot.lane.b32.xlu0 %v2199, 32
  %v3919 = vpop.permute.xlu0 %3918
  %3920 = vrot.lane.b32.xlu0 %v2200, 32
  %v3921 = vpop.permute.xlu0 %3920
  %3922 = vrot.lane.b32.xlu0 %v2201, 32
  %v3923 = vpop.permute.xlu0 %3922
  %3924 = vrot.lane.b32.xlu0 %v2202, 32
  %v3925 = vpop.permute.xlu0 %3924
  %3926 = vrot.lane.b32.xlu0 %v2203, 32
  %v3927 = vpop.permute.xlu0 %3926
  %3928 = vrot.lane.b32.xlu0 %v2204, 32
  %v3929 = vpop.permute.xlu0 %3928
  %3930 = vrot.lane.b32.xlu0 %v2205, 32
  %v3931 = vpop.permute.xlu0 %3930
  %3932 = vrot.lane.b32.xlu0 %v2206, 32
  %v3933 = vpop.permute.xlu0 %3932
  %3934 = vrot.lane.b32.xlu0 %v2207, 32
  %v3935 = vpop.permute.xlu0 %3934
  %3936 = vrot.lane.b32.xlu0 %v2208, 32
  %v3937 = vpop.permute.xlu0 %3936
  %3938 = vrot.lane.b32.xlu0 %v2209, 32
  %v3939 = vpop.permute.xlu0 %3938
  %3940 = vrot.lane.b32.xlu0 %v2210, 32
  %v3941 = vpop.permute.xlu0 %3940
  %3942 = vrot.lane.b32.xlu0 %v2211, 32
  %v3943 = vpop.permute.xlu0 %3942
  %3944 = vrot.lane.b32.xlu0 %v2212, 32
  %v3945 = vpop.permute.xlu0 %3944
  %3946 = vrot.lane.b32.xlu0 %v2213, 32
  %v3947 = vpop.permute.xlu0 %3946
  %3948 = vrot.lane.b32.xlu0 %v2214, 32
  %v3949 = vpop.permute.xlu0 %3948
  %3950 = vrot.lane.b32.xlu0 %v2215, 32
  %v3951 = vpop.permute.xlu0 %3950
  %3952 = vrot.lane.b32.xlu0 %v2216, 32
  %v3953 = vpop.permute.xlu0 %3952
  %3954 = vrot.lane.b32.xlu0 %v2217, 32
  %v3955 = vpop.permute.xlu0 %3954
  %3956 = vrot.lane.b32.xlu0 %v2218, 32
  %v3957 = vpop.permute.xlu0 %3956
  %3958 = vrot.lane.b32.xlu0 %v2219, 32
  %v3959 = vpop.permute.xlu0 %3958
  %4048 = vrot.lane.b32.xlu0 %v2980, 64
  %v4049 = vpop.permute.xlu0 %4048
  %4050 = vrot.lane.b32.xlu0 %v2981, 64
  %v4051 = vpop.permute.xlu0 %4050
  %4052 = vrot.lane.b32.xlu0 %v2982, 64
  %v4053 = vpop.permute.xlu0 %4052
  %4054 = vrot.lane.b32.xlu0 %v2983, 64
  %v4055 = vpop.permute.xlu0 %4054
  %4056 = vrot.lane.b32.xlu0 %v2984, 64
  %v4057 = vpop.permute.xlu0 %4056
  %4058 = vrot.lane.b32.xlu0 %v2985, 64
  %v4059 = vpop.permute.xlu0 %4058
  %4060 = vrot.lane.b32.xlu0 %v2986, 64
  %v4061 = vpop.permute.xlu0 %4060
  %4062 = vrot.lane.b32.xlu0 %v2987, 64
  %v4063 = vpop.permute.xlu0 %4062
  %4064 = vrot.lane.b32.xlu0 %v2988, 64
  %v4065 = vpop.permute.xlu0 %4064
  %4066 = vrot.lane.b32.xlu0 %v2989, 64
  %v4067 = vpop.permute.xlu0 %4066
  %4068 = vrot.lane.b32.xlu0 %v2990, 64
  %v4069 = vpop.permute.xlu0 %4068
  %4070 = vrot.lane.b32.xlu0 %v2991, 64
  %v4071 = vpop.permute.xlu0 %4070
  %4072 = vrot.lane.b32.xlu0 %v2992, 64
  %v4073 = vpop.permute.xlu0 %4072
  %4074 = vrot.lane.b32.xlu0 %v2993, 64
  %v4075 = vpop.permute.xlu0 %4074
  %4076 = vrot.lane.b32.xlu0 %v2994, 64
  %v4077 = vpop.permute.xlu0 %4076
  %4078 = vrot.lane.b32.xlu0 %v2995, 64
  %v4079 = vpop.permute.xlu0 %4078
  %4080 = vrot.lane.b32.xlu0 %v2996, 64
  %v4081 = vpop.permute.xlu0 %4080
  %4082 = vrot.lane.b32.xlu0 %v2997, 64
  %v4083 = vpop.permute.xlu0 %4082
  %4084 = vrot.lane.b32.xlu0 %v2998, 64
  %v4085 = vpop.permute.xlu0 %4084
  %4086 = vrot.lane.b32.xlu0 %v2999, 64
  %v4087 = vpop.permute.xlu0 %4086
  %4088 = vrot.lane.b32.xlu0 %v3000, 64
  %v4089 = vpop.permute.xlu0 %4088
  %4090 = vrot.lane.b32.xlu0 %v3001, 64
  %v4091 = vpop.permute.xlu0 %4090
  %4092 = vrot.lane.b32.xlu0 %v3002, 64
  %v4093 = vpop.permute.xlu0 %4092
  %4094 = vrot.lane.b32.xlu0 %v3003, 64
  %v4095 = vpop.permute.xlu0 %4094
  %4096 = vrot.lane.b32.xlu0 %v3004, 64
  %v4097 = vpop.permute.xlu0 %4096
  %4098 = vrot.lane.b32.xlu0 %v3005, 64
  %v4099 = vpop.permute.xlu0 %4098
  %4100 = vrot.lane.b32.xlu0 %v3006, 64
  %v4101 = vpop.permute.xlu0 %4100
  %4102 = vrot.lane.b32.xlu0 %v3007, 64
  %v4103 = vpop.permute.xlu0 %4102
  %4104 = vrot.lane.b32.xlu0 %v3008, 64
  %v4105 = vpop.permute.xlu0 %4104
  %4106 = vrot.lane.b32.xlu0 %v3009, 64
  %v4107 = vpop.permute.xlu0 %4106
  %4108 = vrot.lane.b32.xlu0 %v3010, 64
  %v4109 = vpop.permute.xlu0 %4108
  %4110 = vrot.lane.b32.xlu0 %v3011, 64
  %v4111 = vpop.permute.xlu0 %4110
  %4112 = vrot.lane.b32.xlu0 %v3012, 64
  %v4113 = vpop.permute.xlu0 %4112
  %4114 = vrot.lane.b32.xlu0 %v3013, 64
  %v4115 = vpop.permute.xlu0 %4114
  %4116 = vrot.lane.b32.xlu0 %v3014, 64
  %v4117 = vpop.permute.xlu0 %4116
  %4118 = vrot.lane.b32.xlu0 %v3015, 64
  %v4119 = vpop.permute.xlu0 %4118
  %4120 = vrot.lane.b32.xlu0 %v3016, 64
  %v4121 = vpop.permute.xlu0 %4120
  %4122 = vrot.lane.b32.xlu0 %v3017, 64
  %v4123 = vpop.permute.xlu0 %4122
  %4124 = vrot.lane.b32.xlu0 %v3018, 64
  %v4125 = vpop.permute.xlu0 %4124
  %4126 = vrot.lane.b32.xlu0 %v3019, 64
  %v4127 = vpop.permute.xlu0 %4126
  %4128 = vrot.lane.b32.xlu0 %v3020, 64
  %v4129 = vpop.permute.xlu0 %4128
  %4130 = vrot.lane.b32.xlu0 %v3021, 64
  %v4131 = vpop.permute.xlu0 %4130
  %4132 = vrot.lane.b32.xlu0 %v3022, 64
  %v4133 = vpop.permute.xlu0 %4132
  %4134 = vrot.lane.b32.xlu0 %v3023, 64
  %v4135 = vpop.permute.xlu0 %4134
  %4224 = vrot.lane.b32.xlu0 %v3784, 96
  %v4225 = vpop.permute.xlu0 %4224
  %4226 = vrot.lane.b32.xlu0 %v3785, 96
  %v4227 = vpop.permute.xlu0 %4226
  %4228 = vrot.lane.b32.xlu0 %v3786, 96
  %v4229 = vpop.permute.xlu0 %4228
  %4230 = vrot.lane.b32.xlu0 %v3787, 96
  %v4231 = vpop.permute.xlu0 %4230
  %4232 = vrot.lane.b32.xlu0 %v3788, 96
  %v4233 = vpop.permute.xlu0 %4232
  %4234 = vrot.lane.b32.xlu0 %v3789, 96
  %v4235 = vpop.permute.xlu0 %4234
  %4236 = vrot.lane.b32.xlu0 %v3790, 96
  %v4237 = vpop.permute.xlu0 %4236
  %4238 = vrot.lane.b32.xlu0 %v3791, 96
  %v4239 = vpop.permute.xlu0 %4238
  %4240 = vrot.lane.b32.xlu0 %v3792, 96
  %v4241 = vpop.permute.xlu0 %4240
  %4242 = vrot.lane.b32.xlu0 %v3793, 96
  %v4243 = vpop.permute.xlu0 %4242
  %4244 = vrot.lane.b32.xlu0 %v3794, 96
  %v4245 = vpop.permute.xlu0 %4244
  %4246 = vrot.lane.b32.xlu0 %v3795, 96
  %v4247 = vpop.permute.xlu0 %4246
  %4248 = vrot.lane.b32.xlu0 %v3796, 96
  %v4249 = vpop.permute.xlu0 %4248
  %4250 = vrot.lane.b32.xlu0 %v3797, 96
  %v4251 = vpop.permute.xlu0 %4250
  %4252 = vrot.lane.b32.xlu0 %v3798, 96
  %v4253 = vpop.permute.xlu0 %4252
  %4254 = vrot.lane.b32.xlu0 %v3799, 96
  %v4255 = vpop.permute.xlu0 %4254
  %4256 = vrot.lane.b32.xlu0 %v3800, 96
  %v4257 = vpop.permute.xlu0 %4256
  %4258 = vrot.lane.b32.xlu0 %v3801, 96
  %v4259 = vpop.permute.xlu0 %4258
  %4260 = vrot.lane.b32.xlu0 %v3802, 96
  %v4261 = vpop.permute.xlu0 %4260
  %4262 = vrot.lane.b32.xlu0 %v3803, 96
  %v4263 = vpop.permute.xlu0 %4262
  %4264 = vrot.lane.b32.xlu0 %v3804, 96
  %v4265 = vpop.permute.xlu0 %4264
  %4266 = vrot.lane.b32.xlu0 %v3805, 96
  %v4267 = vpop.permute.xlu0 %4266
  %4268 = vrot.lane.b32.xlu0 %v3806, 96
  %v4269 = vpop.permute.xlu0 %4268
  %4270 = vrot.lane.b32.xlu0 %v3807, 96
  %v4271 = vpop.permute.xlu0 %4270
  %4272 = vrot.lane.b32.xlu0 %v3808, 96
  %v4273 = vpop.permute.xlu0 %4272
  %4274 = vrot.lane.b32.xlu0 %v3809, 96
  %v4275 = vpop.permute.xlu0 %4274
  %4276 = vrot.lane.b32.xlu0 %v3810, 96
  %v4277 = vpop.permute.xlu0 %4276
  %4278 = vrot.lane.b32.xlu0 %v3811, 96
  %v4279 = vpop.permute.xlu0 %4278
  %4280 = vrot.lane.b32.xlu0 %v3812, 96
  %v4281 = vpop.permute.xlu0 %4280
  %4282 = vrot.lane.b32.xlu0 %v3813, 96
  %v4283 = vpop.permute.xlu0 %4282
  %4284 = vrot.lane.b32.xlu0 %v3814, 96
  %v4285 = vpop.permute.xlu0 %4284
  %4286 = vrot.lane.b32.xlu0 %v3815, 96
  %v4287 = vpop.permute.xlu0 %4286
  %4288 = vrot.lane.b32.xlu0 %v3816, 96
  %v4289 = vpop.permute.xlu0 %4288
  %4290 = vrot.lane.b32.xlu0 %v3817, 96
  %v4291 = vpop.permute.xlu0 %4290
  %4292 = vrot.lane.b32.xlu0 %v3818, 96
  %v4293 = vpop.permute.xlu0 %4292
  %4294 = vrot.lane.b32.xlu0 %v3819, 96
  %v4295 = vpop.permute.xlu0 %4294
  %4296 = vrot.lane.b32.xlu0 %v3820, 96
  %v4297 = vpop.permute.xlu0 %4296
  %4298 = vrot.lane.b32.xlu0 %v3821, 96
  %v4299 = vpop.permute.xlu0 %4298
  %4300 = vrot.lane.b32.xlu0 %v3822, 96
  %v4301 = vpop.permute.xlu0 %4300
  %4302 = vrot.lane.b32.xlu0 %v3823, 96
  %v4303 = vpop.permute.xlu0 %4302
  %4304 = vrot.lane.b32.xlu0 %v3824, 96
  %v4305 = vpop.permute.xlu0 %4304
  %4306 = vrot.lane.b32.xlu0 %v3825, 96
  %v4307 = vpop.permute.xlu0 %4306
  %4308 = vrot.lane.b32.xlu0 %v3826, 96
  %v4309 = vpop.permute.xlu0 %4308
  %4310 = vrot.lane.b32.xlu0 %v3827, 96
  %v4311 = vpop.permute.xlu0 %4310
  %v4356 = vsel %vm1453, %v1371, %v3873
  %v4357 = vsel %vm1453, %v1372, %v3875
  %v4358 = vsel %vm1453, %v1373, %v3877
  %v4359 = vsel %vm1453, %v1374, %v3879
  %v4360 = vsel %vm1453, %v1375, %v3881
  %v4361 = vsel %vm1453, %v1376, %v3883
  %v4362 = vsel %vm1453, %v1377, %v3885
  %v4363 = vsel %vm1453, %v1378, %v3887
  %v4364 = vsel %vm1453, %v1379, %v3889
  %v4365 = vsel %vm1453, %v1380, %v3891
  %v4366 = vsel %vm1453, %v1381, %v3893
  %v4367 = vsel %vm1453, %v1382, %v3895
  %v4368 = vsel %vm1453, %v1383, %v3897
  %v4369 = vsel %vm1453, %v1384, %v3899
  %v4370 = vsel %vm1453, %v1385, %v3901
  %v4371 = vsel %vm1453, %v1386, %v3903
  %v4372 = vsel %vm1453, %v1387, %v3905
  %v4373 = vsel %vm1453, %v1388, %v3907
  %v4374 = vsel %vm1453, %v1389, %v3909
  %v4375 = vsel %vm1453, %v1390, %v3911
  %v4376 = vsel %vm1453, %v1391, %v3913
  %v4377 = vsel %vm1453, %v1392, %v3915
  %v4378 = vsel %vm1453, %v1393, %v3917
  %v4379 = vsel %vm1453, %v1394, %v3919
  %v4380 = vsel %vm1453, %v1395, %v3921
  %v4381 = vsel %vm1453, %v1396, %v3923
  %v4382 = vsel %vm1453, %v1397, %v3925
  %v4383 = vsel %vm1453, %v1398, %v3927
  %v4384 = vsel %vm1453, %v1399, %v3929
  %v4385 = vsel %vm1453, %v1400, %v3931
  %v4386 = vsel %vm1453, %v1401, %v3933
  %v4387 = vsel %vm1453, %v1402, %v3935
  %v4388 = vsel %vm1453, %v1403, %v3937
  %v4389 = vsel %vm1453, %v1404, %v3939
  %v4390 = vsel %vm1453, %v1405, %v3941
  %v4391 = vsel %vm1453, %v1406, %v3943
  %v4392 = vsel %vm1453, %v1407, %v3945
  %v4393 = vsel %vm1453, %v1408, %v3947
  %v4394 = vsel %vm1453, %v1409, %v3949
  %v4395 = vsel %vm1453, %v1410, %v3951
  %v4396 = vsel %vm1453, %v1411, %v3953
  %v4397 = vsel %vm1453, %v1412, %v3955
  %v4398 = vsel %vm1453, %v1413, %v3957
  %v4399 = vsel %vm1453, %v1414, %v3959
  %vm4400 = vcmask 523264
  %v4401 = vsel %vm4400, %v4356, %v4049
  %v4402 = vsel %vm4400, %v4357, %v4051
  %v4403 = vsel %vm4400, %v4358, %v4053
  %v4404 = vsel %vm4400, %v4359, %v4055
  %v4405 = vsel %vm4400, %v4360, %v4057
  %v4406 = vsel %vm4400, %v4361, %v4059
  %v4407 = vsel %vm4400, %v4362, %v4061
  %v4408 = vsel %vm4400, %v4363, %v4063
  %v4409 = vsel %vm4400, %v4364, %v4065
  %v4410 = vsel %vm4400, %v4365, %v4067
  %v4411 = vsel %vm4400, %v4366, %v4069
  %v4412 = vsel %vm4400, %v4367, %v4071
  %v4413 = vsel %vm4400, %v4368, %v4073
  %v4414 = vsel %vm4400, %v4369, %v4075
  %v4415 = vsel %vm4400, %v4370, %v4077
  %v4416 = vsel %vm4400, %v4371, %v4079
  %v4417 = vsel %vm4400, %v4372, %v4081
  %v4418 = vsel %vm4400, %v4373, %v4083
  %v4419 = vsel %vm4400, %v4374, %v4085
  %v4420 = vsel %vm4400, %v4375, %v4087
  %v4421 = vsel %vm4400, %v4376, %v4089
  %v4422 = vsel %vm4400, %v4377, %v4091
  %v4423 = vsel %vm4400, %v4378, %v4093
  %v4424 = vsel %vm4400, %v4379, %v4095
  %v4425 = vsel %vm4400, %v4380, %v4097
  %v4426 = vsel %vm4400, %v4381, %v4099
  %v4427 = vsel %vm4400, %v4382, %v4101
  %v4428 = vsel %vm4400, %v4383, %v4103
  %v4429 = vsel %vm4400, %v4384, %v4105
  %v4430 = vsel %vm4400, %v4385, %v4107
  %v4431 = vsel %vm4400, %v4386, %v4109
  %v4432 = vsel %vm4400, %v4387, %v4111
  %v4433 = vsel %vm4400, %v4388, %v4113
  %v4434 = vsel %vm4400, %v4389, %v4115
  %v4435 = vsel %vm4400, %v4390, %v4117
  %v4436 = vsel %vm4400, %v4391, %v4119
  %v4437 = vsel %vm4400, %v4392, %v4121
  %v4438 = vsel %vm4400, %v4393, %v4123
  %v4439 = vsel %vm4400, %v4394, %v4125
  %v4440 = vsel %vm4400, %v4395, %v4127
  %v4441 = vsel %vm4400, %v4396, %v4129
  %v4442 = vsel %vm4400, %v4397, %v4131
  %v4443 = vsel %vm4400, %v4398, %v4133
  %v4444 = vsel %vm4400, %v4399, %v4135
  %v4445 = vsel %vm886, %v4401, %v4225
  %v4446 = vsel %vm886, %v4402, %v4227
  %v4447 = vsel %vm886, %v4403, %v4229
  %v4448 = vsel %vm886, %v4404, %v4231
  %v4449 = vsel %vm886, %v4405, %v4233
  %v4450 = vsel %vm886, %v4406, %v4235
  %v4451 = vsel %vm886, %v4407, %v4237
  %v4452 = vsel %vm886, %v4408, %v4239
  %v4453 = vsel %vm886, %v4409, %v4241
  %v4454 = vsel %vm886, %v4410, %v4243
  %v4455 = vsel %vm886, %v4411, %v4245
  %v4456 = vsel %vm886, %v4412, %v4247
  %v4457 = vsel %vm886, %v4413, %v4249
  %v4458 = vsel %vm886, %v4414, %v4251
  %v4459 = vsel %vm886, %v4415, %v4253
  %v4460 = vsel %vm886, %v4416, %v4255
  %v4461 = vsel %vm886, %v4417, %v4257
  %v4462 = vsel %vm886, %v4418, %v4259
  %v4463 = vsel %vm886, %v4419, %v4261
  %v4464 = vsel %vm886, %v4420, %v4263
  %v4465 = vsel %vm886, %v4421, %v4265
  %v4466 = vsel %vm886, %v4422, %v4267
  %v4467 = vsel %vm886, %v4423, %v4269
  %v4468 = vsel %vm886, %v4424, %v4271
  %v4469 = vsel %vm886, %v4425, %v4273
  %v4470 = vsel %vm886, %v4426, %v4275
  %v4471 = vsel %vm886, %v4427, %v4277
  %v4472 = vsel %vm886, %v4428, %v4279
  %v4473 = vsel %vm886, %v4429, %v4281
  %v4474 = vsel %vm886, %v4430, %v4283
  %v4475 = vsel %vm886, %v4431, %v4285
  %v4476 = vsel %vm886, %v4432, %v4287
  %v4477 = vsel %vm886, %v4433, %v4289
  %v4478 = vsel %vm886, %v4434, %v4291
  %v4479 = vsel %vm886, %v4435, %v4293
  %v4480 = vsel %vm886, %v4436, %v4295
  %v4481 = vsel %vm886, %v4437, %v4297
  %v4482 = vsel %vm886, %v4438, %v4299
  %v4483 = vsel %vm886, %v4439, %v4301
  %v4484 = vsel %vm886, %v4440, %v4303
  %v4485 = vsel %vm886, %v4441, %v4305
  %v4486 = vsel %vm886, %v4442, %v4307
  %v4487 = vsel %vm886, %v4443, %v4309
  %v4488 = vsel %vm886, %v4444, %v4311
  %v4489 = vpack.c.bf16 %v4446, %v4445
  %v4490 = vpack.c.bf16 %v4448, %v4447
  %v4491 = vpack.c.bf16 %v4450, %v4449
  %v4492 = vpack.c.bf16 %v4452, %v4451
  %v4493 = vpack.c.bf16 %v4454, %v4453
  %v4494 = vpack.c.bf16 %v4456, %v4455
  %v4495 = vpack.c.bf16 %v4458, %v4457
  %v4496 = vpack.c.bf16 %v4460, %v4459
  %v4497 = vpack.c.bf16 %v4462, %v4461
  %v4498 = vpack.c.bf16 %v4464, %v4463
  %v4499 = vpack.c.bf16 %v4466, %v4465
  %v4500 = vpack.c.bf16 %v4468, %v4467
  %v4501 = vpack.c.bf16 %v4470, %v4469
  %v4502 = vpack.c.bf16 %v4472, %v4471
  %v4503 = vpack.c.bf16 %v4474, %v4473
  %v4504 = vpack.c.bf16 %v4476, %v4475
  %v4505 = vpack.c.bf16 %v4478, %v4477
  %v4506 = vpack.c.bf16 %v4480, %v4479
  %v4507 = vpack.c.bf16 %v4482, %v4481
  %v4508 = vpack.c.bf16 %v4484, %v4483
  %v4509 = vpack.c.bf16 %v4486, %v4485
  %v4510 = vpack.c.bf16 %v4488, %v4487
  %v4511 = vunpack.c.l.bf16 %v4489
  %v4512 = vunpack.c.h.bf16 %v4489
  %v4513 = vunpack.c.l.bf16 %v4490
  %v4514 = vunpack.c.h.bf16 %v4490
  %v4515 = vunpack.c.l.bf16 %v4491
  %v4516 = vunpack.c.h.bf16 %v4491
  %v4517 = vunpack.c.l.bf16 %v4492
  %v4518 = vunpack.c.h.bf16 %v4492
  %v4519 = vunpack.c.l.bf16 %v4493
  %v4520 = vunpack.c.h.bf16 %v4493
  %v4521 = vunpack.c.l.bf16 %v4494
  %v4522 = vunpack.c.h.bf16 %v4494
  %v4523 = vunpack.c.l.bf16 %v4495
  %v4524 = vunpack.c.h.bf16 %v4495
  %v4525 = vunpack.c.l.bf16 %v4496
  %v4526 = vunpack.c.h.bf16 %v4496
  %v4527 = vunpack.c.l.bf16 %v4497
  %v4528 = vunpack.c.h.bf16 %v4497
  %v4529 = vunpack.c.l.bf16 %v4498
  %v4530 = vunpack.c.h.bf16 %v4498
  %v4531 = vunpack.c.l.bf16 %v4499
  %v4532 = vunpack.c.h.bf16 %v4499
  %v4533 = vunpack.c.l.bf16 %v4500
  %v4534 = vunpack.c.h.bf16 %v4500
  %v4535 = vunpack.c.l.bf16 %v4501
  %v4536 = vunpack.c.h.bf16 %v4501
  %v4537 = vunpack.c.l.bf16 %v4502
  %v4538 = vunpack.c.h.bf16 %v4502
  %v4539 = vunpack.c.l.bf16 %v4503
  %v4540 = vunpack.c.h.bf16 %v4503
  %v4541 = vunpack.c.l.bf16 %v4504
  %v4542 = vunpack.c.h.bf16 %v4504
  %v4543 = vunpack.c.l.bf16 %v4505
  %v4544 = vunpack.c.h.bf16 %v4505
  %v4545 = vunpack.c.l.bf16 %v4506
  %v4546 = vunpack.c.h.bf16 %v4506
  %v4547 = vunpack.c.l.bf16 %v4507
  %v4548 = vunpack.c.h.bf16 %v4507
  %v4549 = vunpack.c.l.bf16 %v4508
  %v4550 = vunpack.c.h.bf16 %v4508
  %v4551 = vunpack.c.l.bf16 %v4509
  %v4552 = vunpack.c.h.bf16 %v4509
  %v4553 = vunpack.c.l.bf16 %v4510
  %v4554 = vunpack.c.h.bf16 %v4510
  %v4555 = vlaneseq
  %v4556 = vand.u32 %v4555, 127
  %vm4557 = vcmp.eq.s32.totalorder %v4556, 96
  %v4558 = vsel %vm4557, 1, 0
  %v4559 = vcvt.s32.f32 %v4558
  %v4560 = vpack.c.bf16 %v4559, %v4559
  %4561 = vmatprep.subr.bf16.mxu0 0
  %4562 = vmatpush1.bf16.xpose.msra.mxu0 %v4496
  %4563 = vmatprep.subr.bf16.mxu0 0
  %4564 = vmatpush1.bf16.xpose.msra.mxu0 %v4495
  %4565 = vmatprep.subr.bf16.mxu0 0
  %4566 = vmatpush1.bf16.xpose.msra.mxu0 %v4494
  %4567 = vmatprep.subr.bf16.mxu0 0
  %4568 = vmatpush1.bf16.xpose.msra.mxu0 %v4493
  %4569 = vmatprep.subr.bf16.mxu0 0
  %4570 = vmatpush1.bf16.xpose.msra.mxu0 %v4492
  %4571 = vmatprep.subr.bf16.mxu0 0
  %4572 = vmatpush1.bf16.xpose.msra.mxu0 %v4491
  %4573 = vmatprep.subr.bf16.mxu0 0
  %4574 = vmatpush1.bf16.xpose.msra.mxu0 %v4490
  %4575 = vmatprep.subr.bf16.mxu0 0
  %4576 = vmatpush1.bf16.xpose.msra.mxu0 %v4489
  %4577 = vmatprep.subr.bf16.mxu0 0
  %4578 = vmatpush2.bf16.xpose.msra.mxu0 %v4504
  %4579 = vmatprep.subr.bf16.mxu0 0
  %4580 = vmatpush2.bf16.xpose.msra.mxu0 %v4503
  %4581 = vmatprep.subr.bf16.mxu0 0
  %4582 = vmatpush2.bf16.xpose.msra.mxu0 %v4502
  %4583 = vmatprep.subr.bf16.mxu0 0
  %4584 = vmatpush2.bf16.xpose.msra.mxu0 %v4501
  %4585 = vmatprep.subr.bf16.mxu0 0
  %4586 = vmatpush2.bf16.xpose.msra.mxu0 %v4500
  %4587 = vmatprep.subr.bf16.mxu0 0
  %4588 = vmatpush2.bf16.xpose.msra.mxu0 %v4499
  %4589 = vmatprep.subr.bf16.mxu0 0
  %4590 = vmatpush2.bf16.xpose.msra.mxu0 %v4498
  %4591 = vmatprep.subr.bf16.mxu0 0
  %4592 = vmatpush2.bf16.xpose.msra.mxu0 %v4497
  %4593 = vmatprep.mubr.bf16.mxu0 0
  %4594 = vmatmul.mubr.bf16.gmra.mxu0 %v4560
  %v4595 = vpop.f32.mrf.mxu0
  %v4596 = vadd.f32 0.0, %v4595
  %v4597 = vpop.f32.mrf.mxu0
  %v4598 = vadd.f32 0.0, %v4597
  %v4599 = vpop.f32.mrf.mxu0
  %v4600 = vpop.f32.mrf.mxu0
  %4601 = vdwg.mxu0
  %4602 = vmatprep.subr.bf16.mxu0 0
  %4603 = vmatpush1.bf16.xpose.msra.mxu0 0
  %4604 = vmatprep.subr.bf16.mxu0 0
  %4605 = vmatpush1.bf16.xpose.msra.mxu0 0
  %4606 = vmatprep.subr.bf16.mxu0 0
  %4607 = vmatpush1.bf16.xpose.msra.mxu0 %v4510
  %4608 = vmatprep.subr.bf16.mxu0 0
  %4609 = vmatpush1.bf16.xpose.msra.mxu0 %v4509
  %4610 = vmatprep.subr.bf16.mxu0 0
  %4611 = vmatpush1.bf16.xpose.msra.mxu0 %v4508
  %4612 = vmatprep.subr.bf16.mxu0 0
  %4613 = vmatpush1.bf16.xpose.msra.mxu0 %v4507
  %4614 = vmatprep.subr.bf16.mxu0 0
  %4615 = vmatpush1.bf16.xpose.msra.mxu0 %v4506
  %4616 = vmatprep.subr.bf16.mxu0 0
  %4617 = vmatpush1.bf16.xpose.msra.mxu0 %v4505
  %4618 = vmatprep.subr.bf16.mxu0 0
  %4619 = vmatpush2.bf16.xpose.msra.mxu0 0
  %4620 = vmatprep.subr.bf16.mxu0 0
  %4621 = vmatpush2.bf16.xpose.msra.mxu0 0
  %4622 = vmatprep.subr.bf16.mxu0 0
  %4623 = vmatpush2.bf16.xpose.msra.mxu0 0
  %4624 = vmatprep.subr.bf16.mxu0 0
  %4625 = vmatpush2.bf16.xpose.msra.mxu0 0
  %4626 = vmatprep.subr.bf16.mxu0 0
  %4627 = vmatpush2.bf16.xpose.msra.mxu0 0
  %4628 = vmatprep.subr.bf16.mxu0 0
  %4629 = vmatpush2.bf16.xpose.msra.mxu0 0
  %4630 = vmatprep.subr.bf16.mxu0 0
  %4631 = vmatpush2.bf16.xpose.msra.mxu0 0
  %4632 = vmatprep.subr.bf16.mxu0 0
  %4633 = vmatpush2.bf16.xpose.msra.mxu0 0
  %4634 = vmatprep.mubr.bf16.mxu0 0
  %4635 = vmatmul.mubr.bf16.gmra.mxu0 %v4560
  %v4636 = vpop.f32.mrf.mxu0
  %v4637 = vadd.f32 0.0, %v4636
  %v4638 = vpop.f32.mrf.mxu0
  %v4639 = vpop.f32.mrf.mxu0
  %v4640 = vpop.f32.mrf.mxu0
  %4641 = vdwg.mxu0
  %v4642 = vlaneseq
  %v4643 = vshrl.u32 %v4642, 7
  %v4644 = vadd.s32 %v4643, 8
  %v4645 = vadd.s32 %v4643, 16
  %v4646 = vadd.s32 %v4643, 24
  %v4647 = vadd.s32 %v4643, 32
  %v4648 = vadd.s32 %v4643, 40
  %v4649 = vadd.s32 %v4643, 48
  %v4650 = vadd.s32 %v4643, 56
  %v4651 = vadd.s32 %v4643, 64
  %v4652 = vadd.s32 %v4643, 72
  %v4653 = vadd.s32 %v4643, 80
  %v4654 = vadd.s32 %v4643, 88
  %v4655 = vadd.s32 %v4643, 96
  %v4656 = vadd.s32 %v4643, 104
  %v4657 = vadd.s32 %v4643, 112
  %v4658 = vadd.s32 %v4643, 120
  %v4659 = vadd.s32 %v4643, 128
  %v4660 = vadd.s32 %v4643, 136
  %v4661 = vadd.s32 %v4643, 144
  %v4662 = vadd.s32 %v4643, 152
  %v4663 = vadd.s32 %v4643, 160
  %v4664 = vadd.s32 %v4643, 168
  %v4665 = vadd.s32 %v4643, 176
  %v4666 = vadd.s32 %v4643, 184
  %v4667 = vadd.s32 %v4643, 192
  %v4668 = vadd.s32 %v4643, 200
  %v4669 = vadd.s32 %v4643, 208
  %v4670 = vadd.s32 %v4643, 216
  %v4671 = vadd.s32 %v4643, 224
  %v4672 = vadd.s32 %v4643, 232
  %v4673 = vadd.s32 %v4643, 240
  %v4674 = vadd.s32 %v4643, 248
  %v4675 = vadd.s32 %v4643, 256
  %v4676 = vadd.s32 %v4643, 264
  %v4677 = vadd.s32 %v4643, 272
  %v4678 = vadd.s32 %v4643, 280
  %v4679 = vadd.s32 %v4643, 288
  %v4680 = vadd.s32 %v4643, 296
  %v4681 = vadd.s32 %v4643, 304
  %v4682 = vadd.s32 %v4643, 312
  %v4683 = vadd.s32 %v4643, 320
  %v4684 = vadd.s32 %v4643, 328
  %v4685 = vadd.s32 %v4643, 336
  %v4686 = vadd.s32 %v4643, 344
  %v4687 = vadd.s32 %v4556, 128
  %v4688 = vadd.s32 %v4556, 256
  %v4689 = vld [vmem:[%s10] sm:$0xff]
  %v4690 = vld [vmem:[%s10 + $0x8] sm:$0xff]
  %v4691 = vld [vmem:[%s10 + $0x10] sm:$0xff]
  %v4692 = vld [vmem:[%s10 + $0x18] sm:$0xff]
  %v4693 = vld [vmem:[%s10 + $0x20] sm:$0xff]
  %v4694 = vld [vmem:[%s10 + $0x28] sm:$0xff]
  %v4695 = vld [vmem:[%s10 + $0x30] sm:$0xff]
  %v4696 = vld [vmem:[%s10 + $0x38] sm:$0xff]
  %v4697 = vld [vmem:[%s10 + $0x40] sm:$0xff]
  %v4698 = vld [vmem:[%s10 + $0x48] sm:$0xff]
  %v4699 = vld [vmem:[%s10 + $0x50] sm:$0xff]
  %v4700 = vld [vmem:[%s10 + $0x58] sm:$0xff]
  %v4701 = vld [vmem:[%s10 + $0x60] sm:$0xff]
  %v4702 = vld [vmem:[%s10 + $0x68] sm:$0xff]
  %v4703 = vld [vmem:[%s10 + $0x70] sm:$0xff]
  %v4704 = vld [vmem:[%s10 + $0x78] sm:$0xff]
  %v4705 = vld [vmem:[%s10 + $0x80] sm:$0xff]
  %v4706 = vld [vmem:[%s10 + $0x88] sm:$0xff]
  %v4707 = vld [vmem:[%s10 + $0x90] sm:$0xff]
  %v4708 = vld [vmem:[%s10 + $0x98] sm:$0xff]
  %v4709 = vld [vmem:[%s10 + $0xa0] sm:$0xff]
  %v4710 = vld [vmem:[%s10 + $0xa8] sm:$0xff]
  %v4711 = vld [vmem:[%s10 + $0xb0] sm:$0xff]
  %v4712 = vld [vmem:[%s10 + $0xb8] sm:$0xff]
  %v4713 = vld [vmem:[%s10 + $0xc0] sm:$0xff]
  %v4714 = vld [vmem:[%s10 + $0xc8] sm:$0xff]
  %v4715 = vld [vmem:[%s10 + $0xd0] sm:$0xff]
  %v4716 = vld [vmem:[%s10 + $0xd8] sm:$0xff]
  %v4717 = vld [vmem:[%s10 + $0xe0] sm:$0xff]
  %v4718 = vld [vmem:[%s10 + $0xe8] sm:$0xff]
  %v4719 = vld [vmem:[%s10 + $0xf0] sm:$0xff]
  %v4720 = vld [vmem:[%s10 + $0xf8] sm:$0xff]
  %v4721 = vld [vmem:[%s10 + $0x100] sm:$0xff]
  %v4722 = vld [vmem:[%s10 + $0x108] sm:$0xff]
  %v4723 = vld [vmem:[%s10 + $0x110] sm:$0xff]
  %v4724 = vld [vmem:[%s10 + $0x118] sm:$0xff]
  %v4725 = vld [vmem:[%s10 + $0x120] sm:$0xff]
  %v4726 = vld [vmem:[%s10 + $0x128] sm:$0xff]
  %v4727 = vld [vmem:[%s10 + $0x130] sm:$0xff]
  %v4728 = vld [vmem:[%s10 + $0x138] sm:$0xff]
  %v4729 = vld [vmem:[%s10 + $0x140] sm:$0xff]
  %v4730 = vld [vmem:[%s10 + $0x148] sm:$0xff]
  %v4731 = vld [vmem:[%s10 + $0x150] sm:$0xff]
  %v4732 = vld [vmem:[%s10 + $0x158] sm:$0xff]
  %v4733 = vld [vmem:[%s11] sm:$0x7]
  %4735 = vset.pattern.permute.xlu0 0
  %4736 = vperm.xlu0 %4735, %v4689
  %v4737 = vpop.permute.xlu0 %4736
  %4740 = vset.pattern.permute.xlu0 0
  %4741 = vperm.xlu0 %4740, %v4690
  %v4742 = vpop.permute.xlu0 %4741
  %4745 = vset.pattern.permute.xlu0 0
  %4746 = vperm.xlu0 %4745, %v4691
  %v4747 = vpop.permute.xlu0 %4746
  %4750 = vset.pattern.permute.xlu0 0
  %4751 = vperm.xlu0 %4750, %v4692
  %v4752 = vpop.permute.xlu0 %4751
  %4755 = vset.pattern.permute.xlu0 0
  %4756 = vperm.xlu0 %4755, %v4693
  %v4757 = vpop.permute.xlu0 %4756
  %4760 = vset.pattern.permute.xlu0 0
  %4761 = vperm.xlu0 %4760, %v4694
  %v4762 = vpop.permute.xlu0 %4761
  %4765 = vset.pattern.permute.xlu0 0
  %4766 = vperm.xlu0 %4765, %v4695
  %v4767 = vpop.permute.xlu0 %4766
  %4770 = vset.pattern.permute.xlu0 0
  %4771 = vperm.xlu0 %4770, %v4696
  %v4772 = vpop.permute.xlu0 %4771
  %4775 = vset.pattern.permute.xlu0 0
  %4776 = vperm.xlu0 %4775, %v4697
  %v4777 = vpop.permute.xlu0 %4776
  %4780 = vset.pattern.permute.xlu0 0
  %4781 = vperm.xlu0 %4780, %v4698
  %v4782 = vpop.permute.xlu0 %4781
  %4785 = vset.pattern.permute.xlu0 0
  %4786 = vperm.xlu0 %4785, %v4699
  %v4787 = vpop.permute.xlu0 %4786
  %4790 = vset.pattern.permute.xlu0 0
  %4791 = vperm.xlu0 %4790, %v4700
  %v4792 = vpop.permute.xlu0 %4791
  %4795 = vset.pattern.permute.xlu0 0
  %4796 = vperm.xlu0 %4795, %v4701
  %v4797 = vpop.permute.xlu0 %4796
  %4800 = vset.pattern.permute.xlu0 0
  %4801 = vperm.xlu0 %4800, %v4702
  %v4802 = vpop.permute.xlu0 %4801
  %4805 = vset.pattern.permute.xlu0 0
  %4806 = vperm.xlu0 %4805, %v4703
  %v4807 = vpop.permute.xlu0 %4806
  %4810 = vset.pattern.permute.xlu0 0
  %4811 = vperm.xlu0 %4810, %v4704
  %v4812 = vpop.permute.xlu0 %4811
  %4815 = vset.pattern.permute.xlu0 0
  %4816 = vperm.xlu0 %4815, %v4705
  %v4817 = vpop.permute.xlu0 %4816
  %4820 = vset.pattern.permute.xlu0 0
  %4821 = vperm.xlu0 %4820, %v4706
  %v4822 = vpop.permute.xlu0 %4821
  %4825 = vset.pattern.permute.xlu0 0
  %4826 = vperm.xlu0 %4825, %v4707
  %v4827 = vpop.permute.xlu0 %4826
  %4830 = vset.pattern.permute.xlu0 0
  %4831 = vperm.xlu0 %4830, %v4708
  %v4832 = vpop.permute.xlu0 %4831
  %4835 = vset.pattern.permute.xlu0 0
  %4836 = vperm.xlu0 %4835, %v4709
  %v4837 = vpop.permute.xlu0 %4836
  %4840 = vset.pattern.permute.xlu0 0
  %4841 = vperm.xlu0 %4840, %v4710
  %v4842 = vpop.permute.xlu0 %4841
  %4845 = vset.pattern.permute.xlu0 0
  %4846 = vperm.xlu0 %4845, %v4711
  %v4847 = vpop.permute.xlu0 %4846
  %4850 = vset.pattern.permute.xlu0 0
  %4851 = vperm.xlu0 %4850, %v4712
  %v4852 = vpop.permute.xlu0 %4851
  %4855 = vset.pattern.permute.xlu0 0
  %4856 = vperm.xlu0 %4855, %v4713
  %v4857 = vpop.permute.xlu0 %4856
  %4860 = vset.pattern.permute.xlu0 0
  %4861 = vperm.xlu0 %4860, %v4714
  %v4862 = vpop.permute.xlu0 %4861
  %4865 = vset.pattern.permute.xlu0 0
  %4866 = vperm.xlu0 %4865, %v4715
  %v4867 = vpop.permute.xlu0 %4866
  %4870 = vset.pattern.permute.xlu0 0
  %4871 = vperm.xlu0 %4870, %v4716
  %v4872 = vpop.permute.xlu0 %4871
  %4875 = vset.pattern.permute.xlu0 0
  %4876 = vperm.xlu0 %4875, %v4717
  %v4877 = vpop.permute.xlu0 %4876
  %4880 = vset.pattern.permute.xlu0 0
  %4881 = vperm.xlu0 %4880, %v4718
  %v4882 = vpop.permute.xlu0 %4881
  %4885 = vset.pattern.permute.xlu0 0
  %4886 = vperm.xlu0 %4885, %v4719
  %v4887 = vpop.permute.xlu0 %4886
  %4890 = vset.pattern.permute.xlu0 0
  %4891 = vperm.xlu0 %4890, %v4720
  %v4892 = vpop.permute.xlu0 %4891
  %4895 = vset.pattern.permute.xlu0 0
  %4896 = vperm.xlu0 %4895, %v4721
  %v4897 = vpop.permute.xlu0 %4896
  %4900 = vset.pattern.permute.xlu0 0
  %4901 = vperm.xlu0 %4900, %v4722
  %v4902 = vpop.permute.xlu0 %4901
  %4905 = vset.pattern.permute.xlu0 0
  %4906 = vperm.xlu0 %4905, %v4723
  %v4907 = vpop.permute.xlu0 %4906
  %4910 = vset.pattern.permute.xlu0 0
  %4911 = vperm.xlu0 %4910, %v4724
  %v4912 = vpop.permute.xlu0 %4911
  %4915 = vset.pattern.permute.xlu0 0
  %4916 = vperm.xlu0 %4915, %v4725
  %v4917 = vpop.permute.xlu0 %4916
  %4920 = vset.pattern.permute.xlu0 0
  %4921 = vperm.xlu0 %4920, %v4726
  %v4922 = vpop.permute.xlu0 %4921
  %4925 = vset.pattern.permute.xlu0 0
  %4926 = vperm.xlu0 %4925, %v4727
  %v4927 = vpop.permute.xlu0 %4926
  %4930 = vset.pattern.permute.xlu0 0
  %4931 = vperm.xlu0 %4930, %v4728
  %v4932 = vpop.permute.xlu0 %4931
  %4935 = vset.pattern.permute.xlu0 0
  %4936 = vperm.xlu0 %4935, %v4729
  %v4937 = vpop.permute.xlu0 %4936
  %4940 = vset.pattern.permute.xlu0 0
  %4941 = vperm.xlu0 %4940, %v4730
  %v4942 = vpop.permute.xlu0 %4941
  %4945 = vset.pattern.permute.xlu0 0
  %4946 = vperm.xlu0 %4945, %v4731
  %v4947 = vpop.permute.xlu0 %4946
  %4950 = vset.pattern.permute.xlu0 0
  %4951 = vperm.xlu0 %4950, %v4732
  %v4952 = vpop.permute.xlu0 %4951
  %v4955 = vlaneseq
  %v4956 = vshrl.u32 %v4955, 7
  %v4957 = vsub.s32 0, %v4956
  %v4958 = vrot.slane %v4733, %v4957
  %v4959 = vlaneseq
  %v4960 = vshrl.u32 %v4959, 7
  %v4961 = vsub.s32 1, %v4960
  %v4962 = vrot.slane %v4733, %v4961
  %v4963 = vlaneseq
  %v4964 = vshrl.u32 %v4963, 7
  %v4965 = vsub.s32 2, %v4964
  %v4966 = vrot.slane %v4733, %v4965
  %vm4970 = vcmp.eq.f32.partialorder %v4737, %v4958
  %vm4971 = vcmp.eq.f32.partialorder %v4737, %v4962
  %vm4972 = vcmp.eq.f32.partialorder %v4737, %v4966
  %vm4973 = vcmp.eq.f32.partialorder %v4742, %v4958
  %vm4974 = vcmp.eq.f32.partialorder %v4742, %v4962
  %vm4975 = vcmp.eq.f32.partialorder %v4742, %v4966
  %vm4976 = vcmp.eq.f32.partialorder %v4747, %v4958
  %vm4977 = vcmp.eq.f32.partialorder %v4747, %v4962
  %vm4978 = vcmp.eq.f32.partialorder %v4747, %v4966
  %vm4979 = vcmp.eq.f32.partialorder %v4752, %v4958
  %vm4980 = vcmp.eq.f32.partialorder %v4752, %v4962
  %vm4981 = vcmp.eq.f32.partialorder %v4752, %v4966
  %vm4982 = vcmp.eq.f32.partialorder %v4757, %v4958
  %vm4983 = vcmp.eq.f32.partialorder %v4757, %v4962
  %vm4984 = vcmp.eq.f32.partialorder %v4757, %v4966
  %vm4985 = vcmp.eq.f32.partialorder %v4762, %v4958
  %vm4986 = vcmp.eq.f32.partialorder %v4762, %v4962
  %vm4987 = vcmp.eq.f32.partialorder %v4762, %v4966
  %vm4988 = vcmp.eq.f32.partialorder %v4767, %v4958
  %vm4989 = vcmp.eq.f32.partialorder %v4767, %v4962
  %vm4990 = vcmp.eq.f32.partialorder %v4767, %v4966
  %vm4991 = vcmp.eq.f32.partialorder %v4772, %v4958
  %vm4992 = vcmp.eq.f32.partialorder %v4772, %v4962
  %vm4993 = vcmp.eq.f32.partialorder %v4772, %v4966
  %vm4994 = vcmp.eq.f32.partialorder %v4777, %v4958
  %vm4995 = vcmp.eq.f32.partialorder %v4777, %v4962
  %vm4996 = vcmp.eq.f32.partialorder %v4777, %v4966
  %vm4997 = vcmp.eq.f32.partialorder %v4782, %v4958
  %vm4998 = vcmp.eq.f32.partialorder %v4782, %v4962
  %vm4999 = vcmp.eq.f32.partialorder %v4782, %v4966
  %vm5000 = vcmp.eq.f32.partialorder %v4787, %v4958
  %vm5001 = vcmp.eq.f32.partialorder %v4787, %v4962
  %vm5002 = vcmp.eq.f32.partialorder %v4787, %v4966
  %vm5003 = vcmp.eq.f32.partialorder %v4792, %v4958
  %vm5004 = vcmp.eq.f32.partialorder %v4792, %v4962
  %vm5005 = vcmp.eq.f32.partialorder %v4792, %v4966
  %vm5006 = vcmp.eq.f32.partialorder %v4797, %v4958
  %vm5007 = vcmp.eq.f32.partialorder %v4797, %v4962
  %vm5008 = vcmp.eq.f32.partialorder %v4797, %v4966
  %vm5009 = vcmp.eq.f32.partialorder %v4802, %v4958
  %vm5010 = vcmp.eq.f32.partialorder %v4802, %v4962
  %vm5011 = vcmp.eq.f32.partialorder %v4802, %v4966
  %vm5012 = vcmp.eq.f32.partialorder %v4807, %v4958
  %vm5013 = vcmp.eq.f32.partialorder %v4807, %v4962
  %vm5014 = vcmp.eq.f32.partialorder %v4807, %v4966
  %vm5015 = vcmp.eq.f32.partialorder %v4812, %v4958
  %vm5016 = vcmp.eq.f32.partialorder %v4812, %v4962
  %vm5017 = vcmp.eq.f32.partialorder %v4812, %v4966
  %vm5018 = vcmp.eq.f32.partialorder %v4817, %v4958
  %vm5019 = vcmp.eq.f32.partialorder %v4817, %v4962
  %vm5020 = vcmp.eq.f32.partialorder %v4817, %v4966
  %vm5021 = vcmp.eq.f32.partialorder %v4822, %v4958
  %vm5022 = vcmp.eq.f32.partialorder %v4822, %v4962
  %vm5023 = vcmp.eq.f32.partialorder %v4822, %v4966
  %vm5024 = vcmp.eq.f32.partialorder %v4827, %v4958
  %vm5025 = vcmp.eq.f32.partialorder %v4827, %v4962
  %vm5026 = vcmp.eq.f32.partialorder %v4827, %v4966
  %vm5027 = vcmp.eq.f32.partialorder %v4832, %v4958
  %vm5028 = vcmp.eq.f32.partialorder %v4832, %v4962
  %vm5029 = vcmp.eq.f32.partialorder %v4832, %v4966
  %vm5030 = vcmp.eq.f32.partialorder %v4837, %v4958
  %vm5031 = vcmp.eq.f32.partialorder %v4837, %v4962
  %vm5032 = vcmp.eq.f32.partialorder %v4837, %v4966
  %vm5033 = vcmp.eq.f32.partialorder %v4842, %v4958
  %vm5034 = vcmp.eq.f32.partialorder %v4842, %v4962
  %vm5035 = vcmp.eq.f32.partialorder %v4842, %v4966
  %vm5036 = vcmp.eq.f32.partialorder %v4847, %v4958
  %vm5037 = vcmp.eq.f32.partialorder %v4847, %v4962
  %vm5038 = vcmp.eq.f32.partialorder %v4847, %v4966
  %vm5039 = vcmp.eq.f32.partialorder %v4852, %v4958
  %vm5040 = vcmp.eq.f32.partialorder %v4852, %v4962
  %vm5041 = vcmp.eq.f32.partialorder %v4852, %v4966
  %vm5042 = vcmp.eq.f32.partialorder %v4857, %v4958
  %vm5043 = vcmp.eq.f32.partialorder %v4857, %v4962
  %vm5044 = vcmp.eq.f32.partialorder %v4857, %v4966
  %vm5045 = vcmp.eq.f32.partialorder %v4862, %v4958
  %vm5046 = vcmp.eq.f32.partialorder %v4862, %v4962
  %vm5047 = vcmp.eq.f32.partialorder %v4862, %v4966
  %vm5048 = vcmp.eq.f32.partialorder %v4867, %v4958
  %vm5049 = vcmp.eq.f32.partialorder %v4867, %v4962
  %vm5050 = vcmp.eq.f32.partialorder %v4867, %v4966
  %vm5051 = vcmp.eq.f32.partialorder %v4872, %v4958
  %vm5052 = vcmp.eq.f32.partialorder %v4872, %v4962
  %vm5053 = vcmp.eq.f32.partialorder %v4872, %v4966
  %vm5054 = vcmp.eq.f32.partialorder %v4877, %v4958
  %vm5055 = vcmp.eq.f32.partialorder %v4877, %v4962
  %vm5056 = vcmp.eq.f32.partialorder %v4877, %v4966
  %vm5057 = vcmp.eq.f32.partialorder %v4882, %v4958
  %vm5058 = vcmp.eq.f32.partialorder %v4882, %v4962
  %vm5059 = vcmp.eq.f32.partialorder %v4882, %v4966
  %vm5060 = vcmp.eq.f32.partialorder %v4887, %v4958
  %vm5061 = vcmp.eq.f32.partialorder %v4887, %v4962
  %vm5062 = vcmp.eq.f32.partialorder %v4887, %v4966
  %vm5063 = vcmp.eq.f32.partialorder %v4892, %v4958
  %vm5064 = vcmp.eq.f32.partialorder %v4892, %v4962
  %vm5065 = vcmp.eq.f32.partialorder %v4892, %v4966
  %vm5066 = vcmp.eq.f32.partialorder %v4897, %v4958
  %vm5067 = vcmp.eq.f32.partialorder %v4897, %v4962
  %vm5068 = vcmp.eq.f32.partialorder %v4897, %v4966
  %vm5069 = vcmp.eq.f32.partialorder %v4902, %v4958
  %vm5070 = vcmp.eq.f32.partialorder %v4902, %v4962
  %vm5071 = vcmp.eq.f32.partialorder %v4902, %v4966
  %vm5072 = vcmp.eq.f32.partialorder %v4907, %v4958
  %vm5073 = vcmp.eq.f32.partialorder %v4907, %v4962
  %vm5074 = vcmp.eq.f32.partialorder %v4907, %v4966
  %vm5075 = vcmp.eq.f32.partialorder %v4912, %v4958
  %vm5076 = vcmp.eq.f32.partialorder %v4912, %v4962
  %vm5077 = vcmp.eq.f32.partialorder %v4912, %v4966
  %vm5078 = vcmp.eq.f32.partialorder %v4917, %v4958
  %vm5079 = vcmp.eq.f32.partialorder %v4917, %v4962
  %vm5080 = vcmp.eq.f32.partialorder %v4917, %v4966
  %vm5081 = vcmp.eq.f32.partialorder %v4922, %v4958
  %vm5082 = vcmp.eq.f32.partialorder %v4922, %v4962
  %vm5083 = vcmp.eq.f32.partialorder %v4922, %v4966
  %vm5084 = vcmp.eq.f32.partialorder %v4927, %v4958
  %vm5085 = vcmp.eq.f32.partialorder %v4927, %v4962
  %vm5086 = vcmp.eq.f32.partialorder %v4927, %v4966
  %vm5087 = vcmp.eq.f32.partialorder %v4932, %v4958
  %vm5088 = vcmp.eq.f32.partialorder %v4932, %v4962
  %vm5089 = vcmp.eq.f32.partialorder %v4932, %v4966
  %vm5090 = vcmp.eq.f32.partialorder %v4937, %v4958
  %vm5091 = vcmp.eq.f32.partialorder %v4937, %v4962
  %vm5092 = vcmp.eq.f32.partialorder %v4937, %v4966
  %vm5093 = vcmp.eq.f32.partialorder %v4942, %v4958
  %vm5094 = vcmp.eq.f32.partialorder %v4942, %v4962
  %vm5095 = vcmp.eq.f32.partialorder %v4942, %v4966
  %vm5096 = vcmp.eq.f32.partialorder %v4947, %v4958
  %vm5097 = vcmp.eq.f32.partialorder %v4947, %v4962
  %vm5098 = vcmp.eq.f32.partialorder %v4947, %v4966
  %vm5099 = vcmp.eq.f32.partialorder %v4952, %v4958
  %vm5100 = vcmp.eq.f32.partialorder %v4952, %v4962
  %vm5101 = vcmp.eq.f32.partialorder %v4952, %v4966
  %5103 = vset.pattern.permute.xlu0 96
  %5104 = vperm.xlu0 %5103, %v4511
  %v5105 = vpop.permute.xlu0 %5104
  %5108 = vset.pattern.permute.xlu0 96
  %5109 = vperm.xlu0 %5108, %v4512
  %v5110 = vpop.permute.xlu0 %5109
  %5113 = vset.pattern.permute.xlu0 96
  %5114 = vperm.xlu0 %5113, %v4513
  %v5115 = vpop.permute.xlu0 %5114
  %5118 = vset.pattern.permute.xlu0 96
  %5119 = vperm.xlu0 %5118, %v4514
  %v5120 = vpop.permute.xlu0 %5119
  %5123 = vset.pattern.permute.xlu0 96
  %5124 = vperm.xlu0 %5123, %v4515
  %v5125 = vpop.permute.xlu0 %5124
  %5128 = vset.pattern.permute.xlu0 96
  %5129 = vperm.xlu0 %5128, %v4516
  %v5130 = vpop.permute.xlu0 %5129
  %5133 = vset.pattern.permute.xlu0 96
  %5134 = vperm.xlu0 %5133, %v4517
  %v5135 = vpop.permute.xlu0 %5134
  %5138 = vset.pattern.permute.xlu0 96
  %5139 = vperm.xlu0 %5138, %v4518
  %v5140 = vpop.permute.xlu0 %5139
  %5143 = vset.pattern.permute.xlu0 96
  %5144 = vperm.xlu0 %5143, %v4519
  %v5145 = vpop.permute.xlu0 %5144
  %5148 = vset.pattern.permute.xlu0 96
  %5149 = vperm.xlu0 %5148, %v4520
  %v5150 = vpop.permute.xlu0 %5149
  %5153 = vset.pattern.permute.xlu0 96
  %5154 = vperm.xlu0 %5153, %v4521
  %v5155 = vpop.permute.xlu0 %5154
  %5158 = vset.pattern.permute.xlu0 96
  %5159 = vperm.xlu0 %5158, %v4522
  %v5160 = vpop.permute.xlu0 %5159
  %5163 = vset.pattern.permute.xlu0 96
  %5164 = vperm.xlu0 %5163, %v4523
  %v5165 = vpop.permute.xlu0 %5164
  %5168 = vset.pattern.permute.xlu0 96
  %5169 = vperm.xlu0 %5168, %v4524
  %v5170 = vpop.permute.xlu0 %5169
  %5173 = vset.pattern.permute.xlu0 96
  %5174 = vperm.xlu0 %5173, %v4525
  %v5175 = vpop.permute.xlu0 %5174
  %5178 = vset.pattern.permute.xlu0 96
  %5179 = vperm.xlu0 %5178, %v4526
  %v5180 = vpop.permute.xlu0 %5179
  %5183 = vset.pattern.permute.xlu0 96
  %5184 = vperm.xlu0 %5183, %v4527
  %v5185 = vpop.permute.xlu0 %5184
  %5188 = vset.pattern.permute.xlu0 96
  %5189 = vperm.xlu0 %5188, %v4528
  %v5190 = vpop.permute.xlu0 %5189
  %5193 = vset.pattern.permute.xlu0 96
  %5194 = vperm.xlu0 %5193, %v4529
  %v5195 = vpop.permute.xlu0 %5194
  %5198 = vset.pattern.permute.xlu0 96
  %5199 = vperm.xlu0 %5198, %v4530
  %v5200 = vpop.permute.xlu0 %5199
  %5203 = vset.pattern.permute.xlu0 96
  %5204 = vperm.xlu0 %5203, %v4531
  %v5205 = vpop.permute.xlu0 %5204
  %5208 = vset.pattern.permute.xlu0 96
  %5209 = vperm.xlu0 %5208, %v4532
  %v5210 = vpop.permute.xlu0 %5209
  %5213 = vset.pattern.permute.xlu0 96
  %5214 = vperm.xlu0 %5213, %v4533
  %v5215 = vpop.permute.xlu0 %5214
  %5218 = vset.pattern.permute.xlu0 96
  %5219 = vperm.xlu0 %5218, %v4534
  %v5220 = vpop.permute.xlu0 %5219
  %5223 = vset.pattern.permute.xlu0 96
  %5224 = vperm.xlu0 %5223, %v4535
  %v5225 = vpop.permute.xlu0 %5224
  %5228 = vset.pattern.permute.xlu0 96
  %5229 = vperm.xlu0 %5228, %v4536
  %v5230 = vpop.permute.xlu0 %5229
  %5233 = vset.pattern.permute.xlu0 96
  %5234 = vperm.xlu0 %5233, %v4537
  %v5235 = vpop.permute.xlu0 %5234
  %5238 = vset.pattern.permute.xlu0 96
  %5239 = vperm.xlu0 %5238, %v4538
  %v5240 = vpop.permute.xlu0 %5239
  %5243 = vset.pattern.permute.xlu0 96
  %5244 = vperm.xlu0 %5243, %v4539
  %v5245 = vpop.permute.xlu0 %5244
  %5248 = vset.pattern.permute.xlu0 96
  %5249 = vperm.xlu0 %5248, %v4540
  %v5250 = vpop.permute.xlu0 %5249
  %5253 = vset.pattern.permute.xlu0 96
  %5254 = vperm.xlu0 %5253, %v4541
  %v5255 = vpop.permute.xlu0 %5254
  %5258 = vset.pattern.permute.xlu0 96
  %5259 = vperm.xlu0 %5258, %v4542
  %v5260 = vpop.permute.xlu0 %5259
  %5263 = vset.pattern.permute.xlu0 96
  %5264 = vperm.xlu0 %5263, %v4543
  %v5265 = vpop.permute.xlu0 %5264
  %5268 = vset.pattern.permute.xlu0 96
  %5269 = vperm.xlu0 %5268, %v4544
  %v5270 = vpop.permute.xlu0 %5269
  %5273 = vset.pattern.permute.xlu0 96
  %5274 = vperm.xlu0 %5273, %v4545
  %v5275 = vpop.permute.xlu0 %5274
  %5278 = vset.pattern.permute.xlu0 96
  %5279 = vperm.xlu0 %5278, %v4546
  %v5280 = vpop.permute.xlu0 %5279
  %5283 = vset.pattern.permute.xlu0 96
  %5284 = vperm.xlu0 %5283, %v4547
  %v5285 = vpop.permute.xlu0 %5284
  %5288 = vset.pattern.permute.xlu0 96
  %5289 = vperm.xlu0 %5288, %v4548
  %v5290 = vpop.permute.xlu0 %5289
  %5293 = vset.pattern.permute.xlu0 96
  %5294 = vperm.xlu0 %5293, %v4549
  %v5295 = vpop.permute.xlu0 %5294
  %5298 = vset.pattern.permute.xlu0 96
  %5299 = vperm.xlu0 %5298, %v4550
  %v5300 = vpop.permute.xlu0 %5299
  %5303 = vset.pattern.permute.xlu0 96
  %5304 = vperm.xlu0 %5303, %v4551
  %v5305 = vpop.permute.xlu0 %5304
  %5308 = vset.pattern.permute.xlu0 96
  %5309 = vperm.xlu0 %5308, %v4552
  %v5310 = vpop.permute.xlu0 %5309
  %5313 = vset.pattern.permute.xlu0 96
  %5314 = vperm.xlu0 %5313, %v4553
  %v5315 = vpop.permute.xlu0 %5314
  %5318 = vset.pattern.permute.xlu0 96
  %5319 = vperm.xlu0 %5318, %v4554
  %v5320 = vpop.permute.xlu0 %5319
  %v5322 = vlaneseq
  %v5323 = vshrl.u32 %v5322, 7
  %v5324 = vsub.s32 0, %v5323
  %v5325 = vrot.slane %v4596, %v5324
  %v5326 = vlaneseq
  %v5327 = vshrl.u32 %v5326, 7
  %v5328 = vsub.s32 0, %v5327
  %v5329 = vrot.slane %v4598, %v5328
  %v5330 = vlaneseq
  %v5331 = vshrl.u32 %v5330, 7
  %v5332 = vsub.s32 0, %v5331
  %v5333 = vrot.slane %v4637, %v5332
  %vm5334 = vcmp.gt.f32.partialorder %v5105, %v5325
  %vm5335 = vcmp.gt.f32.partialorder %v5105, %v5329
  %vm5336 = vcmp.gt.f32.partialorder %v5105, %v5333
  %vm5337 = vcmp.gt.f32.partialorder %v5110, %v5325
  %vm5338 = vcmp.gt.f32.partialorder %v5110, %v5329
  %vm5339 = vcmp.gt.f32.partialorder %v5110, %v5333
  %vm5340 = vcmp.gt.f32.partialorder %v5115, %v5325
  %vm5341 = vcmp.gt.f32.partialorder %v5115, %v5329
  %vm5342 = vcmp.gt.f32.partialorder %v5115, %v5333
  %vm5343 = vcmp.gt.f32.partialorder %v5120, %v5325
  %vm5344 = vcmp.gt.f32.partialorder %v5120, %v5329
  %vm5345 = vcmp.gt.f32.partialorder %v5120, %v5333
  %vm5346 = vcmp.gt.f32.partialorder %v5125, %v5325
  %vm5347 = vcmp.gt.f32.partialorder %v5125, %v5329
  %vm5348 = vcmp.gt.f32.partialorder %v5125, %v5333
  %vm5349 = vcmp.gt.f32.partialorder %v5130, %v5325
  %vm5350 = vcmp.gt.f32.partialorder %v5130, %v5329
  %vm5351 = vcmp.gt.f32.partialorder %v5130, %v5333
  %vm5352 = vcmp.gt.f32.partialorder %v5135, %v5325
  %vm5353 = vcmp.gt.f32.partialorder %v5135, %v5329
  %vm5354 = vcmp.gt.f32.partialorder %v5135, %v5333
  %vm5355 = vcmp.gt.f32.partialorder %v5140, %v5325
  %vm5356 = vcmp.gt.f32.partialorder %v5140, %v5329
  %vm5357 = vcmp.gt.f32.partialorder %v5140, %v5333
  %vm5358 = vcmp.gt.f32.partialorder %v5145, %v5325
  %vm5359 = vcmp.gt.f32.partialorder %v5145, %v5329
  %vm5360 = vcmp.gt.f32.partialorder %v5145, %v5333
  %vm5361 = vcmp.gt.f32.partialorder %v5150, %v5325
  %vm5362 = vcmp.gt.f32.partialorder %v5150, %v5329
  %vm5363 = vcmp.gt.f32.partialorder %v5150, %v5333
  %vm5364 = vcmp.gt.f32.partialorder %v5155, %v5325
  %vm5365 = vcmp.gt.f32.partialorder %v5155, %v5329
  %vm5366 = vcmp.gt.f32.partialorder %v5155, %v5333
  %vm5367 = vcmp.gt.f32.partialorder %v5160, %v5325
  %vm5368 = vcmp.gt.f32.partialorder %v5160, %v5329
  %vm5369 = vcmp.gt.f32.partialorder %v5160, %v5333
  %vm5370 = vcmp.gt.f32.partialorder %v5165, %v5325
  %vm5371 = vcmp.gt.f32.partialorder %v5165, %v5329
  %vm5372 = vcmp.gt.f32.partialorder %v5165, %v5333
  %vm5373 = vcmp.gt.f32.partialorder %v5170, %v5325
  %vm5374 = vcmp.gt.f32.partialorder %v5170, %v5329
  %vm5375 = vcmp.gt.f32.partialorder %v5170, %v5333
  %vm5376 = vcmp.gt.f32.partialorder %v5175, %v5325
  %vm5377 = vcmp.gt.f32.partialorder %v5175, %v5329
  %vm5378 = vcmp.gt.f32.partialorder %v5175, %v5333
  %vm5379 = vcmp.gt.f32.partialorder %v5180, %v5325
  %vm5380 = vcmp.gt.f32.partialorder %v5180, %v5329
  %vm5381 = vcmp.gt.f32.partialorder %v5180, %v5333
  %vm5382 = vcmp.gt.f32.partialorder %v5185, %v5325
  %vm5383 = vcmp.gt.f32.partialorder %v5185, %v5329
  %vm5384 = vcmp.gt.f32.partialorder %v5185, %v5333
  %vm5385 = vcmp.gt.f32.partialorder %v5190, %v5325
  %vm5386 = vcmp.gt.f32.partialorder %v5190, %v5329
  %vm5387 = vcmp.gt.f32.partialorder %v5190, %v5333
  %vm5388 = vcmp.gt.f32.partialorder %v5195, %v5325
  %vm5389 = vcmp.gt.f32.partialorder %v5195, %v5329
  %vm5390 = vcmp.gt.f32.partialorder %v5195, %v5333
  %vm5391 = vcmp.gt.f32.partialorder %v5200, %v5325
  %vm5392 = vcmp.gt.f32.partialorder %v5200, %v5329
  %vm5393 = vcmp.gt.f32.partialorder %v5200, %v5333
  %vm5394 = vcmp.gt.f32.partialorder %v5205, %v5325
  %vm5395 = vcmp.gt.f32.partialorder %v5205, %v5329
  %vm5396 = vcmp.gt.f32.partialorder %v5205, %v5333
  %vm5397 = vcmp.gt.f32.partialorder %v5210, %v5325
  %vm5398 = vcmp.gt.f32.partialorder %v5210, %v5329
  %vm5399 = vcmp.gt.f32.partialorder %v5210, %v5333
  %vm5400 = vcmp.gt.f32.partialorder %v5215, %v5325
  %vm5401 = vcmp.gt.f32.partialorder %v5215, %v5329
  %vm5402 = vcmp.gt.f32.partialorder %v5215, %v5333
  %vm5403 = vcmp.gt.f32.partialorder %v5220, %v5325
  %vm5404 = vcmp.gt.f32.partialorder %v5220, %v5329
  %vm5405 = vcmp.gt.f32.partialorder %v5220, %v5333
  %vm5406 = vcmp.gt.f32.partialorder %v5225, %v5325
  %vm5407 = vcmp.gt.f32.partialorder %v5225, %v5329
  %vm5408 = vcmp.gt.f32.partialorder %v5225, %v5333
  %vm5409 = vcmp.gt.f32.partialorder %v5230, %v5325
  %vm5410 = vcmp.gt.f32.partialorder %v5230, %v5329
  %vm5411 = vcmp.gt.f32.partialorder %v5230, %v5333
  %vm5412 = vcmp.gt.f32.partialorder %v5235, %v5325
  %vm5413 = vcmp.gt.f32.partialorder %v5235, %v5329
  %vm5414 = vcmp.gt.f32.partialorder %v5235, %v5333
  %vm5415 = vcmp.gt.f32.partialorder %v5240, %v5325
  %vm5416 = vcmp.gt.f32.partialorder %v5240, %v5329
  %vm5417 = vcmp.gt.f32.partialorder %v5240, %v5333
  %vm5418 = vcmp.gt.f32.partialorder %v5245, %v5325
  %vm5419 = vcmp.gt.f32.partialorder %v5245, %v5329
  %vm5420 = vcmp.gt.f32.partialorder %v5245, %v5333
  %vm5421 = vcmp.gt.f32.partialorder %v5250, %v5325
  %vm5422 = vcmp.gt.f32.partialorder %v5250, %v5329
  %vm5423 = vcmp.gt.f32.partialorder %v5250, %v5333
  %vm5424 = vcmp.gt.f32.partialorder %v5255, %v5325
  %vm5425 = vcmp.gt.f32.partialorder %v5255, %v5329
  %vm5426 = vcmp.gt.f32.partialorder %v5255, %v5333
  %vm5427 = vcmp.gt.f32.partialorder %v5260, %v5325
  %vm5428 = vcmp.gt.f32.partialorder %v5260, %v5329
  %vm5429 = vcmp.gt.f32.partialorder %v5260, %v5333
  %vm5430 = vcmp.gt.f32.partialorder %v5265, %v5325
  %vm5431 = vcmp.gt.f32.partialorder %v5265, %v5329
  %vm5432 = vcmp.gt.f32.partialorder %v5265, %v5333
  %vm5433 = vcmp.gt.f32.partialorder %v5270, %v5325
  %vm5434 = vcmp.gt.f32.partialorder %v5270, %v5329
  %vm5435 = vcmp.gt.f32.partialorder %v5270, %v5333
  %vm5436 = vcmp.gt.f32.partialorder %v5275, %v5325
  %vm5437 = vcmp.gt.f32.partialorder %v5275, %v5329
  %vm5438 = vcmp.gt.f32.partialorder %v5275, %v5333
  %vm5439 = vcmp.gt.f32.partialorder %v5280, %v5325
  %vm5440 = vcmp.gt.f32.partialorder %v5280, %v5329
  %vm5441 = vcmp.gt.f32.partialorder %v5280, %v5333
  %vm5442 = vcmp.gt.f32.partialorder %v5285, %v5325
  %vm5443 = vcmp.gt.f32.partialorder %v5285, %v5329
  %vm5444 = vcmp.gt.f32.partialorder %v5285, %v5333
  %vm5445 = vcmp.gt.f32.partialorder %v5290, %v5325
  %vm5446 = vcmp.gt.f32.partialorder %v5290, %v5329
  %vm5447 = vcmp.gt.f32.partialorder %v5290, %v5333
  %vm5448 = vcmp.gt.f32.partialorder %v5295, %v5325
  %vm5449 = vcmp.gt.f32.partialorder %v5295, %v5329
  %vm5450 = vcmp.gt.f32.partialorder %v5295, %v5333
  %vm5451 = vcmp.gt.f32.partialorder %v5300, %v5325
  %vm5452 = vcmp.gt.f32.partialorder %v5300, %v5329
  %vm5453 = vcmp.gt.f32.partialorder %v5300, %v5333
  %vm5454 = vcmp.gt.f32.partialorder %v5305, %v5325
  %vm5455 = vcmp.gt.f32.partialorder %v5305, %v5329
  %vm5456 = vcmp.gt.f32.partialorder %v5305, %v5333
  %vm5457 = vcmp.gt.f32.partialorder %v5310, %v5325
  %vm5458 = vcmp.gt.f32.partialorder %v5310, %v5329
  %vm5459 = vcmp.gt.f32.partialorder %v5310, %v5333
  %vm5460 = vcmp.gt.f32.partialorder %v5315, %v5325
  %vm5461 = vcmp.gt.f32.partialorder %v5315, %v5329
  %vm5462 = vcmp.gt.f32.partialorder %v5315, %v5333
  %vm5463 = vcmp.gt.f32.partialorder %v5320, %v5325
  %vm5464 = vcmp.gt.f32.partialorder %v5320, %v5329
  %vm5465 = vcmp.gt.f32.partialorder %v5320, %v5333
  %vm5466 = vcmp.eq.f32.partialorder %v5105, %v5325
  %vm5467 = vcmp.eq.f32.partialorder %v5105, %v5329
  %vm5468 = vcmp.eq.f32.partialorder %v5105, %v5333
  %vm5469 = vcmp.eq.f32.partialorder %v5110, %v5325
  %vm5470 = vcmp.eq.f32.partialorder %v5110, %v5329
  %vm5471 = vcmp.eq.f32.partialorder %v5110, %v5333
  %vm5472 = vcmp.eq.f32.partialorder %v5115, %v5325
  %vm5473 = vcmp.eq.f32.partialorder %v5115, %v5329
  %vm5474 = vcmp.eq.f32.partialorder %v5115, %v5333
  %vm5475 = vcmp.eq.f32.partialorder %v5120, %v5325
  %vm5476 = vcmp.eq.f32.partialorder %v5120, %v5329
  %vm5477 = vcmp.eq.f32.partialorder %v5120, %v5333
  %vm5478 = vcmp.eq.f32.partialorder %v5125, %v5325
  %vm5479 = vcmp.eq.f32.partialorder %v5125, %v5329
  %vm5480 = vcmp.eq.f32.partialorder %v5125, %v5333
  %vm5481 = vcmp.eq.f32.partialorder %v5130, %v5325
  %vm5482 = vcmp.eq.f32.partialorder %v5130, %v5329
  %vm5483 = vcmp.eq.f32.partialorder %v5130, %v5333
  %vm5484 = vcmp.eq.f32.partialorder %v5135, %v5325
  %vm5485 = vcmp.eq.f32.partialorder %v5135, %v5329
  %vm5486 = vcmp.eq.f32.partialorder %v5135, %v5333
  %vm5487 = vcmp.eq.f32.partialorder %v5140, %v5325
  %vm5488 = vcmp.eq.f32.partialorder %v5140, %v5329
  %vm5489 = vcmp.eq.f32.partialorder %v5140, %v5333
  %vm5490 = vcmp.eq.f32.partialorder %v5145, %v5325
  %vm5491 = vcmp.eq.f32.partialorder %v5145, %v5329
  %vm5492 = vcmp.eq.f32.partialorder %v5145, %v5333
  %vm5493 = vcmp.eq.f32.partialorder %v5150, %v5325
  %vm5494 = vcmp.eq.f32.partialorder %v5150, %v5329
  %vm5495 = vcmp.eq.f32.partialorder %v5150, %v5333
  %vm5496 = vcmp.eq.f32.partialorder %v5155, %v5325
  %vm5497 = vcmp.eq.f32.partialorder %v5155, %v5329
  %vm5498 = vcmp.eq.f32.partialorder %v5155, %v5333
  %vm5499 = vcmp.eq.f32.partialorder %v5160, %v5325
  %vm5500 = vcmp.eq.f32.partialorder %v5160, %v5329
  %vm5501 = vcmp.eq.f32.partialorder %v5160, %v5333
  %vm5502 = vcmp.eq.f32.partialorder %v5165, %v5325
  %vm5503 = vcmp.eq.f32.partialorder %v5165, %v5329
  %vm5504 = vcmp.eq.f32.partialorder %v5165, %v5333
  %vm5505 = vcmp.eq.f32.partialorder %v5170, %v5325
  %vm5506 = vcmp.eq.f32.partialorder %v5170, %v5329
  %vm5507 = vcmp.eq.f32.partialorder %v5170, %v5333
  %vm5508 = vcmp.eq.f32.partialorder %v5175, %v5325
  %vm5509 = vcmp.eq.f32.partialorder %v5175, %v5329
  %vm5510 = vcmp.eq.f32.partialorder %v5175, %v5333
  %vm5511 = vcmp.eq.f32.partialorder %v5180, %v5325
  %vm5512 = vcmp.eq.f32.partialorder %v5180, %v5329
  %vm5513 = vcmp.eq.f32.partialorder %v5180, %v5333
  %vm5514 = vcmp.eq.f32.partialorder %v5185, %v5325
  %vm5515 = vcmp.eq.f32.partialorder %v5185, %v5329
  %vm5516 = vcmp.eq.f32.partialorder %v5185, %v5333
  %vm5517 = vcmp.eq.f32.partialorder %v5190, %v5325
  %vm5518 = vcmp.eq.f32.partialorder %v5190, %v5329
  %vm5519 = vcmp.eq.f32.partialorder %v5190, %v5333
  %vm5520 = vcmp.eq.f32.partialorder %v5195, %v5325
  %vm5521 = vcmp.eq.f32.partialorder %v5195, %v5329
  %vm5522 = vcmp.eq.f32.partialorder %v5195, %v5333
  %vm5523 = vcmp.eq.f32.partialorder %v5200, %v5325
  %vm5524 = vcmp.eq.f32.partialorder %v5200, %v5329
  %vm5525 = vcmp.eq.f32.partialorder %v5200, %v5333
  %vm5526 = vcmp.eq.f32.partialorder %v5205, %v5325
  %vm5527 = vcmp.eq.f32.partialorder %v5205, %v5329
  %vm5528 = vcmp.eq.f32.partialorder %v5205, %v5333
  %vm5529 = vcmp.eq.f32.partialorder %v5210, %v5325
  %vm5530 = vcmp.eq.f32.partialorder %v5210, %v5329
  %vm5531 = vcmp.eq.f32.partialorder %v5210, %v5333
  %vm5532 = vcmp.eq.f32.partialorder %v5215, %v5325
  %vm5533 = vcmp.eq.f32.partialorder %v5215, %v5329
  %vm5534 = vcmp.eq.f32.partialorder %v5215, %v5333
  %vm5535 = vcmp.eq.f32.partialorder %v5220, %v5325
  %vm5536 = vcmp.eq.f32.partialorder %v5220, %v5329
  %vm5537 = vcmp.eq.f32.partialorder %v5220, %v5333
  %vm5538 = vcmp.eq.f32.partialorder %v5225, %v5325
  %vm5539 = vcmp.eq.f32.partialorder %v5225, %v5329
  %vm5540 = vcmp.eq.f32.partialorder %v5225, %v5333
  %vm5541 = vcmp.eq.f32.partialorder %v5230, %v5325
  %vm5542 = vcmp.eq.f32.partialorder %v5230, %v5329
  %vm5543 = vcmp.eq.f32.partialorder %v5230, %v5333
  %vm5544 = vcmp.eq.f32.partialorder %v5235, %v5325
  %vm5545 = vcmp.eq.f32.partialorder %v5235, %v5329
  %vm5546 = vcmp.eq.f32.partialorder %v5235, %v5333
  %vm5547 = vcmp.eq.f32.partialorder %v5240, %v5325
  %vm5548 = vcmp.eq.f32.partialorder %v5240, %v5329
  %vm5549 = vcmp.eq.f32.partialorder %v5240, %v5333
  %vm5550 = vcmp.eq.f32.partialorder %v5245, %v5325
  %vm5551 = vcmp.eq.f32.partialorder %v5245, %v5329
  %vm5552 = vcmp.eq.f32.partialorder %v5245, %v5333
  %vm5553 = vcmp.eq.f32.partialorder %v5250, %v5325
  %vm5554 = vcmp.eq.f32.partialorder %v5250, %v5329
  %vm5555 = vcmp.eq.f32.partialorder %v5250, %v5333
  %vm5556 = vcmp.eq.f32.partialorder %v5255, %v5325
  %vm5557 = vcmp.eq.f32.partialorder %v5255, %v5329
  %vm5558 = vcmp.eq.f32.partialorder %v5255, %v5333
  %vm5559 = vcmp.eq.f32.partialorder %v5260, %v5325
  %vm5560 = vcmp.eq.f32.partialorder %v5260, %v5329
  %vm5561 = vcmp.eq.f32.partialorder %v5260, %v5333
  %vm5562 = vcmp.eq.f32.partialorder %v5265, %v5325
  %vm5563 = vcmp.eq.f32.partialorder %v5265, %v5329
  %vm5564 = vcmp.eq.f32.partialorder %v5265, %v5333
  %vm5565 = vcmp.eq.f32.partialorder %v5270, %v5325
  %vm5566 = vcmp.eq.f32.partialorder %v5270, %v5329
  %vm5567 = vcmp.eq.f32.partialorder %v5270, %v5333
  %vm5568 = vcmp.eq.f32.partialorder %v5275, %v5325
  %vm5569 = vcmp.eq.f32.partialorder %v5275, %v5329
  %vm5570 = vcmp.eq.f32.partialorder %v5275, %v5333
  %vm5571 = vcmp.eq.f32.partialorder %v5280, %v5325
  %vm5572 = vcmp.eq.f32.partialorder %v5280, %v5329
  %vm5573 = vcmp.eq.f32.partialorder %v5280, %v5333
  %vm5574 = vcmp.eq.f32.partialorder %v5285, %v5325
  %vm5575 = vcmp.eq.f32.partialorder %v5285, %v5329
  %vm5576 = vcmp.eq.f32.partialorder %v5285, %v5333
  %vm5577 = vcmp.eq.f32.partialorder %v5290, %v5325
  %vm5578 = vcmp.eq.f32.partialorder %v5290, %v5329
  %vm5579 = vcmp.eq.f32.partialorder %v5290, %v5333
  %vm5580 = vcmp.eq.f32.partialorder %v5295, %v5325
  %vm5581 = vcmp.eq.f32.partialorder %v5295, %v5329
  %vm5582 = vcmp.eq.f32.partialorder %v5295, %v5333
  %vm5583 = vcmp.eq.f32.partialorder %v5300, %v5325
  %vm5584 = vcmp.eq.f32.partialorder %v5300, %v5329
  %vm5585 = vcmp.eq.f32.partialorder %v5300, %v5333
  %vm5586 = vcmp.eq.f32.partialorder %v5305, %v5325
  %vm5587 = vcmp.eq.f32.partialorder %v5305, %v5329
  %vm5588 = vcmp.eq.f32.partialorder %v5305, %v5333
  %vm5589 = vcmp.eq.f32.partialorder %v5310, %v5325
  %vm5590 = vcmp.eq.f32.partialorder %v5310, %v5329
  %vm5591 = vcmp.eq.f32.partialorder %v5310, %v5333
  %vm5592 = vcmp.eq.f32.partialorder %v5315, %v5325
  %vm5593 = vcmp.eq.f32.partialorder %v5315, %v5329
  %vm5594 = vcmp.eq.f32.partialorder %v5315, %v5333
  %vm5595 = vcmp.eq.f32.partialorder %v5320, %v5325
  %vm5596 = vcmp.eq.f32.partialorder %v5320, %v5329
  %vm5597 = vcmp.eq.f32.partialorder %v5320, %v5333
  %vm5598 = vcmp.lt.s32.totalorder %v4643, %v4556
  %vm5599 = vcmp.lt.s32.totalorder %v4643, %v4687
  %vm5600 = vcmp.lt.s32.totalorder %v4643, %v4688
  %vm5601 = vcmp.lt.s32.totalorder %v4644, %v4556
  %vm5602 = vcmp.lt.s32.totalorder %v4644, %v4687
  %vm5603 = vcmp.lt.s32.totalorder %v4644, %v4688
  %vm5604 = vcmp.lt.s32.totalorder %v4645, %v4556
  %vm5605 = vcmp.lt.s32.totalorder %v4645, %v4687
  %vm5606 = vcmp.lt.s32.totalorder %v4645, %v4688
  %vm5607 = vcmp.lt.s32.totalorder %v4646, %v4556
  %vm5608 = vcmp.lt.s32.totalorder %v4646, %v4687
  %vm5609 = vcmp.lt.s32.totalorder %v4646, %v4688
  %vm5610 = vcmp.lt.s32.totalorder %v4647, %v4556
  %vm5611 = vcmp.lt.s32.totalorder %v4647, %v4687
  %vm5612 = vcmp.lt.s32.totalorder %v4647, %v4688
  %vm5613 = vcmp.lt.s32.totalorder %v4648, %v4556
  %vm5614 = vcmp.lt.s32.totalorder %v4648, %v4687
  %vm5615 = vcmp.lt.s32.totalorder %v4648, %v4688
  %vm5616 = vcmp.lt.s32.totalorder %v4649, %v4556
  %vm5617 = vcmp.lt.s32.totalorder %v4649, %v4687
  %vm5618 = vcmp.lt.s32.totalorder %v4649, %v4688
  %vm5619 = vcmp.lt.s32.totalorder %v4650, %v4556
  %vm5620 = vcmp.lt.s32.totalorder %v4650, %v4687
  %vm5621 = vcmp.lt.s32.totalorder %v4650, %v4688
  %vm5622 = vcmp.lt.s32.totalorder %v4651, %v4556
  %vm5623 = vcmp.lt.s32.totalorder %v4651, %v4687
  %vm5624 = vcmp.lt.s32.totalorder %v4651, %v4688
  %vm5625 = vcmp.lt.s32.totalorder %v4652, %v4556
  %vm5626 = vcmp.lt.s32.totalorder %v4652, %v4687
  %vm5627 = vcmp.lt.s32.totalorder %v4652, %v4688
  %vm5628 = vcmp.lt.s32.totalorder %v4653, %v4556
  %vm5629 = vcmp.lt.s32.totalorder %v4653, %v4687
  %vm5630 = vcmp.lt.s32.totalorder %v4653, %v4688
  %vm5631 = vcmp.lt.s32.totalorder %v4654, %v4556
  %vm5632 = vcmp.lt.s32.totalorder %v4654, %v4687
  %vm5633 = vcmp.lt.s32.totalorder %v4654, %v4688
  %vm5634 = vcmp.lt.s32.totalorder %v4655, %v4556
  %vm5635 = vcmp.lt.s32.totalorder %v4655, %v4687
  %vm5636 = vcmp.lt.s32.totalorder %v4655, %v4688
  %vm5637 = vcmp.lt.s32.totalorder %v4656, %v4556
  %vm5638 = vcmp.lt.s32.totalorder %v4656, %v4687
  %vm5639 = vcmp.lt.s32.totalorder %v4656, %v4688
  %vm5640 = vcmp.lt.s32.totalorder %v4657, %v4556
  %vm5641 = vcmp.lt.s32.totalorder %v4657, %v4687
  %vm5642 = vcmp.lt.s32.totalorder %v4657, %v4688
  %vm5643 = vcmp.lt.s32.totalorder %v4658, %v4556
  %vm5644 = vcmp.lt.s32.totalorder %v4658, %v4687
  %vm5645 = vcmp.lt.s32.totalorder %v4658, %v4688
  %vm5646 = vcmp.lt.s32.totalorder %v4659, %v4556
  %vm5647 = vcmp.lt.s32.totalorder %v4659, %v4687
  %vm5648 = vcmp.lt.s32.totalorder %v4659, %v4688
  %vm5649 = vcmp.lt.s32.totalorder %v4660, %v4556
  %vm5650 = vcmp.lt.s32.totalorder %v4660, %v4687
  %vm5651 = vcmp.lt.s32.totalorder %v4660, %v4688
  %vm5652 = vcmp.lt.s32.totalorder %v4661, %v4556
  %vm5653 = vcmp.lt.s32.totalorder %v4661, %v4687
  %vm5654 = vcmp.lt.s32.totalorder %v4661, %v4688
  %vm5655 = vcmp.lt.s32.totalorder %v4662, %v4556
  %vm5656 = vcmp.lt.s32.totalorder %v4662, %v4687
  %vm5657 = vcmp.lt.s32.totalorder %v4662, %v4688
  %vm5658 = vcmp.lt.s32.totalorder %v4663, %v4556
  %vm5659 = vcmp.lt.s32.totalorder %v4663, %v4687
  %vm5660 = vcmp.lt.s32.totalorder %v4663, %v4688
  %vm5661 = vcmp.lt.s32.totalorder %v4664, %v4556
  %vm5662 = vcmp.lt.s32.totalorder %v4664, %v4687
  %vm5663 = vcmp.lt.s32.totalorder %v4664, %v4688
  %vm5664 = vcmp.lt.s32.totalorder %v4665, %v4556
  %vm5665 = vcmp.lt.s32.totalorder %v4665, %v4687
  %vm5666 = vcmp.lt.s32.totalorder %v4665, %v4688
  %vm5667 = vcmp.lt.s32.totalorder %v4666, %v4556
  %vm5668 = vcmp.lt.s32.totalorder %v4666, %v4687
  %vm5669 = vcmp.lt.s32.totalorder %v4666, %v4688
  %vm5670 = vcmp.lt.s32.totalorder %v4667, %v4556
  %vm5671 = vcmp.lt.s32.totalorder %v4667, %v4687
  %vm5672 = vcmp.lt.s32.totalorder %v4667, %v4688
  %vm5673 = vcmp.lt.s32.totalorder %v4668, %v4556
  %vm5674 = vcmp.lt.s32.totalorder %v4668, %v4687
  %vm5675 = vcmp.lt.s32.totalorder %v4668, %v4688
  %vm5676 = vcmp.lt.s32.totalorder %v4669, %v4556
  %vm5677 = vcmp.lt.s32.totalorder %v4669, %v4687
  %vm5678 = vcmp.lt.s32.totalorder %v4669, %v4688
  %vm5679 = vcmp.lt.s32.totalorder %v4670, %v4556
  %vm5680 = vcmp.lt.s32.totalorder %v4670, %v4687
  %vm5681 = vcmp.lt.s32.totalorder %v4670, %v4688
  %vm5682 = vcmp.lt.s32.totalorder %v4671, %v4556
  %vm5683 = vcmp.lt.s32.totalorder %v4671, %v4687
  %vm5684 = vcmp.lt.s32.totalorder %v4671, %v4688
  %vm5685 = vcmp.lt.s32.totalorder %v4672, %v4556
  %vm5686 = vcmp.lt.s32.totalorder %v4672, %v4687
  %vm5687 = vcmp.lt.s32.totalorder %v4672, %v4688
  %vm5688 = vcmp.lt.s32.totalorder %v4673, %v4556
  %vm5689 = vcmp.lt.s32.totalorder %v4673, %v4687
  %vm5690 = vcmp.lt.s32.totalorder %v4673, %v4688
  %vm5691 = vcmp.lt.s32.totalorder %v4674, %v4556
  %vm5692 = vcmp.lt.s32.totalorder %v4674, %v4687
  %vm5693 = vcmp.lt.s32.totalorder %v4674, %v4688
  %vm5694 = vcmp.lt.s32.totalorder %v4675, %v4556
  %vm5695 = vcmp.lt.s32.totalorder %v4675, %v4687
  %vm5696 = vcmp.lt.s32.totalorder %v4675, %v4688
  %vm5697 = vcmp.lt.s32.totalorder %v4676, %v4556
  %vm5698 = vcmp.lt.s32.totalorder %v4676, %v4687
  %vm5699 = vcmp.lt.s32.totalorder %v4676, %v4688
  %vm5700 = vcmp.lt.s32.totalorder %v4677, %v4556
  %vm5701 = vcmp.lt.s32.totalorder %v4677, %v4687
  %vm5702 = vcmp.lt.s32.totalorder %v4677, %v4688
  %vm5703 = vcmp.lt.s32.totalorder %v4678, %v4556
  %vm5704 = vcmp.lt.s32.totalorder %v4678, %v4687
  %vm5705 = vcmp.lt.s32.totalorder %v4678, %v4688
  %vm5706 = vcmp.lt.s32.totalorder %v4679, %v4556
  %vm5707 = vcmp.lt.s32.totalorder %v4679, %v4687
  %vm5708 = vcmp.lt.s32.totalorder %v4679, %v4688
  %vm5709 = vcmp.lt.s32.totalorder %v4680, %v4556
  %vm5710 = vcmp.lt.s32.totalorder %v4680, %v4687
  %vm5711 = vcmp.lt.s32.totalorder %v4680, %v4688
  %vm5712 = vcmp.lt.s32.totalorder %v4681, %v4556
  %vm5713 = vcmp.lt.s32.totalorder %v4681, %v4687
  %vm5714 = vcmp.lt.s32.totalorder %v4681, %v4688
  %vm5715 = vcmp.lt.s32.totalorder %v4682, %v4556
  %vm5716 = vcmp.lt.s32.totalorder %v4682, %v4687
  %vm5717 = vcmp.lt.s32.totalorder %v4682, %v4688
  %vm5718 = vcmp.lt.s32.totalorder %v4683, %v4556
  %vm5719 = vcmp.lt.s32.totalorder %v4683, %v4687
  %vm5720 = vcmp.lt.s32.totalorder %v4683, %v4688
  %vm5721 = vcmp.lt.s32.totalorder %v4684, %v4556
  %vm5722 = vcmp.lt.s32.totalorder %v4684, %v4687
  %vm5723 = vcmp.lt.s32.totalorder %v4684, %v4688
  %vm5724 = vcmp.lt.s32.totalorder %v4685, %v4556
  %vm5725 = vcmp.lt.s32.totalorder %v4685, %v4687
  %vm5726 = vcmp.lt.s32.totalorder %v4685, %v4688
  %vm5727 = vcmp.lt.s32.totalorder %v4686, %v4556
  %vm5728 = vcmp.lt.s32.totalorder %v4686, %v4687
  %vm5729 = vcmp.lt.s32.totalorder %v4686, %v4688
  %vm5730 = vmand %vm5466, %vm5598
  %vm5731 = vmand %vm5467, %vm5599
  %vm5732 = vmand %vm5468, %vm5600
  %vm5733 = vmand %vm5469, %vm5601
  %vm5734 = vmand %vm5470, %vm5602
  %vm5735 = vmand %vm5471, %vm5603
  %vm5736 = vmand %vm5472, %vm5604
  %vm5737 = vmand %vm5473, %vm5605
  %vm5738 = vmand %vm5474, %vm5606
  %vm5739 = vmand %vm5475, %vm5607
  %vm5740 = vmand %vm5476, %vm5608
  %vm5741 = vmand %vm5477, %vm5609
  %vm5742 = vmand %vm5478, %vm5610
  %vm5743 = vmand %vm5479, %vm5611
  %vm5744 = vmand %vm5480, %vm5612
  %vm5745 = vmand %vm5481, %vm5613
  %vm5746 = vmand %vm5482, %vm5614
  %vm5747 = vmand %vm5483, %vm5615
  %vm5748 = vmand %vm5484, %vm5616
  %vm5749 = vmand %vm5485, %vm5617
  %vm5750 = vmand %vm5486, %vm5618
  %vm5751 = vmand %vm5487, %vm5619
  %vm5752 = vmand %vm5488, %vm5620
  %vm5753 = vmand %vm5489, %vm5621
  %vm5754 = vmand %vm5490, %vm5622
  %vm5755 = vmand %vm5491, %vm5623
  %vm5756 = vmand %vm5492, %vm5624
  %vm5757 = vmand %vm5493, %vm5625
  %vm5758 = vmand %vm5494, %vm5626
  %vm5759 = vmand %vm5495, %vm5627
  %vm5760 = vmand %vm5496, %vm5628
  %vm5761 = vmand %vm5497, %vm5629
  %vm5762 = vmand %vm5498, %vm5630
  %vm5763 = vmand %vm5499, %vm5631
  %vm5764 = vmand %vm5500, %vm5632
  %vm5765 = vmand %vm5501, %vm5633
  %vm5766 = vmand %vm5502, %vm5634
  %vm5767 = vmand %vm5503, %vm5635
  %vm5768 = vmand %vm5504, %vm5636
  %vm5769 = vmand %vm5505, %vm5637
  %vm5770 = vmand %vm5506, %vm5638
  %vm5771 = vmand %vm5507, %vm5639
  %vm5772 = vmand %vm5508, %vm5640
  %vm5773 = vmand %vm5509, %vm5641
  %vm5774 = vmand %vm5510, %vm5642
  %vm5775 = vmand %vm5511, %vm5643
  %vm5776 = vmand %vm5512, %vm5644
  %vm5777 = vmand %vm5513, %vm5645
  %vm5778 = vmand %vm5514, %vm5646
  %vm5779 = vmand %vm5515, %vm5647
  %vm5780 = vmand %vm5516, %vm5648
  %vm5781 = vmand %vm5517, %vm5649
  %vm5782 = vmand %vm5518, %vm5650
  %vm5783 = vmand %vm5519, %vm5651
  %vm5784 = vmand %vm5520, %vm5652
  %vm5785 = vmand %vm5521, %vm5653
  %vm5786 = vmand %vm5522, %vm5654
  %vm5787 = vmand %vm5523, %vm5655
  %vm5788 = vmand %vm5524, %vm5656
  %vm5789 = vmand %vm5525, %vm5657
  %vm5790 = vmand %vm5526, %vm5658
  %vm5791 = vmand %vm5527, %vm5659
  %vm5792 = vmand %vm5528, %vm5660
  %vm5793 = vmand %vm5529, %vm5661
  %vm5794 = vmand %vm5530, %vm5662
  %vm5795 = vmand %vm5531, %vm5663
  %vm5796 = vmand %vm5532, %vm5664
  %vm5797 = vmand %vm5533, %vm5665
  %vm5798 = vmand %vm5534, %vm5666
  %vm5799 = vmand %vm5535, %vm5667
  %vm5800 = vmand %vm5536, %vm5668
  %vm5801 = vmand %vm5537, %vm5669
  %vm5802 = vmand %vm5538, %vm5670
  %vm5803 = vmand %vm5539, %vm5671
  %vm5804 = vmand %vm5540, %vm5672
  %vm5805 = vmand %vm5541, %vm5673
  %vm5806 = vmand %vm5542, %vm5674
  %vm5807 = vmand %vm5543, %vm5675
  %vm5808 = vmand %vm5544, %vm5676
  %vm5809 = vmand %vm5545, %vm5677
  %vm5810 = vmand %vm5546, %vm5678
  %vm5811 = vmand %vm5547, %vm5679
  %vm5812 = vmand %vm5548, %vm5680
  %vm5813 = vmand %vm5549, %vm5681
  %vm5814 = vmand %vm5550, %vm5682
  %vm5815 = vmand %vm5551, %vm5683
  %vm5816 = vmand %vm5552, %vm5684
  %vm5817 = vmand %vm5553, %vm5685
  %vm5818 = vmand %vm5554, %vm5686
  %vm5819 = vmand %vm5555, %vm5687
  %vm5820 = vmand %vm5556, %vm5688
  %vm5821 = vmand %vm5557, %vm5689
  %vm5822 = vmand %vm5558, %vm5690
  %vm5823 = vmand %vm5559, %vm5691
  %vm5824 = vmand %vm5560, %vm5692
  %vm5825 = vmand %vm5561, %vm5693
  %vm5826 = vmand %vm5562, %vm5694
  %vm5827 = vmand %vm5563, %vm5695
  %vm5828 = vmand %vm5564, %vm5696
  %vm5829 = vmand %vm5565, %vm5697
  %vm5830 = vmand %vm5566, %vm5698
  %vm5831 = vmand %vm5567, %vm5699
  %vm5832 = vmand %vm5568, %vm5700
  %vm5833 = vmand %vm5569, %vm5701
  %vm5834 = vmand %vm5570, %vm5702
  %vm5835 = vmand %vm5571, %vm5703
  %vm5836 = vmand %vm5572, %vm5704
  %vm5837 = vmand %vm5573, %vm5705
  %vm5838 = vmand %vm5574, %vm5706
  %vm5839 = vmand %vm5575, %vm5707
  %vm5840 = vmand %vm5576, %vm5708
  %vm5841 = vmand %vm5577, %vm5709
  %vm5842 = vmand %vm5578, %vm5710
  %vm5843 = vmand %vm5579, %vm5711
  %vm5844 = vmand %vm5580, %vm5712
  %vm5845 = vmand %vm5581, %vm5713
  %vm5846 = vmand %vm5582, %vm5714
  %vm5847 = vmand %vm5583, %vm5715
  %vm5848 = vmand %vm5584, %vm5716
  %vm5849 = vmand %vm5585, %vm5717
  %vm5850 = vmand %vm5586, %vm5718
  %vm5851 = vmand %vm5587, %vm5719
  %vm5852 = vmand %vm5588, %vm5720
  %vm5853 = vmand %vm5589, %vm5721
  %vm5854 = vmand %vm5590, %vm5722
  %vm5855 = vmand %vm5591, %vm5723
  %vm5856 = vmand %vm5592, %vm5724
  %vm5857 = vmand %vm5593, %vm5725
  %vm5858 = vmand %vm5594, %vm5726
  %vm5859 = vmand %vm5595, %vm5727
  %vm5860 = vmand %vm5596, %vm5728
  %vm5861 = vmand %vm5597, %vm5729
  %vm5862 = vmor %vm5334, %vm5730
  %vm5863 = vmor %vm5335, %vm5731
  %vm5864 = vmor %vm5336, %vm5732
  %vm5865 = vmor %vm5337, %vm5733
  %vm5866 = vmor %vm5338, %vm5734
  %vm5867 = vmor %vm5339, %vm5735
  %vm5868 = vmor %vm5340, %vm5736
  %vm5869 = vmor %vm5341, %vm5737
  %vm5870 = vmor %vm5342, %vm5738
  %vm5871 = vmor %vm5343, %vm5739
  %vm5872 = vmor %vm5344, %vm5740
  %vm5873 = vmor %vm5345, %vm5741
  %vm5874 = vmor %vm5346, %vm5742
  %vm5875 = vmor %vm5347, %vm5743
  %vm5876 = vmor %vm5348, %vm5744
  %vm5877 = vmor %vm5349, %vm5745
  %vm5878 = vmor %vm5350, %vm5746
  %vm5879 = vmor %vm5351, %vm5747
  %vm5880 = vmor %vm5352, %vm5748
  %vm5881 = vmor %vm5353, %vm5749
  %vm5882 = vmor %vm5354, %vm5750
  %vm5883 = vmor %vm5355, %vm5751
  %vm5884 = vmor %vm5356, %vm5752
  %vm5885 = vmor %vm5357, %vm5753
  %vm5886 = vmor %vm5358, %vm5754
  %vm5887 = vmor %vm5359, %vm5755
  %vm5888 = vmor %vm5360, %vm5756
  %vm5889 = vmor %vm5361, %vm5757
  %vm5890 = vmor %vm5362, %vm5758
  %vm5891 = vmor %vm5363, %vm5759
  %vm5892 = vmor %vm5364, %vm5760
  %vm5893 = vmor %vm5365, %vm5761
  %vm5894 = vmor %vm5366, %vm5762
  %vm5895 = vmor %vm5367, %vm5763
  %vm5896 = vmor %vm5368, %vm5764
  %vm5897 = vmor %vm5369, %vm5765
  %vm5898 = vmor %vm5370, %vm5766
  %vm5899 = vmor %vm5371, %vm5767
  %vm5900 = vmor %vm5372, %vm5768
  %vm5901 = vmor %vm5373, %vm5769
  %vm5902 = vmor %vm5374, %vm5770
  %vm5903 = vmor %vm5375, %vm5771
  %vm5904 = vmor %vm5376, %vm5772
  %vm5905 = vmor %vm5377, %vm5773
  %vm5906 = vmor %vm5378, %vm5774
  %vm5907 = vmor %vm5379, %vm5775
  %vm5908 = vmor %vm5380, %vm5776
  %vm5909 = vmor %vm5381, %vm5777
  %vm5910 = vmor %vm5382, %vm5778
  %vm5911 = vmor %vm5383, %vm5779
  %vm5912 = vmor %vm5384, %vm5780
  %vm5913 = vmor %vm5385, %vm5781
  %vm5914 = vmor %vm5386, %vm5782
  %vm5915 = vmor %vm5387, %vm5783
  %vm5916 = vmor %vm5388, %vm5784
  %vm5917 = vmor %vm5389, %vm5785
  %vm5918 = vmor %vm5390, %vm5786
  %vm5919 = vmor %vm5391, %vm5787
  %vm5920 = vmor %vm5392, %vm5788
  %vm5921 = vmor %vm5393, %vm5789
  %vm5922 = vmor %vm5394, %vm5790
  %vm5923 = vmor %vm5395, %vm5791
  %vm5924 = vmor %vm5396, %vm5792
  %vm5925 = vmor %vm5397, %vm5793
  %vm5926 = vmor %vm5398, %vm5794
  %vm5927 = vmor %vm5399, %vm5795
  %vm5928 = vmor %vm5400, %vm5796
  %vm5929 = vmor %vm5401, %vm5797
  %vm5930 = vmor %vm5402, %vm5798
  %vm5931 = vmor %vm5403, %vm5799
  %vm5932 = vmor %vm5404, %vm5800
  %vm5933 = vmor %vm5405, %vm5801
  %vm5934 = vmor %vm5406, %vm5802
  %vm5935 = vmor %vm5407, %vm5803
  %vm5936 = vmor %vm5408, %vm5804
  %vm5937 = vmor %vm5409, %vm5805
  %vm5938 = vmor %vm5410, %vm5806
  %vm5939 = vmor %vm5411, %vm5807
  %vm5940 = vmor %vm5412, %vm5808
  %vm5941 = vmor %vm5413, %vm5809
  %vm5942 = vmor %vm5414, %vm5810
  %vm5943 = vmor %vm5415, %vm5811
  %vm5944 = vmor %vm5416, %vm5812
  %vm5945 = vmor %vm5417, %vm5813
  %vm5946 = vmor %vm5418, %vm5814
  %vm5947 = vmor %vm5419, %vm5815
  %vm5948 = vmor %vm5420, %vm5816
  %vm5949 = vmor %vm5421, %vm5817
  %vm5950 = vmor %vm5422, %vm5818
  %vm5951 = vmor %vm5423, %vm5819
  %vm5952 = vmor %vm5424, %vm5820
  %vm5953 = vmor %vm5425, %vm5821
  %vm5954 = vmor %vm5426, %vm5822
  %vm5955 = vmor %vm5427, %vm5823
  %vm5956 = vmor %vm5428, %vm5824
  %vm5957 = vmor %vm5429, %vm5825
  %vm5958 = vmor %vm5430, %vm5826
  %vm5959 = vmor %vm5431, %vm5827
  %vm5960 = vmor %vm5432, %vm5828
  %vm5961 = vmor %vm5433, %vm5829
  %vm5962 = vmor %vm5434, %vm5830
  %vm5963 = vmor %vm5435, %vm5831
  %vm5964 = vmor %vm5436, %vm5832
  %vm5965 = vmor %vm5437, %vm5833
  %vm5966 = vmor %vm5438, %vm5834
  %vm5967 = vmor %vm5439, %vm5835
  %vm5968 = vmor %vm5440, %vm5836
  %vm5969 = vmor %vm5441, %vm5837
  %vm5970 = vmor %vm5442, %vm5838
  %vm5971 = vmor %vm5443, %vm5839
  %vm5972 = vmor %vm5444, %vm5840
  %vm5973 = vmor %vm5445, %vm5841
  %vm5974 = vmor %vm5446, %vm5842
  %vm5975 = vmor %vm5447, %vm5843
  %vm5976 = vmor %vm5448, %vm5844
  %vm5977 = vmor %vm5449, %vm5845
  %vm5978 = vmor %vm5450, %vm5846
  %vm5979 = vmor %vm5451, %vm5847
  %vm5980 = vmor %vm5452, %vm5848
  %vm5981 = vmor %vm5453, %vm5849
  %vm5982 = vmor %vm5454, %vm5850
  %vm5983 = vmor %vm5455, %vm5851
  %vm5984 = vmor %vm5456, %vm5852
  %vm5985 = vmor %vm5457, %vm5853
  %vm5986 = vmor %vm5458, %vm5854
  %vm5987 = vmor %vm5459, %vm5855
  %vm5988 = vmor %vm5460, %vm5856
  %vm5989 = vmor %vm5461, %vm5857
  %vm5990 = vmor %vm5462, %vm5858
  %vm5991 = vmor %vm5463, %vm5859
  %vm5992 = vmor %vm5464, %vm5860
  %vm5993 = vmor %vm5465, %vm5861
  %vm5994 = vmand %vm4970, %vm5862
  %vm5995 = vmand %vm4971, %vm5863
  %vm5996 = vmand %vm4972, %vm5864
  %vm5997 = vmand %vm4973, %vm5865
  %vm5998 = vmand %vm4974, %vm5866
  %vm5999 = vmand %vm4975, %vm5867
  %vm6000 = vmand %vm4976, %vm5868
  %vm6001 = vmand %vm4977, %vm5869
  %vm6002 = vmand %vm4978, %vm5870
  %vm6003 = vmand %vm4979, %vm5871
  %vm6004 = vmand %vm4980, %vm5872
  %vm6005 = vmand %vm4981, %vm5873
  %vm6006 = vmand %vm4982, %vm5874
  %vm6007 = vmand %vm4983, %vm5875
  %vm6008 = vmand %vm4984, %vm5876
  %vm6009 = vmand %vm4985, %vm5877
  %vm6010 = vmand %vm4986, %vm5878
  %vm6011 = vmand %vm4987, %vm5879
  %vm6012 = vmand %vm4988, %vm5880
  %vm6013 = vmand %vm4989, %vm5881
  %vm6014 = vmand %vm4990, %vm5882
  %vm6015 = vmand %vm4991, %vm5883
  %vm6016 = vmand %vm4992, %vm5884
  %vm6017 = vmand %vm4993, %vm5885
  %vm6018 = vmand %vm4994, %vm5886
  %vm6019 = vmand %vm4995, %vm5887
  %vm6020 = vmand %vm4996, %vm5888
  %vm6021 = vmand %vm4997, %vm5889
  %vm6022 = vmand %vm4998, %vm5890
  %vm6023 = vmand %vm4999, %vm5891
  %vm6024 = vmand %vm5000, %vm5892
  %vm6025 = vmand %vm5001, %vm5893
  %vm6026 = vmand %vm5002, %vm5894
  %vm6027 = vmand %vm5003, %vm5895
  %vm6028 = vmand %vm5004, %vm5896
  %vm6029 = vmand %vm5005, %vm5897
  %vm6030 = vmand %vm5006, %vm5898
  %vm6031 = vmand %vm5007, %vm5899
  %vm6032 = vmand %vm5008, %vm5900
  %vm6033 = vmand %vm5009, %vm5901
  %vm6034 = vmand %vm5010, %vm5902
  %vm6035 = vmand %vm5011, %vm5903
  %vm6036 = vmand %vm5012, %vm5904
  %vm6037 = vmand %vm5013, %vm5905
  %vm6038 = vmand %vm5014, %vm5906
  %vm6039 = vmand %vm5015, %vm5907
  %vm6040 = vmand %vm5016, %vm5908
  %vm6041 = vmand %vm5017, %vm5909
  %vm6042 = vmand %vm5018, %vm5910
  %vm6043 = vmand %vm5019, %vm5911
  %vm6044 = vmand %vm5020, %vm5912
  %vm6045 = vmand %vm5021, %vm5913
  %vm6046 = vmand %vm5022, %vm5914
  %vm6047 = vmand %vm5023, %vm5915
  %vm6048 = vmand %vm5024, %vm5916
  %vm6049 = vmand %vm5025, %vm5917
  %vm6050 = vmand %vm5026, %vm5918
  %vm6051 = vmand %vm5027, %vm5919
  %vm6052 = vmand %vm5028, %vm5920
  %vm6053 = vmand %vm5029, %vm5921
  %vm6054 = vmand %vm5030, %vm5922
  %vm6055 = vmand %vm5031, %vm5923
  %vm6056 = vmand %vm5032, %vm5924
  %vm6057 = vmand %vm5033, %vm5925
  %vm6058 = vmand %vm5034, %vm5926
  %vm6059 = vmand %vm5035, %vm5927
  %vm6060 = vmand %vm5036, %vm5928
  %vm6061 = vmand %vm5037, %vm5929
  %vm6062 = vmand %vm5038, %vm5930
  %vm6063 = vmand %vm5039, %vm5931
  %vm6064 = vmand %vm5040, %vm5932
  %vm6065 = vmand %vm5041, %vm5933
  %vm6066 = vmand %vm5042, %vm5934
  %vm6067 = vmand %vm5043, %vm5935
  %vm6068 = vmand %vm5044, %vm5936
  %vm6069 = vmand %vm5045, %vm5937
  %vm6070 = vmand %vm5046, %vm5938
  %vm6071 = vmand %vm5047, %vm5939
  %vm6072 = vmand %vm5048, %vm5940
  %vm6073 = vmand %vm5049, %vm5941
  %vm6074 = vmand %vm5050, %vm5942
  %vm6075 = vmand %vm5051, %vm5943
  %vm6076 = vmand %vm5052, %vm5944
  %vm6077 = vmand %vm5053, %vm5945
  %vm6078 = vmand %vm5054, %vm5946
  %vm6079 = vmand %vm5055, %vm5947
  %vm6080 = vmand %vm5056, %vm5948
  %vm6081 = vmand %vm5057, %vm5949
  %vm6082 = vmand %vm5058, %vm5950
  %vm6083 = vmand %vm5059, %vm5951
  %vm6084 = vmand %vm5060, %vm5952
  %vm6085 = vmand %vm5061, %vm5953
  %vm6086 = vmand %vm5062, %vm5954
  %vm6087 = vmand %vm5063, %vm5955
  %vm6088 = vmand %vm5064, %vm5956
  %vm6089 = vmand %vm5065, %vm5957
  %vm6090 = vmand %vm5066, %vm5958
  %vm6091 = vmand %vm5067, %vm5959
  %vm6092 = vmand %vm5068, %vm5960
  %vm6093 = vmand %vm5069, %vm5961
  %vm6094 = vmand %vm5070, %vm5962
  %vm6095 = vmand %vm5071, %vm5963
  %vm6096 = vmand %vm5072, %vm5964
  %vm6097 = vmand %vm5073, %vm5965
  %vm6098 = vmand %vm5074, %vm5966
  %vm6099 = vmand %vm5075, %vm5967
  %vm6100 = vmand %vm5076, %vm5968
  %vm6101 = vmand %vm5077, %vm5969
  %vm6102 = vmand %vm5078, %vm5970
  %vm6103 = vmand %vm5079, %vm5971
  %vm6104 = vmand %vm5080, %vm5972
  %vm6105 = vmand %vm5081, %vm5973
  %vm6106 = vmand %vm5082, %vm5974
  %vm6107 = vmand %vm5083, %vm5975
  %vm6108 = vmand %vm5084, %vm5976
  %vm6109 = vmand %vm5085, %vm5977
  %vm6110 = vmand %vm5086, %vm5978
  %vm6111 = vmand %vm5087, %vm5979
  %vm6112 = vmand %vm5088, %vm5980
  %vm6113 = vmand %vm5089, %vm5981
  %vm6114 = vmand %vm5090, %vm5982
  %vm6115 = vmand %vm5091, %vm5983
  %vm6116 = vmand %vm5092, %vm5984
  %vm6117 = vmand %vm5093, %vm5985
  %vm6118 = vmand %vm5094, %vm5986
  %vm6119 = vmand %vm5095, %vm5987
  %vm6120 = vmand %vm5096, %vm5988
  %vm6121 = vmand %vm5097, %vm5989
  %vm6122 = vmand %vm5098, %vm5990
  %vm6123 = vmand %vm5099, %vm5991
  %vm6124 = vmand %vm5100, %vm5992
  %vm6125 = vmand %vm5101, %vm5993
  %v6126 = vsel %vm5994, 1.0, 0.0
  %v6127 = vsel %vm5995, 1.0, 0.0
  %v6128 = vsel %vm5996, 1.0, 0.0
  %v6129 = vsel %vm5997, 1.0, 0.0
  %v6130 = vsel %vm5998, 1.0, 0.0
  %v6131 = vsel %vm5999, 1.0, 0.0
  %v6132 = vsel %vm6000, 1.0, 0.0
  %v6133 = vsel %vm6001, 1.0, 0.0
  %v6134 = vsel %vm6002, 1.0, 0.0
  %v6135 = vsel %vm6003, 1.0, 0.0
  %v6136 = vsel %vm6004, 1.0, 0.0
  %v6137 = vsel %vm6005, 1.0, 0.0
  %v6138 = vsel %vm6006, 1.0, 0.0
  %v6139 = vsel %vm6007, 1.0, 0.0
  %v6140 = vsel %vm6008, 1.0, 0.0
  %v6141 = vsel %vm6009, 1.0, 0.0
  %v6142 = vsel %vm6010, 1.0, 0.0
  %v6143 = vsel %vm6011, 1.0, 0.0
  %v6144 = vsel %vm6012, 1.0, 0.0
  %v6145 = vsel %vm6013, 1.0, 0.0
  %v6146 = vsel %vm6014, 1.0, 0.0
  %v6147 = vsel %vm6015, 1.0, 0.0
  %v6148 = vsel %vm6016, 1.0, 0.0
  %v6149 = vsel %vm6017, 1.0, 0.0
  %v6150 = vsel %vm6018, 1.0, 0.0
  %v6151 = vsel %vm6019, 1.0, 0.0
  %v6152 = vsel %vm6020, 1.0, 0.0
  %v6153 = vsel %vm6021, 1.0, 0.0
  %v6154 = vsel %vm6022, 1.0, 0.0
  %v6155 = vsel %vm6023, 1.0, 0.0
  %v6156 = vsel %vm6024, 1.0, 0.0
  %v6157 = vsel %vm6025, 1.0, 0.0
  %v6158 = vsel %vm6026, 1.0, 0.0
  %v6159 = vsel %vm6027, 1.0, 0.0
  %v6160 = vsel %vm6028, 1.0, 0.0
  %v6161 = vsel %vm6029, 1.0, 0.0
  %v6162 = vsel %vm6030, 1.0, 0.0
  %v6163 = vsel %vm6031, 1.0, 0.0
  %v6164 = vsel %vm6032, 1.0, 0.0
  %v6165 = vsel %vm6033, 1.0, 0.0
  %v6166 = vsel %vm6034, 1.0, 0.0
  %v6167 = vsel %vm6035, 1.0, 0.0
  %v6168 = vsel %vm6036, 1.0, 0.0
  %v6169 = vsel %vm6037, 1.0, 0.0
  %v6170 = vsel %vm6038, 1.0, 0.0
  %v6171 = vsel %vm6039, 1.0, 0.0
  %v6172 = vsel %vm6040, 1.0, 0.0
  %v6173 = vsel %vm6041, 1.0, 0.0
  %v6174 = vsel %vm6042, 1.0, 0.0
  %v6175 = vsel %vm6043, 1.0, 0.0
  %v6176 = vsel %vm6044, 1.0, 0.0
  %v6177 = vsel %vm6045, 1.0, 0.0
  %v6178 = vsel %vm6046, 1.0, 0.0
  %v6179 = vsel %vm6047, 1.0, 0.0
  %v6180 = vsel %vm6048, 1.0, 0.0
  %v6181 = vsel %vm6049, 1.0, 0.0
  %v6182 = vsel %vm6050, 1.0, 0.0
  %v6183 = vsel %vm6051, 1.0, 0.0
  %v6184 = vsel %vm6052, 1.0, 0.0
  %v6185 = vsel %vm6053, 1.0, 0.0
  %v6186 = vsel %vm6054, 1.0, 0.0
  %v6187 = vsel %vm6055, 1.0, 0.0
  %v6188 = vsel %vm6056, 1.0, 0.0
  %v6189 = vsel %vm6057, 1.0, 0.0
  %v6190 = vsel %vm6058, 1.0, 0.0
  %v6191 = vsel %vm6059, 1.0, 0.0
  %v6192 = vsel %vm6060, 1.0, 0.0
  %v6193 = vsel %vm6061, 1.0, 0.0
  %v6194 = vsel %vm6062, 1.0, 0.0
  %v6195 = vsel %vm6063, 1.0, 0.0
  %v6196 = vsel %vm6064, 1.0, 0.0
  %v6197 = vsel %vm6065, 1.0, 0.0
  %v6198 = vsel %vm6066, 1.0, 0.0
  %v6199 = vsel %vm6067, 1.0, 0.0
  %v6200 = vsel %vm6068, 1.0, 0.0
  %v6201 = vsel %vm6069, 1.0, 0.0
  %v6202 = vsel %vm6070, 1.0, 0.0
  %v6203 = vsel %vm6071, 1.0, 0.0
  %v6204 = vsel %vm6072, 1.0, 0.0
  %v6205 = vsel %vm6073, 1.0, 0.0
  %v6206 = vsel %vm6074, 1.0, 0.0
  %v6207 = vsel %vm6075, 1.0, 0.0
  %v6208 = vsel %vm6076, 1.0, 0.0
  %v6209 = vsel %vm6077, 1.0, 0.0
  %v6210 = vsel %vm6078, 1.0, 0.0
  %v6211 = vsel %vm6079, 1.0, 0.0
  %v6212 = vsel %vm6080, 1.0, 0.0
  %v6213 = vsel %vm6081, 1.0, 0.0
  %v6214 = vsel %vm6082, 1.0, 0.0
  %v6215 = vsel %vm6083, 1.0, 0.0
  %v6216 = vsel %vm6084, 1.0, 0.0
  %v6217 = vsel %vm6085, 1.0, 0.0
  %v6218 = vsel %vm6086, 1.0, 0.0
  %v6219 = vsel %vm6087, 1.0, 0.0
  %v6220 = vsel %vm6088, 1.0, 0.0
  %v6221 = vsel %vm6089, 1.0, 0.0
  %v6222 = vsel %vm6090, 1.0, 0.0
  %v6223 = vsel %vm6091, 1.0, 0.0
  %v6224 = vsel %vm6092, 1.0, 0.0
  %v6225 = vsel %vm6093, 1.0, 0.0
  %v6226 = vsel %vm6094, 1.0, 0.0
  %v6227 = vsel %vm6095, 1.0, 0.0
  %v6228 = vsel %vm6096, 1.0, 0.0
  %v6229 = vsel %vm6097, 1.0, 0.0
  %v6230 = vsel %vm6098, 1.0, 0.0
  %v6231 = vsel %vm6099, 1.0, 0.0
  %v6232 = vsel %vm6100, 1.0, 0.0
  %v6233 = vsel %vm6101, 1.0, 0.0
  %v6234 = vsel %vm6102, 1.0, 0.0
  %v6235 = vsel %vm6103, 1.0, 0.0
  %v6236 = vsel %vm6104, 1.0, 0.0
  %v6237 = vsel %vm6105, 1.0, 0.0
  %v6238 = vsel %vm6106, 1.0, 0.0
  %v6239 = vsel %vm6107, 1.0, 0.0
  %v6240 = vsel %vm6108, 1.0, 0.0
  %v6241 = vsel %vm6109, 1.0, 0.0
  %v6242 = vsel %vm6110, 1.0, 0.0
  %v6243 = vsel %vm6111, 1.0, 0.0
  %v6244 = vsel %vm6112, 1.0, 0.0
  %v6245 = vsel %vm6113, 1.0, 0.0
  %v6246 = vsel %vm6114, 1.0, 0.0
  %v6247 = vsel %vm6115, 1.0, 0.0
  %v6248 = vsel %vm6116, 1.0, 0.0
  %v6249 = vsel %vm6117, 1.0, 0.0
  %v6250 = vsel %vm6118, 1.0, 0.0
  %v6251 = vsel %vm6119, 1.0, 0.0
  %v6252 = vsel %vm6120, 1.0, 0.0
  %v6253 = vsel %vm6121, 1.0, 0.0
  %v6254 = vsel %vm6122, 1.0, 0.0
  %v6255 = vsel %vm6123, 1.0, 0.0
  %v6256 = vsel %vm6124, 1.0, 0.0
  %v6257 = vsel %vm6125, 1.0, 0.0
  %v6258 = vadd.f32 %v6126, %v6129
  %v6259 = vadd.f32 %v6258, %v6132
  %v6260 = vadd.f32 %v6259, %v6135
  %v6261 = vadd.f32 %v6260, %v6138
  %v6262 = vadd.f32 %v6261, %v6141
  %v6263 = vadd.f32 %v6262, %v6144
  %v6264 = vadd.f32 %v6263, %v6147
  %v6265 = vadd.f32 %v6264, %v6150
  %v6266 = vadd.f32 %v6265, %v6153
  %v6267 = vadd.f32 %v6266, %v6156
  %v6268 = vadd.f32 %v6267, %v6159
  %v6269 = vadd.f32 %v6268, %v6162
  %v6270 = vadd.f32 %v6269, %v6165
  %v6271 = vadd.f32 %v6270, %v6168
  %v6272 = vadd.f32 %v6271, %v6171
  %v6273 = vadd.f32 %v6272, %v6174
  %v6274 = vadd.f32 %v6273, %v6177
  %v6275 = vadd.f32 %v6274, %v6180
  %v6276 = vadd.f32 %v6275, %v6183
  %v6277 = vadd.f32 %v6276, %v6186
  %v6278 = vadd.f32 %v6277, %v6189
  %v6279 = vadd.f32 %v6278, %v6192
  %v6280 = vadd.f32 %v6279, %v6195
  %v6281 = vadd.f32 %v6280, %v6198
  %v6282 = vadd.f32 %v6281, %v6201
  %v6283 = vadd.f32 %v6282, %v6204
  %v6284 = vadd.f32 %v6283, %v6207
  %v6285 = vadd.f32 %v6284, %v6210
  %v6286 = vadd.f32 %v6285, %v6213
  %v6287 = vadd.f32 %v6286, %v6216
  %v6288 = vadd.f32 %v6287, %v6219
  %v6289 = vadd.f32 %v6288, %v6222
  %v6290 = vadd.f32 %v6289, %v6225
  %v6291 = vadd.f32 %v6290, %v6228
  %v6292 = vadd.f32 %v6291, %v6231
  %v6293 = vadd.f32 %v6292, %v6234
  %v6294 = vadd.f32 %v6293, %v6237
  %v6295 = vadd.f32 %v6294, %v6240
  %v6296 = vadd.f32 %v6295, %v6243
  %v6297 = vadd.f32 %v6296, %v6246
  %v6298 = vadd.f32 %v6297, %v6249
  %v6299 = vadd.f32 %v6298, %v6252
  %v6300 = vadd.f32 %v6299, %v6255
  %v6301 = vrot.slane %v6300, 4
  %v6302 = vadd.f32 %v6300, %v6301
  %v6303 = vrot.slane %v6302, 2
  %v6304 = vadd.f32 %v6302, %v6303
  %v6305 = vrot.slane %v6304, 1
  %v6306 = vadd.f32 %v6304, %v6305
  %v6307 = vadd.f32 %v6127, %v6130
  %v6308 = vadd.f32 %v6307, %v6133
  %v6309 = vadd.f32 %v6308, %v6136
  %v6310 = vadd.f32 %v6309, %v6139
  %v6311 = vadd.f32 %v6310, %v6142
  %v6312 = vadd.f32 %v6311, %v6145
  %v6313 = vadd.f32 %v6312, %v6148
  %v6314 = vadd.f32 %v6313, %v6151
  %v6315 = vadd.f32 %v6314, %v6154
  %v6316 = vadd.f32 %v6315, %v6157
  %v6317 = vadd.f32 %v6316, %v6160
  %v6318 = vadd.f32 %v6317, %v6163
  %v6319 = vadd.f32 %v6318, %v6166
  %v6320 = vadd.f32 %v6319, %v6169
  %v6321 = vadd.f32 %v6320, %v6172
  %v6322 = vadd.f32 %v6321, %v6175
  %v6323 = vadd.f32 %v6322, %v6178
  %v6324 = vadd.f32 %v6323, %v6181
  %v6325 = vadd.f32 %v6324, %v6184
  %v6326 = vadd.f32 %v6325, %v6187
  %v6327 = vadd.f32 %v6326, %v6190
  %v6328 = vadd.f32 %v6327, %v6193
  %v6329 = vadd.f32 %v6328, %v6196
  %v6330 = vadd.f32 %v6329, %v6199
  %v6331 = vadd.f32 %v6330, %v6202
  %v6332 = vadd.f32 %v6331, %v6205
  %v6333 = vadd.f32 %v6332, %v6208
  %v6334 = vadd.f32 %v6333, %v6211
  %v6335 = vadd.f32 %v6334, %v6214
  %v6336 = vadd.f32 %v6335, %v6217
  %v6337 = vadd.f32 %v6336, %v6220
  %v6338 = vadd.f32 %v6337, %v6223
  %v6339 = vadd.f32 %v6338, %v6226
  %v6340 = vadd.f32 %v6339, %v6229
  %v6341 = vadd.f32 %v6340, %v6232
  %v6342 = vadd.f32 %v6341, %v6235
  %v6343 = vadd.f32 %v6342, %v6238
  %v6344 = vadd.f32 %v6343, %v6241
  %v6345 = vadd.f32 %v6344, %v6244
  %v6346 = vadd.f32 %v6345, %v6247
  %v6347 = vadd.f32 %v6346, %v6250
  %v6348 = vadd.f32 %v6347, %v6253
  %v6349 = vadd.f32 %v6348, %v6256
  %v6350 = vrot.slane %v6349, 4
  %v6351 = vadd.f32 %v6349, %v6350
  %v6352 = vrot.slane %v6351, 2
  %v6353 = vadd.f32 %v6351, %v6352
  %v6354 = vrot.slane %v6353, 1
  %v6355 = vadd.f32 %v6353, %v6354
  %v6356 = vsel %vm886, %v6128, 0.0
  %v6357 = vsel %vm886, %v6131, 0.0
  %v6358 = vadd.f32 %v6356, %v6357
  %v6359 = vsel %vm886, %v6134, 0.0
  %v6360 = vadd.f32 %v6358, %v6359
  %v6361 = vsel %vm886, %v6137, 0.0
  %v6362 = vadd.f32 %v6360, %v6361
  %v6363 = vsel %vm886, %v6140, 0.0
  %v6364 = vadd.f32 %v6362, %v6363
  %v6365 = vsel %vm886, %v6143, 0.0
  %v6366 = vadd.f32 %v6364, %v6365
  %v6367 = vsel %vm886, %v6146, 0.0
  %v6368 = vadd.f32 %v6366, %v6367
  %v6369 = vsel %vm886, %v6149, 0.0
  %v6370 = vadd.f32 %v6368, %v6369
  %v6371 = vsel %vm886, %v6152, 0.0
  %v6372 = vadd.f32 %v6370, %v6371
  %v6373 = vsel %vm886, %v6155, 0.0
  %v6374 = vadd.f32 %v6372, %v6373
  %v6375 = vsel %vm886, %v6158, 0.0
  %v6376 = vadd.f32 %v6374, %v6375
  %v6377 = vsel %vm886, %v6161, 0.0
  %v6378 = vadd.f32 %v6376, %v6377
  %v6379 = vsel %vm886, %v6164, 0.0
  %v6380 = vadd.f32 %v6378, %v6379
  %v6381 = vsel %vm886, %v6167, 0.0
  %v6382 = vadd.f32 %v6380, %v6381
  %v6383 = vsel %vm886, %v6170, 0.0
  %v6384 = vadd.f32 %v6382, %v6383
  %v6385 = vsel %vm886, %v6173, 0.0
  %v6386 = vadd.f32 %v6384, %v6385
  %v6387 = vsel %vm886, %v6176, 0.0
  %v6388 = vadd.f32 %v6386, %v6387
  %v6389 = vsel %vm886, %v6179, 0.0
  %v6390 = vadd.f32 %v6388, %v6389
  %v6391 = vsel %vm886, %v6182, 0.0
  %v6392 = vadd.f32 %v6390, %v6391
  %v6393 = vsel %vm886, %v6185, 0.0
  %v6394 = vadd.f32 %v6392, %v6393
  %v6395 = vsel %vm886, %v6188, 0.0
  %v6396 = vadd.f32 %v6394, %v6395
  %v6397 = vsel %vm886, %v6191, 0.0
  %v6398 = vadd.f32 %v6396, %v6397
  %v6399 = vsel %vm886, %v6194, 0.0
  %v6400 = vadd.f32 %v6398, %v6399
  %v6401 = vsel %vm886, %v6197, 0.0
  %v6402 = vadd.f32 %v6400, %v6401
  %v6403 = vsel %vm886, %v6200, 0.0
  %v6404 = vadd.f32 %v6402, %v6403
  %v6405 = vsel %vm886, %v6203, 0.0
  %v6406 = vadd.f32 %v6404, %v6405
  %v6407 = vsel %vm886, %v6206, 0.0
  %v6408 = vadd.f32 %v6406, %v6407
  %v6409 = vsel %vm886, %v6209, 0.0
  %v6410 = vadd.f32 %v6408, %v6409
  %v6411 = vsel %vm886, %v6212, 0.0
  %v6412 = vadd.f32 %v6410, %v6411
  %v6413 = vsel %vm886, %v6215, 0.0
  %v6414 = vadd.f32 %v6412, %v6413
  %v6415 = vsel %vm886, %v6218, 0.0
  %v6416 = vadd.f32 %v6414, %v6415
  %v6417 = vsel %vm886, %v6221, 0.0
  %v6418 = vadd.f32 %v6416, %v6417
  %v6419 = vsel %vm886, %v6224, 0.0
  %v6420 = vadd.f32 %v6418, %v6419
  %v6421 = vsel %vm886, %v6227, 0.0
  %v6422 = vadd.f32 %v6420, %v6421
  %v6423 = vsel %vm886, %v6230, 0.0
  %v6424 = vadd.f32 %v6422, %v6423
  %v6425 = vsel %vm886, %v6233, 0.0
  %v6426 = vadd.f32 %v6424, %v6425
  %v6427 = vsel %vm886, %v6236, 0.0
  %v6428 = vadd.f32 %v6426, %v6427
  %v6429 = vsel %vm886, %v6239, 0.0
  %v6430 = vadd.f32 %v6428, %v6429
  %v6431 = vsel %vm886, %v6242, 0.0
  %v6432 = vadd.f32 %v6430, %v6431
  %v6433 = vsel %vm886, %v6245, 0.0
  %v6434 = vadd.f32 %v6432, %v6433
  %v6435 = vsel %vm886, %v6248, 0.0
  %v6436 = vadd.f32 %v6434, %v6435
  %v6437 = vsel %vm886, %v6251, 0.0
  %v6438 = vadd.f32 %v6436, %v6437
  %v6439 = vsel %vm886, %v6254, 0.0
  %v6440 = vadd.f32 %v6438, %v6439
  %v6441 = vsel %vm886, %v6257, 0.0
  %v6442 = vadd.f32 %v6440, %v6441
  %v6443 = vrot.slane %v6442, 4
  %v6444 = vadd.f32 %v6442, %v6443
  %v6445 = vrot.slane %v6444, 2
  %v6446 = vadd.f32 %v6444, %v6445
  %v6447 = vrot.slane %v6446, 1
  %v6448 = vadd.f32 %v6446, %v6447
  %v6449 = vld [vmem:[%s12] sm:$0xff]
  %v6450 = vld [vmem:[%s12 + $0x8] sm:$0xff]
  %v6451 = vld [vmem:[%s12 + $0x10] sm:$0xff]
  %v6452 = vld [vmem:[%s12 + $0x18] sm:$0xff]
  %v6453 = vld [vmem:[%s12 + $0x20] sm:$0xff]
  %v6454 = vld [vmem:[%s12 + $0x28] sm:$0xff]
  %v6455 = vld [vmem:[%s12 + $0x30] sm:$0xff]
  %v6456 = vld [vmem:[%s12 + $0x38] sm:$0xff]
  %v6457 = vld [vmem:[%s12 + $0x40] sm:$0xff]
  %v6458 = vld [vmem:[%s12 + $0x48] sm:$0xff]
  %v6459 = vld [vmem:[%s12 + $0x50] sm:$0xff]
  %v6460 = vld [vmem:[%s12 + $0x58] sm:$0xff]
  %v6461 = vld [vmem:[%s12 + $0x60] sm:$0xff]
  %v6462 = vld [vmem:[%s12 + $0x68] sm:$0xff]
  %v6463 = vld [vmem:[%s12 + $0x70] sm:$0xff]
  %v6464 = vld [vmem:[%s12 + $0x78] sm:$0xff]
  %v6465 = vld [vmem:[%s12 + $0x80] sm:$0xff]
  %v6466 = vld [vmem:[%s12 + $0x88] sm:$0xff]
  %v6467 = vld [vmem:[%s12 + $0x90] sm:$0xff]
  %v6468 = vld [vmem:[%s12 + $0x98] sm:$0xff]
  %v6469 = vld [vmem:[%s12 + $0xa0] sm:$0xff]
  %v6470 = vld [vmem:[%s12 + $0xa8] sm:$0xff]
  %v6471 = vld [vmem:[%s12 + $0xb0] sm:$0xff]
  %v6472 = vld [vmem:[%s12 + $0xb8] sm:$0xff]
  %v6473 = vld [vmem:[%s12 + $0xc0] sm:$0xff]
  %v6474 = vld [vmem:[%s12 + $0xc8] sm:$0xff]
  %v6475 = vld [vmem:[%s12 + $0xd0] sm:$0xff]
  %v6476 = vld [vmem:[%s12 + $0xd8] sm:$0xff]
  %v6477 = vld [vmem:[%s12 + $0xe0] sm:$0xff]
  %v6478 = vld [vmem:[%s12 + $0xe8] sm:$0xff]
  %v6479 = vld [vmem:[%s12 + $0xf0] sm:$0xff]
  %v6480 = vld [vmem:[%s12 + $0xf8] sm:$0xff]
  %v6481 = vld [vmem:[%s12 + $0x100] sm:$0xff]
  %6483 = vset.pattern.permute.xlu0 0
  %6484 = vperm.xlu0 %6483, %v6449
  %v6485 = vpop.permute.xlu0 %6484
  %6488 = vset.pattern.permute.xlu0 0
  %6489 = vperm.xlu0 %6488, %v6450
  %v6490 = vpop.permute.xlu0 %6489
  %6493 = vset.pattern.permute.xlu0 0
  %6494 = vperm.xlu0 %6493, %v6451
  %v6495 = vpop.permute.xlu0 %6494
  %6498 = vset.pattern.permute.xlu0 0
  %6499 = vperm.xlu0 %6498, %v6452
  %v6500 = vpop.permute.xlu0 %6499
  %6503 = vset.pattern.permute.xlu0 0
  %6504 = vperm.xlu0 %6503, %v6453
  %v6505 = vpop.permute.xlu0 %6504
  %6508 = vset.pattern.permute.xlu0 0
  %6509 = vperm.xlu0 %6508, %v6454
  %v6510 = vpop.permute.xlu0 %6509
  %6513 = vset.pattern.permute.xlu0 0
  %6514 = vperm.xlu0 %6513, %v6455
  %v6515 = vpop.permute.xlu0 %6514
  %6518 = vset.pattern.permute.xlu0 0
  %6519 = vperm.xlu0 %6518, %v6456
  %v6520 = vpop.permute.xlu0 %6519
  %6523 = vset.pattern.permute.xlu0 0
  %6524 = vperm.xlu0 %6523, %v6457
  %v6525 = vpop.permute.xlu0 %6524
  %6528 = vset.pattern.permute.xlu0 0
  %6529 = vperm.xlu0 %6528, %v6458
  %v6530 = vpop.permute.xlu0 %6529
  %6533 = vset.pattern.permute.xlu0 0
  %6534 = vperm.xlu0 %6533, %v6459
  %v6535 = vpop.permute.xlu0 %6534
  %6538 = vset.pattern.permute.xlu0 0
  %6539 = vperm.xlu0 %6538, %v6460
  %v6540 = vpop.permute.xlu0 %6539
  %6543 = vset.pattern.permute.xlu0 0
  %6544 = vperm.xlu0 %6543, %v6461
  %v6545 = vpop.permute.xlu0 %6544
  %6548 = vset.pattern.permute.xlu0 0
  %6549 = vperm.xlu0 %6548, %v6462
  %v6550 = vpop.permute.xlu0 %6549
  %6553 = vset.pattern.permute.xlu0 0
  %6554 = vperm.xlu0 %6553, %v6463
  %v6555 = vpop.permute.xlu0 %6554
  %6558 = vset.pattern.permute.xlu0 0
  %6559 = vperm.xlu0 %6558, %v6464
  %v6560 = vpop.permute.xlu0 %6559
  %6563 = vset.pattern.permute.xlu0 0
  %6564 = vperm.xlu0 %6563, %v6465
  %v6565 = vpop.permute.xlu0 %6564
  %6568 = vset.pattern.permute.xlu0 0
  %6569 = vperm.xlu0 %6568, %v6466
  %v6570 = vpop.permute.xlu0 %6569
  %6573 = vset.pattern.permute.xlu0 0
  %6574 = vperm.xlu0 %6573, %v6467
  %v6575 = vpop.permute.xlu0 %6574
  %6578 = vset.pattern.permute.xlu0 0
  %6579 = vperm.xlu0 %6578, %v6468
  %v6580 = vpop.permute.xlu0 %6579
  %6583 = vset.pattern.permute.xlu0 0
  %6584 = vperm.xlu0 %6583, %v6469
  %v6585 = vpop.permute.xlu0 %6584
  %6588 = vset.pattern.permute.xlu0 0
  %6589 = vperm.xlu0 %6588, %v6470
  %v6590 = vpop.permute.xlu0 %6589
  %6593 = vset.pattern.permute.xlu0 0
  %6594 = vperm.xlu0 %6593, %v6471
  %v6595 = vpop.permute.xlu0 %6594
  %6598 = vset.pattern.permute.xlu0 0
  %6599 = vperm.xlu0 %6598, %v6472
  %v6600 = vpop.permute.xlu0 %6599
  %6603 = vset.pattern.permute.xlu0 0
  %6604 = vperm.xlu0 %6603, %v6473
  %v6605 = vpop.permute.xlu0 %6604
  %6608 = vset.pattern.permute.xlu0 0
  %6609 = vperm.xlu0 %6608, %v6474
  %v6610 = vpop.permute.xlu0 %6609
  %6613 = vset.pattern.permute.xlu0 0
  %6614 = vperm.xlu0 %6613, %v6475
  %v6615 = vpop.permute.xlu0 %6614
  %6618 = vset.pattern.permute.xlu0 0
  %6619 = vperm.xlu0 %6618, %v6476
  %v6620 = vpop.permute.xlu0 %6619
  %6623 = vset.pattern.permute.xlu0 0
  %6624 = vperm.xlu0 %6623, %v6477
  %v6625 = vpop.permute.xlu0 %6624
  %6628 = vset.pattern.permute.xlu0 0
  %6629 = vperm.xlu0 %6628, %v6478
  %v6630 = vpop.permute.xlu0 %6629
  %6633 = vset.pattern.permute.xlu0 0
  %6634 = vperm.xlu0 %6633, %v6479
  %v6635 = vpop.permute.xlu0 %6634
  %6638 = vset.pattern.permute.xlu0 0
  %6639 = vperm.xlu0 %6638, %v6480
  %v6640 = vpop.permute.xlu0 %6639
  %6643 = vset.pattern.permute.xlu0 0
  %6644 = vperm.xlu0 %6643, %v6481
  %v6645 = vpop.permute.xlu0 %6644
  %vm6647 = vcmp.eq.f32.partialorder %v6485, %v4958
  %vm6648 = vcmp.eq.f32.partialorder %v6485, %v4962
  %vm6649 = vcmp.eq.f32.partialorder %v6485, %v4966
  %vm6650 = vcmp.eq.f32.partialorder %v6490, %v4958
  %vm6651 = vcmp.eq.f32.partialorder %v6490, %v4962
  %vm6652 = vcmp.eq.f32.partialorder %v6490, %v4966
  %vm6653 = vcmp.eq.f32.partialorder %v6495, %v4958
  %vm6654 = vcmp.eq.f32.partialorder %v6495, %v4962
  %vm6655 = vcmp.eq.f32.partialorder %v6495, %v4966
  %vm6656 = vcmp.eq.f32.partialorder %v6500, %v4958
  %vm6657 = vcmp.eq.f32.partialorder %v6500, %v4962
  %vm6658 = vcmp.eq.f32.partialorder %v6500, %v4966
  %vm6659 = vcmp.eq.f32.partialorder %v6505, %v4958
  %vm6660 = vcmp.eq.f32.partialorder %v6505, %v4962
  %vm6661 = vcmp.eq.f32.partialorder %v6505, %v4966
  %vm6662 = vcmp.eq.f32.partialorder %v6510, %v4958
  %vm6663 = vcmp.eq.f32.partialorder %v6510, %v4962
  %vm6664 = vcmp.eq.f32.partialorder %v6510, %v4966
  %vm6665 = vcmp.eq.f32.partialorder %v6515, %v4958
  %vm6666 = vcmp.eq.f32.partialorder %v6515, %v4962
  %vm6667 = vcmp.eq.f32.partialorder %v6515, %v4966
  %vm6668 = vcmp.eq.f32.partialorder %v6520, %v4958
  %vm6669 = vcmp.eq.f32.partialorder %v6520, %v4962
  %vm6670 = vcmp.eq.f32.partialorder %v6520, %v4966
  %vm6671 = vcmp.eq.f32.partialorder %v6525, %v4958
  %vm6672 = vcmp.eq.f32.partialorder %v6525, %v4962
  %vm6673 = vcmp.eq.f32.partialorder %v6525, %v4966
  %vm6674 = vcmp.eq.f32.partialorder %v6530, %v4958
  %vm6675 = vcmp.eq.f32.partialorder %v6530, %v4962
  %vm6676 = vcmp.eq.f32.partialorder %v6530, %v4966
  %vm6677 = vcmp.eq.f32.partialorder %v6535, %v4958
  %vm6678 = vcmp.eq.f32.partialorder %v6535, %v4962
  %vm6679 = vcmp.eq.f32.partialorder %v6535, %v4966
  %vm6680 = vcmp.eq.f32.partialorder %v6540, %v4958
  %vm6681 = vcmp.eq.f32.partialorder %v6540, %v4962
  %vm6682 = vcmp.eq.f32.partialorder %v6540, %v4966
  %vm6683 = vcmp.eq.f32.partialorder %v6545, %v4958
  %vm6684 = vcmp.eq.f32.partialorder %v6545, %v4962
  %vm6685 = vcmp.eq.f32.partialorder %v6545, %v4966
  %vm6686 = vcmp.eq.f32.partialorder %v6550, %v4958
  %vm6687 = vcmp.eq.f32.partialorder %v6550, %v4962
  %vm6688 = vcmp.eq.f32.partialorder %v6550, %v4966
  %vm6689 = vcmp.eq.f32.partialorder %v6555, %v4958
  %vm6690 = vcmp.eq.f32.partialorder %v6555, %v4962
  %vm6691 = vcmp.eq.f32.partialorder %v6555, %v4966
  %vm6692 = vcmp.eq.f32.partialorder %v6560, %v4958
  %vm6693 = vcmp.eq.f32.partialorder %v6560, %v4962
  %vm6694 = vcmp.eq.f32.partialorder %v6560, %v4966
  %vm6695 = vcmp.eq.f32.partialorder %v6565, %v4958
  %vm6696 = vcmp.eq.f32.partialorder %v6565, %v4962
  %vm6697 = vcmp.eq.f32.partialorder %v6565, %v4966
  %vm6698 = vcmp.eq.f32.partialorder %v6570, %v4958
  %vm6699 = vcmp.eq.f32.partialorder %v6570, %v4962
  %vm6700 = vcmp.eq.f32.partialorder %v6570, %v4966
  %vm6701 = vcmp.eq.f32.partialorder %v6575, %v4958
  %vm6702 = vcmp.eq.f32.partialorder %v6575, %v4962
  %vm6703 = vcmp.eq.f32.partialorder %v6575, %v4966
  %vm6704 = vcmp.eq.f32.partialorder %v6580, %v4958
  %vm6705 = vcmp.eq.f32.partialorder %v6580, %v4962
  %vm6706 = vcmp.eq.f32.partialorder %v6580, %v4966
  %vm6707 = vcmp.eq.f32.partialorder %v6585, %v4958
  %vm6708 = vcmp.eq.f32.partialorder %v6585, %v4962
  %vm6709 = vcmp.eq.f32.partialorder %v6585, %v4966
  %vm6710 = vcmp.eq.f32.partialorder %v6590, %v4958
  %vm6711 = vcmp.eq.f32.partialorder %v6590, %v4962
  %vm6712 = vcmp.eq.f32.partialorder %v6590, %v4966
  %vm6713 = vcmp.eq.f32.partialorder %v6595, %v4958
  %vm6714 = vcmp.eq.f32.partialorder %v6595, %v4962
  %vm6715 = vcmp.eq.f32.partialorder %v6595, %v4966
  %vm6716 = vcmp.eq.f32.partialorder %v6600, %v4958
  %vm6717 = vcmp.eq.f32.partialorder %v6600, %v4962
  %vm6718 = vcmp.eq.f32.partialorder %v6600, %v4966
  %vm6719 = vcmp.eq.f32.partialorder %v6605, %v4958
  %vm6720 = vcmp.eq.f32.partialorder %v6605, %v4962
  %vm6721 = vcmp.eq.f32.partialorder %v6605, %v4966
  %vm6722 = vcmp.eq.f32.partialorder %v6610, %v4958
  %vm6723 = vcmp.eq.f32.partialorder %v6610, %v4962
  %vm6724 = vcmp.eq.f32.partialorder %v6610, %v4966
  %vm6725 = vcmp.eq.f32.partialorder %v6615, %v4958
  %vm6726 = vcmp.eq.f32.partialorder %v6615, %v4962
  %vm6727 = vcmp.eq.f32.partialorder %v6615, %v4966
  %vm6728 = vcmp.eq.f32.partialorder %v6620, %v4958
  %vm6729 = vcmp.eq.f32.partialorder %v6620, %v4962
  %vm6730 = vcmp.eq.f32.partialorder %v6620, %v4966
  %vm6731 = vcmp.eq.f32.partialorder %v6625, %v4958
  %vm6732 = vcmp.eq.f32.partialorder %v6625, %v4962
  %vm6733 = vcmp.eq.f32.partialorder %v6625, %v4966
  %vm6734 = vcmp.eq.f32.partialorder %v6630, %v4958
  %vm6735 = vcmp.eq.f32.partialorder %v6630, %v4962
  %vm6736 = vcmp.eq.f32.partialorder %v6630, %v4966
  %vm6737 = vcmp.eq.f32.partialorder %v6635, %v4958
  %vm6738 = vcmp.eq.f32.partialorder %v6635, %v4962
  %vm6739 = vcmp.eq.f32.partialorder %v6635, %v4966
  %vm6740 = vcmp.eq.f32.partialorder %v6640, %v4958
  %vm6741 = vcmp.eq.f32.partialorder %v6640, %v4962
  %vm6742 = vcmp.eq.f32.partialorder %v6640, %v4966
  %vm6743 = vcmp.eq.f32.partialorder %v6645, %v4958
  %vm6744 = vcmp.eq.f32.partialorder %v6645, %v4962
  %vm6745 = vcmp.eq.f32.partialorder %v6645, %v4966
  %v6746 = vld [vmem:[%s13] sm:$0xff]
  %v6747 = vld [vmem:[%s13 + $0x8] sm:$0xff]
  %v6748 = vld [vmem:[%s13 + $0x10] sm:$0xff]
  %v6749 = vld [vmem:[%s13 + $0x18] sm:$0xff]
  %v6750 = vld [vmem:[%s13 + $0x20] sm:$0xff]
  %v6751 = vld [vmem:[%s13 + $0x28] sm:$0xff]
  %v6752 = vld [vmem:[%s13 + $0x30] sm:$0xff]
  %v6753 = vld [vmem:[%s13 + $0x38] sm:$0xff]
  %v6754 = vld [vmem:[%s13 + $0x40] sm:$0xff]
  %v6755 = vld [vmem:[%s13 + $0x48] sm:$0xff]
  %v6756 = vld [vmem:[%s13 + $0x50] sm:$0xff]
  %v6757 = vld [vmem:[%s13 + $0x58] sm:$0xff]
  %v6758 = vld [vmem:[%s13 + $0x60] sm:$0xff]
  %v6759 = vld [vmem:[%s13 + $0x68] sm:$0xff]
  %v6760 = vld [vmem:[%s13 + $0x70] sm:$0xff]
  %v6761 = vld [vmem:[%s13 + $0x78] sm:$0xff]
  %v6762 = vld [vmem:[%s13 + $0x80] sm:$0xff]
  %v6763 = vld [vmem:[%s13 + $0x88] sm:$0xff]
  %v6764 = vld [vmem:[%s13 + $0x90] sm:$0xff]
  %v6765 = vld [vmem:[%s13 + $0x98] sm:$0xff]
  %v6766 = vld [vmem:[%s13 + $0xa0] sm:$0xff]
  %v6767 = vld [vmem:[%s13 + $0xa8] sm:$0xff]
  %v6768 = vld [vmem:[%s13 + $0xb0] sm:$0xff]
  %v6769 = vld [vmem:[%s13 + $0xb8] sm:$0xff]
  %v6770 = vld [vmem:[%s13 + $0xc0] sm:$0xff]
  %v6771 = vld [vmem:[%s13 + $0xc8] sm:$0xff]
  %v6772 = vld [vmem:[%s13 + $0xd0] sm:$0xff]
  %v6773 = vld [vmem:[%s13 + $0xd8] sm:$0xff]
  %v6774 = vld [vmem:[%s13 + $0xe0] sm:$0xff]
  %v6775 = vld [vmem:[%s13 + $0xe8] sm:$0xff]
  %v6776 = vld [vmem:[%s13 + $0xf0] sm:$0xff]
  %v6777 = vld [vmem:[%s13 + $0xf8] sm:$0xff]
  %v6778 = vld [vmem:[%s13 + $0x100] sm:$0xff]
  %6780 = vset.pattern.permute.xlu0 0
  %6781 = vperm.xlu0 %6780, %v6746
  %v6782 = vpop.permute.xlu0 %6781
  %6785 = vset.pattern.permute.xlu0 0
  %6786 = vperm.xlu0 %6785, %v6747
  %v6787 = vpop.permute.xlu0 %6786
  %6790 = vset.pattern.permute.xlu0 0
  %6791 = vperm.xlu0 %6790, %v6748
  %v6792 = vpop.permute.xlu0 %6791
  %6795 = vset.pattern.permute.xlu0 0
  %6796 = vperm.xlu0 %6795, %v6749
  %v6797 = vpop.permute.xlu0 %6796
  %6800 = vset.pattern.permute.xlu0 0
  %6801 = vperm.xlu0 %6800, %v6750
  %v6802 = vpop.permute.xlu0 %6801
  %6805 = vset.pattern.permute.xlu0 0
  %6806 = vperm.xlu0 %6805, %v6751
  %v6807 = vpop.permute.xlu0 %6806
  %6810 = vset.pattern.permute.xlu0 0
  %6811 = vperm.xlu0 %6810, %v6752
  %v6812 = vpop.permute.xlu0 %6811
  %6815 = vset.pattern.permute.xlu0 0
  %6816 = vperm.xlu0 %6815, %v6753
  %v6817 = vpop.permute.xlu0 %6816
  %6820 = vset.pattern.permute.xlu0 0
  %6821 = vperm.xlu0 %6820, %v6754
  %v6822 = vpop.permute.xlu0 %6821
  %6825 = vset.pattern.permute.xlu0 0
  %6826 = vperm.xlu0 %6825, %v6755
  %v6827 = vpop.permute.xlu0 %6826
  %6830 = vset.pattern.permute.xlu0 0
  %6831 = vperm.xlu0 %6830, %v6756
  %v6832 = vpop.permute.xlu0 %6831
  %6835 = vset.pattern.permute.xlu0 0
  %6836 = vperm.xlu0 %6835, %v6757
  %v6837 = vpop.permute.xlu0 %6836
  %6840 = vset.pattern.permute.xlu0 0
  %6841 = vperm.xlu0 %6840, %v6758
  %v6842 = vpop.permute.xlu0 %6841
  %6845 = vset.pattern.permute.xlu0 0
  %6846 = vperm.xlu0 %6845, %v6759
  %v6847 = vpop.permute.xlu0 %6846
  %6850 = vset.pattern.permute.xlu0 0
  %6851 = vperm.xlu0 %6850, %v6760
  %v6852 = vpop.permute.xlu0 %6851
  %6855 = vset.pattern.permute.xlu0 0
  %6856 = vperm.xlu0 %6855, %v6761
  %v6857 = vpop.permute.xlu0 %6856
  %6860 = vset.pattern.permute.xlu0 0
  %6861 = vperm.xlu0 %6860, %v6762
  %v6862 = vpop.permute.xlu0 %6861
  %6865 = vset.pattern.permute.xlu0 0
  %6866 = vperm.xlu0 %6865, %v6763
  %v6867 = vpop.permute.xlu0 %6866
  %6870 = vset.pattern.permute.xlu0 0
  %6871 = vperm.xlu0 %6870, %v6764
  %v6872 = vpop.permute.xlu0 %6871
  %6875 = vset.pattern.permute.xlu0 0
  %6876 = vperm.xlu0 %6875, %v6765
  %v6877 = vpop.permute.xlu0 %6876
  %6880 = vset.pattern.permute.xlu0 0
  %6881 = vperm.xlu0 %6880, %v6766
  %v6882 = vpop.permute.xlu0 %6881
  %6885 = vset.pattern.permute.xlu0 0
  %6886 = vperm.xlu0 %6885, %v6767
  %v6887 = vpop.permute.xlu0 %6886
  %6890 = vset.pattern.permute.xlu0 0
  %6891 = vperm.xlu0 %6890, %v6768
  %v6892 = vpop.permute.xlu0 %6891
  %6895 = vset.pattern.permute.xlu0 0
  %6896 = vperm.xlu0 %6895, %v6769
  %v6897 = vpop.permute.xlu0 %6896
  %6900 = vset.pattern.permute.xlu0 0
  %6901 = vperm.xlu0 %6900, %v6770
  %v6902 = vpop.permute.xlu0 %6901
  %6905 = vset.pattern.permute.xlu0 0
  %6906 = vperm.xlu0 %6905, %v6771
  %v6907 = vpop.permute.xlu0 %6906
  %6910 = vset.pattern.permute.xlu0 0
  %6911 = vperm.xlu0 %6910, %v6772
  %v6912 = vpop.permute.xlu0 %6911
  %6915 = vset.pattern.permute.xlu0 0
  %6916 = vperm.xlu0 %6915, %v6773
  %v6917 = vpop.permute.xlu0 %6916
  %6920 = vset.pattern.permute.xlu0 0
  %6921 = vperm.xlu0 %6920, %v6774
  %v6922 = vpop.permute.xlu0 %6921
  %6925 = vset.pattern.permute.xlu0 0
  %6926 = vperm.xlu0 %6925, %v6775
  %v6927 = vpop.permute.xlu0 %6926
  %6930 = vset.pattern.permute.xlu0 0
  %6931 = vperm.xlu0 %6930, %v6776
  %v6932 = vpop.permute.xlu0 %6931
  %6935 = vset.pattern.permute.xlu0 0
  %6936 = vperm.xlu0 %6935, %v6777
  %v6937 = vpop.permute.xlu0 %6936
  %6940 = vset.pattern.permute.xlu0 0
  %6941 = vperm.xlu0 %6940, %v6778
  %v6942 = vpop.permute.xlu0 %6941
  %vm6944 = vcmp.eq.f32.partialorder %v6782, %v6306
  %vm6945 = vcmp.eq.f32.partialorder %v6782, %v6355
  %vm6946 = vcmp.eq.f32.partialorder %v6782, %v6448
  %vm6947 = vcmp.eq.f32.partialorder %v6787, %v6306
  %vm6948 = vcmp.eq.f32.partialorder %v6787, %v6355
  %vm6949 = vcmp.eq.f32.partialorder %v6787, %v6448
  %vm6950 = vcmp.eq.f32.partialorder %v6792, %v6306
  %vm6951 = vcmp.eq.f32.partialorder %v6792, %v6355
  %vm6952 = vcmp.eq.f32.partialorder %v6792, %v6448
  %vm6953 = vcmp.eq.f32.partialorder %v6797, %v6306
  %vm6954 = vcmp.eq.f32.partialorder %v6797, %v6355
  %vm6955 = vcmp.eq.f32.partialorder %v6797, %v6448
  %vm6956 = vcmp.eq.f32.partialorder %v6802, %v6306
  %vm6957 = vcmp.eq.f32.partialorder %v6802, %v6355
  %vm6958 = vcmp.eq.f32.partialorder %v6802, %v6448
  %vm6959 = vcmp.eq.f32.partialorder %v6807, %v6306
  %vm6960 = vcmp.eq.f32.partialorder %v6807, %v6355
  %vm6961 = vcmp.eq.f32.partialorder %v6807, %v6448
  %vm6962 = vcmp.eq.f32.partialorder %v6812, %v6306
  %vm6963 = vcmp.eq.f32.partialorder %v6812, %v6355
  %vm6964 = vcmp.eq.f32.partialorder %v6812, %v6448
  %vm6965 = vcmp.eq.f32.partialorder %v6817, %v6306
  %vm6966 = vcmp.eq.f32.partialorder %v6817, %v6355
  %vm6967 = vcmp.eq.f32.partialorder %v6817, %v6448
  %vm6968 = vcmp.eq.f32.partialorder %v6822, %v6306
  %vm6969 = vcmp.eq.f32.partialorder %v6822, %v6355
  %vm6970 = vcmp.eq.f32.partialorder %v6822, %v6448
  %vm6971 = vcmp.eq.f32.partialorder %v6827, %v6306
  %vm6972 = vcmp.eq.f32.partialorder %v6827, %v6355
  %vm6973 = vcmp.eq.f32.partialorder %v6827, %v6448
  %vm6974 = vcmp.eq.f32.partialorder %v6832, %v6306
  %vm6975 = vcmp.eq.f32.partialorder %v6832, %v6355
  %vm6976 = vcmp.eq.f32.partialorder %v6832, %v6448
  %vm6977 = vcmp.eq.f32.partialorder %v6837, %v6306
  %vm6978 = vcmp.eq.f32.partialorder %v6837, %v6355
  %vm6979 = vcmp.eq.f32.partialorder %v6837, %v6448
  %vm6980 = vcmp.eq.f32.partialorder %v6842, %v6306
  %vm6981 = vcmp.eq.f32.partialorder %v6842, %v6355
  %vm6982 = vcmp.eq.f32.partialorder %v6842, %v6448
  %vm6983 = vcmp.eq.f32.partialorder %v6847, %v6306
  %vm6984 = vcmp.eq.f32.partialorder %v6847, %v6355
  %vm6985 = vcmp.eq.f32.partialorder %v6847, %v6448
  %vm6986 = vcmp.eq.f32.partialorder %v6852, %v6306
  %vm6987 = vcmp.eq.f32.partialorder %v6852, %v6355
  %vm6988 = vcmp.eq.f32.partialorder %v6852, %v6448
  %vm6989 = vcmp.eq.f32.partialorder %v6857, %v6306
  %vm6990 = vcmp.eq.f32.partialorder %v6857, %v6355
  %vm6991 = vcmp.eq.f32.partialorder %v6857, %v6448
  %vm6992 = vcmp.eq.f32.partialorder %v6862, %v6306
  %vm6993 = vcmp.eq.f32.partialorder %v6862, %v6355
  %vm6994 = vcmp.eq.f32.partialorder %v6862, %v6448
  %vm6995 = vcmp.eq.f32.partialorder %v6867, %v6306
  %vm6996 = vcmp.eq.f32.partialorder %v6867, %v6355
  %vm6997 = vcmp.eq.f32.partialorder %v6867, %v6448
  %vm6998 = vcmp.eq.f32.partialorder %v6872, %v6306
  %vm6999 = vcmp.eq.f32.partialorder %v6872, %v6355
  %vm7000 = vcmp.eq.f32.partialorder %v6872, %v6448
  %vm7001 = vcmp.eq.f32.partialorder %v6877, %v6306
  %vm7002 = vcmp.eq.f32.partialorder %v6877, %v6355
  %vm7003 = vcmp.eq.f32.partialorder %v6877, %v6448
  %vm7004 = vcmp.eq.f32.partialorder %v6882, %v6306
  %vm7005 = vcmp.eq.f32.partialorder %v6882, %v6355
  %vm7006 = vcmp.eq.f32.partialorder %v6882, %v6448
  %vm7007 = vcmp.eq.f32.partialorder %v6887, %v6306
  %vm7008 = vcmp.eq.f32.partialorder %v6887, %v6355
  %vm7009 = vcmp.eq.f32.partialorder %v6887, %v6448
  %vm7010 = vcmp.eq.f32.partialorder %v6892, %v6306
  %vm7011 = vcmp.eq.f32.partialorder %v6892, %v6355
  %vm7012 = vcmp.eq.f32.partialorder %v6892, %v6448
  %vm7013 = vcmp.eq.f32.partialorder %v6897, %v6306
  %vm7014 = vcmp.eq.f32.partialorder %v6897, %v6355
  %vm7015 = vcmp.eq.f32.partialorder %v6897, %v6448
  %vm7016 = vcmp.eq.f32.partialorder %v6902, %v6306
  %vm7017 = vcmp.eq.f32.partialorder %v6902, %v6355
  %vm7018 = vcmp.eq.f32.partialorder %v6902, %v6448
  %vm7019 = vcmp.eq.f32.partialorder %v6907, %v6306
  %vm7020 = vcmp.eq.f32.partialorder %v6907, %v6355
  %vm7021 = vcmp.eq.f32.partialorder %v6907, %v6448
  %vm7022 = vcmp.eq.f32.partialorder %v6912, %v6306
  %vm7023 = vcmp.eq.f32.partialorder %v6912, %v6355
  %vm7024 = vcmp.eq.f32.partialorder %v6912, %v6448
  %vm7025 = vcmp.eq.f32.partialorder %v6917, %v6306
  %vm7026 = vcmp.eq.f32.partialorder %v6917, %v6355
  %vm7027 = vcmp.eq.f32.partialorder %v6917, %v6448
  %vm7028 = vcmp.eq.f32.partialorder %v6922, %v6306
  %vm7029 = vcmp.eq.f32.partialorder %v6922, %v6355
  %vm7030 = vcmp.eq.f32.partialorder %v6922, %v6448
  %vm7031 = vcmp.eq.f32.partialorder %v6927, %v6306
  %vm7032 = vcmp.eq.f32.partialorder %v6927, %v6355
  %vm7033 = vcmp.eq.f32.partialorder %v6927, %v6448
  %vm7034 = vcmp.eq.f32.partialorder %v6932, %v6306
  %vm7035 = vcmp.eq.f32.partialorder %v6932, %v6355
  %vm7036 = vcmp.eq.f32.partialorder %v6932, %v6448
  %vm7037 = vcmp.eq.f32.partialorder %v6937, %v6306
  %vm7038 = vcmp.eq.f32.partialorder %v6937, %v6355
  %vm7039 = vcmp.eq.f32.partialorder %v6937, %v6448
  %vm7040 = vcmp.eq.f32.partialorder %v6942, %v6306
  %vm7041 = vcmp.eq.f32.partialorder %v6942, %v6355
  %vm7042 = vcmp.eq.f32.partialorder %v6942, %v6448
  %vm7043 = vmand %vm6647, %vm6944
  %vm7044 = vmand %vm6648, %vm6945
  %vm7045 = vmand %vm6649, %vm6946
  %vm7046 = vmand %vm6650, %vm6947
  %vm7047 = vmand %vm6651, %vm6948
  %vm7048 = vmand %vm6652, %vm6949
  %vm7049 = vmand %vm6653, %vm6950
  %vm7050 = vmand %vm6654, %vm6951
  %vm7051 = vmand %vm6655, %vm6952
  %vm7052 = vmand %vm6656, %vm6953
  %vm7053 = vmand %vm6657, %vm6954
  %vm7054 = vmand %vm6658, %vm6955
  %vm7055 = vmand %vm6659, %vm6956
  %vm7056 = vmand %vm6660, %vm6957
  %vm7057 = vmand %vm6661, %vm6958
  %vm7058 = vmand %vm6662, %vm6959
  %vm7059 = vmand %vm6663, %vm6960
  %vm7060 = vmand %vm6664, %vm6961
  %vm7061 = vmand %vm6665, %vm6962
  %vm7062 = vmand %vm6666, %vm6963
  %vm7063 = vmand %vm6667, %vm6964
  %vm7064 = vmand %vm6668, %vm6965
  %vm7065 = vmand %vm6669, %vm6966
  %vm7066 = vmand %vm6670, %vm6967
  %vm7067 = vmand %vm6671, %vm6968
  %vm7068 = vmand %vm6672, %vm6969
  %vm7069 = vmand %vm6673, %vm6970
  %vm7070 = vmand %vm6674, %vm6971
  %vm7071 = vmand %vm6675, %vm6972
  %vm7072 = vmand %vm6676, %vm6973
  %vm7073 = vmand %vm6677, %vm6974
  %vm7074 = vmand %vm6678, %vm6975
  %vm7075 = vmand %vm6679, %vm6976
  %vm7076 = vmand %vm6680, %vm6977
  %vm7077 = vmand %vm6681, %vm6978
  %vm7078 = vmand %vm6682, %vm6979
  %vm7079 = vmand %vm6683, %vm6980
  %vm7080 = vmand %vm6684, %vm6981
  %vm7081 = vmand %vm6685, %vm6982
  %vm7082 = vmand %vm6686, %vm6983
  %vm7083 = vmand %vm6687, %vm6984
  %vm7084 = vmand %vm6688, %vm6985
  %vm7085 = vmand %vm6689, %vm6986
  %vm7086 = vmand %vm6690, %vm6987
  %vm7087 = vmand %vm6691, %vm6988
  %vm7088 = vmand %vm6692, %vm6989
  %vm7089 = vmand %vm6693, %vm6990
  %vm7090 = vmand %vm6694, %vm6991
  %vm7091 = vmand %vm6695, %vm6992
  %vm7092 = vmand %vm6696, %vm6993
  %vm7093 = vmand %vm6697, %vm6994
  %vm7094 = vmand %vm6698, %vm6995
  %vm7095 = vmand %vm6699, %vm6996
  %vm7096 = vmand %vm6700, %vm6997
  %vm7097 = vmand %vm6701, %vm6998
  %vm7098 = vmand %vm6702, %vm6999
  %vm7099 = vmand %vm6703, %vm7000
  %vm7100 = vmand %vm6704, %vm7001
  %vm7101 = vmand %vm6705, %vm7002
  %vm7102 = vmand %vm6706, %vm7003
  %vm7103 = vmand %vm6707, %vm7004
  %vm7104 = vmand %vm6708, %vm7005
  %vm7105 = vmand %vm6709, %vm7006
  %vm7106 = vmand %vm6710, %vm7007
  %vm7107 = vmand %vm6711, %vm7008
  %vm7108 = vmand %vm6712, %vm7009
  %vm7109 = vmand %vm6713, %vm7010
  %vm7110 = vmand %vm6714, %vm7011
  %vm7111 = vmand %vm6715, %vm7012
  %vm7112 = vmand %vm6716, %vm7013
  %vm7113 = vmand %vm6717, %vm7014
  %vm7114 = vmand %vm6718, %vm7015
  %vm7115 = vmand %vm6719, %vm7016
  %vm7116 = vmand %vm6720, %vm7017
  %vm7117 = vmand %vm6721, %vm7018
  %vm7118 = vmand %vm6722, %vm7019
  %vm7119 = vmand %vm6723, %vm7020
  %vm7120 = vmand %vm6724, %vm7021
  %vm7121 = vmand %vm6725, %vm7022
  %vm7122 = vmand %vm6726, %vm7023
  %vm7123 = vmand %vm6727, %vm7024
  %vm7124 = vmand %vm6728, %vm7025
  %vm7125 = vmand %vm6729, %vm7026
  %vm7126 = vmand %vm6730, %vm7027
  %vm7127 = vmand %vm6731, %vm7028
  %vm7128 = vmand %vm6732, %vm7029
  %vm7129 = vmand %vm6733, %vm7030
  %vm7130 = vmand %vm6734, %vm7031
  %vm7131 = vmand %vm6735, %vm7032
  %vm7132 = vmand %vm6736, %vm7033
  %vm7133 = vmand %vm6737, %vm7034
  %vm7134 = vmand %vm6738, %vm7035
  %vm7135 = vmand %vm6739, %vm7036
  %vm7136 = vmand %vm6740, %vm7037
  %vm7137 = vmand %vm6741, %vm7038
  %vm7138 = vmand %vm6742, %vm7039
  %vm7139 = vmand %vm6743, %vm7040
  %vm7140 = vmand %vm6744, %vm7041
  %vm7141 = vmand %vm6745, %vm7042
  %v7142 = vsel %vm7043, 1.0, 0.0
  %v7143 = vsel %vm7044, 1.0, 0.0
  %v7144 = vsel %vm7045, 1.0, 0.0
  %v7145 = vsel %vm7046, 1.0, 0.0
  %v7146 = vsel %vm7047, 1.0, 0.0
  %v7147 = vsel %vm7048, 1.0, 0.0
  %v7148 = vsel %vm7049, 1.0, 0.0
  %v7149 = vsel %vm7050, 1.0, 0.0
  %v7150 = vsel %vm7051, 1.0, 0.0
  %v7151 = vsel %vm7052, 1.0, 0.0
  %v7152 = vsel %vm7053, 1.0, 0.0
  %v7153 = vsel %vm7054, 1.0, 0.0
  %v7154 = vsel %vm7055, 1.0, 0.0
  %v7155 = vsel %vm7056, 1.0, 0.0
  %v7156 = vsel %vm7057, 1.0, 0.0
  %v7157 = vsel %vm7058, 1.0, 0.0
  %v7158 = vsel %vm7059, 1.0, 0.0
  %v7159 = vsel %vm7060, 1.0, 0.0
  %v7160 = vsel %vm7061, 1.0, 0.0
  %v7161 = vsel %vm7062, 1.0, 0.0
  %v7162 = vsel %vm7063, 1.0, 0.0
  %v7163 = vsel %vm7064, 1.0, 0.0
  %v7164 = vsel %vm7065, 1.0, 0.0
  %v7165 = vsel %vm7066, 1.0, 0.0
  %v7166 = vsel %vm7067, 1.0, 0.0
  %v7167 = vsel %vm7068, 1.0, 0.0
  %v7168 = vsel %vm7069, 1.0, 0.0
  %v7169 = vsel %vm7070, 1.0, 0.0
  %v7170 = vsel %vm7071, 1.0, 0.0
  %v7171 = vsel %vm7072, 1.0, 0.0
  %v7172 = vsel %vm7073, 1.0, 0.0
  %v7173 = vsel %vm7074, 1.0, 0.0
  %v7174 = vsel %vm7075, 1.0, 0.0
  %v7175 = vsel %vm7076, 1.0, 0.0
  %v7176 = vsel %vm7077, 1.0, 0.0
  %v7177 = vsel %vm7078, 1.0, 0.0
  %v7178 = vsel %vm7079, 1.0, 0.0
  %v7179 = vsel %vm7080, 1.0, 0.0
  %v7180 = vsel %vm7081, 1.0, 0.0
  %v7181 = vsel %vm7082, 1.0, 0.0
  %v7182 = vsel %vm7083, 1.0, 0.0
  %v7183 = vsel %vm7084, 1.0, 0.0
  %v7184 = vsel %vm7085, 1.0, 0.0
  %v7185 = vsel %vm7086, 1.0, 0.0
  %v7186 = vsel %vm7087, 1.0, 0.0
  %v7187 = vsel %vm7088, 1.0, 0.0
  %v7188 = vsel %vm7089, 1.0, 0.0
  %v7189 = vsel %vm7090, 1.0, 0.0
  %v7190 = vsel %vm7091, 1.0, 0.0
  %v7191 = vsel %vm7092, 1.0, 0.0
  %v7192 = vsel %vm7093, 1.0, 0.0
  %v7193 = vsel %vm7094, 1.0, 0.0
  %v7194 = vsel %vm7095, 1.0, 0.0
  %v7195 = vsel %vm7096, 1.0, 0.0
  %v7196 = vsel %vm7097, 1.0, 0.0
  %v7197 = vsel %vm7098, 1.0, 0.0
  %v7198 = vsel %vm7099, 1.0, 0.0
  %v7199 = vsel %vm7100, 1.0, 0.0
  %v7200 = vsel %vm7101, 1.0, 0.0
  %v7201 = vsel %vm7102, 1.0, 0.0
  %v7202 = vsel %vm7103, 1.0, 0.0
  %v7203 = vsel %vm7104, 1.0, 0.0
  %v7204 = vsel %vm7105, 1.0, 0.0
  %v7205 = vsel %vm7106, 1.0, 0.0
  %v7206 = vsel %vm7107, 1.0, 0.0
  %v7207 = vsel %vm7108, 1.0, 0.0
  %v7208 = vsel %vm7109, 1.0, 0.0
  %v7209 = vsel %vm7110, 1.0, 0.0
  %v7210 = vsel %vm7111, 1.0, 0.0
  %v7211 = vsel %vm7112, 1.0, 0.0
  %v7212 = vsel %vm7113, 1.0, 0.0
  %v7213 = vsel %vm7114, 1.0, 0.0
  %v7214 = vsel %vm7115, 1.0, 0.0
  %v7215 = vsel %vm7116, 1.0, 0.0
  %v7216 = vsel %vm7117, 1.0, 0.0
  %v7217 = vsel %vm7118, 1.0, 0.0
  %v7218 = vsel %vm7119, 1.0, 0.0
  %v7219 = vsel %vm7120, 1.0, 0.0
  %v7220 = vsel %vm7121, 1.0, 0.0
  %v7221 = vsel %vm7122, 1.0, 0.0
  %v7222 = vsel %vm7123, 1.0, 0.0
  %v7223 = vsel %vm7124, 1.0, 0.0
  %v7224 = vsel %vm7125, 1.0, 0.0
  %v7225 = vsel %vm7126, 1.0, 0.0
  %v7226 = vsel %vm7127, 1.0, 0.0
  %v7227 = vsel %vm7128, 1.0, 0.0
  %v7228 = vsel %vm7129, 1.0, 0.0
  %v7229 = vsel %vm7130, 1.0, 0.0
  %v7230 = vsel %vm7131, 1.0, 0.0
  %v7231 = vsel %vm7132, 1.0, 0.0
  %v7232 = vsel %vm7133, 1.0, 0.0
  %v7233 = vsel %vm7134, 1.0, 0.0
  %v7234 = vsel %vm7135, 1.0, 0.0
  %v7235 = vsel %vm7136, 1.0, 0.0
  %v7236 = vsel %vm7137, 1.0, 0.0
  %v7237 = vsel %vm7138, 1.0, 0.0
  %v7238 = vsel %vm7139, 1.0, 0.0
  %v7239 = vsel %vm7140, 1.0, 0.0
  %v7240 = vsel %vm7141, 1.0, 0.0
  %v7241 = vpack.c.bf16 %v7145, %v7142
  %v7242 = vpack.c.bf16 %v7146, %v7143
  %v7243 = vpack.c.bf16 %v7147, %v7144
  %v7244 = vpack.c.bf16 %v7151, %v7148
  %v7245 = vpack.c.bf16 %v7152, %v7149
  %v7246 = vpack.c.bf16 %v7153, %v7150
  %v7247 = vpack.c.bf16 %v7157, %v7154
  %v7248 = vpack.c.bf16 %v7158, %v7155
  %v7249 = vpack.c.bf16 %v7159, %v7156
  %v7250 = vpack.c.bf16 %v7163, %v7160
  %v7251 = vpack.c.bf16 %v7164, %v7161
  %v7252 = vpack.c.bf16 %v7165, %v7162
  %v7253 = vpack.c.bf16 %v7169, %v7166
  %v7254 = vpack.c.bf16 %v7170, %v7167
  %v7255 = vpack.c.bf16 %v7171, %v7168
  %v7256 = vpack.c.bf16 %v7175, %v7172
  %v7257 = vpack.c.bf16 %v7176, %v7173
  %v7258 = vpack.c.bf16 %v7177, %v7174
  %v7259 = vpack.c.bf16 %v7181, %v7178
  %v7260 = vpack.c.bf16 %v7182, %v7179
  %v7261 = vpack.c.bf16 %v7183, %v7180
  %v7262 = vpack.c.bf16 %v7187, %v7184
  %v7263 = vpack.c.bf16 %v7188, %v7185
  %v7264 = vpack.c.bf16 %v7189, %v7186
  %v7265 = vpack.c.bf16 %v7193, %v7190
  %v7266 = vpack.c.bf16 %v7194, %v7191
  %v7267 = vpack.c.bf16 %v7195, %v7192
  %v7268 = vpack.c.bf16 %v7199, %v7196
  %v7269 = vpack.c.bf16 %v7200, %v7197
  %v7270 = vpack.c.bf16 %v7201, %v7198
  %v7271 = vpack.c.bf16 %v7205, %v7202
  %v7272 = vpack.c.bf16 %v7206, %v7203
  %v7273 = vpack.c.bf16 %v7207, %v7204
  %v7274 = vpack.c.bf16 %v7211, %v7208
  %v7275 = vpack.c.bf16 %v7212, %v7209
  %v7276 = vpack.c.bf16 %v7213, %v7210
  %v7277 = vpack.c.bf16 %v7217, %v7214
  %v7278 = vpack.c.bf16 %v7218, %v7215
  %v7279 = vpack.c.bf16 %v7219, %v7216
  %v7280 = vpack.c.bf16 %v7223, %v7220
  %v7281 = vpack.c.bf16 %v7224, %v7221
  %v7282 = vpack.c.bf16 %v7225, %v7222
  %v7283 = vpack.c.bf16 %v7229, %v7226
  %v7284 = vpack.c.bf16 %v7230, %v7227
  %v7285 = vpack.c.bf16 %v7231, %v7228
  %v7286 = vpack.c.bf16 %v7235, %v7232
  %v7287 = vpack.c.bf16 %v7236, %v7233
  %v7288 = vpack.c.bf16 %v7237, %v7234
  %v7289 = vpack.c.bf16 %v7238, %v7238
  %v7290 = vpack.c.bf16 %v7239, %v7239
  %v7291 = vpack.c.bf16 %v7240, %v7240
  %v7293 = vsel %vm886, %v7243, 0
  %v7296 = vsel %vm886, %v7246, 0
  %v7299 = vsel %vm886, %v7249, 0
  %v7302 = vsel %vm886, %v7252, 0
  %v7305 = vsel %vm886, %v7255, 0
  %v7308 = vsel %vm886, %v7258, 0
  %v7311 = vsel %vm886, %v7261, 0
  %v7314 = vsel %vm886, %v7264, 0
  %v7317 = vsel %vm886, %v7267, 0
  %v7320 = vsel %vm886, %v7270, 0
  %v7323 = vsel %vm886, %v7273, 0
  %v7326 = vsel %vm886, %v7276, 0
  %v7329 = vsel %vm886, %v7279, 0
  %v7332 = vsel %vm886, %v7282, 0
  %v7335 = vsel %vm886, %v7285, 0
  %v7338 = vsel %vm886, %v7288, 0
  %v7341 = vsel %vm886, %v7291, 0
  %7343 = vmatprep.subr.bf16.mxu0 0
  %7344 = vmatpush1.bf16.msra.mxu0 %v4496
  %7345 = vmatprep.subr.bf16.mxu0 0
  %7346 = vmatpush1.bf16.msra.mxu0 %v4495
  %7347 = vmatprep.subr.bf16.mxu0 0
  %7348 = vmatpush1.bf16.msra.mxu0 %v4494
  %7349 = vmatprep.subr.bf16.mxu0 0
  %7350 = vmatpush1.bf16.msra.mxu0 %v4493
  %7351 = vmatprep.subr.bf16.mxu0 0
  %7352 = vmatpush1.bf16.msra.mxu0 %v4492
  %7353 = vmatprep.subr.bf16.mxu0 0
  %7354 = vmatpush1.bf16.msra.mxu0 %v4491
  %7355 = vmatprep.subr.bf16.mxu0 0
  %7356 = vmatpush1.bf16.msra.mxu0 %v4490
  %7357 = vmatprep.subr.bf16.mxu0 0
  %7358 = vmatpush1.bf16.msra.mxu0 %v4489
  %7359 = vmatprep.subr.bf16.mxu0 0
  %7360 = vmatpush2.bf16.msra.mxu0 %v4504
  %7361 = vmatprep.subr.bf16.mxu0 0
  %7362 = vmatpush2.bf16.msra.mxu0 %v4503
  %7363 = vmatprep.subr.bf16.mxu0 0
  %7364 = vmatpush2.bf16.msra.mxu0 %v4502
  %7365 = vmatprep.subr.bf16.mxu0 0
  %7366 = vmatpush2.bf16.msra.mxu0 %v4501
  %7367 = vmatprep.subr.bf16.mxu0 0
  %7368 = vmatpush2.bf16.msra.mxu0 %v4500
  %7369 = vmatprep.subr.bf16.mxu0 0
  %7370 = vmatpush2.bf16.msra.mxu0 %v4499
  %7371 = vmatprep.subr.bf16.mxu0 0
  %7372 = vmatpush2.bf16.msra.mxu0 %v4498
  %7373 = vmatprep.subr.bf16.mxu0 0
  %7374 = vmatpush2.bf16.msra.mxu0 %v4497
  %7375 = vmatprep.mubr.bf16.mxu0 %v7242
  %7376 = vmatmul.mubr.bf16.gmra.mxu0 %v7241
  %v7377 = vpop.f32.mrf.mxu0
  %v7378 = vadd.f32 0.0, %v7377
  %v7379 = vpop.f32.mrf.mxu0
  %v7380 = vpop.f32.mrf.mxu0
  %v7381 = vadd.f32 0.0, %v7380
  %v7382 = vpop.f32.mrf.mxu0
  %7383 = vmatprep.mubr.bf16.mxu0 %v7245
  %7384 = vmatmul.mubr.bf16.gmra.mxu0 %v7244
  %v7385 = vpop.f32.mrf.mxu0
  %v7386 = vadd.f32 0.0, %v7385
  %v7387 = vpop.f32.mrf.mxu0
  %v7388 = vpop.f32.mrf.mxu0
  %v7389 = vadd.f32 0.0, %v7388
  %v7390 = vpop.f32.mrf.mxu0
  %7391 = vmatprep.mubr.bf16.mxu0 %v7248
  %7392 = vmatmul.mubr.bf16.gmra.mxu0 %v7247
  %v7393 = vpop.f32.mrf.mxu0
  %v7394 = vadd.f32 0.0, %v7393
  %v7395 = vpop.f32.mrf.mxu0
  %v7396 = vpop.f32.mrf.mxu0
  %v7397 = vadd.f32 0.0, %v7396
  %v7398 = vpop.f32.mrf.mxu0
  %7399 = vmatprep.mubr.bf16.mxu0 %v7251
  %7400 = vmatmul.mubr.bf16.gmra.mxu0 %v7250
  %v7401 = vpop.f32.mrf.mxu0
  %v7402 = vadd.f32 0.0, %v7401
  %v7403 = vpop.f32.mrf.mxu0
  %v7404 = vpop.f32.mrf.mxu0
  %v7405 = vadd.f32 0.0, %v7404
  %v7406 = vpop.f32.mrf.mxu0
  %7407 = vmatprep.mubr.bf16.mxu0 %v7254
  %7408 = vmatmul.mubr.bf16.gmra.mxu0 %v7253
  %v7409 = vpop.f32.mrf.mxu0
  %v7410 = vadd.f32 0.0, %v7409
  %v7411 = vpop.f32.mrf.mxu0
  %v7412 = vpop.f32.mrf.mxu0
  %v7413 = vadd.f32 0.0, %v7412
  %v7414 = vpop.f32.mrf.mxu0
  %7415 = vmatprep.mubr.bf16.mxu0 %v7257
  %7416 = vmatmul.mubr.bf16.gmra.mxu0 %v7256
  %v7417 = vpop.f32.mrf.mxu0
  %v7418 = vadd.f32 0.0, %v7417
  %v7419 = vpop.f32.mrf.mxu0
  %v7420 = vpop.f32.mrf.mxu0
  %v7421 = vadd.f32 0.0, %v7420
  %v7422 = vpop.f32.mrf.mxu0
  %7423 = vmatprep.mubr.bf16.mxu0 %v7260
  %7424 = vmatmul.mubr.bf16.gmra.mxu0 %v7259
  %v7425 = vpop.f32.mrf.mxu0
  %v7426 = vadd.f32 0.0, %v7425
  %v7427 = vpop.f32.mrf.mxu0
  %v7428 = vpop.f32.mrf.mxu0
  %v7429 = vadd.f32 0.0, %v7428
  %v7430 = vpop.f32.mrf.mxu0
  %7431 = vmatprep.mubr.bf16.mxu0 %v7263
  %7432 = vmatmul.mubr.bf16.gmra.mxu0 %v7262
  %v7433 = vpop.f32.mrf.mxu0
  %v7434 = vadd.f32 0.0, %v7433
  %v7435 = vpop.f32.mrf.mxu0
  %v7436 = vpop.f32.mrf.mxu0
  %v7437 = vadd.f32 0.0, %v7436
  %v7438 = vpop.f32.mrf.mxu0
  %7439 = vmatprep.mubr.bf16.mxu0 %v7266
  %7440 = vmatmul.mubr.bf16.gmra.mxu0 %v7265
  %v7441 = vpop.f32.mrf.mxu0
  %v7442 = vadd.f32 0.0, %v7441
  %v7443 = vpop.f32.mrf.mxu0
  %v7444 = vpop.f32.mrf.mxu0
  %v7445 = vadd.f32 0.0, %v7444
  %v7446 = vpop.f32.mrf.mxu0
  %7447 = vmatprep.mubr.bf16.mxu0 %v7269
  %7448 = vmatmul.mubr.bf16.gmra.mxu0 %v7268
  %v7449 = vpop.f32.mrf.mxu0
  %v7450 = vadd.f32 0.0, %v7449
  %v7451 = vpop.f32.mrf.mxu0
  %v7452 = vpop.f32.mrf.mxu0
  %v7453 = vadd.f32 0.0, %v7452
  %v7454 = vpop.f32.mrf.mxu0
  %7455 = vmatprep.mubr.bf16.mxu0 %v7272
  %7456 = vmatmul.mubr.bf16.gmra.mxu0 %v7271
  %v7457 = vpop.f32.mrf.mxu0
  %v7458 = vadd.f32 0.0, %v7457
  %v7459 = vpop.f32.mrf.mxu0
  %v7460 = vpop.f32.mrf.mxu0
  %v7461 = vadd.f32 0.0, %v7460
  %v7462 = vpop.f32.mrf.mxu0
  %7463 = vmatprep.mubr.bf16.mxu0 %v7275
  %7464 = vmatmul.mubr.bf16.gmra.mxu0 %v7274
  %v7465 = vpop.f32.mrf.mxu0
  %v7466 = vadd.f32 0.0, %v7465
  %v7467 = vpop.f32.mrf.mxu0
  %v7468 = vpop.f32.mrf.mxu0
  %v7469 = vadd.f32 0.0, %v7468
  %v7470 = vpop.f32.mrf.mxu0
  %7471 = vmatprep.mubr.bf16.mxu0 %v7278
  %7472 = vmatmul.mubr.bf16.gmra.mxu0 %v7277
  %v7473 = vpop.f32.mrf.mxu0
  %v7474 = vadd.f32 0.0, %v7473
  %v7475 = vpop.f32.mrf.mxu0
  %v7476 = vpop.f32.mrf.mxu0
  %v7477 = vadd.f32 0.0, %v7476
  %v7478 = vpop.f32.mrf.mxu0
  %7479 = vmatprep.mubr.bf16.mxu0 %v7281
  %7480 = vmatmul.mubr.bf16.gmra.mxu0 %v7280
  %v7481 = vpop.f32.mrf.mxu0
  %v7482 = vadd.f32 0.0, %v7481
  %v7483 = vpop.f32.mrf.mxu0
  %v7484 = vpop.f32.mrf.mxu0
  %v7485 = vadd.f32 0.0, %v7484
  %v7486 = vpop.f32.mrf.mxu0
  %7487 = vmatprep.mubr.bf16.mxu0 %v7284
  %7488 = vmatmul.mubr.bf16.gmra.mxu0 %v7283
  %v7489 = vpop.f32.mrf.mxu0
  %v7490 = vadd.f32 0.0, %v7489
  %v7491 = vpop.f32.mrf.mxu0
  %v7492 = vpop.f32.mrf.mxu0
  %v7493 = vadd.f32 0.0, %v7492
  %v7494 = vpop.f32.mrf.mxu0
  %7495 = vmatprep.mubr.bf16.mxu0 %v7287
  %7496 = vmatmul.mubr.bf16.gmra.mxu0 %v7286
  %v7497 = vpop.f32.mrf.mxu0
  %v7498 = vadd.f32 0.0, %v7497
  %v7499 = vpop.f32.mrf.mxu0
  %v7500 = vpop.f32.mrf.mxu0
  %v7501 = vadd.f32 0.0, %v7500
  %v7502 = vpop.f32.mrf.mxu0
  %7503 = vmatprep.mubr.bf16.mxu0 %v7290
  %7504 = vmatmul.mubr.bf16.gmra.mxu0 %v7289
  %v7505 = vpop.f32.mrf.mxu0
  %v7506 = vadd.f32 0.0, %v7505
  %v7507 = vpop.f32.mrf.mxu0
  %v7508 = vpop.f32.mrf.mxu0
  %v7509 = vpop.f32.mrf.mxu0
  %7510 = vdwg.mxu0
  %7511 = vmatprep.subr.bf16.mxu0 0
  %7512 = vmatpush1.bf16.msra.mxu0 0
  %7513 = vmatprep.subr.bf16.mxu0 0
  %7514 = vmatpush1.bf16.msra.mxu0 0
  %7515 = vmatprep.subr.bf16.mxu0 0
  %7516 = vmatpush1.bf16.msra.mxu0 %v4510
  %7517 = vmatprep.subr.bf16.mxu0 0
  %7518 = vmatpush1.bf16.msra.mxu0 %v4509
  %7519 = vmatprep.subr.bf16.mxu0 0
  %7520 = vmatpush1.bf16.msra.mxu0 %v4508
  %7521 = vmatprep.subr.bf16.mxu0 0
  %7522 = vmatpush1.bf16.msra.mxu0 %v4507
  %7523 = vmatprep.subr.bf16.mxu0 0
  %7524 = vmatpush1.bf16.msra.mxu0 %v4506
  %7525 = vmatprep.subr.bf16.mxu0 0
  %7526 = vmatpush1.bf16.msra.mxu0 %v4505
  %7527 = vmatprep.subr.bf16.mxu0 0
  %7528 = vmatpush2.bf16.msra.mxu0 0
  %7529 = vmatprep.subr.bf16.mxu0 0
  %7530 = vmatpush2.bf16.msra.mxu0 0
  %7531 = vmatprep.subr.bf16.mxu0 0
  %7532 = vmatpush2.bf16.msra.mxu0 0
  %7533 = vmatprep.subr.bf16.mxu0 0
  %7534 = vmatpush2.bf16.msra.mxu0 0
  %7535 = vmatprep.subr.bf16.mxu0 0
  %7536 = vmatpush2.bf16.msra.mxu0 0
  %7537 = vmatprep.subr.bf16.mxu0 0
  %7538 = vmatpush2.bf16.msra.mxu0 0
  %7539 = vmatprep.subr.bf16.mxu0 0
  %7540 = vmatpush2.bf16.msra.mxu0 0
  %7541 = vmatprep.subr.bf16.mxu0 0
  %7542 = vmatpush2.bf16.msra.mxu0 0
  %7543 = vmatprep.mubr.bf16.mxu0 0
  %7544 = vmatmul.mubr.bf16.gmra.mxu0 %v7293
  %v7545 = vpop.f32.mrf.mxu0
  %v7546 = vadd.f32 %v7378, %v7545
  %v7547 = vpop.f32.mrf.mxu0
  %v7548 = vpop.f32.mrf.mxu0
  %v7549 = vadd.f32 %v7381, %v7548
  %v7550 = vpop.f32.mrf.mxu0
  %7551 = vmatprep.mubr.bf16.mxu0 0
  %7552 = vmatmul.mubr.bf16.gmra.mxu0 %v7296
  %v7553 = vpop.f32.mrf.mxu0
  %v7554 = vadd.f32 %v7386, %v7553
  %v7555 = vpop.f32.mrf.mxu0
  %v7556 = vpop.f32.mrf.mxu0
  %v7557 = vadd.f32 %v7389, %v7556
  %v7558 = vpop.f32.mrf.mxu0
  %7559 = vmatprep.mubr.bf16.mxu0 0
  %7560 = vmatmul.mubr.bf16.gmra.mxu0 %v7299
  %v7561 = vpop.f32.mrf.mxu0
  %v7562 = vadd.f32 %v7394, %v7561
  %v7563 = vpop.f32.mrf.mxu0
  %v7564 = vpop.f32.mrf.mxu0
  %v7565 = vadd.f32 %v7397, %v7564
  %v7566 = vpop.f32.mrf.mxu0
  %7567 = vmatprep.mubr.bf16.mxu0 0
  %7568 = vmatmul.mubr.bf16.gmra.mxu0 %v7302
  %v7569 = vpop.f32.mrf.mxu0
  %v7570 = vadd.f32 %v7402, %v7569
  %v7571 = vpop.f32.mrf.mxu0
  %v7572 = vpop.f32.mrf.mxu0
  %v7573 = vadd.f32 %v7405, %v7572
  %v7574 = vpop.f32.mrf.mxu0
  %7575 = vmatprep.mubr.bf16.mxu0 0
  %7576 = vmatmul.mubr.bf16.gmra.mxu0 %v7305
  %v7577 = vpop.f32.mrf.mxu0
  %v7578 = vadd.f32 %v7410, %v7577
  %v7579 = vpop.f32.mrf.mxu0
  %v7580 = vpop.f32.mrf.mxu0
  %v7581 = vadd.f32 %v7413, %v7580
  %v7582 = vpop.f32.mrf.mxu0
  %7583 = vmatprep.mubr.bf16.mxu0 0
  %7584 = vmatmul.mubr.bf16.gmra.mxu0 %v7308
  %v7585 = vpop.f32.mrf.mxu0
  %v7586 = vadd.f32 %v7418, %v7585
  %v7587 = vpop.f32.mrf.mxu0
  %v7588 = vpop.f32.mrf.mxu0
  %v7589 = vadd.f32 %v7421, %v7588
  %v7590 = vpop.f32.mrf.mxu0
  %7591 = vmatprep.mubr.bf16.mxu0 0
  %7592 = vmatmul.mubr.bf16.gmra.mxu0 %v7311
  %v7593 = vpop.f32.mrf.mxu0
  %v7594 = vadd.f32 %v7426, %v7593
  %v7595 = vpop.f32.mrf.mxu0
  %v7596 = vpop.f32.mrf.mxu0
  %v7597 = vadd.f32 %v7429, %v7596
  %v7598 = vpop.f32.mrf.mxu0
  %7599 = vmatprep.mubr.bf16.mxu0 0
  %7600 = vmatmul.mubr.bf16.gmra.mxu0 %v7314
  %v7601 = vpop.f32.mrf.mxu0
  %v7602 = vadd.f32 %v7434, %v7601
  %v7603 = vpop.f32.mrf.mxu0
  %v7604 = vpop.f32.mrf.mxu0
  %v7605 = vadd.f32 %v7437, %v7604
  %v7606 = vpop.f32.mrf.mxu0
  %7607 = vmatprep.mubr.bf16.mxu0 0
  %7608 = vmatmul.mubr.bf16.gmra.mxu0 %v7317
  %v7609 = vpop.f32.mrf.mxu0
  %v7610 = vadd.f32 %v7442, %v7609
  %v7611 = vpop.f32.mrf.mxu0
  %v7612 = vpop.f32.mrf.mxu0
  %v7613 = vadd.f32 %v7445, %v7612
  %v7614 = vpop.f32.mrf.mxu0
  %7615 = vmatprep.mubr.bf16.mxu0 0
  %7616 = vmatmul.mubr.bf16.gmra.mxu0 %v7320
  %v7617 = vpop.f32.mrf.mxu0
  %v7618 = vadd.f32 %v7450, %v7617
  %v7619 = vpop.f32.mrf.mxu0
  %v7620 = vpop.f32.mrf.mxu0
  %v7621 = vadd.f32 %v7453, %v7620
  %v7622 = vpop.f32.mrf.mxu0
  %7623 = vmatprep.mubr.bf16.mxu0 0
  %7624 = vmatmul.mubr.bf16.gmra.mxu0 %v7323
  %v7625 = vpop.f32.mrf.mxu0
  %v7626 = vadd.f32 %v7458, %v7625
  %v7627 = vpop.f32.mrf.mxu0
  %v7628 = vpop.f32.mrf.mxu0
  %v7629 = vadd.f32 %v7461, %v7628
  %v7630 = vpop.f32.mrf.mxu0
  %7631 = vmatprep.mubr.bf16.mxu0 0
  %7632 = vmatmul.mubr.bf16.gmra.mxu0 %v7326
  %v7633 = vpop.f32.mrf.mxu0
  %v7634 = vadd.f32 %v7466, %v7633
  %v7635 = vpop.f32.mrf.mxu0
  %v7636 = vpop.f32.mrf.mxu0
  %v7637 = vadd.f32 %v7469, %v7636
  %v7638 = vpop.f32.mrf.mxu0
  %7639 = vmatprep.mubr.bf16.mxu0 0
  %7640 = vmatmul.mubr.bf16.gmra.mxu0 %v7329
  %v7641 = vpop.f32.mrf.mxu0
  %v7642 = vadd.f32 %v7474, %v7641
  %v7643 = vpop.f32.mrf.mxu0
  %v7644 = vpop.f32.mrf.mxu0
  %v7645 = vadd.f32 %v7477, %v7644
  %v7646 = vpop.f32.mrf.mxu0
  %7647 = vmatprep.mubr.bf16.mxu0 0
  %7648 = vmatmul.mubr.bf16.gmra.mxu0 %v7332
  %v7649 = vpop.f32.mrf.mxu0
  %v7650 = vadd.f32 %v7482, %v7649
  %v7651 = vpop.f32.mrf.mxu0
  %v7652 = vpop.f32.mrf.mxu0
  %v7653 = vadd.f32 %v7485, %v7652
  %v7654 = vpop.f32.mrf.mxu0
  %7655 = vmatprep.mubr.bf16.mxu0 0
  %7656 = vmatmul.mubr.bf16.gmra.mxu0 %v7335
  %v7657 = vpop.f32.mrf.mxu0
  %v7658 = vadd.f32 %v7490, %v7657
  %v7659 = vpop.f32.mrf.mxu0
  %v7660 = vpop.f32.mrf.mxu0
  %v7661 = vadd.f32 %v7493, %v7660
  %v7662 = vpop.f32.mrf.mxu0
  %7663 = vmatprep.mubr.bf16.mxu0 0
  %7664 = vmatmul.mubr.bf16.gmra.mxu0 %v7338
  %v7665 = vpop.f32.mrf.mxu0
  %v7666 = vadd.f32 %v7498, %v7665
  %v7667 = vpop.f32.mrf.mxu0
  %v7668 = vpop.f32.mrf.mxu0
  %v7669 = vadd.f32 %v7501, %v7668
  %v7670 = vpop.f32.mrf.mxu0
  %7671 = vmatprep.mubr.bf16.mxu0 0
  %7672 = vmatmul.mubr.bf16.gmra.mxu0 %v7341
  %v7673 = vpop.f32.mrf.mxu0
  %v7674 = vadd.f32 %v7506, %v7673
  %v7675 = vpop.f32.mrf.mxu0
  %v7676 = vpop.f32.mrf.mxu0
  %v7677 = vpop.f32.mrf.mxu0
  %7678 = vdwg.mxu0
  %v7679 = vld [vmem:[%s14] sm:$0xf]
  %v7680 = vld [vmem:[%s14 + $0x4] sm:$0xf]
  %v7681 = vld [vmem:[%s14 + $0x8] sm:$0xf]
  %v7682 = vld [vmem:[%s14 + $0xc] sm:$0xf]
  %v7683 = vld [vmem:[%s14 + $0x10] sm:$0xf]
  %v7684 = vld [vmem:[%s14 + $0x14] sm:$0xf]
  %v7685 = vld [vmem:[%s14 + $0x18] sm:$0xf]
  %v7686 = vld [vmem:[%s14 + $0x1c] sm:$0xf]
  %v7687 = vld [vmem:[%s14 + $0x20] sm:$0xf]
  %v7688 = vld [vmem:[%s14 + $0x24] sm:$0xf]
  %v7689 = vld [vmem:[%s14 + $0x28] sm:$0xf]
  %v7690 = vld [vmem:[%s14 + $0x2c] sm:$0xf]
  %v7691 = vld [vmem:[%s14 + $0x30] sm:$0xf]
  %v7692 = vld [vmem:[%s14 + $0x34] sm:$0xf]
  %v7693 = vld [vmem:[%s14 + $0x38] sm:$0xf]
  %v7694 = vld [vmem:[%s14 + $0x3c] sm:$0xf]
  %v7695 = vpack.c.bf16 %v7549, %v7546
  %v7696 = vpack.c.bf16 %v7557, %v7554
  %v7697 = vpack.c.bf16 %v7565, %v7562
  %v7698 = vpack.c.bf16 %v7573, %v7570
  %v7699 = vpack.c.bf16 %v7581, %v7578
  %v7700 = vpack.c.bf16 %v7589, %v7586
  %v7701 = vpack.c.bf16 %v7597, %v7594
  %v7702 = vpack.c.bf16 %v7605, %v7602
  %v7703 = vpack.c.bf16 %v7613, %v7610
  %v7704 = vpack.c.bf16 %v7621, %v7618
  %v7705 = vpack.c.bf16 %v7629, %v7626
  %v7706 = vpack.c.bf16 %v7637, %v7634
  %v7707 = vpack.c.bf16 %v7645, %v7642
  %v7708 = vpack.c.bf16 %v7653, %v7650
  %v7709 = vpack.c.bf16 %v7661, %v7658
  %v7710 = vpack.c.bf16 %v7669, %v7666
  %v7711 = vpack.c.bf16 %v7674, %v7674
  %v7712 = vld [vmem:[%s15] sm:$0x1]
  %v7714 = vlaneseq
  %v7715 = vshrl.u32 %v7714, 7
  %v7716 = vsub.s32 0, %v7715
  %v7717 = vrot.slane %v7712, %v7716
  %v7735 = vunpack.c.l.b16 %v7679
  %v7736 = vunpack.c.l.b16 %v7680
  %v7737 = vunpack.c.l.b16 %v7681
  %v7738 = vunpack.c.l.b16 %v7682
  %v7739 = vunpack.c.l.b16 %v7683
  %v7740 = vunpack.c.l.b16 %v7684
  %v7741 = vunpack.c.l.b16 %v7685
  %v7742 = vunpack.c.l.b16 %v7686
  %v7743 = vunpack.c.l.b16 %v7687
  %v7744 = vunpack.c.l.b16 %v7688
  %v7745 = vunpack.c.l.b16 %v7689
  %v7746 = vunpack.c.l.b16 %v7690
  %v7747 = vunpack.c.l.b16 %v7691
  %v7748 = vunpack.c.l.b16 %v7692
  %v7749 = vunpack.c.l.b16 %v7693
  %v7750 = vunpack.c.l.b16 %v7694
  %v7751 = vpack.c.b16 %v7736, %v7735
  %v7752 = vpack.c.b16 %v7738, %v7737
  %v7753 = vpack.c.b16 %v7740, %v7739
  %v7754 = vpack.c.b16 %v7742, %v7741
  %v7755 = vpack.c.b16 %v7744, %v7743
  %v7756 = vpack.c.b16 %v7746, %v7745
  %v7757 = vpack.c.b16 %v7748, %v7747
  %v7758 = vpack.c.b16 %v7750, %v7749
  %7767 = vmatprep.subr.bf16.mxu0 0
  %7768 = vmatpush1.bf16.msra.mxu0 %v7758
  %7769 = vmatprep.subr.bf16.mxu0 0
  %7770 = vmatpush1.bf16.msra.mxu0 %v7757
  %7771 = vmatprep.subr.bf16.mxu0 0
  %7772 = vmatpush1.bf16.msra.mxu0 %v7756
  %7773 = vmatprep.subr.bf16.mxu0 0
  %7774 = vmatpush1.bf16.msra.mxu0 %v7755
  %7775 = vmatprep.subr.bf16.mxu0 0
  %7776 = vmatpush1.bf16.msra.mxu0 %v7754
  %7777 = vmatprep.subr.bf16.mxu0 0
  %7778 = vmatpush1.bf16.msra.mxu0 %v7753
  %7779 = vmatprep.subr.bf16.mxu0 0
  %7780 = vmatpush1.bf16.msra.mxu0 %v7752
  %7781 = vmatprep.subr.bf16.mxu0 0
  %7782 = vmatpush1.bf16.msra.mxu0 %v7751
  %7783 = vmatprep.subr.bf16.mxu0 0
  %7784 = vmatpush2.bf16.msra.mxu0 0
  %7785 = vmatprep.subr.bf16.mxu0 0
  %7786 = vmatpush2.bf16.msra.mxu0 0
  %7787 = vmatprep.subr.bf16.mxu0 0
  %7788 = vmatpush2.bf16.msra.mxu0 0
  %7789 = vmatprep.subr.bf16.mxu0 0
  %7790 = vmatpush2.bf16.msra.mxu0 0
  %7791 = vmatprep.subr.bf16.mxu0 0
  %7792 = vmatpush2.bf16.msra.mxu0 0
  %7793 = vmatprep.subr.bf16.mxu0 0
  %7794 = vmatpush2.bf16.msra.mxu0 0
  %7795 = vmatprep.subr.bf16.mxu0 0
  %7796 = vmatpush2.bf16.msra.mxu0 0
  %7797 = vmatprep.subr.bf16.mxu0 0
  %7798 = vmatpush2.bf16.msra.mxu0 0
  %7799 = vmatprep.mubr.bf16.mxu0 0
  %7800 = vmatmul.mubr.bf16.gmra.mxu0 %v7695
  %v7801 = vpop.f32.mrf.mxu0
  %v7802 = vadd.f32 %v7717, %v7801
  %v7803 = vpop.f32.mrf.mxu0
  %v7804 = vpop.f32.mrf.mxu0
  %v7805 = vadd.f32 %v7717, %v7804
  %v7806 = vpop.f32.mrf.mxu0
  %7807 = vmatprep.mubr.bf16.mxu0 0
  %7808 = vmatmul.mubr.bf16.gmra.mxu0 %v7696
  %v7809 = vpop.f32.mrf.mxu0
  %v7810 = vadd.f32 %v7717, %v7809
  %v7811 = vpop.f32.mrf.mxu0
  %v7812 = vpop.f32.mrf.mxu0
  %v7813 = vadd.f32 %v7717, %v7812
  %v7814 = vpop.f32.mrf.mxu0
  %7815 = vmatprep.mubr.bf16.mxu0 0
  %7816 = vmatmul.mubr.bf16.gmra.mxu0 %v7697
  %v7817 = vpop.f32.mrf.mxu0
  %v7818 = vadd.f32 %v7717, %v7817
  %v7819 = vpop.f32.mrf.mxu0
  %v7820 = vpop.f32.mrf.mxu0
  %v7821 = vadd.f32 %v7717, %v7820
  %v7822 = vpop.f32.mrf.mxu0
  %7823 = vmatprep.mubr.bf16.mxu0 0
  %7824 = vmatmul.mubr.bf16.gmra.mxu0 %v7698
  %v7825 = vpop.f32.mrf.mxu0
  %v7826 = vadd.f32 %v7717, %v7825
  %v7827 = vpop.f32.mrf.mxu0
  %v7828 = vpop.f32.mrf.mxu0
  %v7829 = vadd.f32 %v7717, %v7828
  %v7830 = vpop.f32.mrf.mxu0
  %7831 = vmatprep.mubr.bf16.mxu0 0
  %7832 = vmatmul.mubr.bf16.gmra.mxu0 %v7699
  %v7833 = vpop.f32.mrf.mxu0
  %v7834 = vadd.f32 %v7717, %v7833
  %v7835 = vpop.f32.mrf.mxu0
  %v7836 = vpop.f32.mrf.mxu0
  %v7837 = vadd.f32 %v7717, %v7836
  %v7838 = vpop.f32.mrf.mxu0
  %7839 = vmatprep.mubr.bf16.mxu0 0
  %7840 = vmatmul.mubr.bf16.gmra.mxu0 %v7700
  %v7841 = vpop.f32.mrf.mxu0
  %v7842 = vadd.f32 %v7717, %v7841
  %v7843 = vpop.f32.mrf.mxu0
  %v7844 = vpop.f32.mrf.mxu0
  %v7845 = vadd.f32 %v7717, %v7844
  %v7846 = vpop.f32.mrf.mxu0
  %7847 = vmatprep.mubr.bf16.mxu0 0
  %7848 = vmatmul.mubr.bf16.gmra.mxu0 %v7701
  %v7849 = vpop.f32.mrf.mxu0
  %v7850 = vadd.f32 %v7717, %v7849
  %v7851 = vpop.f32.mrf.mxu0
  %v7852 = vpop.f32.mrf.mxu0
  %v7853 = vadd.f32 %v7717, %v7852
  %v7854 = vpop.f32.mrf.mxu0
  %7855 = vmatprep.mubr.bf16.mxu0 0
  %7856 = vmatmul.mubr.bf16.gmra.mxu0 %v7702
  %v7857 = vpop.f32.mrf.mxu0
  %v7858 = vadd.f32 %v7717, %v7857
  %v7859 = vpop.f32.mrf.mxu0
  %v7860 = vpop.f32.mrf.mxu0
  %v7861 = vadd.f32 %v7717, %v7860
  %v7862 = vpop.f32.mrf.mxu0
  %7863 = vmatprep.mubr.bf16.mxu0 0
  %7864 = vmatmul.mubr.bf16.gmra.mxu0 %v7703
  %v7865 = vpop.f32.mrf.mxu0
  %v7866 = vadd.f32 %v7717, %v7865
  %v7867 = vpop.f32.mrf.mxu0
  %v7868 = vpop.f32.mrf.mxu0
  %v7869 = vadd.f32 %v7717, %v7868
  %v7870 = vpop.f32.mrf.mxu0
  %7871 = vmatprep.mubr.bf16.mxu0 0
  %7872 = vmatmul.mubr.bf16.gmra.mxu0 %v7704
  %v7873 = vpop.f32.mrf.mxu0
  %v7874 = vadd.f32 %v7717, %v7873
  %v7875 = vpop.f32.mrf.mxu0
  %v7876 = vpop.f32.mrf.mxu0
  %v7877 = vadd.f32 %v7717, %v7876
  %v7878 = vpop.f32.mrf.mxu0
  %7879 = vmatprep.mubr.bf16.mxu0 0
  %7880 = vmatmul.mubr.bf16.gmra.mxu0 %v7705
  %v7881 = vpop.f32.mrf.mxu0
  %v7882 = vadd.f32 %v7717, %v7881
  %v7883 = vpop.f32.mrf.mxu0
  %v7884 = vpop.f32.mrf.mxu0
  %v7885 = vadd.f32 %v7717, %v7884
  %v7886 = vpop.f32.mrf.mxu0
  %7887 = vmatprep.mubr.bf16.mxu0 0
  %7888 = vmatmul.mubr.bf16.gmra.mxu0 %v7706
  %v7889 = vpop.f32.mrf.mxu0
  %v7890 = vadd.f32 %v7717, %v7889
  %v7891 = vpop.f32.mrf.mxu0
  %v7892 = vpop.f32.mrf.mxu0
  %v7893 = vadd.f32 %v7717, %v7892
  %v7894 = vpop.f32.mrf.mxu0
  %7895 = vmatprep.mubr.bf16.mxu0 0
  %7896 = vmatmul.mubr.bf16.gmra.mxu0 %v7707
  %v7897 = vpop.f32.mrf.mxu0
  %v7898 = vadd.f32 %v7717, %v7897
  %v7899 = vpop.f32.mrf.mxu0
  %v7900 = vpop.f32.mrf.mxu0
  %v7901 = vadd.f32 %v7717, %v7900
  %v7902 = vpop.f32.mrf.mxu0
  %7903 = vmatprep.mubr.bf16.mxu0 0
  %7904 = vmatmul.mubr.bf16.gmra.mxu0 %v7708
  %v7905 = vpop.f32.mrf.mxu0
  %v7906 = vadd.f32 %v7717, %v7905
  %v7907 = vpop.f32.mrf.mxu0
  %v7908 = vpop.f32.mrf.mxu0
  %v7909 = vadd.f32 %v7717, %v7908
  %v7910 = vpop.f32.mrf.mxu0
  %7911 = vmatprep.mubr.bf16.mxu0 0
  %7912 = vmatmul.mubr.bf16.gmra.mxu0 %v7709
  %v7913 = vpop.f32.mrf.mxu0
  %v7914 = vadd.f32 %v7717, %v7913
  %v7915 = vpop.f32.mrf.mxu0
  %v7916 = vpop.f32.mrf.mxu0
  %v7917 = vadd.f32 %v7717, %v7916
  %v7918 = vpop.f32.mrf.mxu0
  %7919 = vmatprep.mubr.bf16.mxu0 0
  %7920 = vmatmul.mubr.bf16.gmra.mxu0 %v7710
  %v7921 = vpop.f32.mrf.mxu0
  %v7922 = vadd.f32 %v7717, %v7921
  %v7923 = vpop.f32.mrf.mxu0
  %v7924 = vpop.f32.mrf.mxu0
  %v7925 = vadd.f32 %v7717, %v7924
  %v7926 = vpop.f32.mrf.mxu0
  %7927 = vmatprep.mubr.bf16.mxu0 0
  %7928 = vmatmul.mubr.bf16.gmra.mxu0 %v7711
  %v7929 = vpop.f32.mrf.mxu0
  %v7930 = vadd.f32 %v7717, %v7929
  %v7931 = vpop.f32.mrf.mxu0
  %v7932 = vpop.f32.mrf.mxu0
  %v7933 = vpop.f32.mrf.mxu0
  %7934 = vdwg.mxu0
  %v7935 = vmax.f32 %v7802, 0.0
  %v7936 = vmax.f32 %v7805, 0.0
  %v7937 = vmax.f32 %v7810, 0.0
  %v7938 = vmax.f32 %v7813, 0.0
  %v7939 = vmax.f32 %v7818, 0.0
  %v7940 = vmax.f32 %v7821, 0.0
  %v7941 = vmax.f32 %v7826, 0.0
  %v7942 = vmax.f32 %v7829, 0.0
  %v7943 = vmax.f32 %v7834, 0.0
  %v7944 = vmax.f32 %v7837, 0.0
  %v7945 = vmax.f32 %v7842, 0.0
  %v7946 = vmax.f32 %v7845, 0.0
  %v7947 = vmax.f32 %v7850, 0.0
  %v7948 = vmax.f32 %v7853, 0.0
  %v7949 = vmax.f32 %v7858, 0.0
  %v7950 = vmax.f32 %v7861, 0.0
  %v7951 = vmax.f32 %v7866, 0.0
  %v7952 = vmax.f32 %v7869, 0.0
  %v7953 = vmax.f32 %v7874, 0.0
  %v7954 = vmax.f32 %v7877, 0.0
  %v7955 = vmax.f32 %v7882, 0.0
  %v7956 = vmax.f32 %v7885, 0.0
  %v7957 = vmax.f32 %v7890, 0.0
  %v7958 = vmax.f32 %v7893, 0.0
  %v7959 = vmax.f32 %v7898, 0.0
  %v7960 = vmax.f32 %v7901, 0.0
  %v7961 = vmax.f32 %v7906, 0.0
  %v7962 = vmax.f32 %v7909, 0.0
  %v7963 = vmax.f32 %v7914, 0.0
  %v7964 = vmax.f32 %v7917, 0.0
  %v7965 = vmax.f32 %v7922, 0.0
  %v7966 = vmax.f32 %v7925, 0.0
  %v7967 = vmax.f32 %v7930, 0.0
  %v7968 = vld [vmem:[%s16] sm:$0xff]
  %v7969 = vld [vmem:[%s16 + $0x8] sm:$0xf]
  %v7970 = vld [vmem:[%s16 + $0xc] sm:$0xff]
  %v7971 = vld [vmem:[%s16 + $0x14] sm:$0xf]
  %v7972 = vld [vmem:[%s16 + $0x18] sm:$0xff]
  %v7973 = vld [vmem:[%s16 + $0x20] sm:$0xf]
  %v7974 = vld [vmem:[%s16 + $0x24] sm:$0xff]
  %v7975 = vld [vmem:[%s16 + $0x2c] sm:$0xf]
  %v7976 = vld [vmem:[%s16 + $0x30] sm:$0xff]
  %v7977 = vld [vmem:[%s16 + $0x38] sm:$0xf]
  %v7978 = vld [vmem:[%s16 + $0x3c] sm:$0xff]
  %v7979 = vld [vmem:[%s16 + $0x44] sm:$0xf]
  %v7980 = vld [vmem:[%s16 + $0x48] sm:$0xff]
  %v7981 = vld [vmem:[%s16 + $0x50] sm:$0xf]
  %v7982 = vld [vmem:[%s16 + $0x54] sm:$0xff]
  %v7983 = vld [vmem:[%s16 + $0x5c] sm:$0xf]
  %v7984 = vld [vmem:[%s16 + $0x60] sm:$0xff]
  %v7985 = vld [vmem:[%s16 + $0x68] sm:$0xf]
  %v7986 = vld [vmem:[%s16 + $0x6c] sm:$0xff]
  %v7987 = vld [vmem:[%s16 + $0x74] sm:$0xf]
  %v7988 = vld [vmem:[%s16 + $0x78] sm:$0xff]
  %v7989 = vld [vmem:[%s16 + $0x80] sm:$0xf]
  %v7990 = vld [vmem:[%s16 + $0x84] sm:$0xff]
  %v7991 = vld [vmem:[%s16 + $0x8c] sm:$0xf]
  %v7992 = vld [vmem:[%s16 + $0x90] sm:$0xff]
  %v7993 = vld [vmem:[%s16 + $0x98] sm:$0xf]
  %v7994 = vld [vmem:[%s16 + $0x9c] sm:$0xff]
  %v7995 = vld [vmem:[%s16 + $0xa4] sm:$0xf]
  %v7996 = vld [vmem:[%s16 + $0xa8] sm:$0xff]
  %v7997 = vld [vmem:[%s16 + $0xb0] sm:$0xf]
  %v7998 = vld [vmem:[%s16 + $0xb4] sm:$0xff]
  %v7999 = vld [vmem:[%s16 + $0xbc] sm:$0xf]
  %v8000 = vld [vmem:[%s16 + $0xc0] sm:$0x33]
  %v8001 = vld [vmem:[%s16 + $0xc8] sm:$0x3]
  %v8002 = vpack.c.bf16 %v7936, %v7935
  %v8003 = vpack.c.bf16 %v7938, %v7937
  %v8004 = vpack.c.bf16 %v7940, %v7939
  %v8005 = vpack.c.bf16 %v7942, %v7941
  %v8006 = vpack.c.bf16 %v7944, %v7943
  %v8007 = vpack.c.bf16 %v7946, %v7945
  %v8008 = vpack.c.bf16 %v7948, %v7947
  %v8009 = vpack.c.bf16 %v7950, %v7949
  %v8010 = vpack.c.bf16 %v7952, %v7951
  %v8011 = vpack.c.bf16 %v7954, %v7953
  %v8012 = vpack.c.bf16 %v7956, %v7955
  %v8013 = vpack.c.bf16 %v7958, %v7957
  %v8014 = vpack.c.bf16 %v7960, %v7959
  %v8015 = vpack.c.bf16 %v7962, %v7961
  %v8016 = vpack.c.bf16 %v7964, %v7963
  %v8017 = vpack.c.bf16 %v7966, %v7965
  %v8018 = vpack.c.bf16 %v7967, %v7967
  %v8053 = vunpack.c.l.b16 %v7968
  %v8054 = vunpack.c.h.b16 %v7968
  %v8055 = vunpack.c.l.b16 %v7969
  %v8056 = vunpack.c.l.b16 %v7970
  %v8057 = vunpack.c.h.b16 %v7970
  %v8058 = vunpack.c.l.b16 %v7971
  %v8059 = vunpack.c.l.b16 %v7972
  %v8060 = vunpack.c.h.b16 %v7972
  %v8061 = vunpack.c.l.b16 %v7973
  %v8062 = vunpack.c.l.b16 %v7974
  %v8063 = vunpack.c.h.b16 %v7974
  %v8064 = vunpack.c.l.b16 %v7975
  %v8065 = vunpack.c.l.b16 %v7976
  %v8066 = vunpack.c.h.b16 %v7976
  %v8067 = vunpack.c.l.b16 %v7977
  %v8068 = vunpack.c.l.b16 %v7978
  %v8069 = vunpack.c.h.b16 %v7978
  %v8070 = vunpack.c.l.b16 %v7979
  %v8071 = vunpack.c.l.b16 %v7980
  %v8072 = vunpack.c.h.b16 %v7980
  %v8073 = vunpack.c.l.b16 %v7981
  %v8074 = vunpack.c.l.b16 %v7982
  %v8075 = vunpack.c.h.b16 %v7982
  %v8076 = vunpack.c.l.b16 %v7983
  %v8077 = vunpack.c.l.b16 %v7984
  %v8078 = vunpack.c.h.b16 %v7984
  %v8079 = vunpack.c.l.b16 %v7985
  %v8080 = vunpack.c.l.b16 %v7986
  %v8081 = vunpack.c.h.b16 %v7986
  %v8082 = vunpack.c.l.b16 %v7987
  %v8083 = vunpack.c.l.b16 %v7988
  %v8084 = vunpack.c.h.b16 %v7988
  %v8085 = vunpack.c.l.b16 %v7989
  %v8086 = vunpack.c.l.b16 %v7990
  %v8087 = vunpack.c.h.b16 %v7990
  %v8088 = vunpack.c.l.b16 %v7991
  %v8089 = vunpack.c.l.b16 %v7992
  %v8090 = vunpack.c.h.b16 %v7992
  %v8091 = vunpack.c.l.b16 %v7993
  %v8092 = vunpack.c.l.b16 %v7994
  %v8093 = vunpack.c.h.b16 %v7994
  %v8094 = vunpack.c.l.b16 %v7995
  %v8095 = vunpack.c.l.b16 %v7996
  %v8096 = vunpack.c.h.b16 %v7996
  %v8097 = vunpack.c.l.b16 %v7997
  %v8098 = vunpack.c.l.b16 %v7998
  %v8099 = vunpack.c.h.b16 %v7998
  %v8100 = vunpack.c.l.b16 %v7999
  %v8101 = vunpack.c.l.b16 %v8000
  %v8102 = vunpack.c.h.b16 %v8000
  %v8103 = vunpack.c.l.b16 %v8001
  %v8104 = vpack.c.b16 %v8056, %v8053
  %v8105 = vpack.c.b16 %v8057, %v8054
  %v8106 = vpack.c.b16 %v8058, %v8055
  %v8107 = vpack.c.b16 %v8062, %v8059
  %v8108 = vpack.c.b16 %v8063, %v8060
  %v8109 = vpack.c.b16 %v8064, %v8061
  %v8110 = vpack.c.b16 %v8068, %v8065
  %v8111 = vpack.c.b16 %v8069, %v8066
  %v8112 = vpack.c.b16 %v8070, %v8067
  %v8113 = vpack.c.b16 %v8074, %v8071
  %v8114 = vpack.c.b16 %v8075, %v8072
  %v8115 = vpack.c.b16 %v8076, %v8073
  %v8116 = vpack.c.b16 %v8080, %v8077
  %v8117 = vpack.c.b16 %v8081, %v8078
  %v8118 = vpack.c.b16 %v8082, %v8079
  %v8119 = vpack.c.b16 %v8086, %v8083
  %v8120 = vpack.c.b16 %v8087, %v8084
  %v8121 = vpack.c.b16 %v8088, %v8085
  %v8122 = vpack.c.b16 %v8092, %v8089
  %v8123 = vpack.c.b16 %v8093, %v8090
  %v8124 = vpack.c.b16 %v8094, %v8091
  %v8125 = vpack.c.b16 %v8098, %v8095
  %v8126 = vpack.c.b16 %v8099, %v8096
  %v8127 = vpack.c.b16 %v8100, %v8097
  %v8128 = vpack.c.b16 %v8101, %v8101
  %v8129 = vpack.c.b16 %v8102, %v8102
  %v8130 = vpack.c.b16 %v8103, %v8103
  %vm8149 = vcmask 64512
  %v8151 = vsel %vm8149, %v8106, 0
  %v8154 = vsel %vm8149, %v8109, 0
  %v8157 = vsel %vm8149, %v8112, 0
  %v8160 = vsel %vm8149, %v8115, 0
  %v8163 = vsel %vm8149, %v8118, 0
  %v8166 = vsel %vm8149, %v8121, 0
  %v8169 = vsel %vm8149, %v8124, 0
  %v8172 = vsel %vm8149, %v8127, 0
  %v8175 = vsel %vm8149, %v8130, 0
  %vm8177 = vcmask 1043456
  %v8179 = vsel %vm8177, %v8018, 0
  %8181 = vmatprep.subr.bf16.mxu0 0
  %8182 = vmatpush1.bf16.msra.mxu0 %v8009
  %8183 = vmatprep.subr.bf16.mxu0 0
  %8184 = vmatpush1.bf16.msra.mxu0 %v8008
  %8185 = vmatprep.subr.bf16.mxu0 0
  %8186 = vmatpush1.bf16.msra.mxu0 %v8007
  %8187 = vmatprep.subr.bf16.mxu0 0
  %8188 = vmatpush1.bf16.msra.mxu0 %v8006
  %8189 = vmatprep.subr.bf16.mxu0 0
  %8190 = vmatpush1.bf16.msra.mxu0 %v8005
  %8191 = vmatprep.subr.bf16.mxu0 0
  %8192 = vmatpush1.bf16.msra.mxu0 %v8004
  %8193 = vmatprep.subr.bf16.mxu0 0
  %8194 = vmatpush1.bf16.msra.mxu0 %v8003
  %8195 = vmatprep.subr.bf16.mxu0 0
  %8196 = vmatpush1.bf16.msra.mxu0 %v8002
  %8197 = vmatprep.subr.bf16.mxu0 0
  %8198 = vmatpush2.bf16.msra.mxu0 %v8017
  %8199 = vmatprep.subr.bf16.mxu0 0
  %8200 = vmatpush2.bf16.msra.mxu0 %v8016
  %8201 = vmatprep.subr.bf16.mxu0 0
  %8202 = vmatpush2.bf16.msra.mxu0 %v8015
  %8203 = vmatprep.subr.bf16.mxu0 0
  %8204 = vmatpush2.bf16.msra.mxu0 %v8014
  %8205 = vmatprep.subr.bf16.mxu0 0
  %8206 = vmatpush2.bf16.msra.mxu0 %v8013
  %8207 = vmatprep.subr.bf16.mxu0 0
  %8208 = vmatpush2.bf16.msra.mxu0 %v8012
  %8209 = vmatprep.subr.bf16.mxu0 0
  %8210 = vmatpush2.bf16.msra.mxu0 %v8011
  %8211 = vmatprep.subr.bf16.mxu0 0
  %8212 = vmatpush2.bf16.msra.mxu0 %v8010
  %8213 = vmatprep.mubr.bf16.mxu0 %v8105
  %8214 = vmatmul.mubr.bf16.gmra.mxu0 %v8104
  %v8215 = vpop.f32.mrf.mxu0
  %v8216 = vadd.f32 0.0, %v8215
  %v8217 = vpop.f32.mrf.mxu0
  %v8218 = vpop.f32.mrf.mxu0
  %v8219 = vadd.f32 0.0, %v8218
  %v8220 = vpop.f32.mrf.mxu0
  %8221 = vmatprep.mubr.bf16.mxu0 %v8108
  %8222 = vmatmul.mubr.bf16.gmra.mxu0 %v8107
  %v8223 = vpop.f32.mrf.mxu0
  %v8224 = vadd.f32 0.0, %v8223
  %v8225 = vpop.f32.mrf.mxu0
  %v8226 = vpop.f32.mrf.mxu0
  %v8227 = vadd.f32 0.0, %v8226
  %v8228 = vpop.f32.mrf.mxu0
  %8229 = vmatprep.mubr.bf16.mxu0 %v8111
  %8230 = vmatmul.mubr.bf16.gmra.mxu0 %v8110
  %v8231 = vpop.f32.mrf.mxu0
  %v8232 = vadd.f32 0.0, %v8231
  %v8233 = vpop.f32.mrf.mxu0
  %v8234 = vpop.f32.mrf.mxu0
  %v8235 = vadd.f32 0.0, %v8234
  %v8236 = vpop.f32.mrf.mxu0
  %8237 = vmatprep.mubr.bf16.mxu0 %v8114
  %8238 = vmatmul.mubr.bf16.gmra.mxu0 %v8113
  %v8239 = vpop.f32.mrf.mxu0
  %v8240 = vadd.f32 0.0, %v8239
  %v8241 = vpop.f32.mrf.mxu0
  %v8242 = vpop.f32.mrf.mxu0
  %v8243 = vadd.f32 0.0, %v8242
  %v8244 = vpop.f32.mrf.mxu0
  %8245 = vmatprep.mubr.bf16.mxu0 %v8117
  %8246 = vmatmul.mubr.bf16.gmra.mxu0 %v8116
  %v8247 = vpop.f32.mrf.mxu0
  %v8248 = vadd.f32 0.0, %v8247
  %v8249 = vpop.f32.mrf.mxu0
  %v8250 = vpop.f32.mrf.mxu0
  %v8251 = vadd.f32 0.0, %v8250
  %v8252 = vpop.f32.mrf.mxu0
  %8253 = vmatprep.mubr.bf16.mxu0 %v8120
  %8254 = vmatmul.mubr.bf16.gmra.mxu0 %v8119
  %v8255 = vpop.f32.mrf.mxu0
  %v8256 = vadd.f32 0.0, %v8255
  %v8257 = vpop.f32.mrf.mxu0
  %v8258 = vpop.f32.mrf.mxu0
  %v8259 = vadd.f32 0.0, %v8258
  %v8260 = vpop.f32.mrf.mxu0
  %8261 = vmatprep.mubr.bf16.mxu0 %v8123
  %8262 = vmatmul.mubr.bf16.gmra.mxu0 %v8122
  %v8263 = vpop.f32.mrf.mxu0
  %v8264 = vadd.f32 0.0, %v8263
  %v8265 = vpop.f32.mrf.mxu0
  %v8266 = vpop.f32.mrf.mxu0
  %v8267 = vadd.f32 0.0, %v8266
  %v8268 = vpop.f32.mrf.mxu0
  %8269 = vmatprep.mubr.bf16.mxu0 %v8126
  %8270 = vmatmul.mubr.bf16.gmra.mxu0 %v8125
  %v8271 = vpop.f32.mrf.mxu0
  %v8272 = vadd.f32 0.0, %v8271
  %v8273 = vpop.f32.mrf.mxu0
  %v8274 = vpop.f32.mrf.mxu0
  %v8275 = vadd.f32 0.0, %v8274
  %v8276 = vpop.f32.mrf.mxu0
  %8277 = vmatprep.mubr.bf16.mxu0 %v8129
  %8278 = vmatmul.mubr.bf16.gmra.mxu0 %v8128
  %v8279 = vpop.f32.mrf.mxu0
  %v8280 = vadd.f32 0.0, %v8279
  %v8281 = vpop.f32.mrf.mxu0
  %v8282 = vpop.f32.mrf.mxu0
  %v8283 = vpop.f32.mrf.mxu0
  %8284 = vdwg.mxu0
  %8285 = vmatprep.subr.bf16.mxu0 0
  %8286 = vmatpush1.bf16.msra.mxu0 0
  %8287 = vmatprep.subr.bf16.mxu0 0
  %8288 = vmatpush1.bf16.msra.mxu0 0
  %8289 = vmatprep.subr.bf16.mxu0 0
  %8290 = vmatpush1.bf16.msra.mxu0 0
  %8291 = vmatprep.subr.bf16.mxu0 0
  %8292 = vmatpush1.bf16.msra.mxu0 0
  %8293 = vmatprep.subr.bf16.mxu0 0
  %8294 = vmatpush1.bf16.msra.mxu0 0
  %8295 = vmatprep.subr.bf16.mxu0 0
  %8296 = vmatpush1.bf16.msra.mxu0 0
  %8297 = vmatprep.subr.bf16.mxu0 0
  %8298 = vmatpush1.bf16.msra.mxu0 0
  %8299 = vmatprep.subr.bf16.mxu0 0
  %8300 = vmatpush1.bf16.msra.mxu0 %v8179
  %8301 = vmatprep.subr.bf16.mxu0 0
  %8302 = vmatpush2.bf16.msra.mxu0 0
  %8303 = vmatprep.subr.bf16.mxu0 0
  %8304 = vmatpush2.bf16.msra.mxu0 0
  %8305 = vmatprep.subr.bf16.mxu0 0
  %8306 = vmatpush2.bf16.msra.mxu0 0
  %8307 = vmatprep.subr.bf16.mxu0 0
  %8308 = vmatpush2.bf16.msra.mxu0 0
  %8309 = vmatprep.subr.bf16.mxu0 0
  %8310 = vmatpush2.bf16.msra.mxu0 0
  %8311 = vmatprep.subr.bf16.mxu0 0
  %8312 = vmatpush2.bf16.msra.mxu0 0
  %8313 = vmatprep.subr.bf16.mxu0 0
  %8314 = vmatpush2.bf16.msra.mxu0 0
  %8315 = vmatprep.subr.bf16.mxu0 0
  %8316 = vmatpush2.bf16.msra.mxu0 0
  %8317 = vmatprep.mubr.bf16.mxu0 0
  %8318 = vmatmul.mubr.bf16.gmra.mxu0 %v8151
  %v8319 = vpop.f32.mrf.mxu0
  %v8320 = vadd.f32 %v8216, %v8319
  %v8321 = vpop.f32.mrf.mxu0
  %v8322 = vpop.f32.mrf.mxu0
  %v8323 = vadd.f32 %v8219, %v8322
  %v8324 = vpop.f32.mrf.mxu0
  %8325 = vmatprep.mubr.bf16.mxu0 0
  %8326 = vmatmul.mubr.bf16.gmra.mxu0 %v8154
  %v8327 = vpop.f32.mrf.mxu0
  %v8328 = vadd.f32 %v8224, %v8327
  %v8329 = vpop.f32.mrf.mxu0
  %v8330 = vpop.f32.mrf.mxu0
  %v8331 = vadd.f32 %v8227, %v8330
  %v8332 = vpop.f32.mrf.mxu0
  %8333 = vmatprep.mubr.bf16.mxu0 0
  %8334 = vmatmul.mubr.bf16.gmra.mxu0 %v8157
  %v8335 = vpop.f32.mrf.mxu0
  %v8336 = vadd.f32 %v8232, %v8335
  %v8337 = vpop.f32.mrf.mxu0
  %v8338 = vpop.f32.mrf.mxu0
  %v8339 = vadd.f32 %v8235, %v8338
  %v8340 = vpop.f32.mrf.mxu0
  %8341 = vmatprep.mubr.bf16.mxu0 0
  %8342 = vmatmul.mubr.bf16.gmra.mxu0 %v8160
  %v8343 = vpop.f32.mrf.mxu0
  %v8344 = vadd.f32 %v8240, %v8343
  %v8345 = vpop.f32.mrf.mxu0
  %v8346 = vpop.f32.mrf.mxu0
  %v8347 = vadd.f32 %v8243, %v8346
  %v8348 = vpop.f32.mrf.mxu0
  %8349 = vmatprep.mubr.bf16.mxu0 0
  %8350 = vmatmul.mubr.bf16.gmra.mxu0 %v8163
  %v8351 = vpop.f32.mrf.mxu0
  %v8352 = vadd.f32 %v8248, %v8351
  %v8353 = vpop.f32.mrf.mxu0
  %v8354 = vpop.f32.mrf.mxu0
  %v8355 = vadd.f32 %v8251, %v8354
  %v8356 = vpop.f32.mrf.mxu0
  %8357 = vmatprep.mubr.bf16.mxu0 0
  %8358 = vmatmul.mubr.bf16.gmra.mxu0 %v8166
  %v8359 = vpop.f32.mrf.mxu0
  %v8360 = vadd.f32 %v8256, %v8359
  %v8361 = vpop.f32.mrf.mxu0
  %v8362 = vpop.f32.mrf.mxu0
  %v8363 = vadd.f32 %v8259, %v8362
  %v8364 = vpop.f32.mrf.mxu0
  %8365 = vmatprep.mubr.bf16.mxu0 0
  %8366 = vmatmul.mubr.bf16.gmra.mxu0 %v8169
  %v8367 = vpop.f32.mrf.mxu0
  %v8368 = vadd.f32 %v8264, %v8367
  %v8369 = vpop.f32.mrf.mxu0
  %v8370 = vpop.f32.mrf.mxu0
  %v8371 = vadd.f32 %v8267, %v8370
  %v8372 = vpop.f32.mrf.mxu0
  %8373 = vmatprep.mubr.bf16.mxu0 0
  %8374 = vmatmul.mubr.bf16.gmra.mxu0 %v8172
  %v8375 = vpop.f32.mrf.mxu0
  %v8376 = vadd.f32 %v8272, %v8375
  %v8377 = vpop.f32.mrf.mxu0
  %v8378 = vpop.f32.mrf.mxu0
  %v8379 = vadd.f32 %v8275, %v8378
  %v8380 = vpop.f32.mrf.mxu0
  %8381 = vmatprep.mubr.bf16.mxu0 0
  %8382 = vmatmul.mubr.bf16.gmra.mxu0 %v8175
  %v8383 = vpop.f32.mrf.mxu0
  %v8384 = vadd.f32 %v8280, %v8383
  %v8385 = vpop.f32.mrf.mxu0
  %v8386 = vpop.f32.mrf.mxu0
  %v8387 = vpop.f32.mrf.mxu0
  %8388 = vdwg.mxu0
  %v8389 = vld [vmem:[%s17] sm:$0xff]
  %v8390 = vld [vmem:[%s17 + $0x8] sm:$0xf]
  %v8391 = vld [vmem:[%s17 + $0xc] sm:$0xff]
  %v8392 = vld [vmem:[%s17 + $0x14] sm:$0xf]
  %v8393 = vld [vmem:[%s17 + $0x18] sm:$0xff]
  %v8394 = vld [vmem:[%s17 + $0x20] sm:$0xf]
  %v8395 = vld [vmem:[%s17 + $0x24] sm:$0xff]
  %v8396 = vld [vmem:[%s17 + $0x2c] sm:$0xf]
  %v8397 = vld [vmem:[%s17 + $0x30] sm:$0xff]
  %v8398 = vld [vmem:[%s17 + $0x38] sm:$0xf]
  %v8399 = vld [vmem:[%s17 + $0x3c] sm:$0xff]
  %v8400 = vld [vmem:[%s17 + $0x44] sm:$0xf]
  %v8401 = vld [vmem:[%s17 + $0x48] sm:$0xff]
  %v8402 = vld [vmem:[%s17 + $0x50] sm:$0xf]
  %v8403 = vld [vmem:[%s17 + $0x54] sm:$0xff]
  %v8404 = vld [vmem:[%s17 + $0x5c] sm:$0xf]
  %v8405 = vld [vmem:[%s17 + $0x60] sm:$0xff]
  %v8406 = vld [vmem:[%s17 + $0x68] sm:$0xf]
  %v8407 = vld [vmem:[%s17 + $0x6c] sm:$0xff]
  %v8408 = vld [vmem:[%s17 + $0x74] sm:$0xf]
  %v8409 = vld [vmem:[%s17 + $0x78] sm:$0xff]
  %v8410 = vld [vmem:[%s17 + $0x80] sm:$0xf]
  %v8411 = vld [vmem:[%s17 + $0x84] sm:$0xff]
  %v8412 = vld [vmem:[%s17 + $0x8c] sm:$0xf]
  %v8413 = vld [vmem:[%s17 + $0x90] sm:$0xff]
  %v8414 = vld [vmem:[%s17 + $0x98] sm:$0xf]
  %v8415 = vld [vmem:[%s17 + $0x9c] sm:$0xff]
  %v8416 = vld [vmem:[%s17 + $0xa4] sm:$0xf]
  %v8417 = vld [vmem:[%s17 + $0xa8] sm:$0xff]
  %v8418 = vld [vmem:[%s17 + $0xb0] sm:$0xf]
  %v8419 = vld [vmem:[%s17 + $0xb4] sm:$0xff]
  %v8420 = vld [vmem:[%s17 + $0xbc] sm:$0xf]
  %v8421 = vld [vmem:[%s17 + $0xc0] sm:$0x33]
  %v8422 = vld [vmem:[%s17 + $0xc8] sm:$0x3]
  %v8457 = vunpack.c.l.b16 %v8389
  %v8458 = vunpack.c.h.b16 %v8389
  %v8459 = vunpack.c.l.b16 %v8390
  %v8460 = vunpack.c.l.b16 %v8391
  %v8461 = vunpack.c.h.b16 %v8391
  %v8462 = vunpack.c.l.b16 %v8392
  %v8463 = vunpack.c.l.b16 %v8393
  %v8464 = vunpack.c.h.b16 %v8393
  %v8465 = vunpack.c.l.b16 %v8394
  %v8466 = vunpack.c.l.b16 %v8395
  %v8467 = vunpack.c.h.b16 %v8395
  %v8468 = vunpack.c.l.b16 %v8396
  %v8469 = vunpack.c.l.b16 %v8397
  %v8470 = vunpack.c.h.b16 %v8397
  %v8471 = vunpack.c.l.b16 %v8398
  %v8472 = vunpack.c.l.b16 %v8399
  %v8473 = vunpack.c.h.b16 %v8399
  %v8474 = vunpack.c.l.b16 %v8400
  %v8475 = vunpack.c.l.b16 %v8401
  %v8476 = vunpack.c.h.b16 %v8401
  %v8477 = vunpack.c.l.b16 %v8402
  %v8478 = vunpack.c.l.b16 %v8403
  %v8479 = vunpack.c.h.b16 %v8403
  %v8480 = vunpack.c.l.b16 %v8404
  %v8481 = vunpack.c.l.b16 %v8405
  %v8482 = vunpack.c.h.b16 %v8405
  %v8483 = vunpack.c.l.b16 %v8406
  %v8484 = vunpack.c.l.b16 %v8407
  %v8485 = vunpack.c.h.b16 %v8407
  %v8486 = vunpack.c.l.b16 %v8408
  %v8487 = vunpack.c.l.b16 %v8409
  %v8488 = vunpack.c.h.b16 %v8409
  %v8489 = vunpack.c.l.b16 %v8410
  %v8490 = vunpack.c.l.b16 %v8411
  %v8491 = vunpack.c.h.b16 %v8411
  %v8492 = vunpack.c.l.b16 %v8412
  %v8493 = vunpack.c.l.b16 %v8413
  %v8494 = vunpack.c.h.b16 %v8413
  %v8495 = vunpack.c.l.b16 %v8414
  %v8496 = vunpack.c.l.b16 %v8415
  %v8497 = vunpack.c.h.b16 %v8415
  %v8498 = vunpack.c.l.b16 %v8416
  %v8499 = vunpack.c.l.b16 %v8417
  %v8500 = vunpack.c.h.b16 %v8417
  %v8501 = vunpack.c.l.b16 %v8418
  %v8502 = vunpack.c.l.b16 %v8419
  %v8503 = vunpack.c.h.b16 %v8419
  %v8504 = vunpack.c.l.b16 %v8420
  %v8505 = vunpack.c.l.b16 %v8421
  %v8506 = vunpack.c.h.b16 %v8421
  %v8507 = vunpack.c.l.b16 %v8422
  %v8508 = vpack.c.b16 %v8460, %v8457
  %v8509 = vpack.c.b16 %v8461, %v8458
  %v8510 = vpack.c.b16 %v8462, %v8459
  %v8511 = vpack.c.b16 %v8466, %v8463
  %v8512 = vpack.c.b16 %v8467, %v8464
  %v8513 = vpack.c.b16 %v8468, %v8465
  %v8514 = vpack.c.b16 %v8472, %v8469
  %v8515 = vpack.c.b16 %v8473, %v8470
  %v8516 = vpack.c.b16 %v8474, %v8471
  %v8517 = vpack.c.b16 %v8478, %v8475
  %v8518 = vpack.c.b16 %v8479, %v8476
  %v8519 = vpack.c.b16 %v8480, %v8477
  %v8520 = vpack.c.b16 %v8484, %v8481
  %v8521 = vpack.c.b16 %v8485, %v8482
  %v8522 = vpack.c.b16 %v8486, %v8483
  %v8523 = vpack.c.b16 %v8490, %v8487
  %v8524 = vpack.c.b16 %v8491, %v8488
  %v8525 = vpack.c.b16 %v8492, %v8489
  %v8526 = vpack.c.b16 %v8496, %v8493
  %v8527 = vpack.c.b16 %v8497, %v8494
  %v8528 = vpack.c.b16 %v8498, %v8495
  %v8529 = vpack.c.b16 %v8502, %v8499
  %v8530 = vpack.c.b16 %v8503, %v8500
  %v8531 = vpack.c.b16 %v8504, %v8501
  %v8532 = vpack.c.b16 %v8505, %v8505
  %v8533 = vpack.c.b16 %v8506, %v8506
  %v8534 = vpack.c.b16 %v8507, %v8507
  %v8554 = vsel %vm8149, %v8510, 0
  %v8557 = vsel %vm8149, %v8513, 0
  %v8560 = vsel %vm8149, %v8516, 0
  %v8563 = vsel %vm8149, %v8519, 0
  %v8566 = vsel %vm8149, %v8522, 0
  %v8569 = vsel %vm8149, %v8525, 0
  %v8572 = vsel %vm8149, %v8528, 0
  %v8575 = vsel %vm8149, %v8531, 0
  %v8578 = vsel %vm8149, %v8534, 0
  %8580 = vmatprep.subr.bf16.mxu0 0
  %8581 = vmatpush1.bf16.msra.mxu0 %v8009
  %8582 = vmatprep.subr.bf16.mxu0 0
  %8583 = vmatpush1.bf16.msra.mxu0 %v8008
  %8584 = vmatprep.subr.bf16.mxu0 0
  %8585 = vmatpush1.bf16.msra.mxu0 %v8007
  %8586 = vmatprep.subr.bf16.mxu0 0
  %8587 = vmatpush1.bf16.msra.mxu0 %v8006
  %8588 = vmatprep.subr.bf16.mxu0 0
  %8589 = vmatpush1.bf16.msra.mxu0 %v8005
  %8590 = vmatprep.subr.bf16.mxu0 0
  %8591 = vmatpush1.bf16.msra.mxu0 %v8004
  %8592 = vmatprep.subr.bf16.mxu0 0
  %8593 = vmatpush1.bf16.msra.mxu0 %v8003
  %8594 = vmatprep.subr.bf16.mxu0 0
  %8595 = vmatpush1.bf16.msra.mxu0 %v8002
  %8596 = vmatprep.subr.bf16.mxu0 0
  %8597 = vmatpush2.bf16.msra.mxu0 %v8017
  %8598 = vmatprep.subr.bf16.mxu0 0
  %8599 = vmatpush2.bf16.msra.mxu0 %v8016
  %8600 = vmatprep.subr.bf16.mxu0 0
  %8601 = vmatpush2.bf16.msra.mxu0 %v8015
  %8602 = vmatprep.subr.bf16.mxu0 0
  %8603 = vmatpush2.bf16.msra.mxu0 %v8014
  %8604 = vmatprep.subr.bf16.mxu0 0
  %8605 = vmatpush2.bf16.msra.mxu0 %v8013
  %8606 = vmatprep.subr.bf16.mxu0 0
  %8607 = vmatpush2.bf16.msra.mxu0 %v8012
  %8608 = vmatprep.subr.bf16.mxu0 0
  %8609 = vmatpush2.bf16.msra.mxu0 %v8011
  %8610 = vmatprep.subr.bf16.mxu0 0
  %8611 = vmatpush2.bf16.msra.mxu0 %v8010
  %8612 = vmatprep.mubr.bf16.mxu0 %v8509
  %8613 = vmatmul.mubr.bf16.gmra.mxu0 %v8508
  %v8614 = vpop.f32.mrf.mxu0
  %v8615 = vadd.f32 0.0, %v8614
  %v8616 = vpop.f32.mrf.mxu0
  %v8617 = vpop.f32.mrf.mxu0
  %v8618 = vadd.f32 0.0, %v8617
  %v8619 = vpop.f32.mrf.mxu0
  %8620 = vmatprep.mubr.bf16.mxu0 %v8512
  %8621 = vmatmul.mubr.bf16.gmra.mxu0 %v8511
  %v8622 = vpop.f32.mrf.mxu0
  %v8623 = vadd.f32 0.0, %v8622
  %v8624 = vpop.f32.mrf.mxu0
  %v8625 = vpop.f32.mrf.mxu0
  %v8626 = vadd.f32 0.0, %v8625
  %v8627 = vpop.f32.mrf.mxu0
  %8628 = vmatprep.mubr.bf16.mxu0 %v8515
  %8629 = vmatmul.mubr.bf16.gmra.mxu0 %v8514
  %v8630 = vpop.f32.mrf.mxu0
  %v8631 = vadd.f32 0.0, %v8630
  %v8632 = vpop.f32.mrf.mxu0
  %v8633 = vpop.f32.mrf.mxu0
  %v8634 = vadd.f32 0.0, %v8633
  %v8635 = vpop.f32.mrf.mxu0
  %8636 = vmatprep.mubr.bf16.mxu0 %v8518
  %8637 = vmatmul.mubr.bf16.gmra.mxu0 %v8517
  %v8638 = vpop.f32.mrf.mxu0
  %v8639 = vadd.f32 0.0, %v8638
  %v8640 = vpop.f32.mrf.mxu0
  %v8641 = vpop.f32.mrf.mxu0
  %v8642 = vadd.f32 0.0, %v8641
  %v8643 = vpop.f32.mrf.mxu0
  %8644 = vmatprep.mubr.bf16.mxu0 %v8521
  %8645 = vmatmul.mubr.bf16.gmra.mxu0 %v8520
  %v8646 = vpop.f32.mrf.mxu0
  %v8647 = vadd.f32 0.0, %v8646
  %v8648 = vpop.f32.mrf.mxu0
  %v8649 = vpop.f32.mrf.mxu0
  %v8650 = vadd.f32 0.0, %v8649
  %v8651 = vpop.f32.mrf.mxu0
  %8652 = vmatprep.mubr.bf16.mxu0 %v8524
  %8653 = vmatmul.mubr.bf16.gmra.mxu0 %v8523
  %v8654 = vpop.f32.mrf.mxu0
  %v8655 = vadd.f32 0.0, %v8654
  %v8656 = vpop.f32.mrf.mxu0
  %v8657 = vpop.f32.mrf.mxu0
  %v8658 = vadd.f32 0.0, %v8657
  %v8659 = vpop.f32.mrf.mxu0
  %8660 = vmatprep.mubr.bf16.mxu0 %v8527
  %8661 = vmatmul.mubr.bf16.gmra.mxu0 %v8526
  %v8662 = vpop.f32.mrf.mxu0
  %v8663 = vadd.f32 0.0, %v8662
  %v8664 = vpop.f32.mrf.mxu0
  %v8665 = vpop.f32.mrf.mxu0
  %v8666 = vadd.f32 0.0, %v8665
  %v8667 = vpop.f32.mrf.mxu0
  %8668 = vmatprep.mubr.bf16.mxu0 %v8530
  %8669 = vmatmul.mubr.bf16.gmra.mxu0 %v8529
  %v8670 = vpop.f32.mrf.mxu0
  %v8671 = vadd.f32 0.0, %v8670
  %v8672 = vpop.f32.mrf.mxu0
  %v8673 = vpop.f32.mrf.mxu0
  %v8674 = vadd.f32 0.0, %v8673
  %v8675 = vpop.f32.mrf.mxu0
  %8676 = vmatprep.mubr.bf16.mxu0 %v8533
  %8677 = vmatmul.mubr.bf16.gmra.mxu0 %v8532
  %v8678 = vpop.f32.mrf.mxu0
  %v8679 = vadd.f32 0.0, %v8678
  %v8680 = vpop.f32.mrf.mxu0
  %v8681 = vpop.f32.mrf.mxu0
  %v8682 = vpop.f32.mrf.mxu0
  %8683 = vdwg.mxu0
  %8684 = vmatprep.subr.bf16.mxu0 0
  %8685 = vmatpush1.bf16.msra.mxu0 0
  %8686 = vmatprep.subr.bf16.mxu0 0
  %8687 = vmatpush1.bf16.msra.mxu0 0
  %8688 = vmatprep.subr.bf16.mxu0 0
  %8689 = vmatpush1.bf16.msra.mxu0 0
  %8690 = vmatprep.subr.bf16.mxu0 0
  %8691 = vmatpush1.bf16.msra.mxu0 0
  %8692 = vmatprep.subr.bf16.mxu0 0
  %8693 = vmatpush1.bf16.msra.mxu0 0
  %8694 = vmatprep.subr.bf16.mxu0 0
  %8695 = vmatpush1.bf16.msra.mxu0 0
  %8696 = vmatprep.subr.bf16.mxu0 0
  %8697 = vmatpush1.bf16.msra.mxu0 0
  %8698 = vmatprep.subr.bf16.mxu0 0
  %8699 = vmatpush1.bf16.msra.mxu0 %v8179
  %8700 = vmatprep.subr.bf16.mxu0 0
  %8701 = vmatpush2.bf16.msra.mxu0 0
  %8702 = vmatprep.subr.bf16.mxu0 0
  %8703 = vmatpush2.bf16.msra.mxu0 0
  %8704 = vmatprep.subr.bf16.mxu0 0
  %8705 = vmatpush2.bf16.msra.mxu0 0
  %8706 = vmatprep.subr.bf16.mxu0 0
  %8707 = vmatpush2.bf16.msra.mxu0 0
  %8708 = vmatprep.subr.bf16.mxu0 0
  %8709 = vmatpush2.bf16.msra.mxu0 0
  %8710 = vmatprep.subr.bf16.mxu0 0
  %8711 = vmatpush2.bf16.msra.mxu0 0
  %8712 = vmatprep.subr.bf16.mxu0 0
  %8713 = vmatpush2.bf16.msra.mxu0 0
  %8714 = vmatprep.subr.bf16.mxu0 0
  %8715 = vmatpush2.bf16.msra.mxu0 0
  %8716 = vmatprep.mubr.bf16.mxu0 0
  %8717 = vmatmul.mubr.bf16.gmra.mxu0 %v8554
  %v8718 = vpop.f32.mrf.mxu0
  %v8719 = vadd.f32 %v8615, %v8718
  %v8720 = vpop.f32.mrf.mxu0
  %v8721 = vpop.f32.mrf.mxu0
  %v8722 = vadd.f32 %v8618, %v8721
  %v8723 = vpop.f32.mrf.mxu0
  %8724 = vmatprep.mubr.bf16.mxu0 0
  %8725 = vmatmul.mubr.bf16.gmra.mxu0 %v8557
  %v8726 = vpop.f32.mrf.mxu0
  %v8727 = vadd.f32 %v8623, %v8726
  %v8728 = vpop.f32.mrf.mxu0
  %v8729 = vpop.f32.mrf.mxu0
  %v8730 = vadd.f32 %v8626, %v8729
  %v8731 = vpop.f32.mrf.mxu0
  %8732 = vmatprep.mubr.bf16.mxu0 0
  %8733 = vmatmul.mubr.bf16.gmra.mxu0 %v8560
  %v8734 = vpop.f32.mrf.mxu0
  %v8735 = vadd.f32 %v8631, %v8734
  %v8736 = vpop.f32.mrf.mxu0
  %v8737 = vpop.f32.mrf.mxu0
  %v8738 = vadd.f32 %v8634, %v8737
  %v8739 = vpop.f32.mrf.mxu0
  %8740 = vmatprep.mubr.bf16.mxu0 0
  %8741 = vmatmul.mubr.bf16.gmra.mxu0 %v8563
  %v8742 = vpop.f32.mrf.mxu0
  %v8743 = vadd.f32 %v8639, %v8742
  %v8744 = vpop.f32.mrf.mxu0
  %v8745 = vpop.f32.mrf.mxu0
  %v8746 = vadd.f32 %v8642, %v8745
  %v8747 = vpop.f32.mrf.mxu0
  %8748 = vmatprep.mubr.bf16.mxu0 0
  %8749 = vmatmul.mubr.bf16.gmra.mxu0 %v8566
  %v8750 = vpop.f32.mrf.mxu0
  %v8751 = vadd.f32 %v8647, %v8750
  %v8752 = vpop.f32.mrf.mxu0
  %v8753 = vpop.f32.mrf.mxu0
  %v8754 = vadd.f32 %v8650, %v8753
  %v8755 = vpop.f32.mrf.mxu0
  %8756 = vmatprep.mubr.bf16.mxu0 0
  %8757 = vmatmul.mubr.bf16.gmra.mxu0 %v8569
  %v8758 = vpop.f32.mrf.mxu0
  %v8759 = vadd.f32 %v8655, %v8758
  %v8760 = vpop.f32.mrf.mxu0
  %v8761 = vpop.f32.mrf.mxu0
  %v8762 = vadd.f32 %v8658, %v8761
  %v8763 = vpop.f32.mrf.mxu0
  %8764 = vmatprep.mubr.bf16.mxu0 0
  %8765 = vmatmul.mubr.bf16.gmra.mxu0 %v8572
  %v8766 = vpop.f32.mrf.mxu0
  %v8767 = vadd.f32 %v8663, %v8766
  %v8768 = vpop.f32.mrf.mxu0
  %v8769 = vpop.f32.mrf.mxu0
  %v8770 = vadd.f32 %v8666, %v8769
  %v8771 = vpop.f32.mrf.mxu0
  %8772 = vmatprep.mubr.bf16.mxu0 0
  %8773 = vmatmul.mubr.bf16.gmra.mxu0 %v8575
  %v8774 = vpop.f32.mrf.mxu0
  %v8775 = vadd.f32 %v8671, %v8774
  %v8776 = vpop.f32.mrf.mxu0
  %v8777 = vpop.f32.mrf.mxu0
  %v8778 = vadd.f32 %v8674, %v8777
  %v8779 = vpop.f32.mrf.mxu0
  %8780 = vmatprep.mubr.bf16.mxu0 0
  %8781 = vmatmul.mubr.bf16.gmra.mxu0 %v8578
  %v8782 = vpop.f32.mrf.mxu0
  %v8783 = vadd.f32 %v8679, %v8782
  %v8784 = vpop.f32.mrf.mxu0
  %v8785 = vpop.f32.mrf.mxu0
  %v8786 = vpop.f32.mrf.mxu0
  %8787 = vdwg.mxu0
  %v8788 = vmax.f32 %v8320, %v8719
  %v8789 = vmax.f32 %v8323, %v8722
  %v8790 = vmax.f32 %v8328, %v8727
  %v8791 = vmax.f32 %v8331, %v8730
  %v8792 = vmax.f32 %v8336, %v8735
  %v8793 = vmax.f32 %v8339, %v8738
  %v8794 = vmax.f32 %v8344, %v8743
  %v8795 = vmax.f32 %v8347, %v8746
  %v8796 = vmax.f32 %v8352, %v8751
  %v8797 = vmax.f32 %v8355, %v8754
  %v8798 = vmax.f32 %v8360, %v8759
  %v8799 = vmax.f32 %v8363, %v8762
  %v8800 = vmax.f32 %v8368, %v8767
  %v8801 = vmax.f32 %v8371, %v8770
  %v8802 = vmax.f32 %v8376, %v8775
  %v8803 = vmax.f32 %v8379, %v8778
  %v8804 = vmax.f32 %v8384, %v8783
  %v8805 = vld [vmem:[%s18] sm:$0xff]
  %v8806 = vld [vmem:[%s18 + $0x8] sm:$0xff]
  %v8807 = vld [vmem:[%s18 + $0x10] sm:$0xff]
  %v8808 = vld [vmem:[%s18 + $0x18] sm:$0xff]
  %v8809 = vld [vmem:[%s18 + $0x20] sm:$0xff]
  %v8810 = vld [vmem:[%s18 + $0x28] sm:$0x33]
  %v8811 = vpack.c.bf16 %v8789, %v8788
  %v8812 = vpack.c.bf16 %v8791, %v8790
  %v8813 = vpack.c.bf16 %v8793, %v8792
  %v8814 = vpack.c.bf16 %v8795, %v8794
  %v8815 = vpack.c.bf16 %v8797, %v8796
  %v8816 = vpack.c.bf16 %v8799, %v8798
  %v8817 = vpack.c.bf16 %v8801, %v8800
  %v8818 = vpack.c.bf16 %v8803, %v8802
  %v8819 = vpack.c.bf16 %v8804, %v8804
  %v8826 = vunpack.c.l.b16 %v8805
  %v8827 = vunpack.c.h.b16 %v8805
  %v8828 = vunpack.c.l.b16 %v8806
  %v8829 = vunpack.c.h.b16 %v8806
  %v8830 = vunpack.c.l.b16 %v8807
  %v8831 = vunpack.c.h.b16 %v8807
  %v8832 = vunpack.c.l.b16 %v8808
  %v8833 = vunpack.c.h.b16 %v8808
  %v8834 = vunpack.c.l.b16 %v8809
  %v8835 = vunpack.c.h.b16 %v8809
  %v8836 = vunpack.c.l.b16 %v8810
  %v8837 = vunpack.c.h.b16 %v8810
  %v8838 = vpack.c.b16 %v8828, %v8826
  %v8839 = vpack.c.b16 %v8829, %v8827
  %v8840 = vpack.c.b16 %v8832, %v8830
  %v8841 = vpack.c.b16 %v8833, %v8831
  %v8842 = vpack.c.b16 %v8836, %v8834
  %v8843 = vpack.c.b16 %v8837, %v8835
  %vm8847 = vcmask 31744
  %v8849 = vsel %vm8847, %v8839, 0
  %v8852 = vsel %vm8847, %v8841, 0
  %v8855 = vsel %vm8847, %v8843, 0
  %v8858 = vsel %vm314, %v8819, 0
  %8860 = vmatprep.subr.bf16.mxu0 0
  %8861 = vmatpush1.bf16.msra.mxu0 %v8818
  %8862 = vmatprep.subr.bf16.mxu0 0
  %8863 = vmatpush1.bf16.msra.mxu0 %v8817
  %8864 = vmatprep.subr.bf16.mxu0 0
  %8865 = vmatpush1.bf16.msra.mxu0 %v8816
  %8866 = vmatprep.subr.bf16.mxu0 0
  %8867 = vmatpush1.bf16.msra.mxu0 %v8815
  %8868 = vmatprep.subr.bf16.mxu0 0
  %8869 = vmatpush1.bf16.msra.mxu0 %v8814
  %8870 = vmatprep.subr.bf16.mxu0 0
  %8871 = vmatpush1.bf16.msra.mxu0 %v8813
  %8872 = vmatprep.subr.bf16.mxu0 0
  %8873 = vmatpush1.bf16.msra.mxu0 %v8812
  %8874 = vmatprep.subr.bf16.mxu0 0
  %8875 = vmatpush1.bf16.msra.mxu0 %v8811
  %8876 = vmatprep.subr.bf16.mxu0 0
  %8877 = vmatpush2.bf16.msra.mxu0 0
  %8878 = vmatprep.subr.bf16.mxu0 0
  %8879 = vmatpush2.bf16.msra.mxu0 0
  %8880 = vmatprep.subr.bf16.mxu0 0
  %8881 = vmatpush2.bf16.msra.mxu0 0
  %8882 = vmatprep.subr.bf16.mxu0 0
  %8883 = vmatpush2.bf16.msra.mxu0 0
  %8884 = vmatprep.subr.bf16.mxu0 0
  %8885 = vmatpush2.bf16.msra.mxu0 0
  %8886 = vmatprep.subr.bf16.mxu0 0
  %8887 = vmatpush2.bf16.msra.mxu0 0
  %8888 = vmatprep.subr.bf16.mxu0 0
  %8889 = vmatpush2.bf16.msra.mxu0 0
  %8890 = vmatprep.subr.bf16.mxu0 0
  %8891 = vmatpush2.bf16.msra.mxu0 %v8858
  %8892 = vmatprep.mubr.bf16.mxu0 %v8849
  %8893 = vmatmul.mubr.bf16.gmra.mxu0 %v8838
  %v8894 = vpop.f32.mrf.mxu0
  %v8895 = vadd.f32 0.0, %v8894
  %v8896 = vpop.f32.mrf.mxu0
  %v8897 = vpop.f32.mrf.mxu0
  %v8898 = vadd.f32 0.0, %v8897
  %v8899 = vpop.f32.mrf.mxu0
  %8900 = vmatprep.mubr.bf16.mxu0 %v8852
  %8901 = vmatmul.mubr.bf16.gmra.mxu0 %v8840
  %v8902 = vpop.f32.mrf.mxu0
  %v8903 = vadd.f32 0.0, %v8902
  %v8904 = vpop.f32.mrf.mxu0
  %v8905 = vpop.f32.mrf.mxu0
  %v8906 = vadd.f32 0.0, %v8905
  %v8907 = vpop.f32.mrf.mxu0
  %8908 = vmatprep.mubr.bf16.mxu0 %v8855
  %8909 = vmatmul.mubr.bf16.gmra.mxu0 %v8842
  %v8910 = vpop.f32.mrf.mxu0
  %v8911 = vadd.f32 0.0, %v8910
  %v8912 = vpop.f32.mrf.mxu0
  %v8913 = vpop.f32.mrf.mxu0
  %v8914 = vadd.f32 0.0, %v8913
  %v8915 = vpop.f32.mrf.mxu0
  %8916 = vdwg.mxu0
  %s8917 = scalar_lea.vmem %s18, 48
  %v8918 = vld [vmem:[%s8917] sm:$0xff]
  %v8919 = vld [vmem:[%s8917 + $0x8] sm:$0xff]
  %v8920 = vld [vmem:[%s8917 + $0x10] sm:$0xff]
  %v8921 = vld [vmem:[%s8917 + $0x18] sm:$0xff]
  %v8922 = vld [vmem:[%s8917 + $0x20] sm:$0xff]
  %v8923 = vld [vmem:[%s8917 + $0x28] sm:$0x33]
  %v8930 = vunpack.c.l.b16 %v8918
  %v8931 = vunpack.c.h.b16 %v8918
  %v8932 = vunpack.c.l.b16 %v8919
  %v8933 = vunpack.c.h.b16 %v8919
  %v8934 = vunpack.c.l.b16 %v8920
  %v8935 = vunpack.c.h.b16 %v8920
  %v8936 = vunpack.c.l.b16 %v8921
  %v8937 = vunpack.c.h.b16 %v8921
  %v8938 = vunpack.c.l.b16 %v8922
  %v8939 = vunpack.c.h.b16 %v8922
  %v8940 = vunpack.c.l.b16 %v8923
  %v8941 = vunpack.c.h.b16 %v8923
  %v8942 = vpack.c.b16 %v8932, %v8930
  %v8943 = vpack.c.b16 %v8933, %v8931
  %v8944 = vpack.c.b16 %v8936, %v8934
  %v8945 = vpack.c.b16 %v8937, %v8935
  %v8946 = vpack.c.b16 %v8940, %v8938
  %v8947 = vpack.c.b16 %v8941, %v8939
  %v8952 = vsel %vm8847, %v8943, 0
  %v8955 = vsel %vm8847, %v8945, 0
  %v8958 = vsel %vm8847, %v8947, 0
  %8960 = vmatprep.subr.bf16.mxu0 0
  %8961 = vmatpush1.bf16.msra.mxu0 %v8818
  %8962 = vmatprep.subr.bf16.mxu0 0
  %8963 = vmatpush1.bf16.msra.mxu0 %v8817
  %8964 = vmatprep.subr.bf16.mxu0 0
  %8965 = vmatpush1.bf16.msra.mxu0 %v8816
  %8966 = vmatprep.subr.bf16.mxu0 0
  %8967 = vmatpush1.bf16.msra.mxu0 %v8815
  %8968 = vmatprep.subr.bf16.mxu0 0
  %8969 = vmatpush1.bf16.msra.mxu0 %v8814
  %8970 = vmatprep.subr.bf16.mxu0 0
  %8971 = vmatpush1.bf16.msra.mxu0 %v8813
  %8972 = vmatprep.subr.bf16.mxu0 0
  %8973 = vmatpush1.bf16.msra.mxu0 %v8812
  %8974 = vmatprep.subr.bf16.mxu0 0
  %8975 = vmatpush1.bf16.msra.mxu0 %v8811
  %8976 = vmatprep.subr.bf16.mxu0 0
  %8977 = vmatpush2.bf16.msra.mxu0 0
  %8978 = vmatprep.subr.bf16.mxu0 0
  %8979 = vmatpush2.bf16.msra.mxu0 0
  %8980 = vmatprep.subr.bf16.mxu0 0
  %8981 = vmatpush2.bf16.msra.mxu0 0
  %8982 = vmatprep.subr.bf16.mxu0 0
  %8983 = vmatpush2.bf16.msra.mxu0 0
  %8984 = vmatprep.subr.bf16.mxu0 0
  %8985 = vmatpush2.bf16.msra.mxu0 0
  %8986 = vmatprep.subr.bf16.mxu0 0
  %8987 = vmatpush2.bf16.msra.mxu0 0
  %8988 = vmatprep.subr.bf16.mxu0 0
  %8989 = vmatpush2.bf16.msra.mxu0 0
  %8990 = vmatprep.subr.bf16.mxu0 0
  %8991 = vmatpush2.bf16.msra.mxu0 %v8858
  %8992 = vmatprep.mubr.bf16.mxu0 %v8952
  %8993 = vmatmul.mubr.bf16.gmra.mxu0 %v8942
  %v8994 = vpop.f32.mrf.mxu0
  %v8995 = vadd.f32 0.0, %v8994
  %v8996 = vpop.f32.mrf.mxu0
  %v8997 = vpop.f32.mrf.mxu0
  %v8998 = vadd.f32 0.0, %v8997
  %v8999 = vpop.f32.mrf.mxu0
  %9000 = vmatprep.mubr.bf16.mxu0 %v8955
  %9001 = vmatmul.mubr.bf16.gmra.mxu0 %v8944
  %v9002 = vpop.f32.mrf.mxu0
  %v9003 = vadd.f32 0.0, %v9002
  %v9004 = vpop.f32.mrf.mxu0
  %v9005 = vpop.f32.mrf.mxu0
  %v9006 = vadd.f32 0.0, %v9005
  %v9007 = vpop.f32.mrf.mxu0
  %9008 = vmatprep.mubr.bf16.mxu0 %v8958
  %9009 = vmatmul.mubr.bf16.gmra.mxu0 %v8946
  %v9010 = vpop.f32.mrf.mxu0
  %v9011 = vadd.f32 0.0, %v9010
  %v9012 = vpop.f32.mrf.mxu0
  %v9013 = vpop.f32.mrf.mxu0
  %v9014 = vadd.f32 0.0, %v9013
  %v9015 = vpop.f32.mrf.mxu0
  %9016 = vdwg.mxu0
  %s9017 = scalar_lea.vmem %s18, 96
  %v9018 = vld [vmem:[%s9017] sm:$0xff]
  %v9019 = vld [vmem:[%s9017 + $0x8] sm:$0xff]
  %v9020 = vld [vmem:[%s9017 + $0x10] sm:$0xff]
  %v9021 = vld [vmem:[%s9017 + $0x18] sm:$0xff]
  %v9022 = vld [vmem:[%s9017 + $0x20] sm:$0xff]
  %v9023 = vld [vmem:[%s9017 + $0x28] sm:$0x33]
  %v9030 = vunpack.c.l.b16 %v9018
  %v9031 = vunpack.c.h.b16 %v9018
  %v9032 = vunpack.c.l.b16 %v9019
  %v9033 = vunpack.c.h.b16 %v9019
  %v9034 = vunpack.c.l.b16 %v9020
  %v9035 = vunpack.c.h.b16 %v9020
  %v9036 = vunpack.c.l.b16 %v9021
  %v9037 = vunpack.c.h.b16 %v9021
  %v9038 = vunpack.c.l.b16 %v9022
  %v9039 = vunpack.c.h.b16 %v9022
  %v9040 = vunpack.c.l.b16 %v9023
  %v9041 = vunpack.c.h.b16 %v9023
  %v9042 = vpack.c.b16 %v9032, %v9030
  %v9043 = vpack.c.b16 %v9033, %v9031
  %v9044 = vpack.c.b16 %v9036, %v9034
  %v9045 = vpack.c.b16 %v9037, %v9035
  %v9046 = vpack.c.b16 %v9040, %v9038
  %v9047 = vpack.c.b16 %v9041, %v9039
  %v9052 = vsel %vm8847, %v9043, 0
  %v9055 = vsel %vm8847, %v9045, 0
  %v9058 = vsel %vm8847, %v9047, 0
  %9060 = vmatprep.subr.bf16.mxu0 0
  %9061 = vmatpush1.bf16.msra.mxu0 %v8818
  %9062 = vmatprep.subr.bf16.mxu0 0
  %9063 = vmatpush1.bf16.msra.mxu0 %v8817
  %9064 = vmatprep.subr.bf16.mxu0 0
  %9065 = vmatpush1.bf16.msra.mxu0 %v8816
  %9066 = vmatprep.subr.bf16.mxu0 0
  %9067 = vmatpush1.bf16.msra.mxu0 %v8815
  %9068 = vmatprep.subr.bf16.mxu0 0
  %9069 = vmatpush1.bf16.msra.mxu0 %v8814
  %9070 = vmatprep.subr.bf16.mxu0 0
  %9071 = vmatpush1.bf16.msra.mxu0 %v8813
  %9072 = vmatprep.subr.bf16.mxu0 0
  %9073 = vmatpush1.bf16.msra.mxu0 %v8812
  %9074 = vmatprep.subr.bf16.mxu0 0
  %9075 = vmatpush1.bf16.msra.mxu0 %v8811
  %9076 = vmatprep.subr.bf16.mxu0 0
  %9077 = vmatpush2.bf16.msra.mxu0 0
  %9078 = vmatprep.subr.bf16.mxu0 0
  %9079 = vmatpush2.bf16.msra.mxu0 0
  %9080 = vmatprep.subr.bf16.mxu0 0
  %9081 = vmatpush2.bf16.msra.mxu0 0
  %9082 = vmatprep.subr.bf16.mxu0 0
  %9083 = vmatpush2.bf16.msra.mxu0 0
  %9084 = vmatprep.subr.bf16.mxu0 0
  %9085 = vmatpush2.bf16.msra.mxu0 0
  %9086 = vmatprep.subr.bf16.mxu0 0
  %9087 = vmatpush2.bf16.msra.mxu0 0
  %9088 = vmatprep.subr.bf16.mxu0 0
  %9089 = vmatpush2.bf16.msra.mxu0 0
  %9090 = vmatprep.subr.bf16.mxu0 0
  %9091 = vmatpush2.bf16.msra.mxu0 %v8858
  %9092 = vmatprep.mubr.bf16.mxu0 %v9052
  %9093 = vmatmul.mubr.bf16.gmra.mxu0 %v9042
  %v9094 = vpop.f32.mrf.mxu0
  %v9095 = vadd.f32 0.0, %v9094
  %v9096 = vpop.f32.mrf.mxu0
  %v9097 = vpop.f32.mrf.mxu0
  %v9098 = vadd.f32 0.0, %v9097
  %v9099 = vpop.f32.mrf.mxu0
  %9100 = vmatprep.mubr.bf16.mxu0 %v9055
  %9101 = vmatmul.mubr.bf16.gmra.mxu0 %v9044
  %v9102 = vpop.f32.mrf.mxu0
  %v9103 = vadd.f32 0.0, %v9102
  %v9104 = vpop.f32.mrf.mxu0
  %v9105 = vpop.f32.mrf.mxu0
  %v9106 = vadd.f32 0.0, %v9105
  %v9107 = vpop.f32.mrf.mxu0
  %9108 = vmatprep.mubr.bf16.mxu0 %v9058
  %9109 = vmatmul.mubr.bf16.gmra.mxu0 %v9046
  %v9110 = vpop.f32.mrf.mxu0
  %v9111 = vadd.f32 0.0, %v9110
  %v9112 = vpop.f32.mrf.mxu0
  %v9113 = vpop.f32.mrf.mxu0
  %v9114 = vadd.f32 0.0, %v9113
  %v9115 = vpop.f32.mrf.mxu0
  %9116 = vdwg.mxu0
  %s9117 = scalar_lea.vmem %s18, 144
  %v9118 = vld [vmem:[%s9117] sm:$0xff]
  %v9119 = vld [vmem:[%s9117 + $0x8] sm:$0xff]
  %v9120 = vld [vmem:[%s9117 + $0x10] sm:$0xff]
  %v9121 = vld [vmem:[%s9117 + $0x18] sm:$0xff]
  %v9122 = vld [vmem:[%s9117 + $0x20] sm:$0xff]
  %v9123 = vld [vmem:[%s9117 + $0x28] sm:$0x33]
  %v9130 = vunpack.c.l.b16 %v9118
  %v9131 = vunpack.c.h.b16 %v9118
  %v9132 = vunpack.c.l.b16 %v9119
  %v9133 = vunpack.c.h.b16 %v9119
  %v9134 = vunpack.c.l.b16 %v9120
  %v9135 = vunpack.c.h.b16 %v9120
  %v9136 = vunpack.c.l.b16 %v9121
  %v9137 = vunpack.c.h.b16 %v9121
  %v9138 = vunpack.c.l.b16 %v9122
  %v9139 = vunpack.c.h.b16 %v9122
  %v9140 = vunpack.c.l.b16 %v9123
  %v9141 = vunpack.c.h.b16 %v9123
  %v9142 = vpack.c.b16 %v9132, %v9130
  %v9143 = vpack.c.b16 %v9133, %v9131
  %v9144 = vpack.c.b16 %v9136, %v9134
  %v9145 = vpack.c.b16 %v9137, %v9135
  %v9146 = vpack.c.b16 %v9140, %v9138
  %v9147 = vpack.c.b16 %v9141, %v9139
  %v9152 = vsel %vm8847, %v9143, 0
  %v9155 = vsel %vm8847, %v9145, 0
  %v9158 = vsel %vm8847, %v9147, 0
  %9160 = vmatprep.subr.bf16.mxu0 0
  %9161 = vmatpush1.bf16.msra.mxu0 %v8818
  %9162 = vmatprep.subr.bf16.mxu0 0
  %9163 = vmatpush1.bf16.msra.mxu0 %v8817
  %9164 = vmatprep.subr.bf16.mxu0 0
  %9165 = vmatpush1.bf16.msra.mxu0 %v8816
  %9166 = vmatprep.subr.bf16.mxu0 0
  %9167 = vmatpush1.bf16.msra.mxu0 %v8815
  %9168 = vmatprep.subr.bf16.mxu0 0
  %9169 = vmatpush1.bf16.msra.mxu0 %v8814
  %9170 = vmatprep.subr.bf16.mxu0 0
  %9171 = vmatpush1.bf16.msra.mxu0 %v8813
  %9172 = vmatprep.subr.bf16.mxu0 0
  %9173 = vmatpush1.bf16.msra.mxu0 %v8812
  %9174 = vmatprep.subr.bf16.mxu0 0
  %9175 = vmatpush1.bf16.msra.mxu0 %v8811
  %9176 = vmatprep.subr.bf16.mxu0 0
  %9177 = vmatpush2.bf16.msra.mxu0 0
  %9178 = vmatprep.subr.bf16.mxu0 0
  %9179 = vmatpush2.bf16.msra.mxu0 0
  %9180 = vmatprep.subr.bf16.mxu0 0
  %9181 = vmatpush2.bf16.msra.mxu0 0
  %9182 = vmatprep.subr.bf16.mxu0 0
  %9183 = vmatpush2.bf16.msra.mxu0 0
  %9184 = vmatprep.subr.bf16.mxu0 0
  %9185 = vmatpush2.bf16.msra.mxu0 0
  %9186 = vmatprep.subr.bf16.mxu0 0
  %9187 = vmatpush2.bf16.msra.mxu0 0
  %9188 = vmatprep.subr.bf16.mxu0 0
  %9189 = vmatpush2.bf16.msra.mxu0 0
  %9190 = vmatprep.subr.bf16.mxu0 0
  %9191 = vmatpush2.bf16.msra.mxu0 %v8858
  %9192 = vmatprep.mubr.bf16.mxu0 %v9152
  %9193 = vmatmul.mubr.bf16.gmra.mxu0 %v9142
  %v9194 = vpop.f32.mrf.mxu0
  %v9195 = vadd.f32 0.0, %v9194
  %v9196 = vpop.f32.mrf.mxu0
  %v9197 = vpop.f32.mrf.mxu0
  %v9198 = vadd.f32 0.0, %v9197
  %v9199 = vpop.f32.mrf.mxu0
  %9200 = vmatprep.mubr.bf16.mxu0 %v9155
  %9201 = vmatmul.mubr.bf16.gmra.mxu0 %v9144
  %v9202 = vpop.f32.mrf.mxu0
  %v9203 = vadd.f32 0.0, %v9202
  %v9204 = vpop.f32.mrf.mxu0
  %v9205 = vpop.f32.mrf.mxu0
  %v9206 = vadd.f32 0.0, %v9205
  %v9207 = vpop.f32.mrf.mxu0
  %9208 = vmatprep.mubr.bf16.mxu0 %v9158
  %9209 = vmatmul.mubr.bf16.gmra.mxu0 %v9146
  %v9210 = vpop.f32.mrf.mxu0
  %v9211 = vadd.f32 0.0, %v9210
  %v9212 = vpop.f32.mrf.mxu0
  %v9213 = vpop.f32.mrf.mxu0
  %v9214 = vadd.f32 0.0, %v9213
  %v9215 = vpop.f32.mrf.mxu0
  %9216 = vdwg.mxu0
  %s9217 = scalar_lea.vmem %s18, 192
  %v9218 = vld [vmem:[%s9217] sm:$0xff]
  %v9219 = vld [vmem:[%s9217 + $0x8] sm:$0xff]
  %v9220 = vld [vmem:[%s9217 + $0x10] sm:$0xff]
  %v9221 = vld [vmem:[%s9217 + $0x18] sm:$0xff]
  %v9222 = vld [vmem:[%s9217 + $0x20] sm:$0xff]
  %v9223 = vld [vmem:[%s9217 + $0x28] sm:$0x33]
  %v9230 = vunpack.c.l.b16 %v9218
  %v9231 = vunpack.c.h.b16 %v9218
  %v9232 = vunpack.c.l.b16 %v9219
  %v9233 = vunpack.c.h.b16 %v9219
  %v9234 = vunpack.c.l.b16 %v9220
  %v9235 = vunpack.c.h.b16 %v9220
  %v9236 = vunpack.c.l.b16 %v9221
  %v9237 = vunpack.c.h.b16 %v9221
  %v9238 = vunpack.c.l.b16 %v9222
  %v9239 = vunpack.c.h.b16 %v9222
  %v9240 = vunpack.c.l.b16 %v9223
  %v9241 = vunpack.c.h.b16 %v9223
  %v9242 = vpack.c.b16 %v9232, %v9230
  %v9243 = vpack.c.b16 %v9233, %v9231
  %v9244 = vpack.c.b16 %v9236, %v9234
  %v9245 = vpack.c.b16 %v9237, %v9235
  %v9246 = vpack.c.b16 %v9240, %v9238
  %v9247 = vpack.c.b16 %v9241, %v9239
  %v9252 = vsel %vm8847, %v9243, 0
  %v9255 = vsel %vm8847, %v9245, 0
  %v9258 = vsel %vm8847, %v9247, 0
  %9260 = vmatprep.subr.bf16.mxu0 0
  %9261 = vmatpush1.bf16.msra.mxu0 %v8818
  %9262 = vmatprep.subr.bf16.mxu0 0
  %9263 = vmatpush1.bf16.msra.mxu0 %v8817
  %9264 = vmatprep.subr.bf16.mxu0 0
  %9265 = vmatpush1.bf16.msra.mxu0 %v8816
  %9266 = vmatprep.subr.bf16.mxu0 0
  %9267 = vmatpush1.bf16.msra.mxu0 %v8815
  %9268 = vmatprep.subr.bf16.mxu0 0
  %9269 = vmatpush1.bf16.msra.mxu0 %v8814
  %9270 = vmatprep.subr.bf16.mxu0 0
  %9271 = vmatpush1.bf16.msra.mxu0 %v8813
  %9272 = vmatprep.subr.bf16.mxu0 0
  %9273 = vmatpush1.bf16.msra.mxu0 %v8812
  %9274 = vmatprep.subr.bf16.mxu0 0
  %9275 = vmatpush1.bf16.msra.mxu0 %v8811
  %9276 = vmatprep.subr.bf16.mxu0 0
  %9277 = vmatpush2.bf16.msra.mxu0 0
  %9278 = vmatprep.subr.bf16.mxu0 0
  %9279 = vmatpush2.bf16.msra.mxu0 0
  %9280 = vmatprep.subr.bf16.mxu0 0
  %9281 = vmatpush2.bf16.msra.mxu0 0
  %9282 = vmatprep.subr.bf16.mxu0 0
  %9283 = vmatpush2.bf16.msra.mxu0 0
  %9284 = vmatprep.subr.bf16.mxu0 0
  %9285 = vmatpush2.bf16.msra.mxu0 0
  %9286 = vmatprep.subr.bf16.mxu0 0
  %9287 = vmatpush2.bf16.msra.mxu0 0
  %9288 = vmatprep.subr.bf16.mxu0 0
  %9289 = vmatpush2.bf16.msra.mxu0 0
  %9290 = vmatprep.subr.bf16.mxu0 0
  %9291 = vmatpush2.bf16.msra.mxu0 %v8858
  %9292 = vmatprep.mubr.bf16.mxu0 %v9252
  %9293 = vmatmul.mubr.bf16.gmra.mxu0 %v9242
  %v9294 = vpop.f32.mrf.mxu0
  %v9295 = vadd.f32 0.0, %v9294
  %v9296 = vpop.f32.mrf.mxu0
  %v9297 = vpop.f32.mrf.mxu0
  %v9298 = vadd.f32 0.0, %v9297
  %v9299 = vpop.f32.mrf.mxu0
  %9300 = vmatprep.mubr.bf16.mxu0 %v9255
  %9301 = vmatmul.mubr.bf16.gmra.mxu0 %v9244
  %v9302 = vpop.f32.mrf.mxu0
  %v9303 = vadd.f32 0.0, %v9302
  %v9304 = vpop.f32.mrf.mxu0
  %v9305 = vpop.f32.mrf.mxu0
  %v9306 = vadd.f32 0.0, %v9305
  %v9307 = vpop.f32.mrf.mxu0
  %9308 = vmatprep.mubr.bf16.mxu0 %v9258
  %9309 = vmatmul.mubr.bf16.gmra.mxu0 %v9246
  %v9310 = vpop.f32.mrf.mxu0
  %v9311 = vadd.f32 0.0, %v9310
  %v9312 = vpop.f32.mrf.mxu0
  %v9313 = vpop.f32.mrf.mxu0
  %v9314 = vadd.f32 0.0, %v9313
  %v9315 = vpop.f32.mrf.mxu0
  %9316 = vdwg.mxu0
  %9323 = vrot.lane.b32.xlu0 %v8995, 16
  %v9324 = vpop.permute.xlu0 %9323
  %9325 = vrot.lane.b32.xlu0 %v8998, 16
  %v9326 = vpop.permute.xlu0 %9325
  %9327 = vrot.lane.b32.xlu0 %v9003, 16
  %v9328 = vpop.permute.xlu0 %9327
  %9329 = vrot.lane.b32.xlu0 %v9006, 16
  %v9330 = vpop.permute.xlu0 %9329
  %9331 = vrot.lane.b32.xlu0 %v9011, 16
  %v9332 = vpop.permute.xlu0 %9331
  %9333 = vrot.lane.b32.xlu0 %v9014, 16
  %v9334 = vpop.permute.xlu0 %9333
  %9347 = vrot.lane.b32.xlu0 %v9095, 32
  %v9348 = vpop.permute.xlu0 %9347
  %9349 = vrot.lane.b32.xlu0 %v9098, 32
  %v9350 = vpop.permute.xlu0 %9349
  %9351 = vrot.lane.b32.xlu0 %v9103, 32
  %v9352 = vpop.permute.xlu0 %9351
  %9353 = vrot.lane.b32.xlu0 %v9106, 32
  %v9354 = vpop.permute.xlu0 %9353
  %9355 = vrot.lane.b32.xlu0 %v9111, 32
  %v9356 = vpop.permute.xlu0 %9355
  %9357 = vrot.lane.b32.xlu0 %v9114, 32
  %v9358 = vpop.permute.xlu0 %9357
  %9371 = vrot.lane.b32.xlu0 %v9195, 48
  %v9372 = vpop.permute.xlu0 %9371
  %9373 = vrot.lane.b32.xlu0 %v9198, 48
  %v9374 = vpop.permute.xlu0 %9373
  %9375 = vrot.lane.b32.xlu0 %v9203, 48
  %v9376 = vpop.permute.xlu0 %9375
  %9377 = vrot.lane.b32.xlu0 %v9206, 48
  %v9378 = vpop.permute.xlu0 %9377
  %9379 = vrot.lane.b32.xlu0 %v9211, 48
  %v9380 = vpop.permute.xlu0 %9379
  %9381 = vrot.lane.b32.xlu0 %v9214, 48
  %v9382 = vpop.permute.xlu0 %9381
  %9395 = vrot.lane.b32.xlu0 %v9295, 64
  %v9396 = vpop.permute.xlu0 %9395
  %9397 = vrot.lane.b32.xlu0 %v9298, 64
  %v9398 = vpop.permute.xlu0 %9397
  %9399 = vrot.lane.b32.xlu0 %v9303, 64
  %v9400 = vpop.permute.xlu0 %9399
  %9401 = vrot.lane.b32.xlu0 %v9306, 64
  %v9402 = vpop.permute.xlu0 %9401
  %9403 = vrot.lane.b32.xlu0 %v9311, 64
  %v9404 = vpop.permute.xlu0 %9403
  %9405 = vrot.lane.b32.xlu0 %v9314, 64
  %v9406 = vpop.permute.xlu0 %9405
  %vm9413 = vcmask 130048
  %v9414 = vsel %vm9413, %v8895, %v9324
  %v9415 = vsel %vm9413, %v8898, %v9326
  %v9416 = vsel %vm9413, %v8903, %v9328
  %v9417 = vsel %vm9413, %v8906, %v9330
  %v9418 = vsel %vm9413, %v8911, %v9332
  %v9419 = vsel %vm9413, %v8914, %v9334
  %v9420 = vsel %vm1453, %v9414, %v9348
  %v9421 = vsel %vm1453, %v9415, %v9350
  %v9422 = vsel %vm1453, %v9416, %v9352
  %v9423 = vsel %vm1453, %v9417, %v9354
  %v9424 = vsel %vm1453, %v9418, %v9356
  %v9425 = vsel %vm1453, %v9419, %v9358
  %vm9426 = vcmask 392192
  %v9427 = vsel %vm9426, %v9420, %v9372
  %v9428 = vsel %vm9426, %v9421, %v9374
  %v9429 = vsel %vm9426, %v9422, %v9376
  %v9430 = vsel %vm9426, %v9423, %v9378
  %v9431 = vsel %vm9426, %v9424, %v9380
  %v9432 = vsel %vm9426, %v9425, %v9382
  %v9433 = vsel %vm4400, %v9427, %v9396
  %v9434 = vsel %vm4400, %v9428, %v9398
  %v9435 = vsel %vm4400, %v9429, %v9400
  %v9436 = vsel %vm4400, %v9430, %v9402
  %v9437 = vsel %vm4400, %v9431, %v9404
  %v9438 = vsel %vm4400, %v9432, %v9406
  %v9439 = vld [vmem:[%s19] sm:$0xf]
  %v9440 = vld [vmem:[%s19 + $0x4] sm:$0xf]
  %v9441 = vld [vmem:[%s19 + $0x8] sm:$0xf]
  %v9442 = vld [vmem:[%s19 + $0xc] sm:$0xf]
  %v9443 = vld [vmem:[%s19 + $0x10] sm:$0xf]
  %v9444 = vld [vmem:[%s19 + $0x14] sm:$0xf]
  %v9445 = vld [vmem:[%s19 + $0x18] sm:$0xf]
  %v9446 = vld [vmem:[%s19 + $0x1c] sm:$0xf]
  %v9447 = vld [vmem:[%s19 + $0x20] sm:$0xf]
  %v9448 = vld [vmem:[%s19 + $0x24] sm:$0xf]
  %v9449 = vpack.c.bf16 %v9434, %v9433
  %v9450 = vpack.c.bf16 %v9436, %v9435
  %v9451 = vpack.c.bf16 %v9438, %v9437
  %v9452 = vld [vmem:[%s20] sm:$0x1]
  %v9454 = vlaneseq
  %v9455 = vshrl.u32 %v9454, 7
  %v9456 = vsub.s32 0, %v9455
  %v9457 = vrot.slane %v9452, %v9456
  %v9469 = vunpack.c.l.b16 %v9439
  %v9470 = vunpack.c.l.b16 %v9440
  %v9471 = vunpack.c.l.b16 %v9441
  %v9472 = vunpack.c.l.b16 %v9442
  %v9473 = vunpack.c.l.b16 %v9443
  %v9474 = vunpack.c.l.b16 %v9444
  %v9475 = vunpack.c.l.b16 %v9445
  %v9476 = vunpack.c.l.b16 %v9446
  %v9477 = vunpack.c.l.b16 %v9447
  %v9478 = vunpack.c.l.b16 %v9448
  %v9479 = vpack.c.b16 %v9470, %v9469
  %v9480 = vpack.c.b16 %v9472, %v9471
  %v9481 = vpack.c.b16 %v9474, %v9473
  %v9482 = vpack.c.b16 %v9476, %v9475
  %v9483 = vpack.c.b16 %v9478, %v9477
  %vm9489 = vcmask 654336
  %v9491 = vsel %vm9489, %v9449, 0
  %v9494 = vsel %vm9489, %v9450, 0
  %v9497 = vsel %vm9489, %v9451, 0
  %9499 = vmatprep.subr.bf16.mxu0 0
  %9500 = vmatpush1.bf16.msra.mxu0 0
  %9501 = vmatprep.subr.bf16.mxu0 0
  %9502 = vmatpush1.bf16.msra.mxu0 0
  %9503 = vmatprep.subr.bf16.mxu0 0
  %9504 = vmatpush1.bf16.msra.mxu0 0
  %9505 = vmatprep.subr.bf16.mxu0 0
  %9506 = vmatpush1.bf16.msra.mxu0 %v9483
  %9507 = vmatprep.subr.bf16.mxu0 0
  %9508 = vmatpush1.bf16.msra.mxu0 %v9482
  %9509 = vmatprep.subr.bf16.mxu0 0
  %9510 = vmatpush1.bf16.msra.mxu0 %v9481
  %9511 = vmatprep.subr.bf16.mxu0 0
  %9512 = vmatpush1.bf16.msra.mxu0 %v9480
  %9513 = vmatprep.subr.bf16.mxu0 0
  %9514 = vmatpush1.bf16.msra.mxu0 %v9479
  %9515 = vmatprep.subr.bf16.mxu0 0
  %9516 = vmatpush2.bf16.msra.mxu0 0
  %9517 = vmatprep.subr.bf16.mxu0 0
  %9518 = vmatpush2.bf16.msra.mxu0 0
  %9519 = vmatprep.subr.bf16.mxu0 0
  %9520 = vmatpush2.bf16.msra.mxu0 0
  %9521 = vmatprep.subr.bf16.mxu0 0
  %9522 = vmatpush2.bf16.msra.mxu0 0
  %9523 = vmatprep.subr.bf16.mxu0 0
  %9524 = vmatpush2.bf16.msra.mxu0 0
  %9525 = vmatprep.subr.bf16.mxu0 0
  %9526 = vmatpush2.bf16.msra.mxu0 0
  %9527 = vmatprep.subr.bf16.mxu0 0
  %9528 = vmatpush2.bf16.msra.mxu0 0
  %9529 = vmatprep.subr.bf16.mxu0 0
  %9530 = vmatpush2.bf16.msra.mxu0 0
  %9531 = vmatprep.mubr.bf16.mxu0 0
  %9532 = vmatmul.mubr.bf16.gmra.mxu0 %v9491
  %v9533 = vpop.f32.mrf.mxu0
  %v9534 = vadd.f32 %v9457, %v9533
  %v9535 = vpop.f32.mrf.mxu0
  %v9536 = vpop.f32.mrf.mxu0
  %v9537 = vadd.f32 %v9457, %v9536
  %v9538 = vpop.f32.mrf.mxu0
  %9539 = vmatprep.mubr.bf16.mxu0 0
  %9540 = vmatmul.mubr.bf16.gmra.mxu0 %v9494
  %v9541 = vpop.f32.mrf.mxu0
  %v9542 = vadd.f32 %v9457, %v9541
  %v9543 = vpop.f32.mrf.mxu0
  %v9544 = vpop.f32.mrf.mxu0
  %v9545 = vadd.f32 %v9457, %v9544
  %v9546 = vpop.f32.mrf.mxu0
  %9547 = vmatprep.mubr.bf16.mxu0 0
  %9548 = vmatmul.mubr.bf16.gmra.mxu0 %v9497
  %v9549 = vpop.f32.mrf.mxu0
  %v9550 = vadd.f32 %v9457, %v9549
  %v9551 = vpop.f32.mrf.mxu0
  %v9552 = vpop.f32.mrf.mxu0
  %v9553 = vadd.f32 %v9457, %v9552
  %v9554 = vpop.f32.mrf.mxu0
  %9555 = vdwg.mxu0
  %v9556 = vmax.f32 %v9534, 0.0
  %v9557 = vmax.f32 %v9537, 0.0
  %v9558 = vmax.f32 %v9542, 0.0
  %v9559 = vmax.f32 %v9545, 0.0
  %v9560 = vmax.f32 %v9550, 0.0
  %v9561 = vmax.f32 %v9553, 0.0
  %v9563 = vrot.slane %v9558, 5
  %vm9565 = vcmask 1040384
  %v9566 = vsel %vm9565, %v9556, %v9563
  %v9568 = vrot.slane %v9556, 1
  %v9570 = vrot.slane %v9558, 6
  %v9572 = vsel %vm9565, %v9568, %v9570
  %v9573 = vrot.slane %v9556, 2
  %v9576 = vrot.slane %v9559, 7
  %v9578 = vsel %vm9565, %v9573, %v9576
  %v9579 = vrot.slane %v9556, 3
  %v9581 = vsel %vm9565, %v9579, %v9559
  %v9582 = vrot.slane %v9556, 4
  %v9584 = vrot.slane %v9559, 1
  %v9586 = vsel %vm9565, %v9582, %v9584
  %v9587 = vrot.slane %v9556, 5
  %v9589 = vrot.slane %v9559, 2
  %v9591 = vsel %vm9565, %v9587, %v9589
  %v9592 = vrot.slane %v9556, 6
  %v9594 = vrot.slane %v9559, 3
  %v9596 = vsel %vm9565, %v9592, %v9594
  %v9597 = vrot.slane %v9556, 7
  %v9599 = vrot.slane %v9559, 4
  %v9601 = vsel %vm9565, %v9597, %v9599
  %v9602 = vrot.slane %v9559, 5
  %v9604 = vsel %vm9565, %v9557, %v9602
  %v9606 = vrot.slane %v9557, 1
  %v9608 = vrot.slane %v9559, 6
  %v9610 = vsel %vm9565, %v9606, %v9608
  %v9611 = vrot.slane %v9557, 2
  %v9614 = vrot.slane %v9560, 7
  %v9616 = vsel %vm9565, %v9611, %v9614
  %v9617 = vrot.slane %v9557, 3
  %v9619 = vsel %vm9565, %v9617, %v9560
  %v9620 = vrot.slane %v9557, 4
  %v9622 = vrot.slane %v9560, 1
  %v9624 = vsel %vm9565, %v9620, %v9622
  %v9625 = vrot.slane %v9557, 5
  %v9627 = vrot.slane %v9560, 2
  %v9629 = vsel %vm9565, %v9625, %v9627
  %v9630 = vrot.slane %v9557, 6
  %v9632 = vrot.slane %v9560, 3
  %v9634 = vsel %vm9565, %v9630, %v9632
  %v9635 = vrot.slane %v9557, 7
  %v9637 = vrot.slane %v9560, 4
  %v9639 = vsel %vm9565, %v9635, %v9637
  %v9640 = vrot.slane %v9560, 5
  %v9642 = vsel %vm9565, %v9558, %v9640
  %v9643 = vrot.slane %v9558, 1
  %v9645 = vrot.slane %v9560, 6
  %v9647 = vsel %vm9565, %v9643, %v9645
  %v9648 = vrot.slane %v9558, 2
  %v9651 = vrot.slane %v9561, 7
  %v9653 = vsel %vm9565, %v9648, %v9651
  %v9654 = vrot.slane %v9558, 3
  %v9656 = vsel %vm9565, %v9654, %v9561
  %v9657 = vrot.slane %v9558, 4
  %v9659 = vrot.slane %v9561, 1
  %v9661 = vsel %vm9565, %v9657, %v9659
  %v9662 = vrot.slane %v9561, 2
  %v9664 = vsel %vm9565, %v9563, %v9662
  %9666 = vrot.lane.b32.xlu0 %v9572, 32
  %v9667 = vpop.permute.xlu0 %9666
  %9670 = vrot.lane.b32.xlu0 %v9578, 64
  %v9671 = vpop.permute.xlu0 %9670
  %9674 = vrot.lane.b32.xlu0 %v9581, 96
  %v9675 = vpop.permute.xlu0 %9674
  %9678 = vrot.lane.b32.xlu0 %v9591, 32
  %v9679 = vpop.permute.xlu0 %9678
  %9682 = vrot.lane.b32.xlu0 %v9596, 64
  %v9683 = vpop.permute.xlu0 %9682
  %9686 = vrot.lane.b32.xlu0 %v9601, 96
  %v9687 = vpop.permute.xlu0 %9686
  %9690 = vrot.lane.b32.xlu0 %v9610, 32
  %v9691 = vpop.permute.xlu0 %9690
  %9694 = vrot.lane.b32.xlu0 %v9616, 64
  %v9695 = vpop.permute.xlu0 %9694
  %9698 = vrot.lane.b32.xlu0 %v9619, 96
  %v9699 = vpop.permute.xlu0 %9698
  %9702 = vrot.lane.b32.xlu0 %v9629, 32
  %v9703 = vpop.permute.xlu0 %9702
  %9706 = vrot.lane.b32.xlu0 %v9634, 64
  %v9707 = vpop.permute.xlu0 %9706
  %9710 = vrot.lane.b32.xlu0 %v9639, 96
  %v9711 = vpop.permute.xlu0 %9710
  %v9713 = vsel %vm1453, %v9566, %v9667
  %v9714 = vsel %vm4400, %v9713, %v9671
  %v9715 = vsel %vm886, %v9714, %v9675
  %v9716 = vsel %vm1453, %v9586, %v9679
  %v9717 = vsel %vm4400, %v9716, %v9683
  %v9718 = vsel %vm886, %v9717, %v9687
  %v9719 = vsel %vm1453, %v9604, %v9691
  %v9720 = vsel %vm4400, %v9719, %v9695
  %v9721 = vsel %vm886, %v9720, %v9699
  %v9722 = vsel %vm1453, %v9624, %v9703
  %v9723 = vsel %vm4400, %v9722, %v9707
  %v9724 = vsel %vm886, %v9723, %v9711
  %9726 = vrot.lane.b32.xlu0 %v9647, 32
  %v9727 = vpop.permute.xlu0 %9726
  %9730 = vrot.lane.b32.xlu0 %v9653, 64
  %v9731 = vpop.permute.xlu0 %9730
  %9734 = vrot.lane.b32.xlu0 %v9656, 96
  %v9735 = vpop.permute.xlu0 %9734
  %9738 = vrot.lane.b32.xlu0 %v9664, 32
  %v9739 = vpop.permute.xlu0 %9738
  %v9741 = vsel %vm1453, %v9642, %v9727
  %v9742 = vsel %vm4400, %v9741, %v9731
  %v9743 = vsel %vm886, %v9742, %v9735
  %v9744 = vsel %vm1453, %v9661, %v9739
  %v9745 = vld [vmem:[%s21] sm:$0xf]
  %v9746 = vld [vmem:[%s21 + $0x4] sm:$0xf]
  %v9747 = vld [vmem:[%s21 + $0x8] sm:$0xf]
  %v9748 = vld [vmem:[%s21 + $0xc] sm:$0xf]
  %v9749 = vld [vmem:[%s21 + $0x10] sm:$0xf]
  %v9750 = vld [vmem:[%s21 + $0x14] sm:$0xf]
  %v9751 = vld [vmem:[%s21 + $0x18] sm:$0xf]
  %v9752 = vld [vmem:[%s21 + $0x1c] sm:$0xf]
  %v9753 = vld [vmem:[%s21 + $0x20] sm:$0xf]
  %v9754 = vld [vmem:[%s21 + $0x24] sm:$0xf]
  %v9755 = vld [vmem:[%s21 + $0x28] sm:$0xf]
  %v9756 = vld [vmem:[%s21 + $0x2c] sm:$0xf]
  %v9757 = vld [vmem:[%s21 + $0x30] sm:$0xf]
  %v9758 = vld [vmem:[%s21 + $0x34] sm:$0xf]
  %v9759 = vld [vmem:[%s21 + $0x38] sm:$0xf]
  %v9760 = vld [vmem:[%s21 + $0x3c] sm:$0xf]
  %v9761 = vld [vmem:[%s21 + $0x40] sm:$0xf]
  %v9762 = vld [vmem:[%s21 + $0x44] sm:$0xf]
  %v9763 = vld [vmem:[%s21 + $0x48] sm:$0xf]
  %v9764 = vld [vmem:[%s21 + $0x4c] sm:$0xf]
  %v9765 = vld [vmem:[%s21 + $0x50] sm:$0xf]
  %v9766 = vld [vmem:[%s21 + $0x54] sm:$0xf]
  %v9767 = vld [vmem:[%s21 + $0x58] sm:$0xf]
  %v9768 = vld [vmem:[%s21 + $0x5c] sm:$0xf]
  %v9769 = vld [vmem:[%s21 + $0x60] sm:$0xf]
  %v9770 = vld [vmem:[%s21 + $0x64] sm:$0xf]
  %v9771 = vld [vmem:[%s21 + $0x68] sm:$0xf]
  %v9772 = vld [vmem:[%s21 + $0x6c] sm:$0xf]
  %v9773 = vld [vmem:[%s21 + $0x70] sm:$0xf]
  %v9774 = vld [vmem:[%s21 + $0x74] sm:$0xf]
  %v9775 = vld [vmem:[%s21 + $0x78] sm:$0xf]
  %v9776 = vld [vmem:[%s21 + $0x7c] sm:$0xf]
  %v9777 = vld [vmem:[%s21 + $0x80] sm:$0xf]
  %v9778 = vld [vmem:[%s21 + $0x84] sm:$0xf]
  %v9779 = vld [vmem:[%s21 + $0x88] sm:$0xf]
  %v9780 = vld [vmem:[%s21 + $0x8c] sm:$0xf]
  %v9781 = vld [vmem:[%s21 + $0x90] sm:$0xf]
  %v9782 = vld [vmem:[%s21 + $0x94] sm:$0xf]
  %v9783 = vld [vmem:[%s21 + $0x98] sm:$0xf]
  %v9784 = vld [vmem:[%s21 + $0x9c] sm:$0xf]
  %v9785 = vld [vmem:[%s21 + $0xa0] sm:$0xf]
  %v9786 = vld [vmem:[%s21 + $0xa4] sm:$0xf]
  %v9787 = vld [vmem:[%s21 + $0xa8] sm:$0xf]
  %v9788 = vld [vmem:[%s21 + $0xac] sm:$0xf]
  %v9789 = vld [vmem:[%s21 + $0xb0] sm:$0xf]
  %v9790 = vld [vmem:[%s21 + $0xb4] sm:$0xf]
  %v9791 = vld [vmem:[%s21 + $0xb8] sm:$0xf]
  %v9792 = vld [vmem:[%s21 + $0xbc] sm:$0xf]
  %v9793 = vld [vmem:[%s21 + $0xc0] sm:$0xf]
  %v9794 = vld [vmem:[%s21 + $0xc4] sm:$0xf]
  %v9795 = vld [vmem:[%s21 + $0xc8] sm:$0xf]
  %v9796 = vld [vmem:[%s21 + $0xcc] sm:$0xf]
  %v9797 = vld [vmem:[%s21 + $0xd0] sm:$0xf]
  %v9798 = vld [vmem:[%s21 + $0xd4] sm:$0xf]
  %v9799 = vld [vmem:[%s21 + $0xd8] sm:$0xf]
  %v9800 = vld [vmem:[%s21 + $0xdc] sm:$0xf]
  %v9801 = vld [vmem:[%s21 + $0xe0] sm:$0xf]
  %v9802 = vld [vmem:[%s21 + $0xe4] sm:$0xf]
  %v9803 = vld [vmem:[%s21 + $0xe8] sm:$0xf]
  %v9804 = vld [vmem:[%s21 + $0xec] sm:$0xf]
  %v9805 = vld [vmem:[%s21 + $0xf0] sm:$0xf]
  %v9806 = vld [vmem:[%s21 + $0xf4] sm:$0xf]
  %v9807 = vld [vmem:[%s21 + $0xf8] sm:$0xf]
  %v9808 = vld [vmem:[%s21 + $0xfc] sm:$0xf]
  %v9809 = vld [vmem:[%s21 + $0x100] sm:$0xf]
  %v9810 = vld [vmem:[%s21 + $0x104] sm:$0xf]
  %v9811 = vld [vmem:[%s21 + $0x108] sm:$0xf]
  %v9812 = vld [vmem:[%s21 + $0x10c] sm:$0xf]
  %v9813 = vld [vmem:[%s21 + $0x110] sm:$0xf]
  %v9814 = vld [vmem:[%s21 + $0x114] sm:$0xf]
  %v9815 = vld [vmem:[%s21 + $0x118] sm:$0xf]
  %v9816 = vld [vmem:[%s21 + $0x11c] sm:$0xf]
  %v9817 = vld [vmem:[%s21 + $0x120] sm:$0xf]
  %v9818 = vld [vmem:[%s21 + $0x124] sm:$0xf]
  %v9819 = vld [vmem:[%s21 + $0x128] sm:$0xf]
  %v9820 = vld [vmem:[%s21 + $0x12c] sm:$0xf]
  %v9821 = vld [vmem:[%s21 + $0x130] sm:$0xf]
  %v9822 = vld [vmem:[%s21 + $0x134] sm:$0xf]
  %v9823 = vld [vmem:[%s21 + $0x138] sm:$0xf]
  %v9824 = vld [vmem:[%s21 + $0x13c] sm:$0xf]
  %v9825 = vld [vmem:[%s21 + $0x140] sm:$0xf]
  %v9826 = vld [vmem:[%s21 + $0x144] sm:$0xf]
  %v9827 = vld [vmem:[%s21 + $0x148] sm:$0xf]
  %v9828 = vld [vmem:[%s21 + $0x14c] sm:$0xf]
  %v9829 = vld [vmem:[%s21 + $0x150] sm:$0xf]
  %v9830 = vld [vmem:[%s21 + $0x154] sm:$0xf]
  %v9831 = vld [vmem:[%s21 + $0x158] sm:$0xf]
  %v9832 = vld [vmem:[%s21 + $0x15c] sm:$0xf]
  %v9833 = vpack.c.bf16 %v9715, %v9715
  %v9834 = vpack.c.bf16 %v9718, %v9718
  %v9835 = vpack.c.bf16 %v9721, %v9721
  %v9836 = vpack.c.bf16 %v9724, %v9724
  %v9837 = vpack.c.bf16 %v9743, %v9743
  %v9838 = vpack.c.bf16 %v9744, %v9744
  %v9839 = vld [vmem:[%s22] sm:$0x1]
  %v9841 = vlaneseq
  %v9842 = vshrl.u32 %v9841, 7
  %v9843 = vsub.s32 0, %v9842
  %v9844 = vrot.slane %v9839, %v9843
  %v9934 = vunpack.c.l.b16 %v9745
  %v9935 = vunpack.c.l.b16 %v9746
  %v9936 = vunpack.c.l.b16 %v9747
  %v9937 = vunpack.c.l.b16 %v9748
  %v9938 = vunpack.c.l.b16 %v9749
  %v9939 = vunpack.c.l.b16 %v9750
  %v9940 = vunpack.c.l.b16 %v9751
  %v9941 = vunpack.c.l.b16 %v9752
  %v9942 = vunpack.c.l.b16 %v9753
  %v9943 = vunpack.c.l.b16 %v9754
  %v9944 = vunpack.c.l.b16 %v9755
  %v9945 = vunpack.c.l.b16 %v9756
  %v9946 = vunpack.c.l.b16 %v9757
  %v9947 = vunpack.c.l.b16 %v9758
  %v9948 = vunpack.c.l.b16 %v9759
  %v9949 = vunpack.c.l.b16 %v9760
  %v9950 = vunpack.c.l.b16 %v9761
  %v9951 = vunpack.c.l.b16 %v9762
  %v9952 = vunpack.c.l.b16 %v9763
  %v9953 = vunpack.c.l.b16 %v9764
  %v9954 = vunpack.c.l.b16 %v9765
  %v9955 = vunpack.c.l.b16 %v9766
  %v9956 = vunpack.c.l.b16 %v9767
  %v9957 = vunpack.c.l.b16 %v9768
  %v9958 = vunpack.c.l.b16 %v9769
  %v9959 = vunpack.c.l.b16 %v9770
  %v9960 = vunpack.c.l.b16 %v9771
  %v9961 = vunpack.c.l.b16 %v9772
  %v9962 = vunpack.c.l.b16 %v9773
  %v9963 = vunpack.c.l.b16 %v9774
  %v9964 = vunpack.c.l.b16 %v9775
  %v9965 = vunpack.c.l.b16 %v9776
  %v9966 = vunpack.c.l.b16 %v9777
  %v9967 = vunpack.c.l.b16 %v9778
  %v9968 = vunpack.c.l.b16 %v9779
  %v9969 = vunpack.c.l.b16 %v9780
  %v9970 = vunpack.c.l.b16 %v9781
  %v9971 = vunpack.c.l.b16 %v9782
  %v9972 = vunpack.c.l.b16 %v9783
  %v9973 = vunpack.c.l.b16 %v9784
  %v9974 = vunpack.c.l.b16 %v9785
  %v9975 = vunpack.c.l.b16 %v9786
  %v9976 = vunpack.c.l.b16 %v9787
  %v9977 = vunpack.c.l.b16 %v9788
  %v9978 = vunpack.c.l.b16 %v9789
  %v9979 = vunpack.c.l.b16 %v9790
  %v9980 = vunpack.c.l.b16 %v9791
  %v9981 = vunpack.c.l.b16 %v9792
  %v9982 = vunpack.c.l.b16 %v9793
  %v9983 = vunpack.c.l.b16 %v9794
  %v9984 = vunpack.c.l.b16 %v9795
  %v9985 = vunpack.c.l.b16 %v9796
  %v9986 = vunpack.c.l.b16 %v9797
  %v9987 = vunpack.c.l.b16 %v9798
  %v9988 = vunpack.c.l.b16 %v9799
  %v9989 = vunpack.c.l.b16 %v9800
  %v9990 = vunpack.c.l.b16 %v9801
  %v9991 = vunpack.c.l.b16 %v9802
  %v9992 = vunpack.c.l.b16 %v9803
  %v9993 = vunpack.c.l.b16 %v9804
  %v9994 = vunpack.c.l.b16 %v9805
  %v9995 = vunpack.c.l.b16 %v9806
  %v9996 = vunpack.c.l.b16 %v9807
  %v9997 = vunpack.c.l.b16 %v9808
  %v9998 = vunpack.c.l.b16 %v9809
  %v9999 = vunpack.c.l.b16 %v9810
  %v10000 = vunpack.c.l.b16 %v9811
  %v10001 = vunpack.c.l.b16 %v9812
  %v10002 = vunpack.c.l.b16 %v9813
  %v10003 = vunpack.c.l.b16 %v9814
  %v10004 = vunpack.c.l.b16 %v9815
  %v10005 = vunpack.c.l.b16 %v9816
  %v10006 = vunpack.c.l.b16 %v9817
  %v10007 = vunpack.c.l.b16 %v9818
  %v10008 = vunpack.c.l.b16 %v9819
  %v10009 = vunpack.c.l.b16 %v9820
  %v10010 = vunpack.c.l.b16 %v9821
  %v10011 = vunpack.c.l.b16 %v9822
  %v10012 = vunpack.c.l.b16 %v9823
  %v10013 = vunpack.c.l.b16 %v9824
  %v10014 = vunpack.c.l.b16 %v9825
  %v10015 = vunpack.c.l.b16 %v9826
  %v10016 = vunpack.c.l.b16 %v9827
  %v10017 = vunpack.c.l.b16 %v9828
  %v10018 = vunpack.c.l.b16 %v9829
  %v10019 = vunpack.c.l.b16 %v9830
  %v10020 = vunpack.c.l.b16 %v9831
  %v10021 = vunpack.c.l.b16 %v9832
  %v10022 = vpack.c.b16 %v9935, %v9934
  %v10023 = vpack.c.b16 %v9937, %v9936
  %v10024 = vpack.c.b16 %v9939, %v9938
  %v10025 = vpack.c.b16 %v9941, %v9940
  %v10026 = vpack.c.b16 %v9943, %v9942
  %v10027 = vpack.c.b16 %v9945, %v9944
  %v10028 = vpack.c.b16 %v9947, %v9946
  %v10029 = vpack.c.b16 %v9949, %v9948
  %v10030 = vpack.c.b16 %v9951, %v9950
  %v10031 = vpack.c.b16 %v9953, %v9952
  %v10032 = vpack.c.b16 %v9955, %v9954
  %v10033 = vpack.c.b16 %v9957, %v9956
  %v10034 = vpack.c.b16 %v9959, %v9958
  %v10035 = vpack.c.b16 %v9961, %v9960
  %v10036 = vpack.c.b16 %v9963, %v9962
  %v10037 = vpack.c.b16 %v9965, %v9964
  %v10038 = vpack.c.b16 %v9967, %v9966
  %v10039 = vpack.c.b16 %v9969, %v9968
  %v10040 = vpack.c.b16 %v9971, %v9970
  %v10041 = vpack.c.b16 %v9973, %v9972
  %v10042 = vpack.c.b16 %v9975, %v9974
  %v10043 = vpack.c.b16 %v9977, %v9976
  %v10044 = vpack.c.b16 %v9979, %v9978
  %v10045 = vpack.c.b16 %v9981, %v9980
  %v10046 = vpack.c.b16 %v9983, %v9982
  %v10047 = vpack.c.b16 %v9985, %v9984
  %v10048 = vpack.c.b16 %v9987, %v9986
  %v10049 = vpack.c.b16 %v9989, %v9988
  %v10050 = vpack.c.b16 %v9991, %v9990
  %v10051 = vpack.c.b16 %v9993, %v9992
  %v10052 = vpack.c.b16 %v9995, %v9994
  %v10053 = vpack.c.b16 %v9997, %v9996
  %v10054 = vpack.c.b16 %v9999, %v9998
  %v10055 = vpack.c.b16 %v10001, %v10000
  %v10056 = vpack.c.b16 %v10003, %v10002
  %v10057 = vpack.c.b16 %v10005, %v10004
  %v10058 = vpack.c.b16 %v10007, %v10006
  %v10059 = vpack.c.b16 %v10009, %v10008
  %v10060 = vpack.c.b16 %v10011, %v10010
  %v10061 = vpack.c.b16 %v10013, %v10012
  %v10062 = vpack.c.b16 %v10015, %v10014
  %v10063 = vpack.c.b16 %v10017, %v10016
  %v10064 = vpack.c.b16 %v10019, %v10018
  %v10065 = vpack.c.b16 %v10021, %v10020
  %v10111 = vsel %vm4400, %v9838, 0
  %10113 = vmatprep.subr.bf16.mxu0 0
  %10114 = vmatpush1.bf16.msra.mxu0 %v10029
  %10115 = vmatprep.subr.bf16.mxu0 0
  %10116 = vmatpush1.bf16.msra.mxu0 %v10028
  %10117 = vmatprep.subr.bf16.mxu0 0
  %10118 = vmatpush1.bf16.msra.mxu0 %v10027
  %10119 = vmatprep.subr.bf16.mxu0 0
  %10120 = vmatpush1.bf16.msra.mxu0 %v10026
  %10121 = vmatprep.subr.bf16.mxu0 0
  %10122 = vmatpush1.bf16.msra.mxu0 %v10025
  %10123 = vmatprep.subr.bf16.mxu0 0
  %10124 = vmatpush1.bf16.msra.mxu0 %v10024
  %10125 = vmatprep.subr.bf16.mxu0 0
  %10126 = vmatpush1.bf16.msra.mxu0 %v10023
  %10127 = vmatprep.subr.bf16.mxu0 0
  %10128 = vmatpush1.bf16.msra.mxu0 %v10022
  %10129 = vmatprep.subr.bf16.mxu0 0
  %10130 = vmatpush2.bf16.msra.mxu0 %v10037
  %10131 = vmatprep.subr.bf16.mxu0 0
  %10132 = vmatpush2.bf16.msra.mxu0 %v10036
  %10133 = vmatprep.subr.bf16.mxu0 0
  %10134 = vmatpush2.bf16.msra.mxu0 %v10035
  %10135 = vmatprep.subr.bf16.mxu0 0
  %10136 = vmatpush2.bf16.msra.mxu0 %v10034
  %10137 = vmatprep.subr.bf16.mxu0 0
  %10138 = vmatpush2.bf16.msra.mxu0 %v10033
  %10139 = vmatprep.subr.bf16.mxu0 0
  %10140 = vmatpush2.bf16.msra.mxu0 %v10032
  %10141 = vmatprep.subr.bf16.mxu0 0
  %10142 = vmatpush2.bf16.msra.mxu0 %v10031
  %10143 = vmatprep.subr.bf16.mxu0 0
  %10144 = vmatpush2.bf16.msra.mxu0 %v10030
  %10145 = vmatprep.mubr.bf16.mxu0 %v9834
  %10146 = vmatmul.mubr.bf16.gmra.mxu0 %v9833
  %v10147 = vpop.f32.mrf.mxu0
  %v10148 = vadd.f32 %v9844, %v10147
  %v10149 = vpop.f32.mrf.mxu0
  %v10150 = vpop.f32.mrf.mxu0
  %v10151 = vpop.f32.mrf.mxu0
  %10152 = vdwg.mxu0
  %10153 = vmatprep.subr.bf16.mxu0 0
  %10154 = vmatpush1.bf16.msra.mxu0 %v10045
  %10155 = vmatprep.subr.bf16.mxu0 0
  %10156 = vmatpush1.bf16.msra.mxu0 %v10044
  %10157 = vmatprep.subr.bf16.mxu0 0
  %10158 = vmatpush1.bf16.msra.mxu0 %v10043
  %10159 = vmatprep.subr.bf16.mxu0 0
  %10160 = vmatpush1.bf16.msra.mxu0 %v10042
  %10161 = vmatprep.subr.bf16.mxu0 0
  %10162 = vmatpush1.bf16.msra.mxu0 %v10041
  %10163 = vmatprep.subr.bf16.mxu0 0
  %10164 = vmatpush1.bf16.msra.mxu0 %v10040
  %10165 = vmatprep.subr.bf16.mxu0 0
  %10166 = vmatpush1.bf16.msra.mxu0 %v10039
  %10167 = vmatprep.subr.bf16.mxu0 0
  %10168 = vmatpush1.bf16.msra.mxu0 %v10038
  %10169 = vmatprep.subr.bf16.mxu0 0
  %10170 = vmatpush2.bf16.msra.mxu0 %v10053
  %10171 = vmatprep.subr.bf16.mxu0 0
  %10172 = vmatpush2.bf16.msra.mxu0 %v10052
  %10173 = vmatprep.subr.bf16.mxu0 0
  %10174 = vmatpush2.bf16.msra.mxu0 %v10051
  %10175 = vmatprep.subr.bf16.mxu0 0
  %10176 = vmatpush2.bf16.msra.mxu0 %v10050
  %10177 = vmatprep.subr.bf16.mxu0 0
  %10178 = vmatpush2.bf16.msra.mxu0 %v10049
  %10179 = vmatprep.subr.bf16.mxu0 0
  %10180 = vmatpush2.bf16.msra.mxu0 %v10048
  %10181 = vmatprep.subr.bf16.mxu0 0
  %10182 = vmatpush2.bf16.msra.mxu0 %v10047
  %10183 = vmatprep.subr.bf16.mxu0 0
  %10184 = vmatpush2.bf16.msra.mxu0 %v10046
  %10185 = vmatprep.mubr.bf16.mxu0 %v9836
  %10186 = vmatmul.mubr.bf16.gmra.mxu0 %v9835
  %v10187 = vpop.f32.mrf.mxu0
  %v10188 = vadd.f32 %v10148, %v10187
  %v10189 = vpop.f32.mrf.mxu0
  %v10190 = vpop.f32.mrf.mxu0
  %v10191 = vpop.f32.mrf.mxu0
  %10192 = vdwg.mxu0
  %10193 = vmatprep.subr.bf16.mxu0 0
  %10194 = vmatpush1.bf16.msra.mxu0 %v10061
  %10195 = vmatprep.subr.bf16.mxu0 0
  %10196 = vmatpush1.bf16.msra.mxu0 %v10060
  %10197 = vmatprep.subr.bf16.mxu0 0
  %10198 = vmatpush1.bf16.msra.mxu0 %v10059
  %10199 = vmatprep.subr.bf16.mxu0 0
  %10200 = vmatpush1.bf16.msra.mxu0 %v10058
  %10201 = vmatprep.subr.bf16.mxu0 0
  %10202 = vmatpush1.bf16.msra.mxu0 %v10057
  %10203 = vmatprep.subr.bf16.mxu0 0
  %10204 = vmatpush1.bf16.msra.mxu0 %v10056
  %10205 = vmatprep.subr.bf16.mxu0 0
  %10206 = vmatpush1.bf16.msra.mxu0 %v10055
  %10207 = vmatprep.subr.bf16.mxu0 0
  %10208 = vmatpush1.bf16.msra.mxu0 %v10054
  %10209 = vmatprep.subr.bf16.mxu0 0
  %10210 = vmatpush2.bf16.msra.mxu0 0
  %10211 = vmatprep.subr.bf16.mxu0 0
  %10212 = vmatpush2.bf16.msra.mxu0 0
  %10213 = vmatprep.subr.bf16.mxu0 0
  %10214 = vmatpush2.bf16.msra.mxu0 0
  %10215 = vmatprep.subr.bf16.mxu0 0
  %10216 = vmatpush2.bf16.msra.mxu0 0
  %10217 = vmatprep.subr.bf16.mxu0 0
  %10218 = vmatpush2.bf16.msra.mxu0 %v10065
  %10219 = vmatprep.subr.bf16.mxu0 0
  %10220 = vmatpush2.bf16.msra.mxu0 %v10064
  %10221 = vmatprep.subr.bf16.mxu0 0
  %10222 = vmatpush2.bf16.msra.mxu0 %v10063
  %10223 = vmatprep.subr.bf16.mxu0 0
  %10224 = vmatpush2.bf16.msra.mxu0 %v10062
  %10225 = vmatprep.mubr.bf16.mxu0 %v10111
  %10226 = vmatmul.mubr.bf16.gmra.mxu0 %v9837
  %v10227 = vpop.f32.mrf.mxu0
  %v10228 = vadd.f32 %v10188, %v10227
  %v10229 = vpop.f32.mrf.mxu0
  %v10230 = vpop.f32.mrf.mxu0
  %v10231 = vpop.f32.mrf.mxu0
  %10232 = vdwg.mxu0
  %v10233 = vmax.f32 %v10228, 0.0
  %v10234 = vld [vmem:[%s23] sm:$0xf]
  %v10235 = vld [vmem:[%s23 + $0x4] sm:$0xf]
  %v10236 = vld [vmem:[%s23 + $0x8] sm:$0xf]
  %v10237 = vld [vmem:[%s23 + $0xc] sm:$0xf]
  %v10238 = vpack.c.bf16 %v10233, %v10233
  %v10239 = vld [vmem:[%s24] sm:$0x1]
  %v10241 = vlaneseq
  %v10242 = vshrl.u32 %v10241, 7
  %v10243 = vsub.s32 0, %v10242
  %v10244 = vrot.slane %v10239, %v10243
  %v10250 = vunpack.c.l.b16 %v10234
  %v10251 = vunpack.c.l.b16 %v10235
  %v10252 = vunpack.c.l.b16 %v10236
  %v10253 = vunpack.c.l.b16 %v10237
  %v10254 = vpack.c.b16 %v10251, %v10250
  %v10255 = vpack.c.b16 %v10253, %v10252
  %v10259 = vsel %vm1453, %v10238, 0
  %10261 = vmatprep.subr.bf16.mxu0 0
  %10262 = vmatpush1.bf16.msra.mxu0 0
  %10263 = vmatprep.subr.bf16.mxu0 0
  %10264 = vmatpush1.bf16.msra.mxu0 0
  %10265 = vmatprep.subr.bf16.mxu0 0
  %10266 = vmatpush1.bf16.msra.mxu0 0
  %10267 = vmatprep.subr.bf16.mxu0 0
  %10268 = vmatpush1.bf16.msra.mxu0 0
  %10269 = vmatprep.subr.bf16.mxu0 0
  %10270 = vmatpush1.bf16.msra.mxu0 0
  %10271 = vmatprep.subr.bf16.mxu0 0
  %10272 = vmatpush1.bf16.msra.mxu0 0
  %10273 = vmatprep.subr.bf16.mxu0 0
  %10274 = vmatpush1.bf16.msra.mxu0 %v10255
  %10275 = vmatprep.subr.bf16.mxu0 0
  %10276 = vmatpush1.bf16.msra.mxu0 %v10254
  %10277 = vmatprep.subr.bf16.mxu0 0
  %10278 = vmatpush2.bf16.msra.mxu0 0
  %10279 = vmatprep.subr.bf16.mxu0 0
  %10280 = vmatpush2.bf16.msra.mxu0 0
  %10281 = vmatprep.subr.bf16.mxu0 0
  %10282 = vmatpush2.bf16.msra.mxu0 0
  %10283 = vmatprep.subr.bf16.mxu0 0
  %10284 = vmatpush2.bf16.msra.mxu0 0
  %10285 = vmatprep.subr.bf16.mxu0 0
  %10286 = vmatpush2.bf16.msra.mxu0 0
  %10287 = vmatprep.subr.bf16.mxu0 0
  %10288 = vmatpush2.bf16.msra.mxu0 0
  %10289 = vmatprep.subr.bf16.mxu0 0
  %10290 = vmatpush2.bf16.msra.mxu0 0
  %10291 = vmatprep.subr.bf16.mxu0 0
  %10292 = vmatpush2.bf16.msra.mxu0 0
  %10293 = vmatprep.mubr.bf16.mxu0 0
  %10294 = vmatmul.mubr.bf16.gmra.mxu0 %v10259
  %v10295 = vpop.f32.mrf.mxu0
  %v10296 = vadd.f32 %v10244, %v10295
  %v10297 = vpop.f32.mrf.mxu0
  %v10298 = vpop.f32.mrf.mxu0
  %v10299 = vpop.f32.mrf.mxu0
  %10300 = vdwg.mxu0
  %10301 = vst [vmem:[%s25] sm:$0x3] %v10296
  // Predicated region
  $region102: #{gast_lc_forward.1} parent=0 // pred_check
    _
  $region103: #{gast_lc_forward.1} parent=0 // pred_check_branch
    %10303 = sbr.rel (0) target = $region105
  $region104: #{gast_lc_forward.1} parent=0 // pred_region
    _
  $region105: #{gast_lc_forward.1} parent=0 // pred_fallthru
    _
  // Predicated region
  $region106: #{gast_lc_forward.1} parent=0 // pred_check
    _
  $region107: #{gast_lc_forward.1} parent=0 // pred_check_branch
    %10305 = sbr.rel (0) target = $region109
  $region108: #{gast_lc_forward.1} parent=0 // pred_region
    _
  $region109: #{gast_lc_forward.1} parent=0 // pred_fallthru
    _

</llo_original>
